<compile_context>
chip_gen: v7x
topology: tpu7x:2x2x1
jax: 0.10.0
libtpu: 0.0.40
codegen_flags: <defaults>
</compile_context>

<pallas_src>
import functools

import jax
import jax.numpy as jnp
from jax.experimental import pallas as pl
from jax.experimental.pallas import tpu as pltpu

EPS = 1e-5
LANES = 128
# Pass-2 M tile: 1024 rows x 128 lanes x 4 B = 512 KiB per buffer; with double-buffered
# in+out that is ~2 MiB -- far under the 32 MiB scoped-VMEM default on all generations
# (including v7x, which only has 64 MiB physical VMEM).
TILE_M_MAX = 1024


def _conv_stats_kernel(x_ref, w_ref, y_ref, stats_ref, *, C, KH, KW, Ho, Wo, F_pad):
    """Pass 1: conv (tap-wise MXU matmuls) + global BN sufficient statistics.

    x_ref:     (1, H, W, C)       f32   one NHWC image, streamed per grid step
    w_ref:     (KH*KW*C, F_pad)   bf16  resident across the grid (constant index_map)
    y_ref:     (1, Ho*Wo, F_pad)  f32   conv output for this image (lane-dense)
    stats_ref: (2, F_pad)         f32   [sum; sum_of_squares] accumulator (grid-resident)
    """
    @pl.when(pl.program_id(0) == 0)
    def _init():
        stats_ref[...] = jnp.zeros_like(stats_ref)

    # Hoist the 9 per-tap weight slices (C, F_pad) out of the row loop.
    w_taps = [w_ref[t * C:(t + 1) * C, :] for t in range(KH * KW)]

    s_sum = jnp.zeros((1, F_pad), jnp.float32)
    s_sq = jnp.zeros((1, F_pad), jnp.float32)

    # In-kernel im2col: the 3x3 taps are static slices of the VMEM-resident image,
    # so the 9x patch expansion never touches HBM.  bf16 feeds the MXU; accumulate f32.
    for ho in range(Ho):
        acc = jnp.zeros((Wo, F_pad), jnp.float32)
        for di in range(KH):
            for dj in range(KW):
                tap = di * KW + dj
                xs = x_ref[0, ho + di, dj:dj + Wo, :].astype(jnp.bfloat16)  # (Wo, C)
                acc = acc + jnp.dot(xs, w_taps[tap],
                                    preferred_element_type=jnp.float32)
        y_ref[0, ho * Wo:(ho + 1) * Wo, :] = acc
        # One sweep: sum and sum-of-squares together (no (y-mean)^2 temporary).
        s_sum = s_sum + jnp.sum(acc, axis=0, keepdims=True)
        s_sq = s_sq + jnp.sum(acc * acc, axis=0, keepdims=True)

    stats_ref[...] = stats_ref[...] + jnp.concatenate([s_sum, s_sq], axis=0)


def _bn_relu_kernel(y_ref, s_ref, t_ref, o_ref):
    """Pass 2: folded BatchNorm affine + ReLU -- one FMA pass, lane-dense output."""
    o_ref[...] = jnp.maximum(y_ref[...] * s_ref[...] + t_ref[...], 0.0)


@jax.jit
def conv_block_forward(x, weight, bias, gamma, beta):
    """x: (N, C, H, W) f32; weight: (F, C, KH, KW); bias/gamma/beta: (F,).

    Matches PyTorch ConvBlock.forward with BatchNorm2d in training mode (batch
    statistics, biased variance).  `bias` is accepted but unused: it cancels
    exactly inside training-mode BN, so the kernel skips the (M, F) bias pass.
    """
    del bias
    N, C, H, W = x.shape
    F, _, KH, KW = weight.shape
    Ho, Wo = H - KH + 1, W - KW + 1
    M = N * Ho * Wo
    K = KH * KW * C
    F_pad = ((F + LANES - 1) // LANES) * LANES

    # NHWC so channels sit on lanes inside the kernel (free in an NHWC-native model).
    x_nhwc = jnp.transpose(x, (0, 2, 3, 1))

    # (F, C, KH, KW) -> (KH, KW, C, F) -> (K, F_pad): row index = (di*KW + dj)*C + c,
    # matching the in-kernel tap order.  bf16 for the MXU, zero-padded dead lanes.
    w2 = jnp.transpose(weight, (2, 3, 1, 0)).reshape(K, F)
    w2 = jnp.pad(w2, ((0, 0), (0, F_pad - F))).astype(jnp.bfloat16)

    # ---------------- Pass 1: conv + global sum / sum-of-squares ----------------
    y, stats = pl.pallas_call(
        functools.partial(_conv_stats_kernel,
                          C=C, KH=KH, KW=KW, Ho=Ho, Wo=Wo, F_pad=F_pad),
        grid=(N,),
        in_specs=[
            pl.BlockSpec((1, H, W, C), lambda n: (n, 0, 0, 0)),
            pl.BlockSpec((K, F_pad), lambda n: (0, 0)),          # weight stays resident
        ],
        out_specs=[
            pl.BlockSpec((1, Ho * Wo, F_pad), lambda n: (n, 0, 0)),
            pl.BlockSpec((2, F_pad), lambda n: (0, 0)),          # stats accumulator
        ],
        out_shape=[
            jax.ShapeDtypeStruct((N, Ho * Wo, F_pad), jnp.float32),
            jax.ShapeDtypeStruct((2, F_pad), jnp.float32),
        ],
        compiler_params=pltpu.CompilerParams(
            dimension_semantics=("arbitrary",)),      # accumulator => sequential axis
        cost_estimate=pl.CostEstimate(
            flops=2 * M * K * F_pad,
            transcendentals=0,
            bytes_accessed=(x_nhwc.size * 4 + w2.size * 2
                            + M * F_pad * 4 + 2 * F_pad * 4)),
    )(x_nhwc, w2)

    # ---- Fold BN (and the cancelled conv bias) into one scale/shift per channel ----
    gamma_p = jnp.pad(gamma, (0, F_pad - F))
    beta_p = jnp.pad(beta, (0, F_pad - F))
    mean = stats[0] / M
    var = jnp.maximum(stats[1] / M - mean * mean, 0.0)    # biased variance (BN training)
    s = gamma_p * jax.lax.rsqrt(var + EPS)
    t = beta_p - mean * s
    s = s.reshape(1, F_pad)
    t = t.reshape(1, F_pad)

    # ---------------- Pass 2: tiled, parallel y*s + t -> ReLU ----------------
    y_flat = y.reshape(M, F_pad)                          # leading-dim merge: free
    tile_m = M if M <= TILE_M_MAX else TILE_M_MAX
    out_flat = pl.pallas_call(
        _bn_relu_kernel,
        grid=(pl.cdiv(M, tile_m),),
        in_specs=[
            pl.BlockSpec((tile_m, F_pad), lambda i: (i, 0)),
            pl.BlockSpec((1, F_pad), lambda i: (0, 0)),
            pl.BlockSpec((1, F_pad), lambda i: (0, 0)),
        ],
        out_specs=pl.BlockSpec((tile_m, F_pad), lambda i: (i, 0)),
        out_shape=jax.ShapeDtypeStruct((M, F_pad), jnp.float32),
        compiler_params=pltpu.CompilerParams(
            dimension_semantics=("parallel",)),       # elementwise => use both v7x TCs
        cost_estimate=pl.CostEstimate(
            flops=3 * M * F_pad, transcendentals=0,
            bytes_accessed=2 * M * F_pad * 4 + 2 * F_pad * 4),
    )(y_flat, s, t)

    # TODO(synk): keep the model NHWC end-to-end (or fold this repack into the tiled
    # writeback) to avoid a standalone NCHW transpose of the activation.
    out = out_flat[:, :F].reshape(N, Ho, Wo, F)
    return jnp.transpose(out, (0, 3, 1, 2))


def reference_forward(x, weight, bias, gamma, beta):
    # Precision-matched reference: same bf16 conv inputs / f32 accumulation as the
    # kernel, otherwise exact PyTorch ConvBlock math (training-mode BN, biased
    # variance, conv bias included -- it cancels inside BN).
    y = jax.lax.conv_general_dilated(
        x.astype(jnp.bfloat16), weight.astype(jnp.bfloat16),
        window_strides=(1, 1), padding="VALID",
        dimension_numbers=("NCHW", "OIHW", "NCHW"),
        preferred_element_type=jnp.float32)
    y = y + bias[None, :, None, None]
    mean = y.mean(axis=(0, 2, 3), keepdims=True)
    var = ((y - mean) ** 2).mean(axis=(0, 2, 3), keepdims=True)
    y = (y - mean) / jnp.sqrt(var + EPS)
    y = y * gamma[None, :, None, None] + beta[None, :, None, None]
    return jnp.maximum(y, 0.0)


if __name__ == "__main__":
    # ConvBlock(in_dim=4, filters=8, kernel_size=3, pad=0) at small shapes.
    N, C, H, W = 2, 4, 16, 16
    FILTERS, KSIZE = 8, 3

    key = jax.random.PRNGKey(0)
    kx, kw, kb = jax.random.split(key, 3)

    x = jax.random.normal(kx, (N, C, H, W), dtype=jnp.float32)

    # PyTorch-style init: Conv2d weight/bias ~ U(-1/sqrt(fan_in), +1/sqrt(fan_in)).
    fan_in = C * KSIZE * KSIZE
    bound = 1.0 / (fan_in ** 0.5)
    weight = jax.random.uniform(kw, (FILTERS, C, KSIZE, KSIZE),
                                minval=-bound, maxval=bound, dtype=jnp.float32)
    bias = jax.random.uniform(kb, (FILTERS,), minval=-bound, maxval=bound,
                              dtype=jnp.float32)
    # BatchNorm2d defaults: gamma=1, beta=0.
    gamma = jnp.ones((FILTERS,), dtype=jnp.float32)
    beta = jnp.zeros((FILTERS,), dtype=jnp.float32)

    out = conv_block_forward(x, weight, bias, gamma, beta)
    out = jax.block_until_ready(out)

    ref = reference_forward(x, weight, bias, gamma, beta)
    assert out.shape == (N, FILTERS, H - KSIZE + 1, W - KSIZE + 1)
    # Kernel and reference both use bf16 MXU inputs with f32 accumulation;
    # remaining differences are summation-order level (<< 2e-3).
    assert jnp.allclose(out, ref, atol=2e-3, rtol=2e-3), "mismatch vs reference"

    print("KERNEL_OK")
</pallas_src>

<mosaic_0001>
module attributes {stable_mosaic.version = 11 : i64} {
  func.func @_bn_relu_kernel(%arg0: i32, %arg1: memref<392x128xf32, #tpu.memory_space<vmem>>, %arg2: memref<1x128xf32, #tpu.memory_space<vmem>>, %arg3: memref<1x128xf32, #tpu.memory_space<vmem>>, %arg4: memref<392x128xf32, #tpu.memory_space<vmem>>) attributes {dimension_semantics = [#tpu.dimension_semantics<parallel>], iteration_bounds = array<i64: 1>, scalar_prefetch = 0 : i64, scratch_operands = 0 : i64, tpu.core_type = #tpu.core_type<tc>, window_params = [{transform_indices = @transform_0, window_bounds = array<i64: 392, 128>}, {pipeline_mode = #tpu.pipeline_mode<synchronous>, transform_indices = @transform_1, window_bounds = array<i64: 1, 128>}, {pipeline_mode = #tpu.pipeline_mode<synchronous>, transform_indices = @transform_2, window_bounds = array<i64: 1, 128>}, {transform_indices = @transform_3, window_bounds = array<i64: 392, 128>}]} {
    %c0 = arith.constant 0 : index
    %c0_0 = arith.constant 0 : index
    %0 = vector.load %arg1[%c0, %c0_0] : memref<392x128xf32, #tpu.memory_space<vmem>>, vector<392x128xf32>
    %c0_1 = arith.constant 0 : index
    %c0_2 = arith.constant 0 : index
    %1 = vector.load %arg2[%c0_1, %c0_2] : memref<1x128xf32, #tpu.memory_space<vmem>>, vector<1x128xf32>
    %2 = vector.broadcast %1 : vector<1x128xf32> to vector<392x128xf32>
    %3 = arith.mulf %0, %2 : vector<392x128xf32>
    %c0_3 = arith.constant 0 : index
    %c0_4 = arith.constant 0 : index
    %4 = vector.load %arg3[%c0_3, %c0_4] : memref<1x128xf32, #tpu.memory_space<vmem>>, vector<1x128xf32>
    %5 = vector.broadcast %4 : vector<1x128xf32> to vector<392x128xf32>
    %6 = arith.addf %3, %5 : vector<392x128xf32>
    %cst = arith.constant 0.000000e+00 : f32
    %7 = vector.broadcast %cst : f32 to vector<392x128xf32>
    %8 = arith.maximumf %6, %7 : vector<392x128xf32>
    %c0_5 = arith.constant 0 : index
    %c0_6 = arith.constant 0 : index
    %9 = vector.load %arg4[%c0_5, %c0_6] : memref<392x128xf32, #tpu.memory_space<vmem>>, vector<392x128xf32>
    tpu.vector_store %arg4[%c0_5, %c0_6], %8 {strides = array<i32>} : memref<392x128xf32, #tpu.memory_space<vmem>>, vector<392x128xf32>,
    return
  }
  func.func @transform_0(%arg0: i32) -> (i32, i32) {
    %c0_i32 = arith.constant 0 : i32
    %c0_i32_0 = arith.constant 0 : i32
    return %arg0, %c0_i32 : i32, i32
  }
  func.func @transform_1(%arg0: i32) -> (i32, i32) {
    %c0_i32 = arith.constant 0 : i32
    %c0_i32_0 = arith.constant 0 : i32
    %c0_i32_1 = arith.constant 0 : i32
    return %c0_i32, %c0_i32_0 : i32, i32
  }
  func.func @transform_2(%arg0: i32) -> (i32, i32) {
    %c0_i32 = arith.constant 0 : i32
    %c0_i32_0 = arith.constant 0 : i32
    %c0_i32_1 = arith.constant 0 : i32
    return %c0_i32, %c0_i32_0 : i32, i32
  }
  func.func @transform_3(%arg0: i32) -> (i32, i32) {
    %c0_i32 = arith.constant 0 : i32
    %c0_i32_0 = arith.constant 0 : i32
    return %arg0, %c0_i32 : i32, i32
  }
}

module attributes {stable_mosaic.version = 11 : i64} {
  func.func @_conv_stats_kernel(%arg0: i32, %arg1: memref<1x16x16x4xf32, #tpu.memory_space<vmem>>, %arg2: memref<36x128xbf16, #tpu.memory_space<vmem>>, %arg3: memref<1x196x128xf32, #tpu.memory_space<vmem>>, %arg4: memref<2x128xf32, #tpu.memory_space<vmem>>) attributes {dimension_semantics = [#tpu.dimension_semantics<arbitrary>], iteration_bounds = array<i64: 2>, scalar_prefetch = 0 : i64, scratch_operands = 0 : i64, tpu.core_type = #tpu.core_type<tc>, window_params = [{transform_indices = @transform_0, window_bounds = array<i64: 1, 16, 16, 4>}, {pipeline_mode = #tpu.pipeline_mode<synchronous>, transform_indices = @transform_1, window_bounds = array<i64: 36, 128>}, {transform_indices = @transform_2, window_bounds = array<i64: 1, 196, 128>}, {pipeline_mode = #tpu.pipeline_mode<synchronous>, transform_indices = @transform_3, window_bounds = array<i64: 2, 128>}]} {
    %c0_i32 = arith.constant 0 : i32
    %0 = arith.cmpi eq, %arg0, %c0_i32 : i32
    %1 = arith.extui %0 : i1 to i32
    %c0_i32_0 = arith.constant 0 : i32
    %2 = arith.cmpi ne, %1, %c0_i32_0 : i32
    scf.if %2 {
      %cst_706 = arith.constant 0.000000e+00 : f32
      %802 = vector.broadcast %cst_706 : f32 to vector<2x128xf32>
      %c0_707 = arith.constant 0 : index
      %c0_708 = arith.constant 0 : index
      %803 = vector.load %arg4[%c0_707, %c0_708] : memref<2x128xf32, #tpu.memory_space<vmem>>, vector<2x128xf32>
      tpu.vector_store %arg4[%c0_707, %c0_708], %802 {strides = array<i32>} : memref<2x128xf32, #tpu.memory_space<vmem>>, vector<2x128xf32>,
    } else {
    }
    %c0 = arith.constant 0 : index
    %c0_1 = arith.constant 0 : index
    %3 = vector.load %arg2[%c0, %c0_1] : memref<36x128xbf16, #tpu.memory_space<vmem>>, vector<4x128xbf16>
    %c4 = arith.constant 4 : index
    %c0_2 = arith.constant 0 : index
    %4 = vector.load %arg2[%c4, %c0_2] : memref<36x128xbf16, #tpu.memory_space<vmem>>, vector<4x128xbf16>
    %c8 = arith.constant 8 : index
    %c0_3 = arith.constant 0 : index
    %5 = vector.load %arg2[%c8, %c0_3] : memref<36x128xbf16, #tpu.memory_space<vmem>>, vector<4x128xbf16>
    %c12 = arith.constant 12 : index
    %c0_4 = arith.constant 0 : index
    %6 = vector.load %arg2[%c12, %c0_4] : memref<36x128xbf16, #tpu.memory_space<vmem>>, vector<4x128xbf16>
    %c16 = arith.constant 16 : index
    %c0_5 = arith.constant 0 : index
    %7 = vector.load %arg2[%c16, %c0_5] : memref<36x128xbf16, #tpu.memory_space<vmem>>, vector<4x128xbf16>
    %c20 = arith.constant 20 : index
    %c0_6 = arith.constant 0 : index
    %8 = vector.load %arg2[%c20, %c0_6] : memref<36x128xbf16, #tpu.memory_space<vmem>>, vector<4x128xbf16>
    %c24 = arith.constant 24 : index
    %c0_7 = arith.constant 0 : index
    %9 = vector.load %arg2[%c24, %c0_7] : memref<36x128xbf16, #tpu.memory_space<vmem>>, vector<4x128xbf16>
    %c28 = arith.constant 28 : index
    %c0_8 = arith.constant 0 : index
    %10 = vector.load %arg2[%c28, %c0_8] : memref<36x128xbf16, #tpu.memory_space<vmem>>, vector<4x128xbf16>
    %c32 = arith.constant 32 : index
    %c0_9 = arith.constant 0 : index
    %11 = vector.load %arg2[%c32, %c0_9] : memref<36x128xbf16, #tpu.memory_space<vmem>>, vector<4x128xbf16>
    %cst = arith.constant 0.000000e+00 : f32
    %12 = vector.broadcast %cst : f32 to vector<1x128xf32>
    %cst_10 = arith.constant 0.000000e+00 : f32
    %13 = vector.broadcast %cst_10 : f32 to vector<1x128xf32>
    %cst_11 = arith.constant 0.000000e+00 : f32
    %14 = vector.broadcast %cst_11 : f32 to vector<14x128xf32>
    %c0_12 = arith.constant 0 : index
    %c0_13 = arith.constant 0 : index
    %c0_14 = arith.constant 0 : index
    %c0_15 = arith.constant 0 : index
    %15 = vector.load %arg1[%c0_12, %c0_13, %c0_14, %c0_15] : memref<1x16x16x4xf32, #tpu.memory_space<vmem>>, vector<1x1x14x4xf32>
    %16 = vector.shape_cast %15 : vector<1x1x14x4xf32> to vector<14x4xf32>
    %17 = arith.truncf %16 : vector<14x4xf32> to vector<14x4xbf16>
    %cst_16 = arith.constant dense<0.000000e+00> : vector<14x128xf32>
    %18 = tpu.matmul %17, %3, %cst_16 {dimension_numbers = #tpu.dot_dimension_numbers<[1], [0], [0], [1], [0, 0, 1, 1], [], []>} : vector<14x4xbf16>, vector<4x128xbf16>, vector<14x128xf32> -> vector<14x128xf32>
    %19 = arith.addf %14, %18 : vector<14x128xf32>
    %c0_17 = arith.constant 0 : index
    %c0_18 = arith.constant 0 : index
    %c1 = arith.constant 1 : index
    %c0_19 = arith.constant 0 : index
    %20 = vector.load %arg1[%c0_17, %c0_18, %c1, %c0_19] : memref<1x16x16x4xf32, #tpu.memory_space<vmem>>, vector<1x1x14x4xf32>
    %21 = vector.shape_cast %20 : vector<1x1x14x4xf32> to vector<14x4xf32>
    %22 = arith.truncf %21 : vector<14x4xf32> to vector<14x4xbf16>
    %cst_20 = arith.constant dense<0.000000e+00> : vector<14x128xf32>
    %23 = tpu.matmul %22, %4, %cst_20 {dimension_numbers = #tpu.dot_dimension_numbers<[1], [0], [0], [1], [0, 0, 1, 1], [], []>} : vector<14x4xbf16>, vector<4x128xbf16>, vector<14x128xf32> -> vector<14x128xf32>
    %24 = arith.addf %19, %23 : vector<14x128xf32>
    %c0_21 = arith.constant 0 : index
    %c0_22 = arith.constant 0 : index
    %c2 = arith.constant 2 : index
    %c0_23 = arith.constant 0 : index
    %25 = vector.load %arg1[%c0_21, %c0_22, %c2, %c0_23] : memref<1x16x16x4xf32, #tpu.memory_space<vmem>>, vector<1x1x14x4xf32>
    %26 = vector.shape_cast %25 : vector<1x1x14x4xf32> to vector<14x4xf32>
    %27 = arith.truncf %26 : vector<14x4xf32> to vector<14x4xbf16>
    %cst_24 = arith.constant dense<0.000000e+00> : vector<14x128xf32>
    %28 = tpu.matmul %27, %5, %cst_24 {dimension_numbers = #tpu.dot_dimension_numbers<[1], [0], [0], [1], [0, 0, 1, 1], [], []>} : vector<14x4xbf16>, vector<4x128xbf16>, vector<14x128xf32> -> vector<14x128xf32>
    %29 = arith.addf %24, %28 : vector<14x128xf32>
    %c0_25 = arith.constant 0 : index
    %c1_26 = arith.constant 1 : index
    %c0_27 = arith.constant 0 : index
    %c0_28 = arith.constant 0 : index
    %30 = vector.load %arg1[%c0_25, %c1_26, %c0_27, %c0_28] : memref<1x16x16x4xf32, #tpu.memory_space<vmem>>, vector<1x1x14x4xf32>
    %31 = vector.shape_cast %30 : vector<1x1x14x4xf32> to vector<14x4xf32>
    %32 = arith.truncf %31 : vector<14x4xf32> to vector<14x4xbf16>
    %cst_29 = arith.constant dense<0.000000e+00> : vector<14x128xf32>
    %33 = tpu.matmul %32, %6, %cst_29 {dimension_numbers = #tpu.dot_dimension_numbers<[1], [0], [0], [1], [0, 0, 1, 1], [], []>} : vector<14x4xbf16>, vector<4x128xbf16>, vector<14x128xf32> -> vector<14x128xf32>
    %34 = arith.addf %29, %33 : vector<14x128xf32>
    %c0_30 = arith.constant 0 : index
    %c1_31 = arith.constant 1 : index
    %c1_32 = arith.constant 1 : index
    %c0_33 = arith.constant 0 : index
    %35 = vector.load %arg1[%c0_30, %c1_31, %c1_32, %c0_33] : memref<1x16x16x4xf32, #tpu.memory_space<vmem>>, vector<1x1x14x4xf32>
    %36 = vector.shape_cast %35 : vector<1x1x14x4xf32> to vector<14x4xf32>
    %37 = arith.truncf %36 : vector<14x4xf32> to vector<14x4xbf16>
    %cst_34 = arith.constant dense<0.000000e+00> : vector<14x128xf32>
    %38 = tpu.matmul %37, %7, %cst_34 {dimension_numbers = #tpu.dot_dimension_numbers<[1], [0], [0], [1], [0, 0, 1, 1], [], []>} : vector<14x4xbf16>, vector<4x128xbf16>, vector<14x128xf32> -> vector<14x128xf32>
    %39 = arith.addf %34, %38 : vector<14x128xf32>
    %c0_35 = arith.constant 0 : index
    %c1_36 = arith.constant 1 : index
    %c2_37 = arith.constant 2 : index
    %c0_38 = arith.constant 0 : index
    %40 = vector.load %arg1[%c0_35, %c1_36, %c2_37, %c0_38] : memref<1x16x16x4xf32, #tpu.memory_space<vmem>>, vector<1x1x14x4xf32>
    %41 = vector.shape_cast %40 : vector<1x1x14x4xf32> to vector<14x4xf32>
    %42 = arith.truncf %41 : vector<14x4xf32> to vector<14x4xbf16>
    %cst_39 = arith.constant dense<0.000000e+00> : vector<14x128xf32>
    %43 = tpu.matmul %42, %8, %cst_39 {dimension_numbers = #tpu.dot_dimension_numbers<[1], [0], [0], [1], [0, 0, 1, 1], [], []>} : vector<14x4xbf16>, vector<4x128xbf16>, vector<14x128xf32> -> vector<14x128xf32>
    %44 = arith.addf %39, %43 : vector<14x128xf32>
    %c0_40 = arith.constant 0 : index
    %c2_41 = arith.constant 2 : index
    %c0_42 = arith.constant 0 : index
    %c0_43 = arith.constant 0 : index
    %45 = vector.load %arg1[%c0_40, %c2_41, %c0_42, %c0_43] : memref<1x16x16x4xf32, #tpu.memory_space<vmem>>, vector<1x1x14x4xf32>
    %46 = vector.shape_cast %45 : vector<1x1x14x4xf32> to vector<14x4xf32>
    %47 = arith.truncf %46 : vector<14x4xf32> to vector<14x4xbf16>
    %cst_44 = arith.constant dense<0.000000e+00> : vector<14x128xf32>
    %48 = tpu.matmul %47, %9, %cst_44 {dimension_numbers = #tpu.dot_dimension_numbers<[1], [0], [0], [1], [0, 0, 1, 1], [], []>} : vector<14x4xbf16>, vector<4x128xbf16>, vector<14x128xf32> -> vector<14x128xf32>
    %49 = arith.addf %44, %48 : vector<14x128xf32>
    %c0_45 = arith.constant 0 : index
    %c2_46 = arith.constant 2 : index
    %c1_47 = arith.constant 1 : index
    %c0_48 = arith.constant 0 : index
    %50 = vector.load %arg1[%c0_45, %c2_46, %c1_47, %c0_48] : memref<1x16x16x4xf32, #tpu.memory_space<vmem>>, vector<1x1x14x4xf32>
    %51 = vector.shape_cast %50 : vector<1x1x14x4xf32> to vector<14x4xf32>
    %52 = arith.truncf %51 : vector<14x4xf32> to vector<14x4xbf16>
    %cst_49 = arith.constant dense<0.000000e+00> : vector<14x128xf32>
    %53 = tpu.matmul %52, %10, %cst_49 {dimension_numbers = #tpu.dot_dimension_numbers<[1], [0], [0], [1], [0, 0, 1, 1], [], []>} : vector<14x4xbf16>, vector<4x128xbf16>, vector<14x128xf32> -> vector<14x128xf32>
    %54 = arith.addf %49, %53 : vector<14x128xf32>
    %c0_50 = arith.constant 0 : index
    %c2_51 = arith.constant 2 : index
    %c2_52 = arith.constant 2 : index
    %c0_53 = arith.constant 0 : index
    %55 = vector.load %arg1[%c0_50, %c2_51, %c2_52, %c0_53] : memref<1x16x16x4xf32, #tpu.memory_space<vmem>>, vector<1x1x14x4xf32>
    %56 = vector.shape_cast %55 : vector<1x1x14x4xf32> to vector<14x4xf32>
    %57 = arith.truncf %56 : vector<14x4xf32> to vector<14x4xbf16>
    %cst_54 = arith.constant dense<0.000000e+00> : vector<14x128xf32>
    %58 = tpu.matmul %57, %11, %cst_54 {dimension_numbers = #tpu.dot_dimension_numbers<[1], [0], [0], [1], [0, 0, 1, 1], [], []>} : vector<14x4xbf16>, vector<4x128xbf16>, vector<14x128xf32> -> vector<14x128xf32>
    %59 = arith.addf %54, %58 : vector<14x128xf32>
    %c0_55 = arith.constant 0 : index
    %c0_56 = arith.constant 0 : index
    %c0_57 = arith.constant 0 : index
    %60 = vector.load %arg3[%c0_55, %c0_56, %c0_57] : memref<1x196x128xf32, #tpu.memory_space<vmem>>, vector<1x14x128xf32>
    %61 = vector.shape_cast %60 : vector<1x14x128xf32> to vector<14x128xf32>
    %62 = vector.shape_cast %59 : vector<14x128xf32> to vector<1x14x128xf32>
    tpu.vector_store %arg3[%c0_55, %c0_56, %c0_57], %62 {strides = array<i32>} : memref<1x196x128xf32, #tpu.memory_space<vmem>>, vector<1x14x128xf32>,
    %cst_58 = arith.constant dense<0.000000e+00> : vector<128xf32>
    %63 = vector.multi_reduction <add>, %59, %cst_58 [0] : vector<14x128xf32> to vector<128xf32>
    %64 = vector.shape_cast %63 : vector<128xf32> to vector<1x128xf32>
    %65 = arith.addf %12, %64 : vector<1x128xf32>
    %66 = arith.mulf %59, %59 : vector<14x128xf32>
    %cst_59 = arith.constant dense<0.000000e+00> : vector<128xf32>
    %67 = vector.multi_reduction <add>, %66, %cst_59 [0] : vector<14x128xf32> to vector<128xf32>
    %68 = vector.shape_cast %67 : vector<128xf32> to vector<1x128xf32>
    %69 = arith.addf %13, %68 : vector<1x128xf32>
    %cst_60 = arith.constant 0.000000e+00 : f32
    %70 = vector.broadcast %cst_60 : f32 to vector<14x128xf32>
    %c0_61 = arith.constant 0 : index
    %c1_62 = arith.constant 1 : index
    %c0_63 = arith.constant 0 : index
    %c0_64 = arith.constant 0 : index
    %71 = vector.load %arg1[%c0_61, %c1_62, %c0_63, %c0_64] : memref<1x16x16x4xf32, #tpu.memory_space<vmem>>, vector<1x1x14x4xf32>
    %72 = vector.shape_cast %71 : vector<1x1x14x4xf32> to vector<14x4xf32>
    %73 = arith.truncf %72 : vector<14x4xf32> to vector<14x4xbf16>
    %cst_65 = arith.constant dense<0.000000e+00> : vector<14x128xf32>
    %74 = tpu.matmul %73, %3, %cst_65 {dimension_numbers = #tpu.dot_dimension_numbers<[1], [0], [0], [1], [0, 0, 1, 1], [], []>} : vector<14x4xbf16>, vector<4x128xbf16>, vector<14x128xf32> -> vector<14x128xf32>
    %75 = arith.addf %70, %74 : vector<14x128xf32>
    %c0_66 = arith.constant 0 : index
    %c1_67 = arith.constant 1 : index
    %c1_68 = arith.constant 1 : index
    %c0_69 = arith.constant 0 : index
    %76 = vector.load %arg1[%c0_66, %c1_67, %c1_68, %c0_69] : memref<1x16x16x4xf32, #tpu.memory_space<vmem>>, vector<1x1x14x4xf32>
    %77 = vector.shape_cast %76 : vector<1x1x14x4xf32> to vector<14x4xf32>
    %78 = arith.truncf %77 : vector<14x4xf32> to vector<14x4xbf16>
    %cst_70 = arith.constant dense<0.000000e+00> : vector<14x128xf32>
    %79 = tpu.matmul %78, %4, %cst_70 {dimension_numbers = #tpu.dot_dimension_numbers<[1], [0], [0], [1], [0, 0, 1, 1], [], []>} : vector<14x4xbf16>, vector<4x128xbf16>, vector<14x128xf32> -> vector<14x128xf32>
    %80 = arith.addf %75, %79 : vector<14x128xf32>
    %c0_71 = arith.constant 0 : index
    %c1_72 = arith.constant 1 : index
    %c2_73 = arith.constant 2 : index
    %c0_74 = arith.constant 0 : index
    %81 = vector.load %arg1[%c0_71, %c1_72, %c2_73, %c0_74] : memref<1x16x16x4xf32, #tpu.memory_space<vmem>>, vector<1x1x14x4xf32>
    %82 = vector.shape_cast %81 : vector<1x1x14x4xf32> to vector<14x4xf32>
    %83 = arith.truncf %82 : vector<14x4xf32> to vector<14x4xbf16>
    %cst_75 = arith.constant dense<0.000000e+00> : vector<14x128xf32>
    %84 = tpu.matmul %83, %5, %cst_75 {dimension_numbers = #tpu.dot_dimension_numbers<[1], [0], [0], [1], [0, 0, 1, 1], [], []>} : vector<14x4xbf16>, vector<4x128xbf16>, vector<14x128xf32> -> vector<14x128xf32>
    %85 = arith.addf %80, %84 : vector<14x128xf32>
    %c0_76 = arith.constant 0 : index
    %c2_77 = arith.constant 2 : index
    %c0_78 = arith.constant 0 : index
    %c0_79 = arith.constant 0 : index
    %86 = vector.load %arg1[%c0_76, %c2_77, %c0_78, %c0_79] : memref<1x16x16x4xf32, #tpu.memory_space<vmem>>, vector<1x1x14x4xf32>
    %87 = vector.shape_cast %86 : vector<1x1x14x4xf32> to vector<14x4xf32>
    %88 = arith.truncf %87 : vector<14x4xf32> to vector<14x4xbf16>
    %cst_80 = arith.constant dense<0.000000e+00> : vector<14x128xf32>
    %89 = tpu.matmul %88, %6, %cst_80 {dimension_numbers = #tpu.dot_dimension_numbers<[1], [0], [0], [1], [0, 0, 1, 1], [], []>} : vector<14x4xbf16>, vector<4x128xbf16>, vector<14x128xf32> -> vector<14x128xf32>
    %90 = arith.addf %85, %89 : vector<14x128xf32>
    %c0_81 = arith.constant 0 : index
    %c2_82 = arith.constant 2 : index
    %c1_83 = arith.constant 1 : index
    %c0_84 = arith.constant 0 : index
    %91 = vector.load %arg1[%c0_81, %c2_82, %c1_83, %c0_84] : memref<1x16x16x4xf32, #tpu.memory_space<vmem>>, vector<1x1x14x4xf32>
    %92 = vector.shape_cast %91 : vector<1x1x14x4xf32> to vector<14x4xf32>
    %93 = arith.truncf %92 : vector<14x4xf32> to vector<14x4xbf16>
    %cst_85 = arith.constant dense<0.000000e+00> : vector<14x128xf32>
    %94 = tpu.matmul %93, %7, %cst_85 {dimension_numbers = #tpu.dot_dimension_numbers<[1], [0], [0], [1], [0, 0, 1, 1], [], []>} : vector<14x4xbf16>, vector<4x128xbf16>, vector<14x128xf32> -> vector<14x128xf32>
    %95 = arith.addf %90, %94 : vector<14x128xf32>
    %c0_86 = arith.constant 0 : index
    %c2_87 = arith.constant 2 : index
    %c2_88 = arith.constant 2 : index
    %c0_89 = arith.constant 0 : index
    %96 = vector.load %arg1[%c0_86, %c2_87, %c2_88, %c0_89] : memref<1x16x16x4xf32, #tpu.memory_space<vmem>>, vector<1x1x14x4xf32>
    %97 = vector.shape_cast %96 : vector<1x1x14x4xf32> to vector<14x4xf32>
    %98 = arith.truncf %97 : vector<14x4xf32> to vector<14x4xbf16>
    %cst_90 = arith.constant dense<0.000000e+00> : vector<14x128xf32>
    %99 = tpu.matmul %98, %8, %cst_90 {dimension_numbers = #tpu.dot_dimension_numbers<[1], [0], [0], [1], [0, 0, 1, 1], [], []>} : vector<14x4xbf16>, vector<4x128xbf16>, vector<14x128xf32> -> vector<14x128xf32>
    %100 = arith.addf %95, %99 : vector<14x128xf32>
    %c0_91 = arith.constant 0 : index
    %c3 = arith.constant 3 : index
    %c0_92 = arith.constant 0 : index
    %c0_93 = arith.constant 0 : index
    %101 = vector.load %arg1[%c0_91, %c3, %c0_92, %c0_93] : memref<1x16x16x4xf32, #tpu.memory_space<vmem>>, vector<1x1x14x4xf32>
    %102 = vector.shape_cast %101 : vector<1x1x14x4xf32> to vector<14x4xf32>
    %103 = arith.truncf %102 : vector<14x4xf32> to vector<14x4xbf16>
    %cst_94 = arith.constant dense<0.000000e+00> : vector<14x128xf32>
    %104 = tpu.matmul %103, %9, %cst_94 {dimension_numbers = #tpu.dot_dimension_numbers<[1], [0], [0], [1], [0, 0, 1, 1], [], []>} : vector<14x4xbf16>, vector<4x128xbf16>, vector<14x128xf32> -> vector<14x128xf32>
    %105 = arith.addf %100, %104 : vector<14x128xf32>
    %c0_95 = arith.constant 0 : index
    %c3_96 = arith.constant 3 : index
    %c1_97 = arith.constant 1 : index
    %c0_98 = arith.constant 0 : index
    %106 = vector.load %arg1[%c0_95, %c3_96, %c1_97, %c0_98] : memref<1x16x16x4xf32, #tpu.memory_space<vmem>>, vector<1x1x14x4xf32>
    %107 = vector.shape_cast %106 : vector<1x1x14x4xf32> to vector<14x4xf32>
    %108 = arith.truncf %107 : vector<14x4xf32> to vector<14x4xbf16>
    %cst_99 = arith.constant dense<0.000000e+00> : vector<14x128xf32>
    %109 = tpu.matmul %108, %10, %cst_99 {dimension_numbers = #tpu.dot_dimension_numbers<[1], [0], [0], [1], [0, 0, 1, 1], [], []>} : vector<14x4xbf16>, vector<4x128xbf16>, vector<14x128xf32> -> vector<14x128xf32>
    %110 = arith.addf %105, %109 : vector<14x128xf32>
    %c0_100 = arith.constant 0 : index
    %c3_101 = arith.constant 3 : index
    %c2_102 = arith.constant 2 : index
    %c0_103 = arith.constant 0 : index
    %111 = vector.load %arg1[%c0_100, %c3_101, %c2_102, %c0_103] : memref<1x16x16x4xf32, #tpu.memory_space<vmem>>, vector<1x1x14x4xf32>
    %112 = vector.shape_cast %111 : vector<1x1x14x4xf32> to vector<14x4xf32>
    %113 = arith.truncf %112 : vector<14x4xf32> to vector<14x4xbf16>
    %cst_104 = arith.constant dense<0.000000e+00> : vector<14x128xf32>
    %114 = tpu.matmul %113, %11, %cst_104 {dimension_numbers = #tpu.dot_dimension_numbers<[1], [0], [0], [1], [0, 0, 1, 1], [], []>} : vector<14x4xbf16>, vector<4x128xbf16>, vector<14x128xf32> -> vector<14x128xf32>
    %115 = arith.addf %110, %114 : vector<14x128xf32>
    %c0_105 = arith.constant 0 : index
    %c14 = arith.constant 14 : index
    %c0_106 = arith.constant 0 : index
    %116 = vector.load %arg3[%c0_105, %c14, %c0_106] : memref<1x196x128xf32, #tpu.memory_space<vmem>>, vector<1x14x128xf32>
    %117 = vector.shape_cast %116 : vector<1x14x128xf32> to vector<14x128xf32>
    %118 = vector.shape_cast %115 : vector<14x128xf32> to vector<1x14x128xf32>
    tpu.vector_store %arg3[%c0_105, %c14, %c0_106], %118 {strides = array<i32>} : memref<1x196x128xf32, #tpu.memory_space<vmem>>, vector<1x14x128xf32>,
    %cst_107 = arith.constant dense<0.000000e+00> : vector<128xf32>
    %119 = vector.multi_reduction <add>, %115, %cst_107 [0] : vector<14x128xf32> to vector<128xf32>
    %120 = vector.shape_cast %119 : vector<128xf32> to vector<1x128xf32>
    %121 = arith.addf %65, %120 : vector<1x128xf32>
    %122 = arith.mulf %115, %115 : vector<14x128xf32>
    %cst_108 = arith.constant dense<0.000000e+00> : vector<128xf32>
    %123 = vector.multi_reduction <add>, %122, %cst_108 [0] : vector<14x128xf32> to vector<128xf32>
    %124 = vector.shape_cast %123 : vector<128xf32> to vector<1x128xf32>
    %125 = arith.addf %69, %124 : vector<1x128xf32>
    %cst_109 = arith.constant 0.000000e+00 : f32
    %126 = vector.broadcast %cst_109 : f32 to vector<14x128xf32>
    %c0_110 = arith.constant 0 : index
    %c2_111 = arith.constant 2 : index
    %c0_112 = arith.constant 0 : index
    %c0_113 = arith.constant 0 : index
    %127 = vector.load %arg1[%c0_110, %c2_111, %c0_112, %c0_113] : memref<1x16x16x4xf32, #tpu.memory_space<vmem>>, vector<1x1x14x4xf32>
    %128 = vector.shape_cast %127 : vector<1x1x14x4xf32> to vector<14x4xf32>
    %129 = arith.truncf %128 : vector<14x4xf32> to vector<14x4xbf16>
    %cst_114 = arith.constant dense<0.000000e+00> : vector<14x128xf32>
    %130 = tpu.matmul %129, %3, %cst_114 {dimension_numbers = #tpu.dot_dimension_numbers<[1], [0], [0], [1], [0, 0, 1, 1], [], []>} : vector<14x4xbf16>, vector<4x128xbf16>, vector<14x128xf32> -> vector<14x128xf32>
    %131 = arith.addf %126, %130 : vector<14x128xf32>
    %c0_115 = arith.constant 0 : index
    %c2_116 = arith.constant 2 : index
    %c1_117 = arith.constant 1 : index
    %c0_118 = arith.constant 0 : index
    %132 = vector.load %arg1[%c0_115, %c2_116, %c1_117, %c0_118] : memref<1x16x16x4xf32, #tpu.memory_space<vmem>>, vector<1x1x14x4xf32>
    %133 = vector.shape_cast %132 : vector<1x1x14x4xf32> to vector<14x4xf32>
    %134 = arith.truncf %133 : vector<14x4xf32> to vector<14x4xbf16>
    %cst_119 = arith.constant dense<0.000000e+00> : vector<14x128xf32>
    %135 = tpu.matmul %134, %4, %cst_119 {dimension_numbers = #tpu.dot_dimension_numbers<[1], [0], [0], [1], [0, 0, 1, 1], [], []>} : vector<14x4xbf16>, vector<4x128xbf16>, vector<14x128xf32> -> vector<14x128xf32>
    %136 = arith.addf %131, %135 : vector<14x128xf32>
    %c0_120 = arith.constant 0 : index
    %c2_121 = arith.constant 2 : index
    %c2_122 = arith.constant 2 : index
    %c0_123 = arith.constant 0 : index
    %137 = vector.load %arg1[%c0_120, %c2_121, %c2_122, %c0_123] : memref<1x16x16x4xf32, #tpu.memory_space<vmem>>, vector<1x1x14x4xf32>
    %138 = vector.shape_cast %137 : vector<1x1x14x4xf32> to vector<14x4xf32>
    %139 = arith.truncf %138 : vector<14x4xf32> to vector<14x4xbf16>
    %cst_124 = arith.constant dense<0.000000e+00> : vector<14x128xf32>
    %140 = tpu.matmul %139, %5, %cst_124 {dimension_numbers = #tpu.dot_dimension_numbers<[1], [0], [0], [1], [0, 0, 1, 1], [], []>} : vector<14x4xbf16>, vector<4x128xbf16>, vector<14x128xf32> -> vector<14x128xf32>
    %141 = arith.addf %136, %140 : vector<14x128xf32>
    %c0_125 = arith.constant 0 : index
    %c3_126 = arith.constant 3 : index
    %c0_127 = arith.constant 0 : index
    %c0_128 = arith.constant 0 : index
    %142 = vector.load %arg1[%c0_125, %c3_126, %c0_127, %c0_128] : memref<1x16x16x4xf32, #tpu.memory_space<vmem>>, vector<1x1x14x4xf32>
    %143 = vector.shape_cast %142 : vector<1x1x14x4xf32> to vector<14x4xf32>
    %144 = arith.truncf %143 : vector<14x4xf32> to vector<14x4xbf16>
    %cst_129 = arith.constant dense<0.000000e+00> : vector<14x128xf32>
    %145 = tpu.matmul %144, %6, %cst_129 {dimension_numbers = #tpu.dot_dimension_numbers<[1], [0], [0], [1], [0, 0, 1, 1], [], []>} : vector<14x4xbf16>, vector<4x128xbf16>, vector<14x128xf32> -> vector<14x128xf32>
    %146 = arith.addf %141, %145 : vector<14x128xf32>
    %c0_130 = arith.constant 0 : index
    %c3_131 = arith.constant 3 : index
    %c1_132 = arith.constant 1 : index
    %c0_133 = arith.constant 0 : index
    %147 = vector.load %arg1[%c0_130, %c3_131, %c1_132, %c0_133] : memref<1x16x16x4xf32, #tpu.memory_space<vmem>>, vector<1x1x14x4xf32>
    %148 = vector.shape_cast %147 : vector<1x1x14x4xf32> to vector<14x4xf32>
    %149 = arith.truncf %148 : vector<14x4xf32> to vector<14x4xbf16>
    %cst_134 = arith.constant dense<0.000000e+00> : vector<14x128xf32>
    %150 = tpu.matmul %149, %7, %cst_134 {dimension_numbers = #tpu.dot_dimension_numbers<[1], [0], [0], [1], [0, 0, 1, 1], [], []>} : vector<14x4xbf16>, vector<4x128xbf16>, vector<14x128xf32> -> vector<14x128xf32>
    %151 = arith.addf %146, %150 : vector<14x128xf32>
    %c0_135 = arith.constant 0 : index
    %c3_136 = arith.constant 3 : index
    %c2_137 = arith.constant 2 : index
    %c0_138 = arith.constant 0 : index
    %152 = vector.load %arg1[%c0_135, %c3_136, %c2_137, %c0_138] : memref<1x16x16x4xf32, #tpu.memory_space<vmem>>, vector<1x1x14x4xf32>
    %153 = vector.shape_cast %152 : vector<1x1x14x4xf32> to vector<14x4xf32>
    %154 = arith.truncf %153 : vector<14x4xf32> to vector<14x4xbf16>
    %cst_139 = arith.constant dense<0.000000e+00> : vector<14x128xf32>
    %155 = tpu.matmul %154, %8, %cst_139 {dimension_numbers = #tpu.dot_dimension_numbers<[1], [0], [0], [1], [0, 0, 1, 1], [], []>} : vector<14x4xbf16>, vector<4x128xbf16>, vector<14x128xf32> -> vector<14x128xf32>
    %156 = arith.addf %151, %155 : vector<14x128xf32>
    %c0_140 = arith.constant 0 : index
    %c4_141 = arith.constant 4 : index
    %c0_142 = arith.constant 0 : index
    %c0_143 = arith.constant 0 : index
    %157 = vector.load %arg1[%c0_140, %c4_141, %c0_142, %c0_143] : memref<1x16x16x4xf32, #tpu.memory_space<vmem>>, vector<1x1x14x4xf32>
    %158 = vector.shape_cast %157 : vector<1x1x14x4xf32> to vector<14x4xf32>
    %159 = arith.truncf %158 : vector<14x4xf32> to vector<14x4xbf16>
    %cst_144 = arith.constant dense<0.000000e+00> : vector<14x128xf32>
    %160 = tpu.matmul %159, %9, %cst_144 {dimension_numbers = #tpu.dot_dimension_numbers<[1], [0], [0], [1], [0, 0, 1, 1], [], []>} : vector<14x4xbf16>, vector<4x128xbf16>, vector<14x128xf32> -> vector<14x128xf32>
    %161 = arith.addf %156, %160 : vector<14x128xf32>
    %c0_145 = arith.constant 0 : index
    %c4_146 = arith.constant 4 : index
    %c1_147 = arith.constant 1 : index
    %c0_148 = arith.constant 0 : index
    %162 = vector.load %arg1[%c0_145, %c4_146, %c1_147, %c0_148] : memref<1x16x16x4xf32, #tpu.memory_space<vmem>>, vector<1x1x14x4xf32>
    %163 = vector.shape_cast %162 : vector<1x1x14x4xf32> to vector<14x4xf32>
    %164 = arith.truncf %163 : vector<14x4xf32> to vector<14x4xbf16>
    %cst_149 = arith.constant dense<0.000000e+00> : vector<14x128xf32>
    %165 = tpu.matmul %164, %10, %cst_149 {dimension_numbers = #tpu.dot_dimension_numbers<[1], [0], [0], [1], [0, 0, 1, 1], [], []>} : vector<14x4xbf16>, vector<4x128xbf16>, vector<14x128xf32> -> vector<14x128xf32>
    %166 = arith.addf %161, %165 : vector<14x128xf32>
    %c0_150 = arith.constant 0 : index
    %c4_151 = arith.constant 4 : index
    %c2_152 = arith.constant 2 : index
    %c0_153 = arith.constant 0 : index
    %167 = vector.load %arg1[%c0_150, %c4_151, %c2_152, %c0_153] : memref<1x16x16x4xf32, #tpu.memory_space<vmem>>, vector<1x1x14x4xf32>
    %168 = vector.shape_cast %167 : vector<1x1x14x4xf32> to vector<14x4xf32>
    %169 = arith.truncf %168 : vector<14x4xf32> to vector<14x4xbf16>
    %cst_154 = arith.constant dense<0.000000e+00> : vector<14x128xf32>
    %170 = tpu.matmul %169, %11, %cst_154 {dimension_numbers = #tpu.dot_dimension_numbers<[1], [0], [0], [1], [0, 0, 1, 1], [], []>} : vector<14x4xbf16>, vector<4x128xbf16>, vector<14x128xf32> -> vector<14x128xf32>
    %171 = arith.addf %166, %170 : vector<14x128xf32>
    %c0_155 = arith.constant 0 : index
    %c28_156 = arith.constant 28 : index
    %c0_157 = arith.constant 0 : index
    %172 = vector.load %arg3[%c0_155, %c28_156, %c0_157] : memref<1x196x128xf32, #tpu.memory_space<vmem>>, vector<1x14x128xf32>
    %173 = vector.shape_cast %172 : vector<1x14x128xf32> to vector<14x128xf32>
    %174 = vector.shape_cast %171 : vector<14x128xf32> to vector<1x14x128xf32>
    tpu.vector_store %arg3[%c0_155, %c28_156, %c0_157], %174 {strides = array<i32>} : memref<1x196x128xf32, #tpu.memory_space<vmem>>, vector<1x14x128xf32>,
    %cst_158 = arith.constant dense<0.000000e+00> : vector<128xf32>
    %175 = vector.multi_reduction <add>, %171, %cst_158 [0] : vector<14x128xf32> to vector<128xf32>
    %176 = vector.shape_cast %175 : vector<128xf32> to vector<1x128xf32>
    %177 = arith.addf %121, %176 : vector<1x128xf32>
    %178 = arith.mulf %171, %171 : vector<14x128xf32>
    %cst_159 = arith.constant dense<0.000000e+00> : vector<128xf32>
    %179 = vector.multi_reduction <add>, %178, %cst_159 [0] : vector<14x128xf32> to vector<128xf32>
    %180 = vector.shape_cast %179 : vector<128xf32> to vector<1x128xf32>
    %181 = arith.addf %125, %180 : vector<1x128xf32>
    %cst_160 = arith.constant 0.000000e+00 : f32
    %182 = vector.broadcast %cst_160 : f32 to vector<14x128xf32>
    %c0_161 = arith.constant 0 : index
    %c3_162 = arith.constant 3 : index
    %c0_163 = arith.constant 0 : index
    %c0_164 = arith.constant 0 : index
    %183 = vector.load %arg1[%c0_161, %c3_162, %c0_163, %c0_164] : memref<1x16x16x4xf32, #tpu.memory_space<vmem>>, vector<1x1x14x4xf32>
    %184 = vector.shape_cast %183 : vector<1x1x14x4xf32> to vector<14x4xf32>
    %185 = arith.truncf %184 : vector<14x4xf32> to vector<14x4xbf16>
    %cst_165 = arith.constant dense<0.000000e+00> : vector<14x128xf32>
    %186 = tpu.matmul %185, %3, %cst_165 {dimension_numbers = #tpu.dot_dimension_numbers<[1], [0], [0], [1], [0, 0, 1, 1], [], []>} : vector<14x4xbf16>, vector<4x128xbf16>, vector<14x128xf32> -> vector<14x128xf32>
    %187 = arith.addf %182, %186 : vector<14x128xf32>
    %c0_166 = arith.constant 0 : index
    %c3_167 = arith.constant 3 : index
    %c1_168 = arith.constant 1 : index
    %c0_169 = arith.constant 0 : index
    %188 = vector.load %arg1[%c0_166, %c3_167, %c1_168, %c0_169] : memref<1x16x16x4xf32, #tpu.memory_space<vmem>>, vector<1x1x14x4xf32>
    %189 = vector.shape_cast %188 : vector<1x1x14x4xf32> to vector<14x4xf32>
    %190 = arith.truncf %189 : vector<14x4xf32> to vector<14x4xbf16>
    %cst_170 = arith.constant dense<0.000000e+00> : vector<14x128xf32>
    %191 = tpu.matmul %190, %4, %cst_170 {dimension_numbers = #tpu.dot_dimension_numbers<[1], [0], [0], [1], [0, 0, 1, 1], [], []>} : vector<14x4xbf16>, vector<4x128xbf16>, vector<14x128xf32> -> vector<14x128xf32>
    %192 = arith.addf %187, %191 : vector<14x128xf32>
    %c0_171 = arith.constant 0 : index
    %c3_172 = arith.constant 3 : index
    %c2_173 = arith.constant 2 : index
    %c0_174 = arith.constant 0 : index
    %193 = vector.load %arg1[%c0_171, %c3_172, %c2_173, %c0_174] : memref<1x16x16x4xf32, #tpu.memory_space<vmem>>, vector<1x1x14x4xf32>
    %194 = vector.shape_cast %193 : vector<1x1x14x4xf32> to vector<14x4xf32>
    %195 = arith.truncf %194 : vector<14x4xf32> to vector<14x4xbf16>
    %cst_175 = arith.constant dense<0.000000e+00> : vector<14x128xf32>
    %196 = tpu.matmul %195, %5, %cst_175 {dimension_numbers = #tpu.dot_dimension_numbers<[1], [0], [0], [1], [0, 0, 1, 1], [], []>} : vector<14x4xbf16>, vector<4x128xbf16>, vector<14x128xf32> -> vector<14x128xf32>
    %197 = arith.addf %192, %196 : vector<14x128xf32>
    %c0_176 = arith.constant 0 : index
    %c4_177 = arith.constant 4 : index
    %c0_178 = arith.constant 0 : index
    %c0_179 = arith.constant 0 : index
    %198 = vector.load %arg1[%c0_176, %c4_177, %c0_178, %c0_179] : memref<1x16x16x4xf32, #tpu.memory_space<vmem>>, vector<1x1x14x4xf32>
    %199 = vector.shape_cast %198 : vector<1x1x14x4xf32> to vector<14x4xf32>
    %200 = arith.truncf %199 : vector<14x4xf32> to vector<14x4xbf16>
    %cst_180 = arith.constant dense<0.000000e+00> : vector<14x128xf32>
    %201 = tpu.matmul %200, %6, %cst_180 {dimension_numbers = #tpu.dot_dimension_numbers<[1], [0], [0], [1], [0, 0, 1, 1], [], []>} : vector<14x4xbf16>, vector<4x128xbf16>, vector<14x128xf32> -> vector<14x128xf32>
    %202 = arith.addf %197, %201 : vector<14x128xf32>
    %c0_181 = arith.constant 0 : index
    %c4_182 = arith.constant 4 : index
    %c1_183 = arith.constant 1 : index
    %c0_184 = arith.constant 0 : index
    %203 = vector.load %arg1[%c0_181, %c4_182, %c1_183, %c0_184] : memref<1x16x16x4xf32, #tpu.memory_space<vmem>>, vector<1x1x14x4xf32>
    %204 = vector.shape_cast %203 : vector<1x1x14x4xf32> to vector<14x4xf32>
    %205 = arith.truncf %204 : vector<14x4xf32> to vector<14x4xbf16>
    %cst_185 = arith.constant dense<0.000000e+00> : vector<14x128xf32>
    %206 = tpu.matmul %205, %7, %cst_185 {dimension_numbers = #tpu.dot_dimension_numbers<[1], [0], [0], [1], [0, 0, 1, 1], [], []>} : vector<14x4xbf16>, vector<4x128xbf16>, vector<14x128xf32> -> vector<14x128xf32>
    %207 = arith.addf %202, %206 : vector<14x128xf32>
    %c0_186 = arith.constant 0 : index
    %c4_187 = arith.constant 4 : index
    %c2_188 = arith.constant 2 : index
    %c0_189 = arith.constant 0 : index
    %208 = vector.load %arg1[%c0_186, %c4_187, %c2_188, %c0_189] : memref<1x16x16x4xf32, #tpu.memory_space<vmem>>, vector<1x1x14x4xf32>
    %209 = vector.shape_cast %208 : vector<1x1x14x4xf32> to vector<14x4xf32>
    %210 = arith.truncf %209 : vector<14x4xf32> to vector<14x4xbf16>
    %cst_190 = arith.constant dense<0.000000e+00> : vector<14x128xf32>
    %211 = tpu.matmul %210, %8, %cst_190 {dimension_numbers = #tpu.dot_dimension_numbers<[1], [0], [0], [1], [0, 0, 1, 1], [], []>} : vector<14x4xbf16>, vector<4x128xbf16>, vector<14x128xf32> -> vector<14x128xf32>
    %212 = arith.addf %207, %211 : vector<14x128xf32>
    %c0_191 = arith.constant 0 : index
    %c5 = arith.constant 5 : index
    %c0_192 = arith.constant 0 : index
    %c0_193 = arith.constant 0 : index
    %213 = vector.load %arg1[%c0_191, %c5, %c0_192, %c0_193] : memref<1x16x16x4xf32, #tpu.memory_space<vmem>>, vector<1x1x14x4xf32>
    %214 = vector.shape_cast %213 : vector<1x1x14x4xf32> to vector<14x4xf32>
    %215 = arith.truncf %214 : vector<14x4xf32> to vector<14x4xbf16>
    %cst_194 = arith.constant dense<0.000000e+00> : vector<14x128xf32>
    %216 = tpu.matmul %215, %9, %cst_194 {dimension_numbers = #tpu.dot_dimension_numbers<[1], [0], [0], [1], [0, 0, 1, 1], [], []>} : vector<14x4xbf16>, vector<4x128xbf16>, vector<14x128xf32> -> vector<14x128xf32>
    %217 = arith.addf %212, %216 : vector<14x128xf32>
    %c0_195 = arith.constant 0 : index
    %c5_196 = arith.constant 5 : index
    %c1_197 = arith.constant 1 : index
    %c0_198 = arith.constant 0 : index
    %218 = vector.load %arg1[%c0_195, %c5_196, %c1_197, %c0_198] : memref<1x16x16x4xf32, #tpu.memory_space<vmem>>, vector<1x1x14x4xf32>
    %219 = vector.shape_cast %218 : vector<1x1x14x4xf32> to vector<14x4xf32>
    %220 = arith.truncf %219 : vector<14x4xf32> to vector<14x4xbf16>
    %cst_199 = arith.constant dense<0.000000e+00> : vector<14x128xf32>
    %221 = tpu.matmul %220, %10, %cst_199 {dimension_numbers = #tpu.dot_dimension_numbers<[1], [0], [0], [1], [0, 0, 1, 1], [], []>} : vector<14x4xbf16>, vector<4x128xbf16>, vector<14x128xf32> -> vector<14x128xf32>
    %222 = arith.addf %217, %221 : vector<14x128xf32>
    %c0_200 = arith.constant 0 : index
    %c5_201 = arith.constant 5 : index
    %c2_202 = arith.constant 2 : index
    %c0_203 = arith.constant 0 : index
    %223 = vector.load %arg1[%c0_200, %c5_201, %c2_202, %c0_203] : memref<1x16x16x4xf32, #tpu.memory_space<vmem>>, vector<1x1x14x4xf32>
    %224 = vector.shape_cast %223 : vector<1x1x14x4xf32> to vector<14x4xf32>
    %225 = arith.truncf %224 : vector<14x4xf32> to vector<14x4xbf16>
    %cst_204 = arith.constant dense<0.000000e+00> : vector<14x128xf32>
    %226 = tpu.matmul %225, %11, %cst_204 {dimension_numbers = #tpu.dot_dimension_numbers<[1], [0], [0], [1], [0, 0, 1, 1], [], []>} : vector<14x4xbf16>, vector<4x128xbf16>, vector<14x128xf32> -> vector<14x128xf32>
    %227 = arith.addf %222, %226 : vector<14x128xf32>
    %c0_205 = arith.constant 0 : index
    %c42 = arith.constant 42 : index
    %c0_206 = arith.constant 0 : index
    %228 = vector.load %arg3[%c0_205, %c42, %c0_206] : memref<1x196x128xf32, #tpu.memory_space<vmem>>, vector<1x14x128xf32>
    %229 = vector.shape_cast %228 : vector<1x14x128xf32> to vector<14x128xf32>
    %230 = vector.shape_cast %227 : vector<14x128xf32> to vector<1x14x128xf32>
    tpu.vector_store %arg3[%c0_205, %c42, %c0_206], %230 {strides = array<i32>} : memref<1x196x128xf32, #tpu.memory_space<vmem>>, vector<1x14x128xf32>,
    %cst_207 = arith.constant dense<0.000000e+00> : vector<128xf32>
    %231 = vector.multi_reduction <add>, %227, %cst_207 [0] : vector<14x128xf32> to vector<128xf32>
    %232 = vector.shape_cast %231 : vector<128xf32> to vector<1x128xf32>
    %233 = arith.addf %177, %232 : vector<1x128xf32>
    %234 = arith.mulf %227, %227 : vector<14x128xf32>
    %cst_208 = arith.constant dense<0.000000e+00> : vector<128xf32>
    %235 = vector.multi_reduction <add>, %234, %cst_208 [0] : vector<14x128xf32> to vector<128xf32>
    %236 = vector.shape_cast %235 : vector<128xf32> to vector<1x128xf32>
    %237 = arith.addf %181, %236 : vector<1x128xf32>
    %cst_209 = arith.constant 0.000000e+00 : f32
    %238 = vector.broadcast %cst_209 : f32 to vector<14x128xf32>
    %c0_210 = arith.constant 0 : index
    %c4_211 = arith.constant 4 : index
    %c0_212 = arith.constant 0 : index
    %c0_213 = arith.constant 0 : index
    %239 = vector.load %arg1[%c0_210, %c4_211, %c0_212, %c0_213] : memref<1x16x16x4xf32, #tpu.memory_space<vmem>>, vector<1x1x14x4xf32>
    %240 = vector.shape_cast %239 : vector<1x1x14x4xf32> to vector<14x4xf32>
    %241 = arith.truncf %240 : vector<14x4xf32> to vector<14x4xbf16>
    %cst_214 = arith.constant dense<0.000000e+00> : vector<14x128xf32>
    %242 = tpu.matmul %241, %3, %cst_214 {dimension_numbers = #tpu.dot_dimension_numbers<[1], [0], [0], [1], [0, 0, 1, 1], [], []>} : vector<14x4xbf16>, vector<4x128xbf16>, vector<14x128xf32> -> vector<14x128xf32>
    %243 = arith.addf %238, %242 : vector<14x128xf32>
    %c0_215 = arith.constant 0 : index
    %c4_216 = arith.constant 4 : index
    %c1_217 = arith.constant 1 : index
    %c0_218 = arith.constant 0 : index
    %244 = vector.load %arg1[%c0_215, %c4_216, %c1_217, %c0_218] : memref<1x16x16x4xf32, #tpu.memory_space<vmem>>, vector<1x1x14x4xf32>
    %245 = vector.shape_cast %244 : vector<1x1x14x4xf32> to vector<14x4xf32>
    %246 = arith.truncf %245 : vector<14x4xf32> to vector<14x4xbf16>
    %cst_219 = arith.constant dense<0.000000e+00> : vector<14x128xf32>
    %247 = tpu.matmul %246, %4, %cst_219 {dimension_numbers = #tpu.dot_dimension_numbers<[1], [0], [0], [1], [0, 0, 1, 1], [], []>} : vector<14x4xbf16>, vector<4x128xbf16>, vector<14x128xf32> -> vector<14x128xf32>
    %248 = arith.addf %243, %247 : vector<14x128xf32>
    %c0_220 = arith.constant 0 : index
    %c4_221 = arith.constant 4 : index
    %c2_222 = arith.constant 2 : index
    %c0_223 = arith.constant 0 : index
    %249 = vector.load %arg1[%c0_220, %c4_221, %c2_222, %c0_223] : memref<1x16x16x4xf32, #tpu.memory_space<vmem>>, vector<1x1x14x4xf32>
    %250 = vector.shape_cast %249 : vector<1x1x14x4xf32> to vector<14x4xf32>
    %251 = arith.truncf %250 : vector<14x4xf32> to vector<14x4xbf16>
    %cst_224 = arith.constant dense<0.000000e+00> : vector<14x128xf32>
    %252 = tpu.matmul %251, %5, %cst_224 {dimension_numbers = #tpu.dot_dimension_numbers<[1], [0], [0], [1], [0, 0, 1, 1], [], []>} : vector<14x4xbf16>, vector<4x128xbf16>, vector<14x128xf32> -> vector<14x128xf32>
    %253 = arith.addf %248, %252 : vector<14x128xf32>
    %c0_225 = arith.constant 0 : index
    %c5_226 = arith.constant 5 : index
    %c0_227 = arith.constant 0 : index
    %c0_228 = arith.constant 0 : index
    %254 = vector.load %arg1[%c0_225, %c5_226, %c0_227, %c0_228] : memref<1x16x16x4xf32, #tpu.memory_space<vmem>>, vector<1x1x14x4xf32>
    %255 = vector.shape_cast %254 : vector<1x1x14x4xf32> to vector<14x4xf32>
    %256 = arith.truncf %255 : vector<14x4xf32> to vector<14x4xbf16>
    %cst_229 = arith.constant dense<0.000000e+00> : vector<14x128xf32>
    %257 = tpu.matmul %256, %6, %cst_229 {dimension_numbers = #tpu.dot_dimension_numbers<[1], [0], [0], [1], [0, 0, 1, 1], [], []>} : vector<14x4xbf16>, vector<4x128xbf16>, vector<14x128xf32> -> vector<14x128xf32>
    %258 = arith.addf %253, %257 : vector<14x128xf32>
    %c0_230 = arith.constant 0 : index
    %c5_231 = arith.constant 5 : index
    %c1_232 = arith.constant 1 : index
    %c0_233 = arith.constant 0 : index
    %259 = vector.load %arg1[%c0_230, %c5_231, %c1_232, %c0_233] : memref<1x16x16x4xf32, #tpu.memory_space<vmem>>, vector<1x1x14x4xf32>
    %260 = vector.shape_cast %259 : vector<1x1x14x4xf32> to vector<14x4xf32>
    %261 = arith.truncf %260 : vector<14x4xf32> to vector<14x4xbf16>
    %cst_234 = arith.constant dense<0.000000e+00> : vector<14x128xf32>
    %262 = tpu.matmul %261, %7, %cst_234 {dimension_numbers = #tpu.dot_dimension_numbers<[1], [0], [0], [1], [0, 0, 1, 1], [], []>} : vector<14x4xbf16>, vector<4x128xbf16>, vector<14x128xf32> -> vector<14x128xf32>
    %263 = arith.addf %258, %262 : vector<14x128xf32>
    %c0_235 = arith.constant 0 : index
    %c5_236 = arith.constant 5 : index
    %c2_237 = arith.constant 2 : index
    %c0_238 = arith.constant 0 : index
    %264 = vector.load %arg1[%c0_235, %c5_236, %c2_237, %c0_238] : memref<1x16x16x4xf32, #tpu.memory_space<vmem>>, vector<1x1x14x4xf32>
    %265 = vector.shape_cast %264 : vector<1x1x14x4xf32> to vector<14x4xf32>
    %266 = arith.truncf %265 : vector<14x4xf32> to vector<14x4xbf16>
    %cst_239 = arith.constant dense<0.000000e+00> : vector<14x128xf32>
    %267 = tpu.matmul %266, %8, %cst_239 {dimension_numbers = #tpu.dot_dimension_numbers<[1], [0], [0], [1], [0, 0, 1, 1], [], []>} : vector<14x4xbf16>, vector<4x128xbf16>, vector<14x128xf32> -> vector<14x128xf32>
    %268 = arith.addf %263, %267 : vector<14x128xf32>
    %c0_240 = arith.constant 0 : index
    %c6 = arith.constant 6 : index
    %c0_241 = arith.constant 0 : index
    %c0_242 = arith.constant 0 : index
    %269 = vector.load %arg1[%c0_240, %c6, %c0_241, %c0_242] : memref<1x16x16x4xf32, #tpu.memory_space<vmem>>, vector<1x1x14x4xf32>
    %270 = vector.shape_cast %269 : vector<1x1x14x4xf32> to vector<14x4xf32>
    %271 = arith.truncf %270 : vector<14x4xf32> to vector<14x4xbf16>
    %cst_243 = arith.constant dense<0.000000e+00> : vector<14x128xf32>
    %272 = tpu.matmul %271, %9, %cst_243 {dimension_numbers = #tpu.dot_dimension_numbers<[1], [0], [0], [1], [0, 0, 1, 1], [], []>} : vector<14x4xbf16>, vector<4x128xbf16>, vector<14x128xf32> -> vector<14x128xf32>
    %273 = arith.addf %268, %272 : vector<14x128xf32>
    %c0_244 = arith.constant 0 : index
    %c6_245 = arith.constant 6 : index
    %c1_246 = arith.constant 1 : index
    %c0_247 = arith.constant 0 : index
    %274 = vector.load %arg1[%c0_244, %c6_245, %c1_246, %c0_247] : memref<1x16x16x4xf32, #tpu.memory_space<vmem>>, vector<1x1x14x4xf32>
    %275 = vector.shape_cast %274 : vector<1x1x14x4xf32> to vector<14x4xf32>
    %276 = arith.truncf %275 : vector<14x4xf32> to vector<14x4xbf16>
    %cst_248 = arith.constant dense<0.000000e+00> : vector<14x128xf32>
    %277 = tpu.matmul %276, %10, %cst_248 {dimension_numbers = #tpu.dot_dimension_numbers<[1], [0], [0], [1], [0, 0, 1, 1], [], []>} : vector<14x4xbf16>, vector<4x128xbf16>, vector<14x128xf32> -> vector<14x128xf32>
    %278 = arith.addf %273, %277 : vector<14x128xf32>
    %c0_249 = arith.constant 0 : index
    %c6_250 = arith.constant 6 : index
    %c2_251 = arith.constant 2 : index
    %c0_252 = arith.constant 0 : index
    %279 = vector.load %arg1[%c0_249, %c6_250, %c2_251, %c0_252] : memref<1x16x16x4xf32, #tpu.memory_space<vmem>>, vector<1x1x14x4xf32>
    %280 = vector.shape_cast %279 : vector<1x1x14x4xf32> to vector<14x4xf32>
    %281 = arith.truncf %280 : vector<14x4xf32> to vector<14x4xbf16>
    %cst_253 = arith.constant dense<0.000000e+00> : vector<14x128xf32>
    %282 = tpu.matmul %281, %11, %cst_253 {dimension_numbers = #tpu.dot_dimension_numbers<[1], [0], [0], [1], [0, 0, 1, 1], [], []>} : vector<14x4xbf16>, vector<4x128xbf16>, vector<14x128xf32> -> vector<14x128xf32>
    %283 = arith.addf %278, %282 : vector<14x128xf32>
    %c0_254 = arith.constant 0 : index
    %c56 = arith.constant 56 : index
    %c0_255 = arith.constant 0 : index
    %284 = vector.load %arg3[%c0_254, %c56, %c0_255] : memref<1x196x128xf32, #tpu.memory_space<vmem>>, vector<1x14x128xf32>
    %285 = vector.shape_cast %284 : vector<1x14x128xf32> to vector<14x128xf32>
    %286 = vector.shape_cast %283 : vector<14x128xf32> to vector<1x14x128xf32>
    tpu.vector_store %arg3[%c0_254, %c56, %c0_255], %286 {strides = array<i32>} : memref<1x196x128xf32, #tpu.memory_space<vmem>>, vector<1x14x128xf32>,
    %cst_256 = arith.constant dense<0.000000e+00> : vector<128xf32>
    %287 = vector.multi_reduction <add>, %283, %cst_256 [0] : vector<14x128xf32> to vector<128xf32>
    %288 = vector.shape_cast %287 : vector<128xf32> to vector<1x128xf32>
    %289 = arith.addf %233, %288 : vector<1x128xf32>
    %290 = arith.mulf %283, %283 : vector<14x128xf32>
    %cst_257 = arith.constant dense<0.000000e+00> : vector<128xf32>
    %291 = vector.multi_reduction <add>, %290, %cst_257 [0] : vector<14x128xf32> to vector<128xf32>
    %292 = vector.shape_cast %291 : vector<128xf32> to vector<1x128xf32>
    %293 = arith.addf %237, %292 : vector<1x128xf32>
    %cst_258 = arith.constant 0.000000e+00 : f32
    %294 = vector.broadcast %cst_258 : f32 to vector<14x128xf32>
    %c0_259 = arith.constant 0 : index
    %c5_260 = arith.constant 5 : index
    %c0_261 = arith.constant 0 : index
    %c0_262 = arith.constant 0 : index
    %295 = vector.load %arg1[%c0_259, %c5_260, %c0_261, %c0_262] : memref<1x16x16x4xf32, #tpu.memory_space<vmem>>, vector<1x1x14x4xf32>
    %296 = vector.shape_cast %295 : vector<1x1x14x4xf32> to vector<14x4xf32>
    %297 = arith.truncf %296 : vector<14x4xf32> to vector<14x4xbf16>
    %cst_263 = arith.constant dense<0.000000e+00> : vector<14x128xf32>
    %298 = tpu.matmul %297, %3, %cst_263 {dimension_numbers = #tpu.dot_dimension_numbers<[1], [0], [0], [1], [0, 0, 1, 1], [], []>} : vector<14x4xbf16>, vector<4x128xbf16>, vector<14x128xf32> -> vector<14x128xf32>
    %299 = arith.addf %294, %298 : vector<14x128xf32>
    %c0_264 = arith.constant 0 : index
    %c5_265 = arith.constant 5 : index
    %c1_266 = arith.constant 1 : index
    %c0_267 = arith.constant 0 : index
    %300 = vector.load %arg1[%c0_264, %c5_265, %c1_266, %c0_267] : memref<1x16x16x4xf32, #tpu.memory_space<vmem>>, vector<1x1x14x4xf32>
    %301 = vector.shape_cast %300 : vector<1x1x14x4xf32> to vector<14x4xf32>
    %302 = arith.truncf %301 : vector<14x4xf32> to vector<14x4xbf16>
    %cst_268 = arith.constant dense<0.000000e+00> : vector<14x128xf32>
    %303 = tpu.matmul %302, %4, %cst_268 {dimension_numbers = #tpu.dot_dimension_numbers<[1], [0], [0], [1], [0, 0, 1, 1], [], []>} : vector<14x4xbf16>, vector<4x128xbf16>, vector<14x128xf32> -> vector<14x128xf32>
    %304 = arith.addf %299, %303 : vector<14x128xf32>
    %c0_269 = arith.constant 0 : index
    %c5_270 = arith.constant 5 : index
    %c2_271 = arith.constant 2 : index
    %c0_272 = arith.constant 0 : index
    %305 = vector.load %arg1[%c0_269, %c5_270, %c2_271, %c0_272] : memref<1x16x16x4xf32, #tpu.memory_space<vmem>>, vector<1x1x14x4xf32>
    %306 = vector.shape_cast %305 : vector<1x1x14x4xf32> to vector<14x4xf32>
    %307 = arith.truncf %306 : vector<14x4xf32> to vector<14x4xbf16>
    %cst_273 = arith.constant dense<0.000000e+00> : vector<14x128xf32>
    %308 = tpu.matmul %307, %5, %cst_273 {dimension_numbers = #tpu.dot_dimension_numbers<[1], [0], [0], [1], [0, 0, 1, 1], [], []>} : vector<14x4xbf16>, vector<4x128xbf16>, vector<14x128xf32> -> vector<14x128xf32>
    %309 = arith.addf %304, %308 : vector<14x128xf32>
    %c0_274 = arith.constant 0 : index
    %c6_275 = arith.constant 6 : index
    %c0_276 = arith.constant 0 : index
    %c0_277 = arith.constant 0 : index
    %310 = vector.load %arg1[%c0_274, %c6_275, %c0_276, %c0_277] : memref<1x16x16x4xf32, #tpu.memory_space<vmem>>, vector<1x1x14x4xf32>
    %311 = vector.shape_cast %310 : vector<1x1x14x4xf32> to vector<14x4xf32>
    %312 = arith.truncf %311 : vector<14x4xf32> to vector<14x4xbf16>
    %cst_278 = arith.constant dense<0.000000e+00> : vector<14x128xf32>
    %313 = tpu.matmul %312, %6, %cst_278 {dimension_numbers = #tpu.dot_dimension_numbers<[1], [0], [0], [1], [0, 0, 1, 1], [], []>} : vector<14x4xbf16>, vector<4x128xbf16>, vector<14x128xf32> -> vector<14x128xf32>
    %314 = arith.addf %309, %313 : vector<14x128xf32>
    %c0_279 = arith.constant 0 : index
    %c6_280 = arith.constant 6 : index
    %c1_281 = arith.constant 1 : index
    %c0_282 = arith.constant 0 : index
    %315 = vector.load %arg1[%c0_279, %c6_280, %c1_281, %c0_282] : memref<1x16x16x4xf32, #tpu.memory_space<vmem>>, vector<1x1x14x4xf32>
    %316 = vector.shape_cast %315 : vector<1x1x14x4xf32> to vector<14x4xf32>
    %317 = arith.truncf %316 : vector<14x4xf32> to vector<14x4xbf16>
    %cst_283 = arith.constant dense<0.000000e+00> : vector<14x128xf32>
    %318 = tpu.matmul %317, %7, %cst_283 {dimension_numbers = #tpu.dot_dimension_numbers<[1], [0], [0], [1], [0, 0, 1, 1], [], []>} : vector<14x4xbf16>, vector<4x128xbf16>, vector<14x128xf32> -> vector<14x128xf32>
    %319 = arith.addf %314, %318 : vector<14x128xf32>
    %c0_284 = arith.constant 0 : index
    %c6_285 = arith.constant 6 : index
    %c2_286 = arith.constant 2 : index
    %c0_287 = arith.constant 0 : index
    %320 = vector.load %arg1[%c0_284, %c6_285, %c2_286, %c0_287] : memref<1x16x16x4xf32, #tpu.memory_space<vmem>>, vector<1x1x14x4xf32>
    %321 = vector.shape_cast %320 : vector<1x1x14x4xf32> to vector<14x4xf32>
    %322 = arith.truncf %321 : vector<14x4xf32> to vector<14x4xbf16>
    %cst_288 = arith.constant dense<0.000000e+00> : vector<14x128xf32>
    %323 = tpu.matmul %322, %8, %cst_288 {dimension_numbers = #tpu.dot_dimension_numbers<[1], [0], [0], [1], [0, 0, 1, 1], [], []>} : vector<14x4xbf16>, vector<4x128xbf16>, vector<14x128xf32> -> vector<14x128xf32>
    %324 = arith.addf %319, %323 : vector<14x128xf32>
    %c0_289 = arith.constant 0 : index
    %c7 = arith.constant 7 : index
    %c0_290 = arith.constant 0 : index
    %c0_291 = arith.constant 0 : index
    %325 = vector.load %arg1[%c0_289, %c7, %c0_290, %c0_291] : memref<1x16x16x4xf32, #tpu.memory_space<vmem>>, vector<1x1x14x4xf32>
    %326 = vector.shape_cast %325 : vector<1x1x14x4xf32> to vector<14x4xf32>
    %327 = arith.truncf %326 : vector<14x4xf32> to vector<14x4xbf16>
    %cst_292 = arith.constant dense<0.000000e+00> : vector<14x128xf32>
    %328 = tpu.matmul %327, %9, %cst_292 {dimension_numbers = #tpu.dot_dimension_numbers<[1], [0], [0], [1], [0, 0, 1, 1], [], []>} : vector<14x4xbf16>, vector<4x128xbf16>, vector<14x128xf32> -> vector<14x128xf32>
    %329 = arith.addf %324, %328 : vector<14x128xf32>
    %c0_293 = arith.constant 0 : index
    %c7_294 = arith.constant 7 : index
    %c1_295 = arith.constant 1 : index
    %c0_296 = arith.constant 0 : index
    %330 = vector.load %arg1[%c0_293, %c7_294, %c1_295, %c0_296] : memref<1x16x16x4xf32, #tpu.memory_space<vmem>>, vector<1x1x14x4xf32>
    %331 = vector.shape_cast %330 : vector<1x1x14x4xf32> to vector<14x4xf32>
    %332 = arith.truncf %331 : vector<14x4xf32> to vector<14x4xbf16>
    %cst_297 = arith.constant dense<0.000000e+00> : vector<14x128xf32>
    %333 = tpu.matmul %332, %10, %cst_297 {dimension_numbers = #tpu.dot_dimension_numbers<[1], [0], [0], [1], [0, 0, 1, 1], [], []>} : vector<14x4xbf16>, vector<4x128xbf16>, vector<14x128xf32> -> vector<14x128xf32>
    %334 = arith.addf %329, %333 : vector<14x128xf32>
    %c0_298 = arith.constant 0 : index
    %c7_299 = arith.constant 7 : index
    %c2_300 = arith.constant 2 : index
    %c0_301 = arith.constant 0 : index
    %335 = vector.load %arg1[%c0_298, %c7_299, %c2_300, %c0_301] : memref<1x16x16x4xf32, #tpu.memory_space<vmem>>, vector<1x1x14x4xf32>
    %336 = vector.shape_cast %335 : vector<1x1x14x4xf32> to vector<14x4xf32>
    %337 = arith.truncf %336 : vector<14x4xf32> to vector<14x4xbf16>
    %cst_302 = arith.constant dense<0.000000e+00> : vector<14x128xf32>
    %338 = tpu.matmul %337, %11, %cst_302 {dimension_numbers = #tpu.dot_dimension_numbers<[1], [0], [0], [1], [0, 0, 1, 1], [], []>} : vector<14x4xbf16>, vector<4x128xbf16>, vector<14x128xf32> -> vector<14x128xf32>
    %339 = arith.addf %334, %338 : vector<14x128xf32>
    %c0_303 = arith.constant 0 : index
    %c70 = arith.constant 70 : index
    %c0_304 = arith.constant 0 : index
    %340 = vector.load %arg3[%c0_303, %c70, %c0_304] : memref<1x196x128xf32, #tpu.memory_space<vmem>>, vector<1x14x128xf32>
    %341 = vector.shape_cast %340 : vector<1x14x128xf32> to vector<14x128xf32>
    %342 = vector.shape_cast %339 : vector<14x128xf32> to vector<1x14x128xf32>
    tpu.vector_store %arg3[%c0_303, %c70, %c0_304], %342 {strides = array<i32>} : memref<1x196x128xf32, #tpu.memory_space<vmem>>, vector<1x14x128xf32>,
    %cst_305 = arith.constant dense<0.000000e+00> : vector<128xf32>
    %343 = vector.multi_reduction <add>, %339, %cst_305 [0] : vector<14x128xf32> to vector<128xf32>
    %344 = vector.shape_cast %343 : vector<128xf32> to vector<1x128xf32>
    %345 = arith.addf %289, %344 : vector<1x128xf32>
    %346 = arith.mulf %339, %339 : vector<14x128xf32>
    %cst_306 = arith.constant dense<0.000000e+00> : vector<128xf32>
    %347 = vector.multi_reduction <add>, %346, %cst_306 [0] : vector<14x128xf32> to vector<128xf32>
    %348 = vector.shape_cast %347 : vector<128xf32> to vector<1x128xf32>
    %349 = arith.addf %293, %348 : vector<1x128xf32>
    %cst_307 = arith.constant 0.000000e+00 : f32
    %350 = vector.broadcast %cst_307 : f32 to vector<14x128xf32>
    %c0_308 = arith.constant 0 : index
    %c6_309 = arith.constant 6 : index
    %c0_310 = arith.constant 0 : index
    %c0_311 = arith.constant 0 : index
    %351 = vector.load %arg1[%c0_308, %c6_309, %c0_310, %c0_311] : memref<1x16x16x4xf32, #tpu.memory_space<vmem>>, vector<1x1x14x4xf32>
    %352 = vector.shape_cast %351 : vector<1x1x14x4xf32> to vector<14x4xf32>
    %353 = arith.truncf %352 : vector<14x4xf32> to vector<14x4xbf16>
    %cst_312 = arith.constant dense<0.000000e+00> : vector<14x128xf32>
    %354 = tpu.matmul %353, %3, %cst_312 {dimension_numbers = #tpu.dot_dimension_numbers<[1], [0], [0], [1], [0, 0, 1, 1], [], []>} : vector<14x4xbf16>, vector<4x128xbf16>, vector<14x128xf32> -> vector<14x128xf32>
    %355 = arith.addf %350, %354 : vector<14x128xf32>
    %c0_313 = arith.constant 0 : index
    %c6_314 = arith.constant 6 : index
    %c1_315 = arith.constant 1 : index
    %c0_316 = arith.constant 0 : index
    %356 = vector.load %arg1[%c0_313, %c6_314, %c1_315, %c0_316] : memref<1x16x16x4xf32, #tpu.memory_space<vmem>>, vector<1x1x14x4xf32>
    %357 = vector.shape_cast %356 : vector<1x1x14x4xf32> to vector<14x4xf32>
    %358 = arith.truncf %357 : vector<14x4xf32> to vector<14x4xbf16>
    %cst_317 = arith.constant dense<0.000000e+00> : vector<14x128xf32>
    %359 = tpu.matmul %358, %4, %cst_317 {dimension_numbers = #tpu.dot_dimension_numbers<[1], [0], [0], [1], [0, 0, 1, 1], [], []>} : vector<14x4xbf16>, vector<4x128xbf16>, vector<14x128xf32> -> vector<14x128xf32>
    %360 = arith.addf %355, %359 : vector<14x128xf32>
    %c0_318 = arith.constant 0 : index
    %c6_319 = arith.constant 6 : index
    %c2_320 = arith.constant 2 : index
    %c0_321 = arith.constant 0 : index
    %361 = vector.load %arg1[%c0_318, %c6_319, %c2_320, %c0_321] : memref<1x16x16x4xf32, #tpu.memory_space<vmem>>, vector<1x1x14x4xf32>
    %362 = vector.shape_cast %361 : vector<1x1x14x4xf32> to vector<14x4xf32>
    %363 = arith.truncf %362 : vector<14x4xf32> to vector<14x4xbf16>
    %cst_322 = arith.constant dense<0.000000e+00> : vector<14x128xf32>
    %364 = tpu.matmul %363, %5, %cst_322 {dimension_numbers = #tpu.dot_dimension_numbers<[1], [0], [0], [1], [0, 0, 1, 1], [], []>} : vector<14x4xbf16>, vector<4x128xbf16>, vector<14x128xf32> -> vector<14x128xf32>
    %365 = arith.addf %360, %364 : vector<14x128xf32>
    %c0_323 = arith.constant 0 : index
    %c7_324 = arith.constant 7 : index
    %c0_325 = arith.constant 0 : index
    %c0_326 = arith.constant 0 : index
    %366 = vector.load %arg1[%c0_323, %c7_324, %c0_325, %c0_326] : memref<1x16x16x4xf32, #tpu.memory_space<vmem>>, vector<1x1x14x4xf32>
    %367 = vector.shape_cast %366 : vector<1x1x14x4xf32> to vector<14x4xf32>
    %368 = arith.truncf %367 : vector<14x4xf32> to vector<14x4xbf16>
    %cst_327 = arith.constant dense<0.000000e+00> : vector<14x128xf32>
    %369 = tpu.matmul %368, %6, %cst_327 {dimension_numbers = #tpu.dot_dimension_numbers<[1], [0], [0], [1], [0, 0, 1, 1], [], []>} : vector<14x4xbf16>, vector<4x128xbf16>, vector<14x128xf32> -> vector<14x128xf32>
    %370 = arith.addf %365, %369 : vector<14x128xf32>
    %c0_328 = arith.constant 0 : index
    %c7_329 = arith.constant 7 : index
    %c1_330 = arith.constant 1 : index
    %c0_331 = arith.constant 0 : index
    %371 = vector.load %arg1[%c0_328, %c7_329, %c1_330, %c0_331] : memref<1x16x16x4xf32, #tpu.memory_space<vmem>>, vector<1x1x14x4xf32>
    %372 = vector.shape_cast %371 : vector<1x1x14x4xf32> to vector<14x4xf32>
    %373 = arith.truncf %372 : vector<14x4xf32> to vector<14x4xbf16>
    %cst_332 = arith.constant dense<0.000000e+00> : vector<14x128xf32>
    %374 = tpu.matmul %373, %7, %cst_332 {dimension_numbers = #tpu.dot_dimension_numbers<[1], [0], [0], [1], [0, 0, 1, 1], [], []>} : vector<14x4xbf16>, vector<4x128xbf16>, vector<14x128xf32> -> vector<14x128xf32>
    %375 = arith.addf %370, %374 : vector<14x128xf32>
    %c0_333 = arith.constant 0 : index
    %c7_334 = arith.constant 7 : index
    %c2_335 = arith.constant 2 : index
    %c0_336 = arith.constant 0 : index
    %376 = vector.load %arg1[%c0_333, %c7_334, %c2_335, %c0_336] : memref<1x16x16x4xf32, #tpu.memory_space<vmem>>, vector<1x1x14x4xf32>
    %377 = vector.shape_cast %376 : vector<1x1x14x4xf32> to vector<14x4xf32>
    %378 = arith.truncf %377 : vector<14x4xf32> to vector<14x4xbf16>
    %cst_337 = arith.constant dense<0.000000e+00> : vector<14x128xf32>
    %379 = tpu.matmul %378, %8, %cst_337 {dimension_numbers = #tpu.dot_dimension_numbers<[1], [0], [0], [1], [0, 0, 1, 1], [], []>} : vector<14x4xbf16>, vector<4x128xbf16>, vector<14x128xf32> -> vector<14x128xf32>
    %380 = arith.addf %375, %379 : vector<14x128xf32>
    %c0_338 = arith.constant 0 : index
    %c8_339 = arith.constant 8 : index
    %c0_340 = arith.constant 0 : index
    %c0_341 = arith.constant 0 : index
    %381 = vector.load %arg1[%c0_338, %c8_339, %c0_340, %c0_341] : memref<1x16x16x4xf32, #tpu.memory_space<vmem>>, vector<1x1x14x4xf32>
    %382 = vector.shape_cast %381 : vector<1x1x14x4xf32> to vector<14x4xf32>
    %383 = arith.truncf %382 : vector<14x4xf32> to vector<14x4xbf16>
    %cst_342 = arith.constant dense<0.000000e+00> : vector<14x128xf32>
    %384 = tpu.matmul %383, %9, %cst_342 {dimension_numbers = #tpu.dot_dimension_numbers<[1], [0], [0], [1], [0, 0, 1, 1], [], []>} : vector<14x4xbf16>, vector<4x128xbf16>, vector<14x128xf32> -> vector<14x128xf32>
    %385 = arith.addf %380, %384 : vector<14x128xf32>
    %c0_343 = arith.constant 0 : index
    %c8_344 = arith.constant 8 : index
    %c1_345 = arith.constant 1 : index
    %c0_346 = arith.constant 0 : index
    %386 = vector.load %arg1[%c0_343, %c8_344, %c1_345, %c0_346] : memref<1x16x16x4xf32, #tpu.memory_space<vmem>>, vector<1x1x14x4xf32>
    %387 = vector.shape_cast %386 : vector<1x1x14x4xf32> to vector<14x4xf32>
    %388 = arith.truncf %387 : vector<14x4xf32> to vector<14x4xbf16>
    %cst_347 = arith.constant dense<0.000000e+00> : vector<14x128xf32>
    %389 = tpu.matmul %388, %10, %cst_347 {dimension_numbers = #tpu.dot_dimension_numbers<[1], [0], [0], [1], [0, 0, 1, 1], [], []>} : vector<14x4xbf16>, vector<4x128xbf16>, vector<14x128xf32> -> vector<14x128xf32>
    %390 = arith.addf %385, %389 : vector<14x128xf32>
    %c0_348 = arith.constant 0 : index
    %c8_349 = arith.constant 8 : index
    %c2_350 = arith.constant 2 : index
    %c0_351 = arith.constant 0 : index
    %391 = vector.load %arg1[%c0_348, %c8_349, %c2_350, %c0_351] : memref<1x16x16x4xf32, #tpu.memory_space<vmem>>, vector<1x1x14x4xf32>
    %392 = vector.shape_cast %391 : vector<1x1x14x4xf32> to vector<14x4xf32>
    %393 = arith.truncf %392 : vector<14x4xf32> to vector<14x4xbf16>
    %cst_352 = arith.constant dense<0.000000e+00> : vector<14x128xf32>
    %394 = tpu.matmul %393, %11, %cst_352 {dimension_numbers = #tpu.dot_dimension_numbers<[1], [0], [0], [1], [0, 0, 1, 1], [], []>} : vector<14x4xbf16>, vector<4x128xbf16>, vector<14x128xf32> -> vector<14x128xf32>
    %395 = arith.addf %390, %394 : vector<14x128xf32>
    %c0_353 = arith.constant 0 : index
    %c84 = arith.constant 84 : index
    %c0_354 = arith.constant 0 : index
    %396 = vector.load %arg3[%c0_353, %c84, %c0_354] : memref<1x196x128xf32, #tpu.memory_space<vmem>>, vector<1x14x128xf32>
    %397 = vector.shape_cast %396 : vector<1x14x128xf32> to vector<14x128xf32>
    %398 = vector.shape_cast %395 : vector<14x128xf32> to vector<1x14x128xf32>
    tpu.vector_store %arg3[%c0_353, %c84, %c0_354], %398 {strides = array<i32>} : memref<1x196x128xf32, #tpu.memory_space<vmem>>, vector<1x14x128xf32>,
    %cst_355 = arith.constant dense<0.000000e+00> : vector<128xf32>
    %399 = vector.multi_reduction <add>, %395, %cst_355 [0] : vector<14x128xf32> to vector<128xf32>
    %400 = vector.shape_cast %399 : vector<128xf32> to vector<1x128xf32>
    %401 = arith.addf %345, %400 : vector<1x128xf32>
    %402 = arith.mulf %395, %395 : vector<14x128xf32>
    %cst_356 = arith.constant dense<0.000000e+00> : vector<128xf32>
    %403 = vector.multi_reduction <add>, %402, %cst_356 [0] : vector<14x128xf32> to vector<128xf32>
    %404 = vector.shape_cast %403 : vector<128xf32> to vector<1x128xf32>
    %405 = arith.addf %349, %404 : vector<1x128xf32>
    %cst_357 = arith.constant 0.000000e+00 : f32
    %406 = vector.broadcast %cst_357 : f32 to vector<14x128xf32>
    %c0_358 = arith.constant 0 : index
    %c7_359 = arith.constant 7 : index
    %c0_360 = arith.constant 0 : index
    %c0_361 = arith.constant 0 : index
    %407 = vector.load %arg1[%c0_358, %c7_359, %c0_360, %c0_361] : memref<1x16x16x4xf32, #tpu.memory_space<vmem>>, vector<1x1x14x4xf32>
    %408 = vector.shape_cast %407 : vector<1x1x14x4xf32> to vector<14x4xf32>
    %409 = arith.truncf %408 : vector<14x4xf32> to vector<14x4xbf16>
    %cst_362 = arith.constant dense<0.000000e+00> : vector<14x128xf32>
    %410 = tpu.matmul %409, %3, %cst_362 {dimension_numbers = #tpu.dot_dimension_numbers<[1], [0], [0], [1], [0, 0, 1, 1], [], []>} : vector<14x4xbf16>, vector<4x128xbf16>, vector<14x128xf32> -> vector<14x128xf32>
    %411 = arith.addf %406, %410 : vector<14x128xf32>
    %c0_363 = arith.constant 0 : index
    %c7_364 = arith.constant 7 : index
    %c1_365 = arith.constant 1 : index
    %c0_366 = arith.constant 0 : index
    %412 = vector.load %arg1[%c0_363, %c7_364, %c1_365, %c0_366] : memref<1x16x16x4xf32, #tpu.memory_space<vmem>>, vector<1x1x14x4xf32>
    %413 = vector.shape_cast %412 : vector<1x1x14x4xf32> to vector<14x4xf32>
    %414 = arith.truncf %413 : vector<14x4xf32> to vector<14x4xbf16>
    %cst_367 = arith.constant dense<0.000000e+00> : vector<14x128xf32>
    %415 = tpu.matmul %414, %4, %cst_367 {dimension_numbers = #tpu.dot_dimension_numbers<[1], [0], [0], [1], [0, 0, 1, 1], [], []>} : vector<14x4xbf16>, vector<4x128xbf16>, vector<14x128xf32> -> vector<14x128xf32>
    %416 = arith.addf %411, %415 : vector<14x128xf32>
    %c0_368 = arith.constant 0 : index
    %c7_369 = arith.constant 7 : index
    %c2_370 = arith.constant 2 : index
    %c0_371 = arith.constant 0 : index
    %417 = vector.load %arg1[%c0_368, %c7_369, %c2_370, %c0_371] : memref<1x16x16x4xf32, #tpu.memory_space<vmem>>, vector<1x1x14x4xf32>
    %418 = vector.shape_cast %417 : vector<1x1x14x4xf32> to vector<14x4xf32>
    %419 = arith.truncf %418 : vector<14x4xf32> to vector<14x4xbf16>
    %cst_372 = arith.constant dense<0.000000e+00> : vector<14x128xf32>
    %420 = tpu.matmul %419, %5, %cst_372 {dimension_numbers = #tpu.dot_dimension_numbers<[1], [0], [0], [1], [0, 0, 1, 1], [], []>} : vector<14x4xbf16>, vector<4x128xbf16>, vector<14x128xf32> -> vector<14x128xf32>
    %421 = arith.addf %416, %420 : vector<14x128xf32>
    %c0_373 = arith.constant 0 : index
    %c8_374 = arith.constant 8 : index
    %c0_375 = arith.constant 0 : index
    %c0_376 = arith.constant 0 : index
    %422 = vector.load %arg1[%c0_373, %c8_374, %c0_375, %c0_376] : memref<1x16x16x4xf32, #tpu.memory_space<vmem>>, vector<1x1x14x4xf32>
    %423 = vector.shape_cast %422 : vector<1x1x14x4xf32> to vector<14x4xf32>
    %424 = arith.truncf %423 : vector<14x4xf32> to vector<14x4xbf16>
    %cst_377 = arith.constant dense<0.000000e+00> : vector<14x128xf32>
    %425 = tpu.matmul %424, %6, %cst_377 {dimension_numbers = #tpu.dot_dimension_numbers<[1], [0], [0], [1], [0, 0, 1, 1], [], []>} : vector<14x4xbf16>, vector<4x128xbf16>, vector<14x128xf32> -> vector<14x128xf32>
    %426 = arith.addf %421, %425 : vector<14x128xf32>
    %c0_378 = arith.constant 0 : index
    %c8_379 = arith.constant 8 : index
    %c1_380 = arith.constant 1 : index
    %c0_381 = arith.constant 0 : index
    %427 = vector.load %arg1[%c0_378, %c8_379, %c1_380, %c0_381] : memref<1x16x16x4xf32, #tpu.memory_space<vmem>>, vector<1x1x14x4xf32>
    %428 = vector.shape_cast %427 : vector<1x1x14x4xf32> to vector<14x4xf32>
    %429 = arith.truncf %428 : vector<14x4xf32> to vector<14x4xbf16>
    %cst_382 = arith.constant dense<0.000000e+00> : vector<14x128xf32>
    %430 = tpu.matmul %429, %7, %cst_382 {dimension_numbers = #tpu.dot_dimension_numbers<[1], [0], [0], [1], [0, 0, 1, 1], [], []>} : vector<14x4xbf16>, vector<4x128xbf16>, vector<14x128xf32> -> vector<14x128xf32>
    %431 = arith.addf %426, %430 : vector<14x128xf32>
    %c0_383 = arith.constant 0 : index
    %c8_384 = arith.constant 8 : index
    %c2_385 = arith.constant 2 : index
    %c0_386 = arith.constant 0 : index
    %432 = vector.load %arg1[%c0_383, %c8_384, %c2_385, %c0_386] : memref<1x16x16x4xf32, #tpu.memory_space<vmem>>, vector<1x1x14x4xf32>
    %433 = vector.shape_cast %432 : vector<1x1x14x4xf32> to vector<14x4xf32>
    %434 = arith.truncf %433 : vector<14x4xf32> to vector<14x4xbf16>
    %cst_387 = arith.constant dense<0.000000e+00> : vector<14x128xf32>
    %435 = tpu.matmul %434, %8, %cst_387 {dimension_numbers = #tpu.dot_dimension_numbers<[1], [0], [0], [1], [0, 0, 1, 1], [], []>} : vector<14x4xbf16>, vector<4x128xbf16>, vector<14x128xf32> -> vector<14x128xf32>
    %436 = arith.addf %431, %435 : vector<14x128xf32>
    %c0_388 = arith.constant 0 : index
    %c9 = arith.constant 9 : index
    %c0_389 = arith.constant 0 : index
    %c0_390 = arith.constant 0 : index
    %437 = vector.load %arg1[%c0_388, %c9, %c0_389, %c0_390] : memref<1x16x16x4xf32, #tpu.memory_space<vmem>>, vector<1x1x14x4xf32>
    %438 = vector.shape_cast %437 : vector<1x1x14x4xf32> to vector<14x4xf32>
    %439 = arith.truncf %438 : vector<14x4xf32> to vector<14x4xbf16>
    %cst_391 = arith.constant dense<0.000000e+00> : vector<14x128xf32>
    %440 = tpu.matmul %439, %9, %cst_391 {dimension_numbers = #tpu.dot_dimension_numbers<[1], [0], [0], [1], [0, 0, 1, 1], [], []>} : vector<14x4xbf16>, vector<4x128xbf16>, vector<14x128xf32> -> vector<14x128xf32>
    %441 = arith.addf %436, %440 : vector<14x128xf32>
    %c0_392 = arith.constant 0 : index
    %c9_393 = arith.constant 9 : index
    %c1_394 = arith.constant 1 : index
    %c0_395 = arith.constant 0 : index
    %442 = vector.load %arg1[%c0_392, %c9_393, %c1_394, %c0_395] : memref<1x16x16x4xf32, #tpu.memory_space<vmem>>, vector<1x1x14x4xf32>
    %443 = vector.shape_cast %442 : vector<1x1x14x4xf32> to vector<14x4xf32>
    %444 = arith.truncf %443 : vector<14x4xf32> to vector<14x4xbf16>
    %cst_396 = arith.constant dense<0.000000e+00> : vector<14x128xf32>
    %445 = tpu.matmul %444, %10, %cst_396 {dimension_numbers = #tpu.dot_dimension_numbers<[1], [0], [0], [1], [0, 0, 1, 1], [], []>} : vector<14x4xbf16>, vector<4x128xbf16>, vector<14x128xf32> -> vector<14x128xf32>
    %446 = arith.addf %441, %445 : vector<14x128xf32>
    %c0_397 = arith.constant 0 : index
    %c9_398 = arith.constant 9 : index
    %c2_399 = arith.constant 2 : index
    %c0_400 = arith.constant 0 : index
    %447 = vector.load %arg1[%c0_397, %c9_398, %c2_399, %c0_400] : memref<1x16x16x4xf32, #tpu.memory_space<vmem>>, vector<1x1x14x4xf32>
    %448 = vector.shape_cast %447 : vector<1x1x14x4xf32> to vector<14x4xf32>
    %449 = arith.truncf %448 : vector<14x4xf32> to vector<14x4xbf16>
    %cst_401 = arith.constant dense<0.000000e+00> : vector<14x128xf32>
    %450 = tpu.matmul %449, %11, %cst_401 {dimension_numbers = #tpu.dot_dimension_numbers<[1], [0], [0], [1], [0, 0, 1, 1], [], []>} : vector<14x4xbf16>, vector<4x128xbf16>, vector<14x128xf32> -> vector<14x128xf32>
    %451 = arith.addf %446, %450 : vector<14x128xf32>
    %c0_402 = arith.constant 0 : index
    %c98 = arith.constant 98 : index
    %c0_403 = arith.constant 0 : index
    %452 = vector.load %arg3[%c0_402, %c98, %c0_403] : memref<1x196x128xf32, #tpu.memory_space<vmem>>, vector<1x14x128xf32>
    %453 = vector.shape_cast %452 : vector<1x14x128xf32> to vector<14x128xf32>
    %454 = vector.shape_cast %451 : vector<14x128xf32> to vector<1x14x128xf32>
    tpu.vector_store %arg3[%c0_402, %c98, %c0_403], %454 {strides = array<i32>} : memref<1x196x128xf32, #tpu.memory_space<vmem>>, vector<1x14x128xf32>,
    %cst_404 = arith.constant dense<0.000000e+00> : vector<128xf32>
    %455 = vector.multi_reduction <add>, %451, %cst_404 [0] : vector<14x128xf32> to vector<128xf32>
    %456 = vector.shape_cast %455 : vector<128xf32> to vector<1x128xf32>
    %457 = arith.addf %401, %456 : vector<1x128xf32>
    %458 = arith.mulf %451, %451 : vector<14x128xf32>
    %cst_405 = arith.constant dense<0.000000e+00> : vector<128xf32>
    %459 = vector.multi_reduction <add>, %458, %cst_405 [0] : vector<14x128xf32> to vector<128xf32>
    %460 = vector.shape_cast %459 : vector<128xf32> to vector<1x128xf32>
    %461 = arith.addf %405, %460 : vector<1x128xf32>
    %cst_406 = arith.constant 0.000000e+00 : f32
    %462 = vector.broadcast %cst_406 : f32 to vector<14x128xf32>
    %c0_407 = arith.constant 0 : index
    %c8_408 = arith.constant 8 : index
    %c0_409 = arith.constant 0 : index
    %c0_410 = arith.constant 0 : index
    %463 = vector.load %arg1[%c0_407, %c8_408, %c0_409, %c0_410] : memref<1x16x16x4xf32, #tpu.memory_space<vmem>>, vector<1x1x14x4xf32>
    %464 = vector.shape_cast %463 : vector<1x1x14x4xf32> to vector<14x4xf32>
    %465 = arith.truncf %464 : vector<14x4xf32> to vector<14x4xbf16>
    %cst_411 = arith.constant dense<0.000000e+00> : vector<14x128xf32>
    %466 = tpu.matmul %465, %3, %cst_411 {dimension_numbers = #tpu.dot_dimension_numbers<[1], [0], [0], [1], [0, 0, 1, 1], [], []>} : vector<14x4xbf16>, vector<4x128xbf16>, vector<14x128xf32> -> vector<14x128xf32>
    %467 = arith.addf %462, %466 : vector<14x128xf32>
    %c0_412 = arith.constant 0 : index
    %c8_413 = arith.constant 8 : index
    %c1_414 = arith.constant 1 : index
    %c0_415 = arith.constant 0 : index
    %468 = vector.load %arg1[%c0_412, %c8_413, %c1_414, %c0_415] : memref<1x16x16x4xf32, #tpu.memory_space<vmem>>, vector<1x1x14x4xf32>
    %469 = vector.shape_cast %468 : vector<1x1x14x4xf32> to vector<14x4xf32>
    %470 = arith.truncf %469 : vector<14x4xf32> to vector<14x4xbf16>
    %cst_416 = arith.constant dense<0.000000e+00> : vector<14x128xf32>
    %471 = tpu.matmul %470, %4, %cst_416 {dimension_numbers = #tpu.dot_dimension_numbers<[1], [0], [0], [1], [0, 0, 1, 1], [], []>} : vector<14x4xbf16>, vector<4x128xbf16>, vector<14x128xf32> -> vector<14x128xf32>
    %472 = arith.addf %467, %471 : vector<14x128xf32>
    %c0_417 = arith.constant 0 : index
    %c8_418 = arith.constant 8 : index
    %c2_419 = arith.constant 2 : index
    %c0_420 = arith.constant 0 : index
    %473 = vector.load %arg1[%c0_417, %c8_418, %c2_419, %c0_420] : memref<1x16x16x4xf32, #tpu.memory_space<vmem>>, vector<1x1x14x4xf32>
    %474 = vector.shape_cast %473 : vector<1x1x14x4xf32> to vector<14x4xf32>
    %475 = arith.truncf %474 : vector<14x4xf32> to vector<14x4xbf16>
    %cst_421 = arith.constant dense<0.000000e+00> : vector<14x128xf32>
    %476 = tpu.matmul %475, %5, %cst_421 {dimension_numbers = #tpu.dot_dimension_numbers<[1], [0], [0], [1], [0, 0, 1, 1], [], []>} : vector<14x4xbf16>, vector<4x128xbf16>, vector<14x128xf32> -> vector<14x128xf32>
    %477 = arith.addf %472, %476 : vector<14x128xf32>
    %c0_422 = arith.constant 0 : index
    %c9_423 = arith.constant 9 : index
    %c0_424 = arith.constant 0 : index
    %c0_425 = arith.constant 0 : index
    %478 = vector.load %arg1[%c0_422, %c9_423, %c0_424, %c0_425] : memref<1x16x16x4xf32, #tpu.memory_space<vmem>>, vector<1x1x14x4xf32>
    %479 = vector.shape_cast %478 : vector<1x1x14x4xf32> to vector<14x4xf32>
    %480 = arith.truncf %479 : vector<14x4xf32> to vector<14x4xbf16>
    %cst_426 = arith.constant dense<0.000000e+00> : vector<14x128xf32>
    %481 = tpu.matmul %480, %6, %cst_426 {dimension_numbers = #tpu.dot_dimension_numbers<[1], [0], [0], [1], [0, 0, 1, 1], [], []>} : vector<14x4xbf16>, vector<4x128xbf16>, vector<14x128xf32> -> vector<14x128xf32>
    %482 = arith.addf %477, %481 : vector<14x128xf32>
    %c0_427 = arith.constant 0 : index
    %c9_428 = arith.constant 9 : index
    %c1_429 = arith.constant 1 : index
    %c0_430 = arith.constant 0 : index
    %483 = vector.load %arg1[%c0_427, %c9_428, %c1_429, %c0_430] : memref<1x16x16x4xf32, #tpu.memory_space<vmem>>, vector<1x1x14x4xf32>
    %484 = vector.shape_cast %483 : vector<1x1x14x4xf32> to vector<14x4xf32>
    %485 = arith.truncf %484 : vector<14x4xf32> to vector<14x4xbf16>
    %cst_431 = arith.constant dense<0.000000e+00> : vector<14x128xf32>
    %486 = tpu.matmul %485, %7, %cst_431 {dimension_numbers = #tpu.dot_dimension_numbers<[1], [0], [0], [1], [0, 0, 1, 1], [], []>} : vector<14x4xbf16>, vector<4x128xbf16>, vector<14x128xf32> -> vector<14x128xf32>
    %487 = arith.addf %482, %486 : vector<14x128xf32>
    %c0_432 = arith.constant 0 : index
    %c9_433 = arith.constant 9 : index
    %c2_434 = arith.constant 2 : index
    %c0_435 = arith.constant 0 : index
    %488 = vector.load %arg1[%c0_432, %c9_433, %c2_434, %c0_435] : memref<1x16x16x4xf32, #tpu.memory_space<vmem>>, vector<1x1x14x4xf32>
    %489 = vector.shape_cast %488 : vector<1x1x14x4xf32> to vector<14x4xf32>
    %490 = arith.truncf %489 : vector<14x4xf32> to vector<14x4xbf16>
    %cst_436 = arith.constant dense<0.000000e+00> : vector<14x128xf32>
    %491 = tpu.matmul %490, %8, %cst_436 {dimension_numbers = #tpu.dot_dimension_numbers<[1], [0], [0], [1], [0, 0, 1, 1], [], []>} : vector<14x4xbf16>, vector<4x128xbf16>, vector<14x128xf32> -> vector<14x128xf32>
    %492 = arith.addf %487, %491 : vector<14x128xf32>
    %c0_437 = arith.constant 0 : index
    %c10 = arith.constant 10 : index
    %c0_438 = arith.constant 0 : index
    %c0_439 = arith.constant 0 : index
    %493 = vector.load %arg1[%c0_437, %c10, %c0_438, %c0_439] : memref<1x16x16x4xf32, #tpu.memory_space<vmem>>, vector<1x1x14x4xf32>
    %494 = vector.shape_cast %493 : vector<1x1x14x4xf32> to vector<14x4xf32>
    %495 = arith.truncf %494 : vector<14x4xf32> to vector<14x4xbf16>
    %cst_440 = arith.constant dense<0.000000e+00> : vector<14x128xf32>
    %496 = tpu.matmul %495, %9, %cst_440 {dimension_numbers = #tpu.dot_dimension_numbers<[1], [0], [0], [1], [0, 0, 1, 1], [], []>} : vector<14x4xbf16>, vector<4x128xbf16>, vector<14x128xf32> -> vector<14x128xf32>
    %497 = arith.addf %492, %496 : vector<14x128xf32>
    %c0_441 = arith.constant 0 : index
    %c10_442 = arith.constant 10 : index
    %c1_443 = arith.constant 1 : index
    %c0_444 = arith.constant 0 : index
    %498 = vector.load %arg1[%c0_441, %c10_442, %c1_443, %c0_444] : memref<1x16x16x4xf32, #tpu.memory_space<vmem>>, vector<1x1x14x4xf32>
    %499 = vector.shape_cast %498 : vector<1x1x14x4xf32> to vector<14x4xf32>
    %500 = arith.truncf %499 : vector<14x4xf32> to vector<14x4xbf16>
    %cst_445 = arith.constant dense<0.000000e+00> : vector<14x128xf32>
    %501 = tpu.matmul %500, %10, %cst_445 {dimension_numbers = #tpu.dot_dimension_numbers<[1], [0], [0], [1], [0, 0, 1, 1], [], []>} : vector<14x4xbf16>, vector<4x128xbf16>, vector<14x128xf32> -> vector<14x128xf32>
    %502 = arith.addf %497, %501 : vector<14x128xf32>
    %c0_446 = arith.constant 0 : index
    %c10_447 = arith.constant 10 : index
    %c2_448 = arith.constant 2 : index
    %c0_449 = arith.constant 0 : index
    %503 = vector.load %arg1[%c0_446, %c10_447, %c2_448, %c0_449] : memref<1x16x16x4xf32, #tpu.memory_space<vmem>>, vector<1x1x14x4xf32>
    %504 = vector.shape_cast %503 : vector<1x1x14x4xf32> to vector<14x4xf32>
    %505 = arith.truncf %504 : vector<14x4xf32> to vector<14x4xbf16>
    %cst_450 = arith.constant dense<0.000000e+00> : vector<14x128xf32>
    %506 = tpu.matmul %505, %11, %cst_450 {dimension_numbers = #tpu.dot_dimension_numbers<[1], [0], [0], [1], [0, 0, 1, 1], [], []>} : vector<14x4xbf16>, vector<4x128xbf16>, vector<14x128xf32> -> vector<14x128xf32>
    %507 = arith.addf %502, %506 : vector<14x128xf32>
    %c0_451 = arith.constant 0 : index
    %c112 = arith.constant 112 : index
    %c0_452 = arith.constant 0 : index
    %508 = vector.load %arg3[%c0_451, %c112, %c0_452] : memref<1x196x128xf32, #tpu.memory_space<vmem>>, vector<1x14x128xf32>
    %509 = vector.shape_cast %508 : vector<1x14x128xf32> to vector<14x128xf32>
    %510 = vector.shape_cast %507 : vector<14x128xf32> to vector<1x14x128xf32>
    tpu.vector_store %arg3[%c0_451, %c112, %c0_452], %510 {strides = array<i32>} : memref<1x196x128xf32, #tpu.memory_space<vmem>>, vector<1x14x128xf32>,
    %cst_453 = arith.constant dense<0.000000e+00> : vector<128xf32>
    %511 = vector.multi_reduction <add>, %507, %cst_453 [0] : vector<14x128xf32> to vector<128xf32>
    %512 = vector.shape_cast %511 : vector<128xf32> to vector<1x128xf32>
    %513 = arith.addf %457, %512 : vector<1x128xf32>
    %514 = arith.mulf %507, %507 : vector<14x128xf32>
    %cst_454 = arith.constant dense<0.000000e+00> : vector<128xf32>
    %515 = vector.multi_reduction <add>, %514, %cst_454 [0] : vector<14x128xf32> to vector<128xf32>
    %516 = vector.shape_cast %515 : vector<128xf32> to vector<1x128xf32>
    %517 = arith.addf %461, %516 : vector<1x128xf32>
    %cst_455 = arith.constant 0.000000e+00 : f32
    %518 = vector.broadcast %cst_455 : f32 to vector<14x128xf32>
    %c0_456 = arith.constant 0 : index
    %c9_457 = arith.constant 9 : index
    %c0_458 = arith.constant 0 : index
    %c0_459 = arith.constant 0 : index
    %519 = vector.load %arg1[%c0_456, %c9_457, %c0_458, %c0_459] : memref<1x16x16x4xf32, #tpu.memory_space<vmem>>, vector<1x1x14x4xf32>
    %520 = vector.shape_cast %519 : vector<1x1x14x4xf32> to vector<14x4xf32>
    %521 = arith.truncf %520 : vector<14x4xf32> to vector<14x4xbf16>
    %cst_460 = arith.constant dense<0.000000e+00> : vector<14x128xf32>
    %522 = tpu.matmul %521, %3, %cst_460 {dimension_numbers = #tpu.dot_dimension_numbers<[1], [0], [0], [1], [0, 0, 1, 1], [], []>} : vector<14x4xbf16>, vector<4x128xbf16>, vector<14x128xf32> -> vector<14x128xf32>
    %523 = arith.addf %518, %522 : vector<14x128xf32>
    %c0_461 = arith.constant 0 : index
    %c9_462 = arith.constant 9 : index
    %c1_463 = arith.constant 1 : index
    %c0_464 = arith.constant 0 : index
    %524 = vector.load %arg1[%c0_461, %c9_462, %c1_463, %c0_464] : memref<1x16x16x4xf32, #tpu.memory_space<vmem>>, vector<1x1x14x4xf32>
    %525 = vector.shape_cast %524 : vector<1x1x14x4xf32> to vector<14x4xf32>
    %526 = arith.truncf %525 : vector<14x4xf32> to vector<14x4xbf16>
    %cst_465 = arith.constant dense<0.000000e+00> : vector<14x128xf32>
    %527 = tpu.matmul %526, %4, %cst_465 {dimension_numbers = #tpu.dot_dimension_numbers<[1], [0], [0], [1], [0, 0, 1, 1], [], []>} : vector<14x4xbf16>, vector<4x128xbf16>, vector<14x128xf32> -> vector<14x128xf32>
    %528 = arith.addf %523, %527 : vector<14x128xf32>
    %c0_466 = arith.constant 0 : index
    %c9_467 = arith.constant 9 : index
    %c2_468 = arith.constant 2 : index
    %c0_469 = arith.constant 0 : index
    %529 = vector.load %arg1[%c0_466, %c9_467, %c2_468, %c0_469] : memref<1x16x16x4xf32, #tpu.memory_space<vmem>>, vector<1x1x14x4xf32>
    %530 = vector.shape_cast %529 : vector<1x1x14x4xf32> to vector<14x4xf32>
    %531 = arith.truncf %530 : vector<14x4xf32> to vector<14x4xbf16>
    %cst_470 = arith.constant dense<0.000000e+00> : vector<14x128xf32>
    %532 = tpu.matmul %531, %5, %cst_470 {dimension_numbers = #tpu.dot_dimension_numbers<[1], [0], [0], [1], [0, 0, 1, 1], [], []>} : vector<14x4xbf16>, vector<4x128xbf16>, vector<14x128xf32> -> vector<14x128xf32>
    %533 = arith.addf %528, %532 : vector<14x128xf32>
    %c0_471 = arith.constant 0 : index
    %c10_472 = arith.constant 10 : index
    %c0_473 = arith.constant 0 : index
    %c0_474 = arith.constant 0 : index
    %534 = vector.load %arg1[%c0_471, %c10_472, %c0_473, %c0_474] : memref<1x16x16x4xf32, #tpu.memory_space<vmem>>, vector<1x1x14x4xf32>
    %535 = vector.shape_cast %534 : vector<1x1x14x4xf32> to vector<14x4xf32>
    %536 = arith.truncf %535 : vector<14x4xf32> to vector<14x4xbf16>
    %cst_475 = arith.constant dense<0.000000e+00> : vector<14x128xf32>
    %537 = tpu.matmul %536, %6, %cst_475 {dimension_numbers = #tpu.dot_dimension_numbers<[1], [0], [0], [1], [0, 0, 1, 1], [], []>} : vector<14x4xbf16>, vector<4x128xbf16>, vector<14x128xf32> -> vector<14x128xf32>
    %538 = arith.addf %533, %537 : vector<14x128xf32>
    %c0_476 = arith.constant 0 : index
    %c10_477 = arith.constant 10 : index
    %c1_478 = arith.constant 1 : index
    %c0_479 = arith.constant 0 : index
    %539 = vector.load %arg1[%c0_476, %c10_477, %c1_478, %c0_479] : memref<1x16x16x4xf32, #tpu.memory_space<vmem>>, vector<1x1x14x4xf32>
    %540 = vector.shape_cast %539 : vector<1x1x14x4xf32> to vector<14x4xf32>
    %541 = arith.truncf %540 : vector<14x4xf32> to vector<14x4xbf16>
    %cst_480 = arith.constant dense<0.000000e+00> : vector<14x128xf32>
    %542 = tpu.matmul %541, %7, %cst_480 {dimension_numbers = #tpu.dot_dimension_numbers<[1], [0], [0], [1], [0, 0, 1, 1], [], []>} : vector<14x4xbf16>, vector<4x128xbf16>, vector<14x128xf32> -> vector<14x128xf32>
    %543 = arith.addf %538, %542 : vector<14x128xf32>
    %c0_481 = arith.constant 0 : index
    %c10_482 = arith.constant 10 : index
    %c2_483 = arith.constant 2 : index
    %c0_484 = arith.constant 0 : index
    %544 = vector.load %arg1[%c0_481, %c10_482, %c2_483, %c0_484] : memref<1x16x16x4xf32, #tpu.memory_space<vmem>>, vector<1x1x14x4xf32>
    %545 = vector.shape_cast %544 : vector<1x1x14x4xf32> to vector<14x4xf32>
    %546 = arith.truncf %545 : vector<14x4xf32> to vector<14x4xbf16>
    %cst_485 = arith.constant dense<0.000000e+00> : vector<14x128xf32>
    %547 = tpu.matmul %546, %8, %cst_485 {dimension_numbers = #tpu.dot_dimension_numbers<[1], [0], [0], [1], [0, 0, 1, 1], [], []>} : vector<14x4xbf16>, vector<4x128xbf16>, vector<14x128xf32> -> vector<14x128xf32>
    %548 = arith.addf %543, %547 : vector<14x128xf32>
    %c0_486 = arith.constant 0 : index
    %c11 = arith.constant 11 : index
    %c0_487 = arith.constant 0 : index
    %c0_488 = arith.constant 0 : index
    %549 = vector.load %arg1[%c0_486, %c11, %c0_487, %c0_488] : memref<1x16x16x4xf32, #tpu.memory_space<vmem>>, vector<1x1x14x4xf32>
    %550 = vector.shape_cast %549 : vector<1x1x14x4xf32> to vector<14x4xf32>
    %551 = arith.truncf %550 : vector<14x4xf32> to vector<14x4xbf16>
    %cst_489 = arith.constant dense<0.000000e+00> : vector<14x128xf32>
    %552 = tpu.matmul %551, %9, %cst_489 {dimension_numbers = #tpu.dot_dimension_numbers<[1], [0], [0], [1], [0, 0, 1, 1], [], []>} : vector<14x4xbf16>, vector<4x128xbf16>, vector<14x128xf32> -> vector<14x128xf32>
    %553 = arith.addf %548, %552 : vector<14x128xf32>
    %c0_490 = arith.constant 0 : index
    %c11_491 = arith.constant 11 : index
    %c1_492 = arith.constant 1 : index
    %c0_493 = arith.constant 0 : index
    %554 = vector.load %arg1[%c0_490, %c11_491, %c1_492, %c0_493] : memref<1x16x16x4xf32, #tpu.memory_space<vmem>>, vector<1x1x14x4xf32>
    %555 = vector.shape_cast %554 : vector<1x1x14x4xf32> to vector<14x4xf32>
    %556 = arith.truncf %555 : vector<14x4xf32> to vector<14x4xbf16>
    %cst_494 = arith.constant dense<0.000000e+00> : vector<14x128xf32>
    %557 = tpu.matmul %556, %10, %cst_494 {dimension_numbers = #tpu.dot_dimension_numbers<[1], [0], [0], [1], [0, 0, 1, 1], [], []>} : vector<14x4xbf16>, vector<4x128xbf16>, vector<14x128xf32> -> vector<14x128xf32>
    %558 = arith.addf %553, %557 : vector<14x128xf32>
    %c0_495 = arith.constant 0 : index
    %c11_496 = arith.constant 11 : index
    %c2_497 = arith.constant 2 : index
    %c0_498 = arith.constant 0 : index
    %559 = vector.load %arg1[%c0_495, %c11_496, %c2_497, %c0_498] : memref<1x16x16x4xf32, #tpu.memory_space<vmem>>, vector<1x1x14x4xf32>
    %560 = vector.shape_cast %559 : vector<1x1x14x4xf32> to vector<14x4xf32>
    %561 = arith.truncf %560 : vector<14x4xf32> to vector<14x4xbf16>
    %cst_499 = arith.constant dense<0.000000e+00> : vector<14x128xf32>
    %562 = tpu.matmul %561, %11, %cst_499 {dimension_numbers = #tpu.dot_dimension_numbers<[1], [0], [0], [1], [0, 0, 1, 1], [], []>} : vector<14x4xbf16>, vector<4x128xbf16>, vector<14x128xf32> -> vector<14x128xf32>
    %563 = arith.addf %558, %562 : vector<14x128xf32>
    %c0_500 = arith.constant 0 : index
    %c126 = arith.constant 126 : index
    %c0_501 = arith.constant 0 : index
    %564 = vector.load %arg3[%c0_500, %c126, %c0_501] : memref<1x196x128xf32, #tpu.memory_space<vmem>>, vector<1x14x128xf32>
    %565 = vector.shape_cast %564 : vector<1x14x128xf32> to vector<14x128xf32>
    %566 = vector.shape_cast %563 : vector<14x128xf32> to vector<1x14x128xf32>
    tpu.vector_store %arg3[%c0_500, %c126, %c0_501], %566 {strides = array<i32>} : memref<1x196x128xf32, #tpu.memory_space<vmem>>, vector<1x14x128xf32>,
    %cst_502 = arith.constant dense<0.000000e+00> : vector<128xf32>
    %567 = vector.multi_reduction <add>, %563, %cst_502 [0] : vector<14x128xf32> to vector<128xf32>
    %568 = vector.shape_cast %567 : vector<128xf32> to vector<1x128xf32>
    %569 = arith.addf %513, %568 : vector<1x128xf32>
    %570 = arith.mulf %563, %563 : vector<14x128xf32>
    %cst_503 = arith.constant dense<0.000000e+00> : vector<128xf32>
    %571 = vector.multi_reduction <add>, %570, %cst_503 [0] : vector<14x128xf32> to vector<128xf32>
    %572 = vector.shape_cast %571 : vector<128xf32> to vector<1x128xf32>
    %573 = arith.addf %517, %572 : vector<1x128xf32>
    %cst_504 = arith.constant 0.000000e+00 : f32
    %574 = vector.broadcast %cst_504 : f32 to vector<14x128xf32>
    %c0_505 = arith.constant 0 : index
    %c10_506 = arith.constant 10 : index
    %c0_507 = arith.constant 0 : index
    %c0_508 = arith.constant 0 : index
    %575 = vector.load %arg1[%c0_505, %c10_506, %c0_507, %c0_508] : memref<1x16x16x4xf32, #tpu.memory_space<vmem>>, vector<1x1x14x4xf32>
    %576 = vector.shape_cast %575 : vector<1x1x14x4xf32> to vector<14x4xf32>
    %577 = arith.truncf %576 : vector<14x4xf32> to vector<14x4xbf16>
    %cst_509 = arith.constant dense<0.000000e+00> : vector<14x128xf32>
    %578 = tpu.matmul %577, %3, %cst_509 {dimension_numbers = #tpu.dot_dimension_numbers<[1], [0], [0], [1], [0, 0, 1, 1], [], []>} : vector<14x4xbf16>, vector<4x128xbf16>, vector<14x128xf32> -> vector<14x128xf32>
    %579 = arith.addf %574, %578 : vector<14x128xf32>
    %c0_510 = arith.constant 0 : index
    %c10_511 = arith.constant 10 : index
    %c1_512 = arith.constant 1 : index
    %c0_513 = arith.constant 0 : index
    %580 = vector.load %arg1[%c0_510, %c10_511, %c1_512, %c0_513] : memref<1x16x16x4xf32, #tpu.memory_space<vmem>>, vector<1x1x14x4xf32>
    %581 = vector.shape_cast %580 : vector<1x1x14x4xf32> to vector<14x4xf32>
    %582 = arith.truncf %581 : vector<14x4xf32> to vector<14x4xbf16>
    %cst_514 = arith.constant dense<0.000000e+00> : vector<14x128xf32>
    %583 = tpu.matmul %582, %4, %cst_514 {dimension_numbers = #tpu.dot_dimension_numbers<[1], [0], [0], [1], [0, 0, 1, 1], [], []>} : vector<14x4xbf16>, vector<4x128xbf16>, vector<14x128xf32> -> vector<14x128xf32>
    %584 = arith.addf %579, %583 : vector<14x128xf32>
    %c0_515 = arith.constant 0 : index
    %c10_516 = arith.constant 10 : index
    %c2_517 = arith.constant 2 : index
    %c0_518 = arith.constant 0 : index
    %585 = vector.load %arg1[%c0_515, %c10_516, %c2_517, %c0_518] : memref<1x16x16x4xf32, #tpu.memory_space<vmem>>, vector<1x1x14x4xf32>
    %586 = vector.shape_cast %585 : vector<1x1x14x4xf32> to vector<14x4xf32>
    %587 = arith.truncf %586 : vector<14x4xf32> to vector<14x4xbf16>
    %cst_519 = arith.constant dense<0.000000e+00> : vector<14x128xf32>
    %588 = tpu.matmul %587, %5, %cst_519 {dimension_numbers = #tpu.dot_dimension_numbers<[1], [0], [0], [1], [0, 0, 1, 1], [], []>} : vector<14x4xbf16>, vector<4x128xbf16>, vector<14x128xf32> -> vector<14x128xf32>
    %589 = arith.addf %584, %588 : vector<14x128xf32>
    %c0_520 = arith.constant 0 : index
    %c11_521 = arith.constant 11 : index
    %c0_522 = arith.constant 0 : index
    %c0_523 = arith.constant 0 : index
    %590 = vector.load %arg1[%c0_520, %c11_521, %c0_522, %c0_523] : memref<1x16x16x4xf32, #tpu.memory_space<vmem>>, vector<1x1x14x4xf32>
    %591 = vector.shape_cast %590 : vector<1x1x14x4xf32> to vector<14x4xf32>
    %592 = arith.truncf %591 : vector<14x4xf32> to vector<14x4xbf16>
    %cst_524 = arith.constant dense<0.000000e+00> : vector<14x128xf32>
    %593 = tpu.matmul %592, %6, %cst_524 {dimension_numbers = #tpu.dot_dimension_numbers<[1], [0], [0], [1], [0, 0, 1, 1], [], []>} : vector<14x4xbf16>, vector<4x128xbf16>, vector<14x128xf32> -> vector<14x128xf32>
    %594 = arith.addf %589, %593 : vector<14x128xf32>
    %c0_525 = arith.constant 0 : index
    %c11_526 = arith.constant 11 : index
    %c1_527 = arith.constant 1 : index
    %c0_528 = arith.constant 0 : index
    %595 = vector.load %arg1[%c0_525, %c11_526, %c1_527, %c0_528] : memref<1x16x16x4xf32, #tpu.memory_space<vmem>>, vector<1x1x14x4xf32>
    %596 = vector.shape_cast %595 : vector<1x1x14x4xf32> to vector<14x4xf32>
    %597 = arith.truncf %596 : vector<14x4xf32> to vector<14x4xbf16>
    %cst_529 = arith.constant dense<0.000000e+00> : vector<14x128xf32>
    %598 = tpu.matmul %597, %7, %cst_529 {dimension_numbers = #tpu.dot_dimension_numbers<[1], [0], [0], [1], [0, 0, 1, 1], [], []>} : vector<14x4xbf16>, vector<4x128xbf16>, vector<14x128xf32> -> vector<14x128xf32>
    %599 = arith.addf %594, %598 : vector<14x128xf32>
    %c0_530 = arith.constant 0 : index
    %c11_531 = arith.constant 11 : index
    %c2_532 = arith.constant 2 : index
    %c0_533 = arith.constant 0 : index
    %600 = vector.load %arg1[%c0_530, %c11_531, %c2_532, %c0_533] : memref<1x16x16x4xf32, #tpu.memory_space<vmem>>, vector<1x1x14x4xf32>
    %601 = vector.shape_cast %600 : vector<1x1x14x4xf32> to vector<14x4xf32>
    %602 = arith.truncf %601 : vector<14x4xf32> to vector<14x4xbf16>
    %cst_534 = arith.constant dense<0.000000e+00> : vector<14x128xf32>
    %603 = tpu.matmul %602, %8, %cst_534 {dimension_numbers = #tpu.dot_dimension_numbers<[1], [0], [0], [1], [0, 0, 1, 1], [], []>} : vector<14x4xbf16>, vector<4x128xbf16>, vector<14x128xf32> -> vector<14x128xf32>
    %604 = arith.addf %599, %603 : vector<14x128xf32>
    %c0_535 = arith.constant 0 : index
    %c12_536 = arith.constant 12 : index
    %c0_537 = arith.constant 0 : index
    %c0_538 = arith.constant 0 : index
    %605 = vector.load %arg1[%c0_535, %c12_536, %c0_537, %c0_538] : memref<1x16x16x4xf32, #tpu.memory_space<vmem>>, vector<1x1x14x4xf32>
    %606 = vector.shape_cast %605 : vector<1x1x14x4xf32> to vector<14x4xf32>
    %607 = arith.truncf %606 : vector<14x4xf32> to vector<14x4xbf16>
    %cst_539 = arith.constant dense<0.000000e+00> : vector<14x128xf32>
    %608 = tpu.matmul %607, %9, %cst_539 {dimension_numbers = #tpu.dot_dimension_numbers<[1], [0], [0], [1], [0, 0, 1, 1], [], []>} : vector<14x4xbf16>, vector<4x128xbf16>, vector<14x128xf32> -> vector<14x128xf32>
    %609 = arith.addf %604, %608 : vector<14x128xf32>
    %c0_540 = arith.constant 0 : index
    %c12_541 = arith.constant 12 : index
    %c1_542 = arith.constant 1 : index
    %c0_543 = arith.constant 0 : index
    %610 = vector.load %arg1[%c0_540, %c12_541, %c1_542, %c0_543] : memref<1x16x16x4xf32, #tpu.memory_space<vmem>>, vector<1x1x14x4xf32>
    %611 = vector.shape_cast %610 : vector<1x1x14x4xf32> to vector<14x4xf32>
    %612 = arith.truncf %611 : vector<14x4xf32> to vector<14x4xbf16>
    %cst_544 = arith.constant dense<0.000000e+00> : vector<14x128xf32>
    %613 = tpu.matmul %612, %10, %cst_544 {dimension_numbers = #tpu.dot_dimension_numbers<[1], [0], [0], [1], [0, 0, 1, 1], [], []>} : vector<14x4xbf16>, vector<4x128xbf16>, vector<14x128xf32> -> vector<14x128xf32>
    %614 = arith.addf %609, %613 : vector<14x128xf32>
    %c0_545 = arith.constant 0 : index
    %c12_546 = arith.constant 12 : index
    %c2_547 = arith.constant 2 : index
    %c0_548 = arith.constant 0 : index
    %615 = vector.load %arg1[%c0_545, %c12_546, %c2_547, %c0_548] : memref<1x16x16x4xf32, #tpu.memory_space<vmem>>, vector<1x1x14x4xf32>
    %616 = vector.shape_cast %615 : vector<1x1x14x4xf32> to vector<14x4xf32>
    %617 = arith.truncf %616 : vector<14x4xf32> to vector<14x4xbf16>
    %cst_549 = arith.constant dense<0.000000e+00> : vector<14x128xf32>
    %618 = tpu.matmul %617, %11, %cst_549 {dimension_numbers = #tpu.dot_dimension_numbers<[1], [0], [0], [1], [0, 0, 1, 1], [], []>} : vector<14x4xbf16>, vector<4x128xbf16>, vector<14x128xf32> -> vector<14x128xf32>
    %619 = arith.addf %614, %618 : vector<14x128xf32>
    %c0_550 = arith.constant 0 : index
    %c140 = arith.constant 140 : index
    %c0_551 = arith.constant 0 : index
    %620 = vector.load %arg3[%c0_550, %c140, %c0_551] : memref<1x196x128xf32, #tpu.memory_space<vmem>>, vector<1x14x128xf32>
    %621 = vector.shape_cast %620 : vector<1x14x128xf32> to vector<14x128xf32>
    %622 = vector.shape_cast %619 : vector<14x128xf32> to vector<1x14x128xf32>
    tpu.vector_store %arg3[%c0_550, %c140, %c0_551], %622 {strides = array<i32>} : memref<1x196x128xf32, #tpu.memory_space<vmem>>, vector<1x14x128xf32>,
    %cst_552 = arith.constant dense<0.000000e+00> : vector<128xf32>
    %623 = vector.multi_reduction <add>, %619, %cst_552 [0] : vector<14x128xf32> to vector<128xf32>
    %624 = vector.shape_cast %623 : vector<128xf32> to vector<1x128xf32>
    %625 = arith.addf %569, %624 : vector<1x128xf32>
    %626 = arith.mulf %619, %619 : vector<14x128xf32>
    %cst_553 = arith.constant dense<0.000000e+00> : vector<128xf32>
    %627 = vector.multi_reduction <add>, %626, %cst_553 [0] : vector<14x128xf32> to vector<128xf32>
    %628 = vector.shape_cast %627 : vector<128xf32> to vector<1x128xf32>
    %629 = arith.addf %573, %628 : vector<1x128xf32>
    %cst_554 = arith.constant 0.000000e+00 : f32
    %630 = vector.broadcast %cst_554 : f32 to vector<14x128xf32>
    %c0_555 = arith.constant 0 : index
    %c11_556 = arith.constant 11 : index
    %c0_557 = arith.constant 0 : index
    %c0_558 = arith.constant 0 : index
    %631 = vector.load %arg1[%c0_555, %c11_556, %c0_557, %c0_558] : memref<1x16x16x4xf32, #tpu.memory_space<vmem>>, vector<1x1x14x4xf32>
    %632 = vector.shape_cast %631 : vector<1x1x14x4xf32> to vector<14x4xf32>
    %633 = arith.truncf %632 : vector<14x4xf32> to vector<14x4xbf16>
    %cst_559 = arith.constant dense<0.000000e+00> : vector<14x128xf32>
    %634 = tpu.matmul %633, %3, %cst_559 {dimension_numbers = #tpu.dot_dimension_numbers<[1], [0], [0], [1], [0, 0, 1, 1], [], []>} : vector<14x4xbf16>, vector<4x128xbf16>, vector<14x128xf32> -> vector<14x128xf32>
    %635 = arith.addf %630, %634 : vector<14x128xf32>
    %c0_560 = arith.constant 0 : index
    %c11_561 = arith.constant 11 : index
    %c1_562 = arith.constant 1 : index
    %c0_563 = arith.constant 0 : index
    %636 = vector.load %arg1[%c0_560, %c11_561, %c1_562, %c0_563] : memref<1x16x16x4xf32, #tpu.memory_space<vmem>>, vector<1x1x14x4xf32>
    %637 = vector.shape_cast %636 : vector<1x1x14x4xf32> to vector<14x4xf32>
    %638 = arith.truncf %637 : vector<14x4xf32> to vector<14x4xbf16>
    %cst_564 = arith.constant dense<0.000000e+00> : vector<14x128xf32>
    %639 = tpu.matmul %638, %4, %cst_564 {dimension_numbers = #tpu.dot_dimension_numbers<[1], [0], [0], [1], [0, 0, 1, 1], [], []>} : vector<14x4xbf16>, vector<4x128xbf16>, vector<14x128xf32> -> vector<14x128xf32>
    %640 = arith.addf %635, %639 : vector<14x128xf32>
    %c0_565 = arith.constant 0 : index
    %c11_566 = arith.constant 11 : index
    %c2_567 = arith.constant 2 : index
    %c0_568 = arith.constant 0 : index
    %641 = vector.load %arg1[%c0_565, %c11_566, %c2_567, %c0_568] : memref<1x16x16x4xf32, #tpu.memory_space<vmem>>, vector<1x1x14x4xf32>
    %642 = vector.shape_cast %641 : vector<1x1x14x4xf32> to vector<14x4xf32>
    %643 = arith.truncf %642 : vector<14x4xf32> to vector<14x4xbf16>
    %cst_569 = arith.constant dense<0.000000e+00> : vector<14x128xf32>
    %644 = tpu.matmul %643, %5, %cst_569 {dimension_numbers = #tpu.dot_dimension_numbers<[1], [0], [0], [1], [0, 0, 1, 1], [], []>} : vector<14x4xbf16>, vector<4x128xbf16>, vector<14x128xf32> -> vector<14x128xf32>
    %645 = arith.addf %640, %644 : vector<14x128xf32>
    %c0_570 = arith.constant 0 : index
    %c12_571 = arith.constant 12 : index
    %c0_572 = arith.constant 0 : index
    %c0_573 = arith.constant 0 : index
    %646 = vector.load %arg1[%c0_570, %c12_571, %c0_572, %c0_573] : memref<1x16x16x4xf32, #tpu.memory_space<vmem>>, vector<1x1x14x4xf32>
    %647 = vector.shape_cast %646 : vector<1x1x14x4xf32> to vector<14x4xf32>
    %648 = arith.truncf %647 : vector<14x4xf32> to vector<14x4xbf16>
    %cst_574 = arith.constant dense<0.000000e+00> : vector<14x128xf32>
    %649 = tpu.matmul %648, %6, %cst_574 {dimension_numbers = #tpu.dot_dimension_numbers<[1], [0], [0], [1], [0, 0, 1, 1], [], []>} : vector<14x4xbf16>, vector<4x128xbf16>, vector<14x128xf32> -> vector<14x128xf32>
    %650 = arith.addf %645, %649 : vector<14x128xf32>
    %c0_575 = arith.constant 0 : index
    %c12_576 = arith.constant 12 : index
    %c1_577 = arith.constant 1 : index
    %c0_578 = arith.constant 0 : index
    %651 = vector.load %arg1[%c0_575, %c12_576, %c1_577, %c0_578] : memref<1x16x16x4xf32, #tpu.memory_space<vmem>>, vector<1x1x14x4xf32>
    %652 = vector.shape_cast %651 : vector<1x1x14x4xf32> to vector<14x4xf32>
    %653 = arith.truncf %652 : vector<14x4xf32> to vector<14x4xbf16>
    %cst_579 = arith.constant dense<0.000000e+00> : vector<14x128xf32>
    %654 = tpu.matmul %653, %7, %cst_579 {dimension_numbers = #tpu.dot_dimension_numbers<[1], [0], [0], [1], [0, 0, 1, 1], [], []>} : vector<14x4xbf16>, vector<4x128xbf16>, vector<14x128xf32> -> vector<14x128xf32>
    %655 = arith.addf %650, %654 : vector<14x128xf32>
    %c0_580 = arith.constant 0 : index
    %c12_581 = arith.constant 12 : index
    %c2_582 = arith.constant 2 : index
    %c0_583 = arith.constant 0 : index
    %656 = vector.load %arg1[%c0_580, %c12_581, %c2_582, %c0_583] : memref<1x16x16x4xf32, #tpu.memory_space<vmem>>, vector<1x1x14x4xf32>
    %657 = vector.shape_cast %656 : vector<1x1x14x4xf32> to vector<14x4xf32>
    %658 = arith.truncf %657 : vector<14x4xf32> to vector<14x4xbf16>
    %cst_584 = arith.constant dense<0.000000e+00> : vector<14x128xf32>
    %659 = tpu.matmul %658, %8, %cst_584 {dimension_numbers = #tpu.dot_dimension_numbers<[1], [0], [0], [1], [0, 0, 1, 1], [], []>} : vector<14x4xbf16>, vector<4x128xbf16>, vector<14x128xf32> -> vector<14x128xf32>
    %660 = arith.addf %655, %659 : vector<14x128xf32>
    %c0_585 = arith.constant 0 : index
    %c13 = arith.constant 13 : index
    %c0_586 = arith.constant 0 : index
    %c0_587 = arith.constant 0 : index
    %661 = vector.load %arg1[%c0_585, %c13, %c0_586, %c0_587] : memref<1x16x16x4xf32, #tpu.memory_space<vmem>>, vector<1x1x14x4xf32>
    %662 = vector.shape_cast %661 : vector<1x1x14x4xf32> to vector<14x4xf32>
    %663 = arith.truncf %662 : vector<14x4xf32> to vector<14x4xbf16>
    %cst_588 = arith.constant dense<0.000000e+00> : vector<14x128xf32>
    %664 = tpu.matmul %663, %9, %cst_588 {dimension_numbers = #tpu.dot_dimension_numbers<[1], [0], [0], [1], [0, 0, 1, 1], [], []>} : vector<14x4xbf16>, vector<4x128xbf16>, vector<14x128xf32> -> vector<14x128xf32>
    %665 = arith.addf %660, %664 : vector<14x128xf32>
    %c0_589 = arith.constant 0 : index
    %c13_590 = arith.constant 13 : index
    %c1_591 = arith.constant 1 : index
    %c0_592 = arith.constant 0 : index
    %666 = vector.load %arg1[%c0_589, %c13_590, %c1_591, %c0_592] : memref<1x16x16x4xf32, #tpu.memory_space<vmem>>, vector<1x1x14x4xf32>
    %667 = vector.shape_cast %666 : vector<1x1x14x4xf32> to vector<14x4xf32>
    %668 = arith.truncf %667 : vector<14x4xf32> to vector<14x4xbf16>
    %cst_593 = arith.constant dense<0.000000e+00> : vector<14x128xf32>
    %669 = tpu.matmul %668, %10, %cst_593 {dimension_numbers = #tpu.dot_dimension_numbers<[1], [0], [0], [1], [0, 0, 1, 1], [], []>} : vector<14x4xbf16>, vector<4x128xbf16>, vector<14x128xf32> -> vector<14x128xf32>
    %670 = arith.addf %665, %669 : vector<14x128xf32>
    %c0_594 = arith.constant 0 : index
    %c13_595 = arith.constant 13 : index
    %c2_596 = arith.constant 2 : index
    %c0_597 = arith.constant 0 : index
    %671 = vector.load %arg1[%c0_594, %c13_595, %c2_596, %c0_597] : memref<1x16x16x4xf32, #tpu.memory_space<vmem>>, vector<1x1x14x4xf32>
    %672 = vector.shape_cast %671 : vector<1x1x14x4xf32> to vector<14x4xf32>
    %673 = arith.truncf %672 : vector<14x4xf32> to vector<14x4xbf16>
    %cst_598 = arith.constant dense<0.000000e+00> : vector<14x128xf32>
    %674 = tpu.matmul %673, %11, %cst_598 {dimension_numbers = #tpu.dot_dimension_numbers<[1], [0], [0], [1], [0, 0, 1, 1], [], []>} : vector<14x4xbf16>, vector<4x128xbf16>, vector<14x128xf32> -> vector<14x128xf32>
    %675 = arith.addf %670, %674 : vector<14x128xf32>
    %c0_599 = arith.constant 0 : index
    %c154 = arith.constant 154 : index
    %c0_600 = arith.constant 0 : index
    %676 = vector.load %arg3[%c0_599, %c154, %c0_600] : memref<1x196x128xf32, #tpu.memory_space<vmem>>, vector<1x14x128xf32>
    %677 = vector.shape_cast %676 : vector<1x14x128xf32> to vector<14x128xf32>
    %678 = vector.shape_cast %675 : vector<14x128xf32> to vector<1x14x128xf32>
    tpu.vector_store %arg3[%c0_599, %c154, %c0_600], %678 {strides = array<i32>} : memref<1x196x128xf32, #tpu.memory_space<vmem>>, vector<1x14x128xf32>,
    %cst_601 = arith.constant dense<0.000000e+00> : vector<128xf32>
    %679 = vector.multi_reduction <add>, %675, %cst_601 [0] : vector<14x128xf32> to vector<128xf32>
    %680 = vector.shape_cast %679 : vector<128xf32> to vector<1x128xf32>
    %681 = arith.addf %625, %680 : vector<1x128xf32>
    %682 = arith.mulf %675, %675 : vector<14x128xf32>
    %cst_602 = arith.constant dense<0.000000e+00> : vector<128xf32>
    %683 = vector.multi_reduction <add>, %682, %cst_602 [0] : vector<14x128xf32> to vector<128xf32>
    %684 = vector.shape_cast %683 : vector<128xf32> to vector<1x128xf32>
    %685 = arith.addf %629, %684 : vector<1x128xf32>
    %cst_603 = arith.constant 0.000000e+00 : f32
    %686 = vector.broadcast %cst_603 : f32 to vector<14x128xf32>
    %c0_604 = arith.constant 0 : index
    %c12_605 = arith.constant 12 : index
    %c0_606 = arith.constant 0 : index
    %c0_607 = arith.constant 0 : index
    %687 = vector.load %arg1[%c0_604, %c12_605, %c0_606, %c0_607] : memref<1x16x16x4xf32, #tpu.memory_space<vmem>>, vector<1x1x14x4xf32>
    %688 = vector.shape_cast %687 : vector<1x1x14x4xf32> to vector<14x4xf32>
    %689 = arith.truncf %688 : vector<14x4xf32> to vector<14x4xbf16>
    %cst_608 = arith.constant dense<0.000000e+00> : vector<14x128xf32>
    %690 = tpu.matmul %689, %3, %cst_608 {dimension_numbers = #tpu.dot_dimension_numbers<[1], [0], [0], [1], [0, 0, 1, 1], [], []>} : vector<14x4xbf16>, vector<4x128xbf16>, vector<14x128xf32> -> vector<14x128xf32>
    %691 = arith.addf %686, %690 : vector<14x128xf32>
    %c0_609 = arith.constant 0 : index
    %c12_610 = arith.constant 12 : index
    %c1_611 = arith.constant 1 : index
    %c0_612 = arith.constant 0 : index
    %692 = vector.load %arg1[%c0_609, %c12_610, %c1_611, %c0_612] : memref<1x16x16x4xf32, #tpu.memory_space<vmem>>, vector<1x1x14x4xf32>
    %693 = vector.shape_cast %692 : vector<1x1x14x4xf32> to vector<14x4xf32>
    %694 = arith.truncf %693 : vector<14x4xf32> to vector<14x4xbf16>
    %cst_613 = arith.constant dense<0.000000e+00> : vector<14x128xf32>
    %695 = tpu.matmul %694, %4, %cst_613 {dimension_numbers = #tpu.dot_dimension_numbers<[1], [0], [0], [1], [0, 0, 1, 1], [], []>} : vector<14x4xbf16>, vector<4x128xbf16>, vector<14x128xf32> -> vector<14x128xf32>
    %696 = arith.addf %691, %695 : vector<14x128xf32>
    %c0_614 = arith.constant 0 : index
    %c12_615 = arith.constant 12 : index
    %c2_616 = arith.constant 2 : index
    %c0_617 = arith.constant 0 : index
    %697 = vector.load %arg1[%c0_614, %c12_615, %c2_616, %c0_617] : memref<1x16x16x4xf32, #tpu.memory_space<vmem>>, vector<1x1x14x4xf32>
    %698 = vector.shape_cast %697 : vector<1x1x14x4xf32> to vector<14x4xf32>
    %699 = arith.truncf %698 : vector<14x4xf32> to vector<14x4xbf16>
    %cst_618 = arith.constant dense<0.000000e+00> : vector<14x128xf32>
    %700 = tpu.matmul %699, %5, %cst_618 {dimension_numbers = #tpu.dot_dimension_numbers<[1], [0], [0], [1], [0, 0, 1, 1], [], []>} : vector<14x4xbf16>, vector<4x128xbf16>, vector<14x128xf32> -> vector<14x128xf32>
    %701 = arith.addf %696, %700 : vector<14x128xf32>
    %c0_619 = arith.constant 0 : index
    %c13_620 = arith.constant 13 : index
    %c0_621 = arith.constant 0 : index
    %c0_622 = arith.constant 0 : index
    %702 = vector.load %arg1[%c0_619, %c13_620, %c0_621, %c0_622] : memref<1x16x16x4xf32, #tpu.memory_space<vmem>>, vector<1x1x14x4xf32>
    %703 = vector.shape_cast %702 : vector<1x1x14x4xf32> to vector<14x4xf32>
    %704 = arith.truncf %703 : vector<14x4xf32> to vector<14x4xbf16>
    %cst_623 = arith.constant dense<0.000000e+00> : vector<14x128xf32>
    %705 = tpu.matmul %704, %6, %cst_623 {dimension_numbers = #tpu.dot_dimension_numbers<[1], [0], [0], [1], [0, 0, 1, 1], [], []>} : vector<14x4xbf16>, vector<4x128xbf16>, vector<14x128xf32> -> vector<14x128xf32>
    %706 = arith.addf %701, %705 : vector<14x128xf32>
    %c0_624 = arith.constant 0 : index
    %c13_625 = arith.constant 13 : index
    %c1_626 = arith.constant 1 : index
    %c0_627 = arith.constant 0 : index
    %707 = vector.load %arg1[%c0_624, %c13_625, %c1_626, %c0_627] : memref<1x16x16x4xf32, #tpu.memory_space<vmem>>, vector<1x1x14x4xf32>
    %708 = vector.shape_cast %707 : vector<1x1x14x4xf32> to vector<14x4xf32>
    %709 = arith.truncf %708 : vector<14x4xf32> to vector<14x4xbf16>
    %cst_628 = arith.constant dense<0.000000e+00> : vector<14x128xf32>
    %710 = tpu.matmul %709, %7, %cst_628 {dimension_numbers = #tpu.dot_dimension_numbers<[1], [0], [0], [1], [0, 0, 1, 1], [], []>} : vector<14x4xbf16>, vector<4x128xbf16>, vector<14x128xf32> -> vector<14x128xf32>
    %711 = arith.addf %706, %710 : vector<14x128xf32>
    %c0_629 = arith.constant 0 : index
    %c13_630 = arith.constant 13 : index
    %c2_631 = arith.constant 2 : index
    %c0_632 = arith.constant 0 : index
    %712 = vector.load %arg1[%c0_629, %c13_630, %c2_631, %c0_632] : memref<1x16x16x4xf32, #tpu.memory_space<vmem>>, vector<1x1x14x4xf32>
    %713 = vector.shape_cast %712 : vector<1x1x14x4xf32> to vector<14x4xf32>
    %714 = arith.truncf %713 : vector<14x4xf32> to vector<14x4xbf16>
    %cst_633 = arith.constant dense<0.000000e+00> : vector<14x128xf32>
    %715 = tpu.matmul %714, %8, %cst_633 {dimension_numbers = #tpu.dot_dimension_numbers<[1], [0], [0], [1], [0, 0, 1, 1], [], []>} : vector<14x4xbf16>, vector<4x128xbf16>, vector<14x128xf32> -> vector<14x128xf32>
    %716 = arith.addf %711, %715 : vector<14x128xf32>
    %c0_634 = arith.constant 0 : index
    %c14_635 = arith.constant 14 : index
    %c0_636 = arith.constant 0 : index
    %c0_637 = arith.constant 0 : index
    %717 = vector.load %arg1[%c0_634, %c14_635, %c0_636, %c0_637] : memref<1x16x16x4xf32, #tpu.memory_space<vmem>>, vector<1x1x14x4xf32>
    %718 = vector.shape_cast %717 : vector<1x1x14x4xf32> to vector<14x4xf32>
    %719 = arith.truncf %718 : vector<14x4xf32> to vector<14x4xbf16>
    %cst_638 = arith.constant dense<0.000000e+00> : vector<14x128xf32>
    %720 = tpu.matmul %719, %9, %cst_638 {dimension_numbers = #tpu.dot_dimension_numbers<[1], [0], [0], [1], [0, 0, 1, 1], [], []>} : vector<14x4xbf16>, vector<4x128xbf16>, vector<14x128xf32> -> vector<14x128xf32>
    %721 = arith.addf %716, %720 : vector<14x128xf32>
    %c0_639 = arith.constant 0 : index
    %c14_640 = arith.constant 14 : index
    %c1_641 = arith.constant 1 : index
    %c0_642 = arith.constant 0 : index
    %722 = vector.load %arg1[%c0_639, %c14_640, %c1_641, %c0_642] : memref<1x16x16x4xf32, #tpu.memory_space<vmem>>, vector<1x1x14x4xf32>
    %723 = vector.shape_cast %722 : vector<1x1x14x4xf32> to vector<14x4xf32>
    %724 = arith.truncf %723 : vector<14x4xf32> to vector<14x4xbf16>
    %cst_643 = arith.constant dense<0.000000e+00> : vector<14x128xf32>
    %725 = tpu.matmul %724, %10, %cst_643 {dimension_numbers = #tpu.dot_dimension_numbers<[1], [0], [0], [1], [0, 0, 1, 1], [], []>} : vector<14x4xbf16>, vector<4x128xbf16>, vector<14x128xf32> -> vector<14x128xf32>
    %726 = arith.addf %721, %725 : vector<14x128xf32>
    %c0_644 = arith.constant 0 : index
    %c14_645 = arith.constant 14 : index
    %c2_646 = arith.constant 2 : index
    %c0_647 = arith.constant 0 : index
    %727 = vector.load %arg1[%c0_644, %c14_645, %c2_646, %c0_647] : memref<1x16x16x4xf32, #tpu.memory_space<vmem>>, vector<1x1x14x4xf32>
    %728 = vector.shape_cast %727 : vector<1x1x14x4xf32> to vector<14x4xf32>
    %729 = arith.truncf %728 : vector<14x4xf32> to vector<14x4xbf16>
    %cst_648 = arith.constant dense<0.000000e+00> : vector<14x128xf32>
    %730 = tpu.matmul %729, %11, %cst_648 {dimension_numbers = #tpu.dot_dimension_numbers<[1], [0], [0], [1], [0, 0, 1, 1], [], []>} : vector<14x4xbf16>, vector<4x128xbf16>, vector<14x128xf32> -> vector<14x128xf32>
    %731 = arith.addf %726, %730 : vector<14x128xf32>
    %c0_649 = arith.constant 0 : index
    %c168 = arith.constant 168 : index
    %c0_650 = arith.constant 0 : index
    %732 = vector.load %arg3[%c0_649, %c168, %c0_650] : memref<1x196x128xf32, #tpu.memory_space<vmem>>, vector<1x14x128xf32>
    %733 = vector.shape_cast %732 : vector<1x14x128xf32> to vector<14x128xf32>
    %734 = vector.shape_cast %731 : vector<14x128xf32> to vector<1x14x128xf32>
    tpu.vector_store %arg3[%c0_649, %c168, %c0_650], %734 {strides = array<i32>} : memref<1x196x128xf32, #tpu.memory_space<vmem>>, vector<1x14x128xf32>,
    %cst_651 = arith.constant dense<0.000000e+00> : vector<128xf32>
    %735 = vector.multi_reduction <add>, %731, %cst_651 [0] : vector<14x128xf32> to vector<128xf32>
    %736 = vector.shape_cast %735 : vector<128xf32> to vector<1x128xf32>
    %737 = arith.addf %681, %736 : vector<1x128xf32>
    %738 = arith.mulf %731, %731 : vector<14x128xf32>
    %cst_652 = arith.constant dense<0.000000e+00> : vector<128xf32>
    %739 = vector.multi_reduction <add>, %738, %cst_652 [0] : vector<14x128xf32> to vector<128xf32>
    %740 = vector.shape_cast %739 : vector<128xf32> to vector<1x128xf32>
    %741 = arith.addf %685, %740 : vector<1x128xf32>
    %cst_653 = arith.constant 0.000000e+00 : f32
    %742 = vector.broadcast %cst_653 : f32 to vector<14x128xf32>
    %c0_654 = arith.constant 0 : index
    %c13_655 = arith.constant 13 : index
    %c0_656 = arith.constant 0 : index
    %c0_657 = arith.constant 0 : index
    %743 = vector.load %arg1[%c0_654, %c13_655, %c0_656, %c0_657] : memref<1x16x16x4xf32, #tpu.memory_space<vmem>>, vector<1x1x14x4xf32>
    %744 = vector.shape_cast %743 : vector<1x1x14x4xf32> to vector<14x4xf32>
    %745 = arith.truncf %744 : vector<14x4xf32> to vector<14x4xbf16>
    %cst_658 = arith.constant dense<0.000000e+00> : vector<14x128xf32>
    %746 = tpu.matmul %745, %3, %cst_658 {dimension_numbers = #tpu.dot_dimension_numbers<[1], [0], [0], [1], [0, 0, 1, 1], [], []>} : vector<14x4xbf16>, vector<4x128xbf16>, vector<14x128xf32> -> vector<14x128xf32>
    %747 = arith.addf %742, %746 : vector<14x128xf32>
    %c0_659 = arith.constant 0 : index
    %c13_660 = arith.constant 13 : index
    %c1_661 = arith.constant 1 : index
    %c0_662 = arith.constant 0 : index
    %748 = vector.load %arg1[%c0_659, %c13_660, %c1_661, %c0_662] : memref<1x16x16x4xf32, #tpu.memory_space<vmem>>, vector<1x1x14x4xf32>
    %749 = vector.shape_cast %748 : vector<1x1x14x4xf32> to vector<14x4xf32>
    %750 = arith.truncf %749 : vector<14x4xf32> to vector<14x4xbf16>
    %cst_663 = arith.constant dense<0.000000e+00> : vector<14x128xf32>
    %751 = tpu.matmul %750, %4, %cst_663 {dimension_numbers = #tpu.dot_dimension_numbers<[1], [0], [0], [1], [0, 0, 1, 1], [], []>} : vector<14x4xbf16>, vector<4x128xbf16>, vector<14x128xf32> -> vector<14x128xf32>
    %752 = arith.addf %747, %751 : vector<14x128xf32>
    %c0_664 = arith.constant 0 : index
    %c13_665 = arith.constant 13 : index
    %c2_666 = arith.constant 2 : index
    %c0_667 = arith.constant 0 : index
    %753 = vector.load %arg1[%c0_664, %c13_665, %c2_666, %c0_667] : memref<1x16x16x4xf32, #tpu.memory_space<vmem>>, vector<1x1x14x4xf32>
    %754 = vector.shape_cast %753 : vector<1x1x14x4xf32> to vector<14x4xf32>
    %755 = arith.truncf %754 : vector<14x4xf32> to vector<14x4xbf16>
    %cst_668 = arith.constant dense<0.000000e+00> : vector<14x128xf32>
    %756 = tpu.matmul %755, %5, %cst_668 {dimension_numbers = #tpu.dot_dimension_numbers<[1], [0], [0], [1], [0, 0, 1, 1], [], []>} : vector<14x4xbf16>, vector<4x128xbf16>, vector<14x128xf32> -> vector<14x128xf32>
    %757 = arith.addf %752, %756 : vector<14x128xf32>
    %c0_669 = arith.constant 0 : index
    %c14_670 = arith.constant 14 : index
    %c0_671 = arith.constant 0 : index
    %c0_672 = arith.constant 0 : index
    %758 = vector.load %arg1[%c0_669, %c14_670, %c0_671, %c0_672] : memref<1x16x16x4xf32, #tpu.memory_space<vmem>>, vector<1x1x14x4xf32>
    %759 = vector.shape_cast %758 : vector<1x1x14x4xf32> to vector<14x4xf32>
    %760 = arith.truncf %759 : vector<14x4xf32> to vector<14x4xbf16>
    %cst_673 = arith.constant dense<0.000000e+00> : vector<14x128xf32>
    %761 = tpu.matmul %760, %6, %cst_673 {dimension_numbers = #tpu.dot_dimension_numbers<[1], [0], [0], [1], [0, 0, 1, 1], [], []>} : vector<14x4xbf16>, vector<4x128xbf16>, vector<14x128xf32> -> vector<14x128xf32>
    %762 = arith.addf %757, %761 : vector<14x128xf32>
    %c0_674 = arith.constant 0 : index
    %c14_675 = arith.constant 14 : index
    %c1_676 = arith.constant 1 : index
    %c0_677 = arith.constant 0 : index
    %763 = vector.load %arg1[%c0_674, %c14_675, %c1_676, %c0_677] : memref<1x16x16x4xf32, #tpu.memory_space<vmem>>, vector<1x1x14x4xf32>
    %764 = vector.shape_cast %763 : vector<1x1x14x4xf32> to vector<14x4xf32>
    %765 = arith.truncf %764 : vector<14x4xf32> to vector<14x4xbf16>
    %cst_678 = arith.constant dense<0.000000e+00> : vector<14x128xf32>
    %766 = tpu.matmul %765, %7, %cst_678 {dimension_numbers = #tpu.dot_dimension_numbers<[1], [0], [0], [1], [0, 0, 1, 1], [], []>} : vector<14x4xbf16>, vector<4x128xbf16>, vector<14x128xf32> -> vector<14x128xf32>
    %767 = arith.addf %762, %766 : vector<14x128xf32>
    %c0_679 = arith.constant 0 : index
    %c14_680 = arith.constant 14 : index
    %c2_681 = arith.constant 2 : index
    %c0_682 = arith.constant 0 : index
    %768 = vector.load %arg1[%c0_679, %c14_680, %c2_681, %c0_682] : memref<1x16x16x4xf32, #tpu.memory_space<vmem>>, vector<1x1x14x4xf32>
    %769 = vector.shape_cast %768 : vector<1x1x14x4xf32> to vector<14x4xf32>
    %770 = arith.truncf %769 : vector<14x4xf32> to vector<14x4xbf16>
    %cst_683 = arith.constant dense<0.000000e+00> : vector<14x128xf32>
    %771 = tpu.matmul %770, %8, %cst_683 {dimension_numbers = #tpu.dot_dimension_numbers<[1], [0], [0], [1], [0, 0, 1, 1], [], []>} : vector<14x4xbf16>, vector<4x128xbf16>, vector<14x128xf32> -> vector<14x128xf32>
    %772 = arith.addf %767, %771 : vector<14x128xf32>
    %c0_684 = arith.constant 0 : index
    %c15 = arith.constant 15 : index
    %c0_685 = arith.constant 0 : index
    %c0_686 = arith.constant 0 : index
    %773 = vector.load %arg1[%c0_684, %c15, %c0_685, %c0_686] : memref<1x16x16x4xf32, #tpu.memory_space<vmem>>, vector<1x1x14x4xf32>
    %774 = vector.shape_cast %773 : vector<1x1x14x4xf32> to vector<14x4xf32>
    %775 = arith.truncf %774 : vector<14x4xf32> to vector<14x4xbf16>
    %cst_687 = arith.constant dense<0.000000e+00> : vector<14x128xf32>
    %776 = tpu.matmul %775, %9, %cst_687 {dimension_numbers = #tpu.dot_dimension_numbers<[1], [0], [0], [1], [0, 0, 1, 1], [], []>} : vector<14x4xbf16>, vector<4x128xbf16>, vector<14x128xf32> -> vector<14x128xf32>
    %777 = arith.addf %772, %776 : vector<14x128xf32>
    %c0_688 = arith.constant 0 : index
    %c15_689 = arith.constant 15 : index
    %c1_690 = arith.constant 1 : index
    %c0_691 = arith.constant 0 : index
    %778 = vector.load %arg1[%c0_688, %c15_689, %c1_690, %c0_691] : memref<1x16x16x4xf32, #tpu.memory_space<vmem>>, vector<1x1x14x4xf32>
    %779 = vector.shape_cast %778 : vector<1x1x14x4xf32> to vector<14x4xf32>
    %780 = arith.truncf %779 : vector<14x4xf32> to vector<14x4xbf16>
    %cst_692 = arith.constant dense<0.000000e+00> : vector<14x128xf32>
    %781 = tpu.matmul %780, %10, %cst_692 {dimension_numbers = #tpu.dot_dimension_numbers<[1], [0], [0], [1], [0, 0, 1, 1], [], []>} : vector<14x4xbf16>, vector<4x128xbf16>, vector<14x128xf32> -> vector<14x128xf32>
    %782 = arith.addf %777, %781 : vector<14x128xf32>
    %c0_693 = arith.constant 0 : index
    %c15_694 = arith.constant 15 : index
    %c2_695 = arith.constant 2 : index
    %c0_696 = arith.constant 0 : index
    %783 = vector.load %arg1[%c0_693, %c15_694, %c2_695, %c0_696] : memref<1x16x16x4xf32, #tpu.memory_space<vmem>>, vector<1x1x14x4xf32>
    %784 = vector.shape_cast %783 : vector<1x1x14x4xf32> to vector<14x4xf32>
    %785 = arith.truncf %784 : vector<14x4xf32> to vector<14x4xbf16>
    %cst_697 = arith.constant dense<0.000000e+00> : vector<14x128xf32>
    %786 = tpu.matmul %785, %11, %cst_697 {dimension_numbers = #tpu.dot_dimension_numbers<[1], [0], [0], [1], [0, 0, 1, 1], [], []>} : vector<14x4xbf16>, vector<4x128xbf16>, vector<14x128xf32> -> vector<14x128xf32>
    %787 = arith.addf %782, %786 : vector<14x128xf32>
    %c0_698 = arith.constant 0 : index
    %c182 = arith.constant 182 : index
    %c0_699 = arith.constant 0 : index
    %788 = vector.load %arg3[%c0_698, %c182, %c0_699] : memref<1x196x128xf32, #tpu.memory_space<vmem>>, vector<1x14x128xf32>
    %789 = vector.shape_cast %788 : vector<1x14x128xf32> to vector<14x128xf32>
    %790 = vector.shape_cast %787 : vector<14x128xf32> to vector<1x14x128xf32>
    tpu.vector_store %arg3[%c0_698, %c182, %c0_699], %790 {strides = array<i32>} : memref<1x196x128xf32, #tpu.memory_space<vmem>>, vector<1x14x128xf32>,
    %cst_700 = arith.constant dense<0.000000e+00> : vector<128xf32>
    %791 = vector.multi_reduction <add>, %787, %cst_700 [0] : vector<14x128xf32> to vector<128xf32>
    %792 = vector.shape_cast %791 : vector<128xf32> to vector<1x128xf32>
    %793 = arith.addf %737, %792 : vector<1x128xf32>
    %794 = arith.mulf %787, %787 : vector<14x128xf32>
    %cst_701 = arith.constant dense<0.000000e+00> : vector<128xf32>
    %795 = vector.multi_reduction <add>, %794, %cst_701 [0] : vector<14x128xf32> to vector<128xf32>
    %796 = vector.shape_cast %795 : vector<128xf32> to vector<1x128xf32>
    %797 = arith.addf %741, %796 : vector<1x128xf32>
    %c0_702 = arith.constant 0 : index
    %c0_703 = arith.constant 0 : index
    %798 = vector.load %arg4[%c0_702, %c0_703] : memref<2x128xf32, #tpu.memory_space<vmem>>, vector<2x128xf32>
    %799 = tpu.concatenate %793, %797 in 0 : vector<1x128xf32>, vector<1x128xf32> -> vector<2x128xf32>
    %800 = arith.addf %798, %799 : vector<2x128xf32>
    %c0_704 = arith.constant 0 : index
    %c0_705 = arith.constant 0 : index
    %801 = vector.load %arg4[%c0_704, %c0_705] : memref<2x128xf32, #tpu.memory_space<vmem>>, vector<2x128xf32>
    tpu.vector_store %arg4[%c0_704, %c0_705], %800 {strides = array<i32>} : memref<2x128xf32, #tpu.memory_space<vmem>>, vector<2x128xf32>,
    return
  }
  func.func @transform_0(%arg0: i32) -> (i32, i32, i32, i32) {
    %c0_i32 = arith.constant 0 : i32
    %c0_i32_0 = arith.constant 0 : i32
    %c0_i32_1 = arith.constant 0 : i32
    %c0_i32_2 = arith.constant 0 : i32
    return %arg0, %c0_i32, %c0_i32_0, %c0_i32_1 : i32, i32, i32, i32
  }
  func.func @transform_1(%arg0: i32) -> (i32, i32) {
    %c0_i32 = arith.constant 0 : i32
    %c0_i32_0 = arith.constant 0 : i32
    %c0_i32_1 = arith.constant 0 : i32
    return %c0_i32, %c0_i32_0 : i32, i32
  }
  func.func @transform_2(%arg0: i32) -> (i32, i32, i32) {
    %c0_i32 = arith.constant 0 : i32
    %c0_i32_0 = arith.constant 0 : i32
    %c0_i32_1 = arith.constant 0 : i32
    return %arg0, %c0_i32, %c0_i32_0 : i32, i32, i32
  }
  func.func @transform_3(%arg0: i32) -> (i32, i32) {
    %c0_i32 = arith.constant 0 : i32
    %c0_i32_0 = arith.constant 0 : i32
    %c0_i32_1 = arith.constant 0 : i32
    return %c0_i32, %c0_i32_0 : i32, i32
  }
}

</mosaic_0001>

<llo_original>
// kernel: conv_block_forward.3
$region0: #{conv_block_forward.3}
  #allocation0 [shape = 'u32[]', space=smem, size = 0x4, offset = 0x4, fixed_abs, tag = 'smem constant byte address 0x4 - core index']
  #allocation1 [shape = 'u32[144,128]{1,0:T(1,128)}', space=vmem, size = 0x12000, scoped, tag = 'internal scratch']
  %s0 = inlined_call_operand.vmem [shape: f32[392,128], index: 0, kind: input, shape index: {}]
  %s1 = inlined_call_operand.vmem [shape: f32[1,128], index: 1, kind: input, shape index: {}]
  %s2 = inlined_call_operand.vmem [shape: f32[1,128], index: 2, kind: input, shape index: {}]
  %s3 = inlined_call_operand.vmem [shape: f32[392,128], index: 3, kind: output, shape index: {}]
  %s4 = sld [smem:[#allocation0]]
  $region22: #{conv_block_forward.3} parent=0
    _
  %s6 = ssub.s32 1, %s4
  %s7 = scalar_select 0, %s6, %s4
  // Predicated region
  $region2: #{conv_block_forward.3} parent=0 // pred_check
    _
  $region3: #{conv_block_forward.3} parent=0 // pred_check_branch
    %9 = sbr.rel (0) target = $region5
  $region4: #{conv_block_forward.3} parent=0 // pred_region
    _
  $region5: #{conv_block_forward.3} parent=0 // pred_fallthru
    _
  // Predicated region
  $region6: #{conv_block_forward.3} parent=0 // pred_check
    _
  $region7: #{conv_block_forward.3} parent=0 // pred_check_branch
    %11 = sbr.rel (0) target = $region9
  $region8: #{conv_block_forward.3} parent=0 // pred_region
    _
  $region9: #{conv_block_forward.3} parent=0 // pred_fallthru
    _
  // Predicated region
  $region10: #{conv_block_forward.3} parent=0 // pred_check
    _
  $region11: #{conv_block_forward.3} parent=0 // pred_check_branch
    %13 = sbr.rel (0) target = $region13
  $region12: #{conv_block_forward.3} parent=0 // pred_region
    _
  $region13: #{conv_block_forward.3} parent=0 // pred_fallthru
    _
  %v14 = vld [vmem:[%s0] sm:$0xff]
  %v15 = vld [vmem:[%s0 + $0x8] sm:$0xff]
  %v16 = vld [vmem:[%s0 + $0x10] sm:$0xff]
  %v17 = vld [vmem:[%s0 + $0x18] sm:$0xff]
  %v18 = vld [vmem:[%s0 + $0x20] sm:$0xff]
  %v19 = vld [vmem:[%s0 + $0x28] sm:$0xff]
  %v20 = vld [vmem:[%s0 + $0x30] sm:$0xff]
  %v21 = vld [vmem:[%s0 + $0x38] sm:$0xff]
  %v22 = vld [vmem:[%s0 + $0x40] sm:$0xff]
  %v23 = vld [vmem:[%s0 + $0x48] sm:$0xff]
  %v24 = vld [vmem:[%s0 + $0x50] sm:$0xff]
  %v25 = vld [vmem:[%s0 + $0x58] sm:$0xff]
  %v26 = vld [vmem:[%s0 + $0x60] sm:$0xff]
  %v27 = vld [vmem:[%s0 + $0x68] sm:$0xff]
  %v28 = vld [vmem:[%s0 + $0x70] sm:$0xff]
  %v29 = vld [vmem:[%s0 + $0x78] sm:$0xff]
  %v30 = vld [vmem:[%s0 + $0x80] sm:$0xff]
  %v31 = vld [vmem:[%s0 + $0x88] sm:$0xff]
  %v32 = vld [vmem:[%s0 + $0x90] sm:$0xff]
  %v33 = vld [vmem:[%s0 + $0x98] sm:$0xff]
  %v34 = vld [vmem:[%s0 + $0xa0] sm:$0xff]
  %v35 = vld [vmem:[%s0 + $0xa8] sm:$0xff]
  %v36 = vld [vmem:[%s0 + $0xb0] sm:$0xff]
  %v37 = vld [vmem:[%s0 + $0xb8] sm:$0xff]
  %v38 = vld [vmem:[%s0 + $0xc0] sm:$0xff]
  %v39 = vld [vmem:[%s0 + $0xc8] sm:$0xff]
  %v40 = vld [vmem:[%s0 + $0xd0] sm:$0xff]
  %v41 = vld [vmem:[%s0 + $0xd8] sm:$0xff]
  %v42 = vld [vmem:[%s0 + $0xe0] sm:$0xff]
  %v43 = vld [vmem:[%s0 + $0xe8] sm:$0xff]
  %v44 = vld [vmem:[%s0 + $0xf0] sm:$0xff]
  %v45 = vld [vmem:[%s0 + $0xf8] sm:$0xff]
  %v46 = vld [vmem:[%s0 + $0x100] sm:$0xff]
  %v47 = vld [vmem:[%s0 + $0x108] sm:$0xff]
  %v48 = vld [vmem:[%s0 + $0x110] sm:$0xff]
  %v49 = vld [vmem:[%s0 + $0x118] sm:$0xff]
  %v50 = vld [vmem:[%s0 + $0x120] sm:$0xff]
  %v51 = vld [vmem:[%s0 + $0x128] sm:$0xff]
  %v52 = vld [vmem:[%s0 + $0x130] sm:$0xff]
  %v53 = vld [vmem:[%s0 + $0x138] sm:$0xff]
  %v54 = vld [vmem:[%s0 + $0x140] sm:$0xff]
  %v55 = vld [vmem:[%s0 + $0x148] sm:$0xff]
  %v56 = vld [vmem:[%s0 + $0x150] sm:$0xff]
  %v57 = vld [vmem:[%s0 + $0x158] sm:$0xff]
  %v58 = vld [vmem:[%s0 + $0x160] sm:$0xff]
  %v59 = vld [vmem:[%s0 + $0x168] sm:$0xff]
  %v60 = vld [vmem:[%s0 + $0x170] sm:$0xff]
  %v61 = vld [vmem:[%s0 + $0x178] sm:$0xff]
  %v62 = vld [vmem:[%s0 + $0x180] sm:$0xff]
  %v63 = vld [vmem:[%s1] sm:$0x1]
  %v65 = vlaneseq
  %v66 = vshrl.u32 %v65, 7
  %v67 = vsub.s32 0, %v66
  %v68 = vrot.slane %v63, %v67
  %v70 = vmul.f32 %v14, %v68
  %v71 = vmul.f32 %v15, %v68
  %v72 = vmul.f32 %v16, %v68
  %v73 = vmul.f32 %v17, %v68
  %v74 = vmul.f32 %v18, %v68
  %v75 = vmul.f32 %v19, %v68
  %v76 = vmul.f32 %v20, %v68
  %v77 = vmul.f32 %v21, %v68
  %v78 = vmul.f32 %v22, %v68
  %v79 = vmul.f32 %v23, %v68
  %v80 = vmul.f32 %v24, %v68
  %v81 = vmul.f32 %v25, %v68
  %v82 = vmul.f32 %v26, %v68
  %v83 = vmul.f32 %v27, %v68
  %v84 = vmul.f32 %v28, %v68
  %v85 = vmul.f32 %v29, %v68
  %v86 = vmul.f32 %v30, %v68
  %v87 = vmul.f32 %v31, %v68
  %v88 = vmul.f32 %v32, %v68
  %v89 = vmul.f32 %v33, %v68
  %v90 = vmul.f32 %v34, %v68
  %v91 = vmul.f32 %v35, %v68
  %v92 = vmul.f32 %v36, %v68
  %v93 = vmul.f32 %v37, %v68
  %v94 = vmul.f32 %v38, %v68
  %v95 = vmul.f32 %v39, %v68
  %v96 = vmul.f32 %v40, %v68
  %v97 = vmul.f32 %v41, %v68
  %v98 = vmul.f32 %v42, %v68
  %v99 = vmul.f32 %v43, %v68
  %v100 = vmul.f32 %v44, %v68
  %v101 = vmul.f32 %v45, %v68
  %v102 = vmul.f32 %v46, %v68
  %v103 = vmul.f32 %v47, %v68
  %v104 = vmul.f32 %v48, %v68
  %v105 = vmul.f32 %v49, %v68
  %v106 = vmul.f32 %v50, %v68
  %v107 = vmul.f32 %v51, %v68
  %v108 = vmul.f32 %v52, %v68
  %v109 = vmul.f32 %v53, %v68
  %v110 = vmul.f32 %v54, %v68
  %v111 = vmul.f32 %v55, %v68
  %v112 = vmul.f32 %v56, %v68
  %v113 = vmul.f32 %v57, %v68
  %v114 = vmul.f32 %v58, %v68
  %v115 = vmul.f32 %v59, %v68
  %v116 = vmul.f32 %v60, %v68
  %v117 = vmul.f32 %v61, %v68
  %v118 = vmul.f32 %v62, %v68
  %v119 = vld [vmem:[%s2] sm:$0x1]
  %v121 = vlaneseq
  %v122 = vshrl.u32 %v121, 7
  %v123 = vsub.s32 0, %v122
  %v124 = vrot.slane %v119, %v123
  %v126 = vadd.f32 %v70, %v124
  %v127 = vadd.f32 %v71, %v124
  %v128 = vadd.f32 %v72, %v124
  %v129 = vadd.f32 %v73, %v124
  %v130 = vadd.f32 %v74, %v124
  %v131 = vadd.f32 %v75, %v124
  %v132 = vadd.f32 %v76, %v124
  %v133 = vadd.f32 %v77, %v124
  %v134 = vadd.f32 %v78, %v124
  %v135 = vadd.f32 %v79, %v124
  %v136 = vadd.f32 %v80, %v124
  %v137 = vadd.f32 %v81, %v124
  %v138 = vadd.f32 %v82, %v124
  %v139 = vadd.f32 %v83, %v124
  %v140 = vadd.f32 %v84, %v124
  %v141 = vadd.f32 %v85, %v124
  %v142 = vadd.f32 %v86, %v124
  %v143 = vadd.f32 %v87, %v124
  %v144 = vadd.f32 %v88, %v124
  %v145 = vadd.f32 %v89, %v124
  %v146 = vadd.f32 %v90, %v124
  %v147 = vadd.f32 %v91, %v124
  %v148 = vadd.f32 %v92, %v124
  %v149 = vadd.f32 %v93, %v124
  %v150 = vadd.f32 %v94, %v124
  %v151 = vadd.f32 %v95, %v124
  %v152 = vadd.f32 %v96, %v124
  %v153 = vadd.f32 %v97, %v124
  %v154 = vadd.f32 %v98, %v124
  %v155 = vadd.f32 %v99, %v124
  %v156 = vadd.f32 %v100, %v124
  %v157 = vadd.f32 %v101, %v124
  %v158 = vadd.f32 %v102, %v124
  %v159 = vadd.f32 %v103, %v124
  %v160 = vadd.f32 %v104, %v124
  %v161 = vadd.f32 %v105, %v124
  %v162 = vadd.f32 %v106, %v124
  %v163 = vadd.f32 %v107, %v124
  %v164 = vadd.f32 %v108, %v124
  %v165 = vadd.f32 %v109, %v124
  %v166 = vadd.f32 %v110, %v124
  %v167 = vadd.f32 %v111, %v124
  %v168 = vadd.f32 %v112, %v124
  %v169 = vadd.f32 %v113, %v124
  %v170 = vadd.f32 %v114, %v124
  %v171 = vadd.f32 %v115, %v124
  %v172 = vadd.f32 %v116, %v124
  %v173 = vadd.f32 %v117, %v124
  %v174 = vadd.f32 %v118, %v124
  %v175 = vmax.f32 %v126, 0.0
  %v176 = vmax.f32 %v127, 0.0
  %v177 = vmax.f32 %v128, 0.0
  %v178 = vmax.f32 %v129, 0.0
  %v179 = vmax.f32 %v130, 0.0
  %v180 = vmax.f32 %v131, 0.0
  %v181 = vmax.f32 %v132, 0.0
  %v182 = vmax.f32 %v133, 0.0
  %v183 = vmax.f32 %v134, 0.0
  %v184 = vmax.f32 %v135, 0.0
  %v185 = vmax.f32 %v136, 0.0
  %v186 = vmax.f32 %v137, 0.0
  %v187 = vmax.f32 %v138, 0.0
  %v188 = vmax.f32 %v139, 0.0
  %v189 = vmax.f32 %v140, 0.0
  %v190 = vmax.f32 %v141, 0.0
  %v191 = vmax.f32 %v142, 0.0
  %v192 = vmax.f32 %v143, 0.0
  %v193 = vmax.f32 %v144, 0.0
  %v194 = vmax.f32 %v145, 0.0
  %v195 = vmax.f32 %v146, 0.0
  %v196 = vmax.f32 %v147, 0.0
  %v197 = vmax.f32 %v148, 0.0
  %v198 = vmax.f32 %v149, 0.0
  %v199 = vmax.f32 %v150, 0.0
  %v200 = vmax.f32 %v151, 0.0
  %v201 = vmax.f32 %v152, 0.0
  %v202 = vmax.f32 %v153, 0.0
  %v203 = vmax.f32 %v154, 0.0
  %v204 = vmax.f32 %v155, 0.0
  %v205 = vmax.f32 %v156, 0.0
  %v206 = vmax.f32 %v157, 0.0
  %v207 = vmax.f32 %v158, 0.0
  %v208 = vmax.f32 %v159, 0.0
  %v209 = vmax.f32 %v160, 0.0
  %v210 = vmax.f32 %v161, 0.0
  %v211 = vmax.f32 %v162, 0.0
  %v212 = vmax.f32 %v163, 0.0
  %v213 = vmax.f32 %v164, 0.0
  %v214 = vmax.f32 %v165, 0.0
  %v215 = vmax.f32 %v166, 0.0
  %v216 = vmax.f32 %v167, 0.0
  %v217 = vmax.f32 %v168, 0.0
  %v218 = vmax.f32 %v169, 0.0
  %v219 = vmax.f32 %v170, 0.0
  %v220 = vmax.f32 %v171, 0.0
  %v221 = vmax.f32 %v172, 0.0
  %v222 = vmax.f32 %v173, 0.0
  %v223 = vmax.f32 %v174, 0.0
  %224 = vst [vmem:[%s3] sm:$0xff] %v175
  %225 = vst [vmem:[%s3 + $0x8] sm:$0xff] %v176
  %226 = vst [vmem:[%s3 + $0x10] sm:$0xff] %v177
  %227 = vst [vmem:[%s3 + $0x18] sm:$0xff] %v178
  %228 = vst [vmem:[%s3 + $0x20] sm:$0xff] %v179
  %229 = vst [vmem:[%s3 + $0x28] sm:$0xff] %v180
  %230 = vst [vmem:[%s3 + $0x30] sm:$0xff] %v181
  %231 = vst [vmem:[%s3 + $0x38] sm:$0xff] %v182
  %232 = vst [vmem:[%s3 + $0x40] sm:$0xff] %v183
  %233 = vst [vmem:[%s3 + $0x48] sm:$0xff] %v184
  %234 = vst [vmem:[%s3 + $0x50] sm:$0xff] %v185
  %235 = vst [vmem:[%s3 + $0x58] sm:$0xff] %v186
  %236 = vst [vmem:[%s3 + $0x60] sm:$0xff] %v187
  %237 = vst [vmem:[%s3 + $0x68] sm:$0xff] %v188
  %238 = vst [vmem:[%s3 + $0x70] sm:$0xff] %v189
  %239 = vst [vmem:[%s3 + $0x78] sm:$0xff] %v190
  %240 = vst [vmem:[%s3 + $0x80] sm:$0xff] %v191
  %241 = vst [vmem:[%s3 + $0x88] sm:$0xff] %v192
  %242 = vst [vmem:[%s3 + $0x90] sm:$0xff] %v193
  %243 = vst [vmem:[%s3 + $0x98] sm:$0xff] %v194
  %244 = vst [vmem:[%s3 + $0xa0] sm:$0xff] %v195
  %245 = vst [vmem:[%s3 + $0xa8] sm:$0xff] %v196
  %246 = vst [vmem:[%s3 + $0xb0] sm:$0xff] %v197
  %247 = vst [vmem:[%s3 + $0xb8] sm:$0xff] %v198
  %248 = vst [vmem:[%s3 + $0xc0] sm:$0xff] %v199
  %249 = vst [vmem:[%s3 + $0xc8] sm:$0xff] %v200
  %250 = vst [vmem:[%s3 + $0xd0] sm:$0xff] %v201
  %251 = vst [vmem:[%s3 + $0xd8] sm:$0xff] %v202
  %252 = vst [vmem:[%s3 + $0xe0] sm:$0xff] %v203
  %253 = vst [vmem:[%s3 + $0xe8] sm:$0xff] %v204
  %254 = vst [vmem:[%s3 + $0xf0] sm:$0xff] %v205
  %255 = vst [vmem:[%s3 + $0xf8] sm:$0xff] %v206
  %256 = vst [vmem:[%s3 + $0x100] sm:$0xff] %v207
  %257 = vst [vmem:[%s3 + $0x108] sm:$0xff] %v208
  %258 = vst [vmem:[%s3 + $0x110] sm:$0xff] %v209
  %259 = vst [vmem:[%s3 + $0x118] sm:$0xff] %v210
  %260 = vst [vmem:[%s3 + $0x120] sm:$0xff] %v211
  %261 = vst [vmem:[%s3 + $0x128] sm:$0xff] %v212
  %262 = vst [vmem:[%s3 + $0x130] sm:$0xff] %v213
  %263 = vst [vmem:[%s3 + $0x138] sm:$0xff] %v214
  %264 = vst [vmem:[%s3 + $0x140] sm:$0xff] %v215
  %265 = vst [vmem:[%s3 + $0x148] sm:$0xff] %v216
  %266 = vst [vmem:[%s3 + $0x150] sm:$0xff] %v217
  %267 = vst [vmem:[%s3 + $0x158] sm:$0xff] %v218
  %268 = vst [vmem:[%s3 + $0x160] sm:$0xff] %v219
  %269 = vst [vmem:[%s3 + $0x168] sm:$0xff] %v220
  %270 = vst [vmem:[%s3 + $0x170] sm:$0xff] %v221
  %271 = vst [vmem:[%s3 + $0x178] sm:$0xff] %v222
  %272 = vst [vmem:[%s3 + $0x180] sm:$0xff] %v223
  // Predicated region
  $region14: #{conv_block_forward.3} parent=0 // pred_check
    _
  $region15: #{conv_block_forward.3} parent=0 // pred_check_branch
    %274 = sbr.rel (0) target = $region17
  $region16: #{conv_block_forward.3} parent=0 // pred_region
    _
  $region17: #{conv_block_forward.3} parent=0 // pred_fallthru
    _
  // Predicated region
  $region18: #{conv_block_forward.3} parent=0 // pred_check
    _
  $region19: #{conv_block_forward.3} parent=0 // pred_check_branch
    %276 = sbr.rel (0) target = $region21
  $region20: #{conv_block_forward.3} parent=0 // pred_region
    _
  $region21: #{conv_block_forward.3} parent=0 // pred_fallthru
    _

// kernel: conv_block_forward.2
$region0: #{conv_block_forward.2}
  #allocation0 [shape = 'u32[]', space=smem, size = 0x4, offset = 0x4, fixed_abs, tag = 'smem constant byte address 0x4 - core index']
  #allocation1 [shape = 'u32[144,128]{1,0:T(1,128)}', space=vmem, size = 0x12000, scoped, tag = 'internal scratch']
  %s0 = inlined_call_operand.vmem [shape: f32[2,16,16,4], index: 0, kind: input, shape index: {}]
  %s1 = inlined_call_operand.vmem [shape: bf16[36,128], index: 1, kind: input, shape index: {}]
  %s2 = inlined_call_operand.vmem [shape: f32[2,196,128], index: 2, kind: output, shape index: {0}]
  %s3 = inlined_call_operand.vmem [shape: f32[2,128], index: 3, kind: output, shape index: {1}]
  %4 = xla_tuple %s2, %s3
  %s5 = sld [smem:[#allocation0]]
  $region53: #{conv_block_forward.2} parent=0
    _
  %s7 = ssub.s32 1, %s5
  %s8 = scalar_select 0, %s7, %s5
  loop: start=0, step=1, limit=4
  $region2: #{conv_block_forward.2} parent=0 // loop_pre_header
    _
  $region3: #{conv_block_forward.2} parent=0 // loop_header
    %s10 = sphi 0, %s14
    %p11 = scmp.ge.s32.totalorder %s10, 4
    %s20 = sphi 0, %s22
    %s23 = sphi 0, %s20
    %s24 = sphi 0, %s23
    %s40 = sphi 0, %s24
    %s44 = sphi 0, %s44
    %s46 = sphi 0, %s44
    %s47 = sphi 0, %s46
    %s61 = sphi 0, %s47
    %s67 = sphi 0, %s69
    %s70 = sphi 0, %s67
    %s71 = sphi 0, %s70
    %s87 = sphi 0, %s71
    %s91 = sphi 0, %s91
    %s93 = sphi 0, %s91
    %s94 = sphi 0, %s93
    %s108 = sphi 0, %s94
  $region4: #{conv_block_forward.2} parent=0 // loop_header_branch
    %13 = sbr.rel (%p11) target = $region8
  $region5: #{conv_block_forward.2} parent=0 // loop_body
    %s15 = ssub.s32 %s10, 1
    %s16 = ssub.s32 %s10, 2
    %s17 = sadd.s32 %s10, 1
    %s18 = ssub.s32 %s10, %s17
    %p19 = scmp.eq.s32.totalorder %s18, 0
    %s21 = sadd.s32 %s20, 1
    %s22 = scalar_select %p19, %s20, %s21
    %p25 = pneg %p19
    %p26 = scmp.eq.s32.totalorder %s10, 1
    %p27 = por %p25, %p26
    %p28 = scmp.ne.s32.totalorder %s20, %s23
    %p29 = scmp.eq.s32.totalorder %s10, 0
    %p30 = por %p28, %p29
    %p31 = scmp.ne.s32.totalorder %s20, %s23
    %p32 = scmp.eq.s32.totalorder %s15, 1
    %p33 = por %p31, %p32
    %p34 = scmp.ne.s32.totalorder %s23, %s24
    %p35 = scmp.eq.s32.totalorder %s15, 0
    %p36 = por %p34, %p35
    %p37 = scmp.ne.s32.totalorder %s23, %s24
    %p38 = scmp.eq.s32.totalorder %s16, 1
    %p39 = por %p37, %p38
    %p41 = scmp.ne.s32.totalorder %s24, %s40
    %p42 = scmp.eq.s32.totalorder %s16, 0
    %p43 = por %p41, %p42
    %s45 = sadd.s32 %s44, 1
    %p48 = scmp.eq.s32.totalorder %s10, 1
    %p49 = scmp.ne.s32.totalorder %s44, %s46
    %p50 = scmp.eq.s32.totalorder %s10, 0
    %p51 = por %p49, %p50
    %p52 = scmp.ne.s32.totalorder %s44, %s46
    %p53 = scmp.eq.s32.totalorder %s15, 1
    %p54 = por %p52, %p53
    %p55 = scmp.ne.s32.totalorder %s46, %s47
    %p56 = scmp.eq.s32.totalorder %s15, 0
    %p57 = por %p55, %p56
    %p58 = scmp.ne.s32.totalorder %s46, %s47
    %p59 = scmp.eq.s32.totalorder %s16, 1
    %p60 = por %p58, %p59
    %p62 = scmp.ne.s32.totalorder %s47, %s61
    %p63 = scmp.eq.s32.totalorder %s16, 0
    %p64 = por %p62, %p63
    %s65 = ssub.s32 %s10, %s17
    %p66 = scmp.eq.s32.totalorder %s65, 0
    %s68 = sadd.s32 %s67, 1
    %s69 = scalar_select %p66, %s67, %s68
    %p72 = pneg %p66
    %p73 = scmp.eq.s32.totalorder %s10, 1
    %p74 = por %p72, %p73
    %p75 = scmp.ne.s32.totalorder %s67, %s70
    %p76 = scmp.eq.s32.totalorder %s10, 0
    %p77 = por %p75, %p76
    %p78 = scmp.ne.s32.totalorder %s67, %s70
    %p79 = scmp.eq.s32.totalorder %s15, 1
    %p80 = por %p78, %p79
    %p81 = scmp.ne.s32.totalorder %s70, %s71
    %p82 = scmp.eq.s32.totalorder %s15, 0
    %p83 = por %p81, %p82
    %p84 = scmp.ne.s32.totalorder %s70, %s71
    %p85 = scmp.eq.s32.totalorder %s16, 1
    %p86 = por %p84, %p85
    %p88 = scmp.ne.s32.totalorder %s71, %s87
    %p89 = scmp.eq.s32.totalorder %s16, 0
    %p90 = por %p88, %p89
    %s92 = sadd.s32 %s91, 1
    %p95 = scmp.eq.s32.totalorder %s10, 1
    %p96 = scmp.ne.s32.totalorder %s91, %s93
    %p97 = scmp.eq.s32.totalorder %s10, 0
    %p98 = por %p96, %p97
    %p99 = scmp.ne.s32.totalorder %s91, %s93
    %p100 = scmp.eq.s32.totalorder %s15, 1
    %p101 = por %p99, %p100
    %p102 = scmp.ne.s32.totalorder %s93, %s94
    %p103 = scmp.eq.s32.totalorder %s15, 0
    %p104 = por %p102, %p103
    %p105 = scmp.ne.s32.totalorder %s93, %s94
    %p106 = scmp.eq.s32.totalorder %s16, 1
    %p107 = por %p105, %p106
    %p109 = scmp.ne.s32.totalorder %s94, %s108
    %p110 = scmp.eq.s32.totalorder %s16, 0
    %p111 = por %p109, %p110
    %p112 = scmp.le.s32.totalorder 1, %s10
    %p113 = scmp.lt.s32.totalorder %s10, 3
    %p114 = pnand %p112, %p113
    %p115 = pneg %p114
    // Predicated region
    $region9: #{conv_block_forward.2} parent=5 // pred_check
      _
    $region10: #{conv_block_forward.2} parent=5 // pred_check_branch
      %117 = sbr.rel (%p114) target = $region12
    $region11: #{conv_block_forward.2} parent=5 // pred_region
      %s118 = ssub.s32 %s10, 1
      // Predicated region
      $region13: #{conv_block_forward.2} parent=11 // pred_check
        %p119 = pneg %p57
      $region14: #{conv_block_forward.2} parent=11 // pred_check_branch
        %121 = sbr.rel (%p119) target = $region16
      $region15: #{conv_block_forward.2} parent=11 // pred_region
        _
      $region16: #{conv_block_forward.2} parent=11 // pred_fallthru
        _
    $region12: #{conv_block_forward.2} parent=5 // pred_fallthru
      _
    %p122 = scmp.lt.s32.totalorder %s10, 2
    // Predicated region
    $region17: #{conv_block_forward.2} parent=5 // pred_check
      %p123 = pneg %p122
    $region18: #{conv_block_forward.2} parent=5 // pred_check_branch
      %125 = sbr.rel (%p123) target = $region20
    $region19: #{conv_block_forward.2} parent=5 // pred_region
      // Predicated region
      $region21: #{conv_block_forward.2} parent=19 // pred_check
        %p126 = pneg %p30
      $region22: #{conv_block_forward.2} parent=19 // pred_check_branch
        %128 = sbr.rel (%p126) target = $region24
      $region23: #{conv_block_forward.2} parent=19 // pred_region
        %p129 = scmp.lt.s32.totalorder %s10, 1
        %s130 = scalar_select %p129, %s10, 1
        %s131 = smul.addr %s130, 32
        %s132 = smul.addr %s131, 8
        %s133 = scalar_lea.vmem %s0, %s132
      $region24: #{conv_block_forward.2} parent=19 // pred_fallthru
        _
    $region20: #{conv_block_forward.2} parent=5 // pred_fallthru
      _
    %p134 = scmp.le.s32.totalorder 1, %s10
    %p135 = scmp.lt.s32.totalorder %s10, 3
    %p136 = pnand %p134, %p135
    %p137 = pneg %p136
    // Predicated region
    $region25: #{conv_block_forward.2} parent=5 // pred_check
      _
    $region26: #{conv_block_forward.2} parent=5 // pred_check_branch
      %139 = sbr.rel (%p136) target = $region28
    $region27: #{conv_block_forward.2} parent=5 // pred_region
      %s140 = ssub.s32 %s10, 1
      %p141 = scmp.lt.s32.totalorder %s15, 1
      %s142 = scalar_select %p141, %s15, 1
      %s143 = smul.addr %s142, 32
      %s144 = smul.addr %s143, 8
      %s145 = scalar_lea.vmem %s0, %s144
      %p146 = pneg %p36
      %p147 = pneg %p33
      %p148 = pneg %p57
      %p149 = pneg %p54
      %p150 = pneg %p83
      %p151 = pneg %p80
      %p152 = scmp.lt.s32.totalorder %s15, 1
      %s153 = scalar_select %p152, %s15, 1
      %s154 = smul.addr %s153, 25
      %s155 = smul.addr %s154, 8
      %s156 = scalar_lea.vmem %s2, %s155
      %p157 = pneg %p104
      %p158 = pneg %p101
      %p159 = scmp.lt.s32.totalorder %s15, 1
      %s160 = scalar_select %p159, %s15, 1
      %s161 = smul.addr %s160, 32
      %s162 = smul.addr %s161, 8
      %s163 = scalar_lea.vmem %s0, %s162
      %p164 = scmp.lt.s32.totalorder %s15, 1
      %s165 = scalar_select %p164, %s15, 1
      %s166 = smul.addr %s165, 25
      %s167 = smul.addr %s166, 8
      %s168 = scalar_lea.vmem %s2, %s167
      %p170 = scmp.eq.s32.totalorder %s15, 0
      // Predicated region
      $region29: #{conv_block_forward.2} parent=27 // pred_check
        %p171 = pneg %p170
      $region30: #{conv_block_forward.2} parent=27 // pred_check_branch
        %173 = sbr.rel (%p171) target = $region32
      $region31: #{conv_block_forward.2} parent=27 // pred_region
        %174 = vst [vmem:[%s3] sm:$0x3] 0.0
      $region32: #{conv_block_forward.2} parent=27 // pred_fallthru
        _
      %v175 = vld [vmem:[%s1] sm:$0x3]
      %v176 = vld [vmem:[%s1] sm:$0xc]
      %v177 = vld [vmem:[%s1 + $0x4] sm:$0x3]
      %v178 = vld [vmem:[%s1 + $0x4] sm:$0xc]
      %v179 = vld [vmem:[%s1 + $0x8] sm:$0x3]
      %v180 = vld [vmem:[%s1 + $0x8] sm:$0xc]
      %v181 = vld [vmem:[%s1 + $0xc] sm:$0x3]
      %v182 = vld [vmem:[%s1 + $0xc] sm:$0xc]
      %v183 = vld [vmem:[%s1 + $0x10] sm:$0x3]
      %v184 = vld [vmem:[%s163] sm:$0xff]
      %v185 = vld [vmem:[%s163 + $0x8] sm:$0x3f]
      %v186 = vpack.c.bf16 %v185, %v184
      %v187 = vld [vmem:[%s163 + $0x1] sm:$0xff]
      %v188 = vld [vmem:[%s163 + $0x9] sm:$0x3f]
      %v189 = vpack.c.bf16 %v188, %v187
      %v191 = vunpack.c.l.b16 %v176
      %v192 = vpack.c.b16 %v191, %v191
      %v193 = vrot.slane %v192, 2
      %vm194 = vcmask 31744
      %v196 = vsel %vm194, %v189, 0
      %vm198 = vcmask 1041408
      %v200 = vsel %vm198, %v193, 0
      %202 = vmatprep.subr.bf16.mxu0 0
      %203 = vmatpush1.bf16.msra.mxu0 %v200
      %204 = vmatprep.subr.bf16.mxu0 0
      %205 = vmatpush1.bf16.msra.mxu0 0
      %206 = vmatprep.subr.bf16.mxu0 0
      %207 = vmatpush1.bf16.msra.mxu0 0
      %208 = vmatprep.subr.bf16.mxu0 0
      %209 = vmatpush1.bf16.msra.mxu0 0
      %210 = vmatprep.subr.bf16.mxu0 0
      %211 = vmatpush1.bf16.msra.mxu0 0
      %212 = vmatprep.subr.bf16.mxu0 0
      %213 = vmatpush1.bf16.msra.mxu0 0
      %214 = vmatprep.subr.bf16.mxu0 0
      %215 = vmatpush1.bf16.msra.mxu0 0
      %216 = vmatprep.subr.bf16.mxu0 0
      %217 = vmatpush1.bf16.msra.mxu0 0
      %218 = vmatprep.subr.bf16.mxu0 0
      %219 = vmatpush1.bf16.msra.mxu0 0
      %220 = vmatprep.subr.bf16.mxu0 0
      %221 = vmatpush1.bf16.msra.mxu0 0
      %222 = vmatprep.subr.bf16.mxu0 0
      %223 = vmatpush1.bf16.msra.mxu0 0
      %224 = vmatprep.subr.bf16.mxu0 0
      %225 = vmatpush1.bf16.msra.mxu0 0
      %226 = vmatprep.subr.bf16.mxu0 0
      %227 = vmatpush1.bf16.msra.mxu0 0
      %228 = vmatprep.subr.bf16.mxu0 0
      %229 = vmatpush1.bf16.msra.mxu0 0
      %230 = vmatprep.subr.bf16.mxu0 0
      %231 = vmatpush1.bf16.msra.mxu0 0
      %232 = vmatprep.subr.bf16.mxu0 0
      %233 = vmatpush1.bf16.msra.mxu0 0
      %234 = vmatprep.mubr.bf16.mxu0 0
      %235 = vmatmul.mubr.bf16.gmra.mrb[0].mxu0 %v196
      %v236 = vpop.f32.mrb[0].mxu0
      %v237 = vadd.f32 0.0, %v236
      %v238 = vpop.f32.mrb[0].mxu0
      %v239 = vpop.f32.mrb[0].mxu0
      %v240 = vadd.f32 0.0, %v239
      %v241 = vpop.f32.mrb[0].mxu0
      %242 = vdwg.mxu0
      %v244 = vsel %vm194, %v186, 0
      %v247 = vsel %vm198, %v175, 0
      %249 = vmatprep.subr.bf16.mxu0 0
      %250 = vmatpush1.bf16.msra.mxu0 %v247
      %251 = vmatprep.subr.bf16.mxu0 0
      %252 = vmatpush1.bf16.msra.mxu0 0
      %253 = vmatprep.subr.bf16.mxu0 0
      %254 = vmatpush1.bf16.msra.mxu0 0
      %255 = vmatprep.subr.bf16.mxu0 0
      %256 = vmatpush1.bf16.msra.mxu0 0
      %257 = vmatprep.subr.bf16.mxu0 0
      %258 = vmatpush1.bf16.msra.mxu0 0
      %259 = vmatprep.subr.bf16.mxu0 0
      %260 = vmatpush1.bf16.msra.mxu0 0
      %261 = vmatprep.subr.bf16.mxu0 0
      %262 = vmatpush1.bf16.msra.mxu0 0
      %263 = vmatprep.subr.bf16.mxu0 0
      %264 = vmatpush1.bf16.msra.mxu0 0
      %265 = vmatprep.subr.bf16.mxu0 0
      %266 = vmatpush1.bf16.msra.mxu0 0
      %267 = vmatprep.subr.bf16.mxu0 0
      %268 = vmatpush1.bf16.msra.mxu0 0
      %269 = vmatprep.subr.bf16.mxu0 0
      %270 = vmatpush1.bf16.msra.mxu0 0
      %271 = vmatprep.subr.bf16.mxu0 0
      %272 = vmatpush1.bf16.msra.mxu0 0
      %273 = vmatprep.subr.bf16.mxu0 0
      %274 = vmatpush1.bf16.msra.mxu0 0
      %275 = vmatprep.subr.bf16.mxu0 0
      %276 = vmatpush1.bf16.msra.mxu0 0
      %277 = vmatprep.subr.bf16.mxu0 0
      %278 = vmatpush1.bf16.msra.mxu0 0
      %279 = vmatprep.subr.bf16.mxu0 0
      %280 = vmatpush1.bf16.msra.mxu0 0
      %281 = vmatprep.mubr.bf16.mxu0 0
      %282 = vmatmul.mubr.bf16.gmra.mrb[0].mxu0 %v244
      %v283 = vpop.f32.mrb[0].mxu0
      %v284 = vadd.f32 %v237, %v283
      %v285 = vpop.f32.mrb[0].mxu0
      %v286 = vpop.f32.mrb[0].mxu0
      %v287 = vadd.f32 %v240, %v286
      %v288 = vpop.f32.mrb[0].mxu0
      %289 = vdwg.mxu0
      %v290 = vld [vmem:[%s163 + $0x2] sm:$0xff]
      %v291 = vld [vmem:[%s163 + $0xa] sm:$0x3f]
      %v292 = vpack.c.bf16 %v291, %v290
      %v294 = vsel %vm194, %v292, 0
      %v297 = vsel %vm198, %v177, 0
      %299 = vmatprep.subr.bf16.mxu0 0
      %300 = vmatpush1.bf16.msra.mxu0 %v297
      %301 = vmatprep.subr.bf16.mxu0 0
      %302 = vmatpush1.bf16.msra.mxu0 0
      %303 = vmatprep.subr.bf16.mxu0 0
      %304 = vmatpush1.bf16.msra.mxu0 0
      %305 = vmatprep.subr.bf16.mxu0 0
      %306 = vmatpush1.bf16.msra.mxu0 0
      %307 = vmatprep.subr.bf16.mxu0 0
      %308 = vmatpush1.bf16.msra.mxu0 0
      %309 = vmatprep.subr.bf16.mxu0 0
      %310 = vmatpush1.bf16.msra.mxu0 0
      %311 = vmatprep.subr.bf16.mxu0 0
      %312 = vmatpush1.bf16.msra.mxu0 0
      %313 = vmatprep.subr.bf16.mxu0 0
      %314 = vmatpush1.bf16.msra.mxu0 0
      %315 = vmatprep.subr.bf16.mxu0 0
      %316 = vmatpush1.bf16.msra.mxu0 0
      %317 = vmatprep.subr.bf16.mxu0 0
      %318 = vmatpush1.bf16.msra.mxu0 0
      %319 = vmatprep.subr.bf16.mxu0 0
      %320 = vmatpush1.bf16.msra.mxu0 0
      %321 = vmatprep.subr.bf16.mxu0 0
      %322 = vmatpush1.bf16.msra.mxu0 0
      %323 = vmatprep.subr.bf16.mxu0 0
      %324 = vmatpush1.bf16.msra.mxu0 0
      %325 = vmatprep.subr.bf16.mxu0 0
      %326 = vmatpush1.bf16.msra.mxu0 0
      %327 = vmatprep.subr.bf16.mxu0 0
      %328 = vmatpush1.bf16.msra.mxu0 0
      %329 = vmatprep.subr.bf16.mxu0 0
      %330 = vmatpush1.bf16.msra.mxu0 0
      %331 = vmatprep.mubr.bf16.mxu0 0
      %332 = vmatmul.mubr.bf16.gmra.mrb[0].mxu0 %v294
      %v333 = vpop.f32.mrb[0].mxu0
      %v334 = vadd.f32 0.0, %v333
      %v335 = vpop.f32.mrb[0].mxu0
      %v336 = vpop.f32.mrb[0].mxu0
      %v337 = vadd.f32 0.0, %v336
      %v338 = vpop.f32.mrb[0].mxu0
      %339 = vdwg.mxu0
      %v340 = vadd.f32 %v284, %v334
      %v341 = vadd.f32 %v287, %v337
      %s342 = scalar_lea.vmem %s163, 16
      %v343 = vld [vmem:[%s342] sm:$0xff]
      %v344 = vld [vmem:[%s342 + $0x8] sm:$0x3f]
      %v345 = vpack.c.bf16 %v344, %v343
      %v347 = vunpack.c.l.b16 %v178
      %v348 = vpack.c.b16 %v347, %v347
      %v349 = vrot.slane %v348, 2
      %v351 = vsel %vm194, %v345, 0
      %v354 = vsel %vm198, %v349, 0
      %356 = vmatprep.subr.bf16.mxu0 0
      %357 = vmatpush1.bf16.msra.mxu0 %v354
      %358 = vmatprep.subr.bf16.mxu0 0
      %359 = vmatpush1.bf16.msra.mxu0 0
      %360 = vmatprep.subr.bf16.mxu0 0
      %361 = vmatpush1.bf16.msra.mxu0 0
      %362 = vmatprep.subr.bf16.mxu0 0
      %363 = vmatpush1.bf16.msra.mxu0 0
      %364 = vmatprep.subr.bf16.mxu0 0
      %365 = vmatpush1.bf16.msra.mxu0 0
      %366 = vmatprep.subr.bf16.mxu0 0
      %367 = vmatpush1.bf16.msra.mxu0 0
      %368 = vmatprep.subr.bf16.mxu0 0
      %369 = vmatpush1.bf16.msra.mxu0 0
      %370 = vmatprep.subr.bf16.mxu0 0
      %371 = vmatpush1.bf16.msra.mxu0 0
      %372 = vmatprep.subr.bf16.mxu0 0
      %373 = vmatpush1.bf16.msra.mxu0 0
      %374 = vmatprep.subr.bf16.mxu0 0
      %375 = vmatpush1.bf16.msra.mxu0 0
      %376 = vmatprep.subr.bf16.mxu0 0
      %377 = vmatpush1.bf16.msra.mxu0 0
      %378 = vmatprep.subr.bf16.mxu0 0
      %379 = vmatpush1.bf16.msra.mxu0 0
      %380 = vmatprep.subr.bf16.mxu0 0
      %381 = vmatpush1.bf16.msra.mxu0 0
      %382 = vmatprep.subr.bf16.mxu0 0
      %383 = vmatpush1.bf16.msra.mxu0 0
      %384 = vmatprep.subr.bf16.mxu0 0
      %385 = vmatpush1.bf16.msra.mxu0 0
      %386 = vmatprep.subr.bf16.mxu0 0
      %387 = vmatpush1.bf16.msra.mxu0 0
      %388 = vmatprep.mubr.bf16.mxu0 0
      %389 = vmatmul.mubr.bf16.gmra.mrb[0].mxu0 %v351
      %v390 = vpop.f32.mrb[0].mxu0
      %v391 = vadd.f32 0.0, %v390
      %v392 = vpop.f32.mrb[0].mxu0
      %v393 = vpop.f32.mrb[0].mxu0
      %v394 = vadd.f32 0.0, %v393
      %v395 = vpop.f32.mrb[0].mxu0
      %396 = vdwg.mxu0
      %v397 = vadd.f32 %v340, %v391
      %v398 = vadd.f32 %v341, %v394
      %v399 = vld [vmem:[%s342 + $0x1] sm:$0xff]
      %v400 = vld [vmem:[%s342 + $0x9] sm:$0x3f]
      %v401 = vpack.c.bf16 %v400, %v399
      %v403 = vsel %vm194, %v401, 0
      %v406 = vsel %vm198, %v179, 0
      %408 = vmatprep.subr.bf16.mxu0 0
      %409 = vmatpush1.bf16.msra.mxu0 %v406
      %410 = vmatprep.subr.bf16.mxu0 0
      %411 = vmatpush1.bf16.msra.mxu0 0
      %412 = vmatprep.subr.bf16.mxu0 0
      %413 = vmatpush1.bf16.msra.mxu0 0
      %414 = vmatprep.subr.bf16.mxu0 0
      %415 = vmatpush1.bf16.msra.mxu0 0
      %416 = vmatprep.subr.bf16.mxu0 0
      %417 = vmatpush1.bf16.msra.mxu0 0
      %418 = vmatprep.subr.bf16.mxu0 0
      %419 = vmatpush1.bf16.msra.mxu0 0
      %420 = vmatprep.subr.bf16.mxu0 0
      %421 = vmatpush1.bf16.msra.mxu0 0
      %422 = vmatprep.subr.bf16.mxu0 0
      %423 = vmatpush1.bf16.msra.mxu0 0
      %424 = vmatprep.subr.bf16.mxu0 0
      %425 = vmatpush1.bf16.msra.mxu0 0
      %426 = vmatprep.subr.bf16.mxu0 0
      %427 = vmatpush1.bf16.msra.mxu0 0
      %428 = vmatprep.subr.bf16.mxu0 0
      %429 = vmatpush1.bf16.msra.mxu0 0
      %430 = vmatprep.subr.bf16.mxu0 0
      %431 = vmatpush1.bf16.msra.mxu0 0
      %432 = vmatprep.subr.bf16.mxu0 0
      %433 = vmatpush1.bf16.msra.mxu0 0
      %434 = vmatprep.subr.bf16.mxu0 0
      %435 = vmatpush1.bf16.msra.mxu0 0
      %436 = vmatprep.subr.bf16.mxu0 0
      %437 = vmatpush1.bf16.msra.mxu0 0
      %438 = vmatprep.subr.bf16.mxu0 0
      %439 = vmatpush1.bf16.msra.mxu0 0
      %440 = vmatprep.mubr.bf16.mxu0 0
      %441 = vmatmul.mubr.bf16.gmra.mrb[0].mxu0 %v403
      %v442 = vpop.f32.mrb[0].mxu0
      %v443 = vadd.f32 0.0, %v442
      %v444 = vpop.f32.mrb[0].mxu0
      %v445 = vpop.f32.mrb[0].mxu0
      %v446 = vadd.f32 0.0, %v445
      %v447 = vpop.f32.mrb[0].mxu0
      %448 = vdwg.mxu0
      %v449 = vadd.f32 %v397, %v443
      %v450 = vadd.f32 %v398, %v446
      %v451 = vld [vmem:[%s342 + $0x2] sm:$0xff]
      %v452 = vld [vmem:[%s342 + $0xa] sm:$0x3f]
      %v453 = vpack.c.bf16 %v452, %v451
      %v455 = vunpack.c.l.b16 %v180
      %v456 = vpack.c.b16 %v455, %v455
      %v457 = vrot.slane %v456, 2
      %v459 = vsel %vm194, %v453, 0
      %v462 = vsel %vm198, %v457, 0
      %464 = vmatprep.subr.bf16.mxu0 0
      %465 = vmatpush1.bf16.msra.mxu0 %v462
      %466 = vmatprep.subr.bf16.mxu0 0
      %467 = vmatpush1.bf16.msra.mxu0 0
      %468 = vmatprep.subr.bf16.mxu0 0
      %469 = vmatpush1.bf16.msra.mxu0 0
      %470 = vmatprep.subr.bf16.mxu0 0
      %471 = vmatpush1.bf16.msra.mxu0 0
      %472 = vmatprep.subr.bf16.mxu0 0
      %473 = vmatpush1.bf16.msra.mxu0 0
      %474 = vmatprep.subr.bf16.mxu0 0
      %475 = vmatpush1.bf16.msra.mxu0 0
      %476 = vmatprep.subr.bf16.mxu0 0
      %477 = vmatpush1.bf16.msra.mxu0 0
      %478 = vmatprep.subr.bf16.mxu0 0
      %479 = vmatpush1.bf16.msra.mxu0 0
      %480 = vmatprep.subr.bf16.mxu0 0
      %481 = vmatpush1.bf16.msra.mxu0 0
      %482 = vmatprep.subr.bf16.mxu0 0
      %483 = vmatpush1.bf16.msra.mxu0 0
      %484 = vmatprep.subr.bf16.mxu0 0
      %485 = vmatpush1.bf16.msra.mxu0 0
      %486 = vmatprep.subr.bf16.mxu0 0
      %487 = vmatpush1.bf16.msra.mxu0 0
      %488 = vmatprep.subr.bf16.mxu0 0
      %489 = vmatpush1.bf16.msra.mxu0 0
      %490 = vmatprep.subr.bf16.mxu0 0
      %491 = vmatpush1.bf16.msra.mxu0 0
      %492 = vmatprep.subr.bf16.mxu0 0
      %493 = vmatpush1.bf16.msra.mxu0 0
      %494 = vmatprep.subr.bf16.mxu0 0
      %495 = vmatpush1.bf16.msra.mxu0 0
      %496 = vmatprep.mubr.bf16.mxu0 0
      %497 = vmatmul.mubr.bf16.gmra.mrb[0].mxu0 %v459
      %v498 = vpop.f32.mrb[0].mxu0
      %v499 = vadd.f32 0.0, %v498
      %v500 = vpop.f32.mrb[0].mxu0
      %v501 = vpop.f32.mrb[0].mxu0
      %v502 = vadd.f32 0.0, %v501
      %v503 = vpop.f32.mrb[0].mxu0
      %504 = vdwg.mxu0
      %v505 = vadd.f32 %v449, %v499
      %v506 = vadd.f32 %v450, %v502
      %s507 = scalar_lea.vmem %s163, 32
      %v508 = vld [vmem:[%s507] sm:$0xff]
      %v509 = vld [vmem:[%s507 + $0x8] sm:$0x3f]
      %v510 = vpack.c.bf16 %v509, %v508
      %v512 = vsel %vm194, %v510, 0
      %v515 = vsel %vm198, %v181, 0
      %517 = vmatprep.subr.bf16.mxu0 0
      %518 = vmatpush1.bf16.msra.mxu0 %v515
      %519 = vmatprep.subr.bf16.mxu0 0
      %520 = vmatpush1.bf16.msra.mxu0 0
      %521 = vmatprep.subr.bf16.mxu0 0
      %522 = vmatpush1.bf16.msra.mxu0 0
      %523 = vmatprep.subr.bf16.mxu0 0
      %524 = vmatpush1.bf16.msra.mxu0 0
      %525 = vmatprep.subr.bf16.mxu0 0
      %526 = vmatpush1.bf16.msra.mxu0 0
      %527 = vmatprep.subr.bf16.mxu0 0
      %528 = vmatpush1.bf16.msra.mxu0 0
      %529 = vmatprep.subr.bf16.mxu0 0
      %530 = vmatpush1.bf16.msra.mxu0 0
      %531 = vmatprep.subr.bf16.mxu0 0
      %532 = vmatpush1.bf16.msra.mxu0 0
      %533 = vmatprep.subr.bf16.mxu0 0
      %534 = vmatpush1.bf16.msra.mxu0 0
      %535 = vmatprep.subr.bf16.mxu0 0
      %536 = vmatpush1.bf16.msra.mxu0 0
      %537 = vmatprep.subr.bf16.mxu0 0
      %538 = vmatpush1.bf16.msra.mxu0 0
      %539 = vmatprep.subr.bf16.mxu0 0
      %540 = vmatpush1.bf16.msra.mxu0 0
      %541 = vmatprep.subr.bf16.mxu0 0
      %542 = vmatpush1.bf16.msra.mxu0 0
      %543 = vmatprep.subr.bf16.mxu0 0
      %544 = vmatpush1.bf16.msra.mxu0 0
      %545 = vmatprep.subr.bf16.mxu0 0
      %546 = vmatpush1.bf16.msra.mxu0 0
      %547 = vmatprep.subr.bf16.mxu0 0
      %548 = vmatpush1.bf16.msra.mxu0 0
      %549 = vmatprep.mubr.bf16.mxu0 0
      %550 = vmatmul.mubr.bf16.gmra.mrb[0].mxu0 %v512
      %v551 = vpop.f32.mrb[0].mxu0
      %v552 = vadd.f32 0.0, %v551
      %v553 = vpop.f32.mrb[0].mxu0
      %v554 = vpop.f32.mrb[0].mxu0
      %v555 = vadd.f32 0.0, %v554
      %v556 = vpop.f32.mrb[0].mxu0
      %557 = vdwg.mxu0
      %v558 = vadd.f32 %v505, %v552
      %v559 = vadd.f32 %v506, %v555
      %v560 = vld [vmem:[%s507 + $0x1] sm:$0xff]
      %v561 = vld [vmem:[%s507 + $0x9] sm:$0x3f]
      %v562 = vpack.c.bf16 %v561, %v560
      %v564 = vunpack.c.l.b16 %v182
      %v565 = vpack.c.b16 %v564, %v564
      %v566 = vrot.slane %v565, 2
      %v568 = vsel %vm194, %v562, 0
      %v571 = vsel %vm198, %v566, 0
      %573 = vmatprep.subr.bf16.mxu0 0
      %574 = vmatpush1.bf16.msra.mxu0 %v571
      %575 = vmatprep.subr.bf16.mxu0 0
      %576 = vmatpush1.bf16.msra.mxu0 0
      %577 = vmatprep.subr.bf16.mxu0 0
      %578 = vmatpush1.bf16.msra.mxu0 0
      %579 = vmatprep.subr.bf16.mxu0 0
      %580 = vmatpush1.bf16.msra.mxu0 0
      %581 = vmatprep.subr.bf16.mxu0 0
      %582 = vmatpush1.bf16.msra.mxu0 0
      %583 = vmatprep.subr.bf16.mxu0 0
      %584 = vmatpush1.bf16.msra.mxu0 0
      %585 = vmatprep.subr.bf16.mxu0 0
      %586 = vmatpush1.bf16.msra.mxu0 0
      %587 = vmatprep.subr.bf16.mxu0 0
      %588 = vmatpush1.bf16.msra.mxu0 0
      %589 = vmatprep.subr.bf16.mxu0 0
      %590 = vmatpush1.bf16.msra.mxu0 0
      %591 = vmatprep.subr.bf16.mxu0 0
      %592 = vmatpush1.bf16.msra.mxu0 0
      %593 = vmatprep.subr.bf16.mxu0 0
      %594 = vmatpush1.bf16.msra.mxu0 0
      %595 = vmatprep.subr.bf16.mxu0 0
      %596 = vmatpush1.bf16.msra.mxu0 0
      %597 = vmatprep.subr.bf16.mxu0 0
      %598 = vmatpush1.bf16.msra.mxu0 0
      %599 = vmatprep.subr.bf16.mxu0 0
      %600 = vmatpush1.bf16.msra.mxu0 0
      %601 = vmatprep.subr.bf16.mxu0 0
      %602 = vmatpush1.bf16.msra.mxu0 0
      %603 = vmatprep.subr.bf16.mxu0 0
      %604 = vmatpush1.bf16.msra.mxu0 0
      %605 = vmatprep.mubr.bf16.mxu0 0
      %606 = vmatmul.mubr.bf16.gmra.mrb[0].mxu0 %v568
      %v607 = vpop.f32.mrb[0].mxu0
      %v608 = vadd.f32 0.0, %v607
      %v609 = vpop.f32.mrb[0].mxu0
      %v610 = vpop.f32.mrb[0].mxu0
      %v611 = vadd.f32 0.0, %v610
      %v612 = vpop.f32.mrb[0].mxu0
      %613 = vdwg.mxu0
      %v614 = vadd.f32 %v558, %v608
      %v615 = vadd.f32 %v559, %v611
      %v616 = vld [vmem:[%s507 + $0x2] sm:$0xff]
      %v617 = vld [vmem:[%s507 + $0xa] sm:$0x3f]
      %v618 = vpack.c.bf16 %v617, %v616
      %v620 = vsel %vm194, %v618, 0
      %v623 = vsel %vm198, %v183, 0
      %625 = vmatprep.subr.bf16.mxu0 0
      %626 = vmatpush1.bf16.msra.mxu0 %v623
      %627 = vmatprep.subr.bf16.mxu0 0
      %628 = vmatpush1.bf16.msra.mxu0 0
      %629 = vmatprep.subr.bf16.mxu0 0
      %630 = vmatpush1.bf16.msra.mxu0 0
      %631 = vmatprep.subr.bf16.mxu0 0
      %632 = vmatpush1.bf16.msra.mxu0 0
      %633 = vmatprep.subr.bf16.mxu0 0
      %634 = vmatpush1.bf16.msra.mxu0 0
      %635 = vmatprep.subr.bf16.mxu0 0
      %636 = vmatpush1.bf16.msra.mxu0 0
      %637 = vmatprep.subr.bf16.mxu0 0
      %638 = vmatpush1.bf16.msra.mxu0 0
      %639 = vmatprep.subr.bf16.mxu0 0
      %640 = vmatpush1.bf16.msra.mxu0 0
      %641 = vmatprep.subr.bf16.mxu0 0
      %642 = vmatpush1.bf16.msra.mxu0 0
      %643 = vmatprep.subr.bf16.mxu0 0
      %644 = vmatpush1.bf16.msra.mxu0 0
      %645 = vmatprep.subr.bf16.mxu0 0
      %646 = vmatpush1.bf16.msra.mxu0 0
      %647 = vmatprep.subr.bf16.mxu0 0
      %648 = vmatpush1.bf16.msra.mxu0 0
      %649 = vmatprep.subr.bf16.mxu0 0
      %650 = vmatpush1.bf16.msra.mxu0 0
      %651 = vmatprep.subr.bf16.mxu0 0
      %652 = vmatpush1.bf16.msra.mxu0 0
      %653 = vmatprep.subr.bf16.mxu0 0
      %654 = vmatpush1.bf16.msra.mxu0 0
      %655 = vmatprep.subr.bf16.mxu0 0
      %656 = vmatpush1.bf16.msra.mxu0 0
      %657 = vmatprep.mubr.bf16.mxu0 0
      %658 = vmatmul.mubr.bf16.gmra.mrb[0].mxu0 %v620
      %v659 = vpop.f32.mrb[0].mxu0
      %v660 = vadd.f32 0.0, %v659
      %v661 = vpop.f32.mrb[0].mxu0
      %v662 = vpop.f32.mrb[0].mxu0
      %v663 = vadd.f32 0.0, %v662
      %v664 = vpop.f32.mrb[0].mxu0
      %665 = vdwg.mxu0
      %v666 = vadd.f32 %v614, %v660
      %v667 = vadd.f32 %v615, %v663
      %668 = vst [vmem:[%s168] sm:$0xff] %v666
      %669 = vst [vmem:[%s168 + $0x8] sm:$0x3f] %v667
      %vm670 = vcmask 1045504
      %v671 = vsel %vm670, %v667, 0.0
      %v672 = vadd.f32 %v666, %v671
      %v673 = vrot.slane %v672, 4
      %v674 = vadd.f32 %v672, %v673
      %v675 = vrot.slane %v674, 2
      %v676 = vadd.f32 %v674, %v675
      %v677 = vrot.slane %v676, 1
      %v678 = vadd.f32 %v676, %v677
      %v679 = vadd.f32 %v678, 0.0
      %v680 = vmul.f32 %v666, %v666
      %v681 = vmul.f32 %v667, %v667
      %v682 = vsel %vm670, %v681, 0.0
      %v683 = vadd.f32 %v680, %v682
      %v684 = vrot.slane %v683, 4
      %v685 = vadd.f32 %v683, %v684
      %v686 = vrot.slane %v685, 2
      %v687 = vadd.f32 %v685, %v686
      %v688 = vrot.slane %v687, 1
      %v689 = vadd.f32 %v687, %v688
      %v690 = vadd.f32 %v689, 0.0
      %v691 = vld [vmem:[%s342] sm:$0xff]
      %v692 = vld [vmem:[%s342 + $0x8] sm:$0x3f]
      %v693 = vpack.c.bf16 %v692, %v691
      %v694 = vld [vmem:[%s342 + $0x1] sm:$0xff]
      %v695 = vld [vmem:[%s342 + $0x9] sm:$0x3f]
      %v696 = vpack.c.bf16 %v695, %v694
      %v698 = vsel %vm194, %v696, 0
      %700 = vmatprep.subr.bf16.mxu0 0
      %701 = vmatpush1.bf16.msra.mxu0 %v200
      %702 = vmatprep.subr.bf16.mxu0 0
      %703 = vmatpush1.bf16.msra.mxu0 0
      %704 = vmatprep.subr.bf16.mxu0 0
      %705 = vmatpush1.bf16.msra.mxu0 0
      %706 = vmatprep.subr.bf16.mxu0 0
      %707 = vmatpush1.bf16.msra.mxu0 0
      %708 = vmatprep.subr.bf16.mxu0 0
      %709 = vmatpush1.bf16.msra.mxu0 0
      %710 = vmatprep.subr.bf16.mxu0 0
      %711 = vmatpush1.bf16.msra.mxu0 0
      %712 = vmatprep.subr.bf16.mxu0 0
      %713 = vmatpush1.bf16.msra.mxu0 0
      %714 = vmatprep.subr.bf16.mxu0 0
      %715 = vmatpush1.bf16.msra.mxu0 0
      %716 = vmatprep.subr.bf16.mxu0 0
      %717 = vmatpush1.bf16.msra.mxu0 0
      %718 = vmatprep.subr.bf16.mxu0 0
      %719 = vmatpush1.bf16.msra.mxu0 0
      %720 = vmatprep.subr.bf16.mxu0 0
      %721 = vmatpush1.bf16.msra.mxu0 0
      %722 = vmatprep.subr.bf16.mxu0 0
      %723 = vmatpush1.bf16.msra.mxu0 0
      %724 = vmatprep.subr.bf16.mxu0 0
      %725 = vmatpush1.bf16.msra.mxu0 0
      %726 = vmatprep.subr.bf16.mxu0 0
      %727 = vmatpush1.bf16.msra.mxu0 0
      %728 = vmatprep.subr.bf16.mxu0 0
      %729 = vmatpush1.bf16.msra.mxu0 0
      %730 = vmatprep.subr.bf16.mxu0 0
      %731 = vmatpush1.bf16.msra.mxu0 0
      %732 = vmatprep.mubr.bf16.mxu0 0
      %733 = vmatmul.mubr.bf16.gmra.mrb[0].mxu0 %v698
      %v734 = vpop.f32.mrb[0].mxu0
      %v735 = vadd.f32 0.0, %v734
      %v736 = vpop.f32.mrb[0].mxu0
      %v737 = vpop.f32.mrb[0].mxu0
      %v738 = vadd.f32 0.0, %v737
      %v739 = vpop.f32.mrb[0].mxu0
      %740 = vdwg.mxu0
      %v742 = vsel %vm194, %v693, 0
      %744 = vmatprep.subr.bf16.mxu0 0
      %745 = vmatpush1.bf16.msra.mxu0 %v247
      %746 = vmatprep.subr.bf16.mxu0 0
      %747 = vmatpush1.bf16.msra.mxu0 0
      %748 = vmatprep.subr.bf16.mxu0 0
      %749 = vmatpush1.bf16.msra.mxu0 0
      %750 = vmatprep.subr.bf16.mxu0 0
      %751 = vmatpush1.bf16.msra.mxu0 0
      %752 = vmatprep.subr.bf16.mxu0 0
      %753 = vmatpush1.bf16.msra.mxu0 0
      %754 = vmatprep.subr.bf16.mxu0 0
      %755 = vmatpush1.bf16.msra.mxu0 0
      %756 = vmatprep.subr.bf16.mxu0 0
      %757 = vmatpush1.bf16.msra.mxu0 0
      %758 = vmatprep.subr.bf16.mxu0 0
      %759 = vmatpush1.bf16.msra.mxu0 0
      %760 = vmatprep.subr.bf16.mxu0 0
      %761 = vmatpush1.bf16.msra.mxu0 0
      %762 = vmatprep.subr.bf16.mxu0 0
      %763 = vmatpush1.bf16.msra.mxu0 0
      %764 = vmatprep.subr.bf16.mxu0 0
      %765 = vmatpush1.bf16.msra.mxu0 0
      %766 = vmatprep.subr.bf16.mxu0 0
      %767 = vmatpush1.bf16.msra.mxu0 0
      %768 = vmatprep.subr.bf16.mxu0 0
      %769 = vmatpush1.bf16.msra.mxu0 0
      %770 = vmatprep.subr.bf16.mxu0 0
      %771 = vmatpush1.bf16.msra.mxu0 0
      %772 = vmatprep.subr.bf16.mxu0 0
      %773 = vmatpush1.bf16.msra.mxu0 0
      %774 = vmatprep.subr.bf16.mxu0 0
      %775 = vmatpush1.bf16.msra.mxu0 0
      %776 = vmatprep.mubr.bf16.mxu0 0
      %777 = vmatmul.mubr.bf16.gmra.mrb[0].mxu0 %v742
      %v778 = vpop.f32.mrb[0].mxu0
      %v779 = vadd.f32 %v735, %v778
      %v780 = vpop.f32.mrb[0].mxu0
      %v781 = vpop.f32.mrb[0].mxu0
      %v782 = vadd.f32 %v738, %v781
      %v783 = vpop.f32.mrb[0].mxu0
      %784 = vdwg.mxu0
      %v785 = vld [vmem:[%s342 + $0x2] sm:$0xff]
      %v786 = vld [vmem:[%s342 + $0xa] sm:$0x3f]
      %v787 = vpack.c.bf16 %v786, %v785
      %v789 = vsel %vm194, %v787, 0
      %791 = vmatprep.subr.bf16.mxu0 0
      %792 = vmatpush1.bf16.msra.mxu0 %v297
      %793 = vmatprep.subr.bf16.mxu0 0
      %794 = vmatpush1.bf16.msra.mxu0 0
      %795 = vmatprep.subr.bf16.mxu0 0
      %796 = vmatpush1.bf16.msra.mxu0 0
      %797 = vmatprep.subr.bf16.mxu0 0
      %798 = vmatpush1.bf16.msra.mxu0 0
      %799 = vmatprep.subr.bf16.mxu0 0
      %800 = vmatpush1.bf16.msra.mxu0 0
      %801 = vmatprep.subr.bf16.mxu0 0
      %802 = vmatpush1.bf16.msra.mxu0 0
      %803 = vmatprep.subr.bf16.mxu0 0
      %804 = vmatpush1.bf16.msra.mxu0 0
      %805 = vmatprep.subr.bf16.mxu0 0
      %806 = vmatpush1.bf16.msra.mxu0 0
      %807 = vmatprep.subr.bf16.mxu0 0
      %808 = vmatpush1.bf16.msra.mxu0 0
      %809 = vmatprep.subr.bf16.mxu0 0
      %810 = vmatpush1.bf16.msra.mxu0 0
      %811 = vmatprep.subr.bf16.mxu0 0
      %812 = vmatpush1.bf16.msra.mxu0 0
      %813 = vmatprep.subr.bf16.mxu0 0
      %814 = vmatpush1.bf16.msra.mxu0 0
      %815 = vmatprep.subr.bf16.mxu0 0
      %816 = vmatpush1.bf16.msra.mxu0 0
      %817 = vmatprep.subr.bf16.mxu0 0
      %818 = vmatpush1.bf16.msra.mxu0 0
      %819 = vmatprep.subr.bf16.mxu0 0
      %820 = vmatpush1.bf16.msra.mxu0 0
      %821 = vmatprep.subr.bf16.mxu0 0
      %822 = vmatpush1.bf16.msra.mxu0 0
      %823 = vmatprep.mubr.bf16.mxu0 0
      %824 = vmatmul.mubr.bf16.gmra.mrb[0].mxu0 %v789
      %v825 = vpop.f32.mrb[0].mxu0
      %v826 = vadd.f32 0.0, %v825
      %v827 = vpop.f32.mrb[0].mxu0
      %v828 = vpop.f32.mrb[0].mxu0
      %v829 = vadd.f32 0.0, %v828
      %v830 = vpop.f32.mrb[0].mxu0
      %831 = vdwg.mxu0
      %v832 = vadd.f32 %v779, %v826
      %v833 = vadd.f32 %v782, %v829
      %v834 = vld [vmem:[%s507] sm:$0xff]
      %v835 = vld [vmem:[%s507 + $0x8] sm:$0x3f]
      %v836 = vpack.c.bf16 %v835, %v834
      %v838 = vsel %vm194, %v836, 0
      %840 = vmatprep.subr.bf16.mxu0 0
      %841 = vmatpush1.bf16.msra.mxu0 %v354
      %842 = vmatprep.subr.bf16.mxu0 0
      %843 = vmatpush1.bf16.msra.mxu0 0
      %844 = vmatprep.subr.bf16.mxu0 0
      %845 = vmatpush1.bf16.msra.mxu0 0
      %846 = vmatprep.subr.bf16.mxu0 0
      %847 = vmatpush1.bf16.msra.mxu0 0
      %848 = vmatprep.subr.bf16.mxu0 0
      %849 = vmatpush1.bf16.msra.mxu0 0
      %850 = vmatprep.subr.bf16.mxu0 0
      %851 = vmatpush1.bf16.msra.mxu0 0
      %852 = vmatprep.subr.bf16.mxu0 0
      %853 = vmatpush1.bf16.msra.mxu0 0
      %854 = vmatprep.subr.bf16.mxu0 0
      %855 = vmatpush1.bf16.msra.mxu0 0
      %856 = vmatprep.subr.bf16.mxu0 0
      %857 = vmatpush1.bf16.msra.mxu0 0
      %858 = vmatprep.subr.bf16.mxu0 0
      %859 = vmatpush1.bf16.msra.mxu0 0
      %860 = vmatprep.subr.bf16.mxu0 0
      %861 = vmatpush1.bf16.msra.mxu0 0
      %862 = vmatprep.subr.bf16.mxu0 0
      %863 = vmatpush1.bf16.msra.mxu0 0
      %864 = vmatprep.subr.bf16.mxu0 0
      %865 = vmatpush1.bf16.msra.mxu0 0
      %866 = vmatprep.subr.bf16.mxu0 0
      %867 = vmatpush1.bf16.msra.mxu0 0
      %868 = vmatprep.subr.bf16.mxu0 0
      %869 = vmatpush1.bf16.msra.mxu0 0
      %870 = vmatprep.subr.bf16.mxu0 0
      %871 = vmatpush1.bf16.msra.mxu0 0
      %872 = vmatprep.mubr.bf16.mxu0 0
      %873 = vmatmul.mubr.bf16.gmra.mrb[0].mxu0 %v838
      %v874 = vpop.f32.mrb[0].mxu0
      %v875 = vadd.f32 0.0, %v874
      %v876 = vpop.f32.mrb[0].mxu0
      %v877 = vpop.f32.mrb[0].mxu0
      %v878 = vadd.f32 0.0, %v877
      %v879 = vpop.f32.mrb[0].mxu0
      %880 = vdwg.mxu0
      %v881 = vadd.f32 %v832, %v875
      %v882 = vadd.f32 %v833, %v878
      %v883 = vld [vmem:[%s507 + $0x1] sm:$0xff]
      %v884 = vld [vmem:[%s507 + $0x9] sm:$0x3f]
      %v885 = vpack.c.bf16 %v884, %v883
      %v887 = vsel %vm194, %v885, 0
      %889 = vmatprep.subr.bf16.mxu0 0
      %890 = vmatpush1.bf16.msra.mxu0 %v406
      %891 = vmatprep.subr.bf16.mxu0 0
      %892 = vmatpush1.bf16.msra.mxu0 0
      %893 = vmatprep.subr.bf16.mxu0 0
      %894 = vmatpush1.bf16.msra.mxu0 0
      %895 = vmatprep.subr.bf16.mxu0 0
      %896 = vmatpush1.bf16.msra.mxu0 0
      %897 = vmatprep.subr.bf16.mxu0 0
      %898 = vmatpush1.bf16.msra.mxu0 0
      %899 = vmatprep.subr.bf16.mxu0 0
      %900 = vmatpush1.bf16.msra.mxu0 0
      %901 = vmatprep.subr.bf16.mxu0 0
      %902 = vmatpush1.bf16.msra.mxu0 0
      %903 = vmatprep.subr.bf16.mxu0 0
      %904 = vmatpush1.bf16.msra.mxu0 0
      %905 = vmatprep.subr.bf16.mxu0 0
      %906 = vmatpush1.bf16.msra.mxu0 0
      %907 = vmatprep.subr.bf16.mxu0 0
      %908 = vmatpush1.bf16.msra.mxu0 0
      %909 = vmatprep.subr.bf16.mxu0 0
      %910 = vmatpush1.bf16.msra.mxu0 0
      %911 = vmatprep.subr.bf16.mxu0 0
      %912 = vmatpush1.bf16.msra.mxu0 0
      %913 = vmatprep.subr.bf16.mxu0 0
      %914 = vmatpush1.bf16.msra.mxu0 0
      %915 = vmatprep.subr.bf16.mxu0 0
      %916 = vmatpush1.bf16.msra.mxu0 0
      %917 = vmatprep.subr.bf16.mxu0 0
      %918 = vmatpush1.bf16.msra.mxu0 0
      %919 = vmatprep.subr.bf16.mxu0 0
      %920 = vmatpush1.bf16.msra.mxu0 0
      %921 = vmatprep.mubr.bf16.mxu0 0
      %922 = vmatmul.mubr.bf16.gmra.mrb[0].mxu0 %v887
      %v923 = vpop.f32.mrb[0].mxu0
      %v924 = vadd.f32 0.0, %v923
      %v925 = vpop.f32.mrb[0].mxu0
      %v926 = vpop.f32.mrb[0].mxu0
      %v927 = vadd.f32 0.0, %v926
      %v928 = vpop.f32.mrb[0].mxu0
      %929 = vdwg.mxu0
      %v930 = vadd.f32 %v881, %v924
      %v931 = vadd.f32 %v882, %v927
      %v932 = vld [vmem:[%s507 + $0x2] sm:$0xff]
      %v933 = vld [vmem:[%s507 + $0xa] sm:$0x3f]
      %v934 = vpack.c.bf16 %v933, %v932
      %v936 = vsel %vm194, %v934, 0
      %938 = vmatprep.subr.bf16.mxu0 0
      %939 = vmatpush1.bf16.msra.mxu0 %v462
      %940 = vmatprep.subr.bf16.mxu0 0
      %941 = vmatpush1.bf16.msra.mxu0 0
      %942 = vmatprep.subr.bf16.mxu0 0
      %943 = vmatpush1.bf16.msra.mxu0 0
      %944 = vmatprep.subr.bf16.mxu0 0
      %945 = vmatpush1.bf16.msra.mxu0 0
      %946 = vmatprep.subr.bf16.mxu0 0
      %947 = vmatpush1.bf16.msra.mxu0 0
      %948 = vmatprep.subr.bf16.mxu0 0
      %949 = vmatpush1.bf16.msra.mxu0 0
      %950 = vmatprep.subr.bf16.mxu0 0
      %951 = vmatpush1.bf16.msra.mxu0 0
      %952 = vmatprep.subr.bf16.mxu0 0
      %953 = vmatpush1.bf16.msra.mxu0 0
      %954 = vmatprep.subr.bf16.mxu0 0
      %955 = vmatpush1.bf16.msra.mxu0 0
      %956 = vmatprep.subr.bf16.mxu0 0
      %957 = vmatpush1.bf16.msra.mxu0 0
      %958 = vmatprep.subr.bf16.mxu0 0
      %959 = vmatpush1.bf16.msra.mxu0 0
      %960 = vmatprep.subr.bf16.mxu0 0
      %961 = vmatpush1.bf16.msra.mxu0 0
      %962 = vmatprep.subr.bf16.mxu0 0
      %963 = vmatpush1.bf16.msra.mxu0 0
      %964 = vmatprep.subr.bf16.mxu0 0
      %965 = vmatpush1.bf16.msra.mxu0 0
      %966 = vmatprep.subr.bf16.mxu0 0
      %967 = vmatpush1.bf16.msra.mxu0 0
      %968 = vmatprep.subr.bf16.mxu0 0
      %969 = vmatpush1.bf16.msra.mxu0 0
      %970 = vmatprep.mubr.bf16.mxu0 0
      %971 = vmatmul.mubr.bf16.gmra.mrb[0].mxu0 %v936
      %v972 = vpop.f32.mrb[0].mxu0
      %v973 = vadd.f32 0.0, %v972
      %v974 = vpop.f32.mrb[0].mxu0
      %v975 = vpop.f32.mrb[0].mxu0
      %v976 = vadd.f32 0.0, %v975
      %v977 = vpop.f32.mrb[0].mxu0
      %978 = vdwg.mxu0
      %v979 = vadd.f32 %v930, %v973
      %v980 = vadd.f32 %v931, %v976
      %s981 = scalar_lea.vmem %s163, 48
      %v982 = vld [vmem:[%s981] sm:$0xff]
      %v983 = vld [vmem:[%s981 + $0x8] sm:$0x3f]
      %v984 = vpack.c.bf16 %v983, %v982
      %v986 = vsel %vm194, %v984, 0
      %988 = vmatprep.subr.bf16.mxu0 0
      %989 = vmatpush1.bf16.msra.mxu0 %v515
      %990 = vmatprep.subr.bf16.mxu0 0
      %991 = vmatpush1.bf16.msra.mxu0 0
      %992 = vmatprep.subr.bf16.mxu0 0
      %993 = vmatpush1.bf16.msra.mxu0 0
      %994 = vmatprep.subr.bf16.mxu0 0
      %995 = vmatpush1.bf16.msra.mxu0 0
      %996 = vmatprep.subr.bf16.mxu0 0
      %997 = vmatpush1.bf16.msra.mxu0 0
      %998 = vmatprep.subr.bf16.mxu0 0
      %999 = vmatpush1.bf16.msra.mxu0 0
      %1000 = vmatprep.subr.bf16.mxu0 0
      %1001 = vmatpush1.bf16.msra.mxu0 0
      %1002 = vmatprep.subr.bf16.mxu0 0
      %1003 = vmatpush1.bf16.msra.mxu0 0
      %1004 = vmatprep.subr.bf16.mxu0 0
      %1005 = vmatpush1.bf16.msra.mxu0 0
      %1006 = vmatprep.subr.bf16.mxu0 0
      %1007 = vmatpush1.bf16.msra.mxu0 0
      %1008 = vmatprep.subr.bf16.mxu0 0
      %1009 = vmatpush1.bf16.msra.mxu0 0
      %1010 = vmatprep.subr.bf16.mxu0 0
      %1011 = vmatpush1.bf16.msra.mxu0 0
      %1012 = vmatprep.subr.bf16.mxu0 0
      %1013 = vmatpush1.bf16.msra.mxu0 0
      %1014 = vmatprep.subr.bf16.mxu0 0
      %1015 = vmatpush1.bf16.msra.mxu0 0
      %1016 = vmatprep.subr.bf16.mxu0 0
      %1017 = vmatpush1.bf16.msra.mxu0 0
      %1018 = vmatprep.subr.bf16.mxu0 0
      %1019 = vmatpush1.bf16.msra.mxu0 0
      %1020 = vmatprep.mubr.bf16.mxu0 0
      %1021 = vmatmul.mubr.bf16.gmra.mrb[0].mxu0 %v986
      %v1022 = vpop.f32.mrb[0].mxu0
      %v1023 = vadd.f32 0.0, %v1022
      %v1024 = vpop.f32.mrb[0].mxu0
      %v1025 = vpop.f32.mrb[0].mxu0
      %v1026 = vadd.f32 0.0, %v1025
      %v1027 = vpop.f32.mrb[0].mxu0
      %1028 = vdwg.mxu0
      %v1029 = vadd.f32 %v979, %v1023
      %v1030 = vadd.f32 %v980, %v1026
      %v1031 = vld [vmem:[%s981 + $0x1] sm:$0xff]
      %v1032 = vld [vmem:[%s981 + $0x9] sm:$0x3f]
      %v1033 = vpack.c.bf16 %v1032, %v1031
      %v1035 = vsel %vm194, %v1033, 0
      %1037 = vmatprep.subr.bf16.mxu0 0
      %1038 = vmatpush1.bf16.msra.mxu0 %v571
      %1039 = vmatprep.subr.bf16.mxu0 0
      %1040 = vmatpush1.bf16.msra.mxu0 0
      %1041 = vmatprep.subr.bf16.mxu0 0
      %1042 = vmatpush1.bf16.msra.mxu0 0
      %1043 = vmatprep.subr.bf16.mxu0 0
      %1044 = vmatpush1.bf16.msra.mxu0 0
      %1045 = vmatprep.subr.bf16.mxu0 0
      %1046 = vmatpush1.bf16.msra.mxu0 0
      %1047 = vmatprep.subr.bf16.mxu0 0
      %1048 = vmatpush1.bf16.msra.mxu0 0
      %1049 = vmatprep.subr.bf16.mxu0 0
      %1050 = vmatpush1.bf16.msra.mxu0 0
      %1051 = vmatprep.subr.bf16.mxu0 0
      %1052 = vmatpush1.bf16.msra.mxu0 0
      %1053 = vmatprep.subr.bf16.mxu0 0
      %1054 = vmatpush1.bf16.msra.mxu0 0
      %1055 = vmatprep.subr.bf16.mxu0 0
      %1056 = vmatpush1.bf16.msra.mxu0 0
      %1057 = vmatprep.subr.bf16.mxu0 0
      %1058 = vmatpush1.bf16.msra.mxu0 0
      %1059 = vmatprep.subr.bf16.mxu0 0
      %1060 = vmatpush1.bf16.msra.mxu0 0
      %1061 = vmatprep.subr.bf16.mxu0 0
      %1062 = vmatpush1.bf16.msra.mxu0 0
      %1063 = vmatprep.subr.bf16.mxu0 0
      %1064 = vmatpush1.bf16.msra.mxu0 0
      %1065 = vmatprep.subr.bf16.mxu0 0
      %1066 = vmatpush1.bf16.msra.mxu0 0
      %1067 = vmatprep.subr.bf16.mxu0 0
      %1068 = vmatpush1.bf16.msra.mxu0 0
      %1069 = vmatprep.mubr.bf16.mxu0 0
      %1070 = vmatmul.mubr.bf16.gmra.mrb[0].mxu0 %v1035
      %v1071 = vpop.f32.mrb[0].mxu0
      %v1072 = vadd.f32 0.0, %v1071
      %v1073 = vpop.f32.mrb[0].mxu0
      %v1074 = vpop.f32.mrb[0].mxu0
      %v1075 = vadd.f32 0.0, %v1074
      %v1076 = vpop.f32.mrb[0].mxu0
      %1077 = vdwg.mxu0
      %v1078 = vadd.f32 %v1029, %v1072
      %v1079 = vadd.f32 %v1030, %v1075
      %v1080 = vld [vmem:[%s981 + $0x2] sm:$0xff]
      %v1081 = vld [vmem:[%s981 + $0xa] sm:$0x3f]
      %v1082 = vpack.c.bf16 %v1081, %v1080
      %v1084 = vsel %vm194, %v1082, 0
      %1086 = vmatprep.subr.bf16.mxu0 0
      %1087 = vmatpush1.bf16.msra.mxu0 %v623
      %1088 = vmatprep.subr.bf16.mxu0 0
      %1089 = vmatpush1.bf16.msra.mxu0 0
      %1090 = vmatprep.subr.bf16.mxu0 0
      %1091 = vmatpush1.bf16.msra.mxu0 0
      %1092 = vmatprep.subr.bf16.mxu0 0
      %1093 = vmatpush1.bf16.msra.mxu0 0
      %1094 = vmatprep.subr.bf16.mxu0 0
      %1095 = vmatpush1.bf16.msra.mxu0 0
      %1096 = vmatprep.subr.bf16.mxu0 0
      %1097 = vmatpush1.bf16.msra.mxu0 0
      %1098 = vmatprep.subr.bf16.mxu0 0
      %1099 = vmatpush1.bf16.msra.mxu0 0
      %1100 = vmatprep.subr.bf16.mxu0 0
      %1101 = vmatpush1.bf16.msra.mxu0 0
      %1102 = vmatprep.subr.bf16.mxu0 0
      %1103 = vmatpush1.bf16.msra.mxu0 0
      %1104 = vmatprep.subr.bf16.mxu0 0
      %1105 = vmatpush1.bf16.msra.mxu0 0
      %1106 = vmatprep.subr.bf16.mxu0 0
      %1107 = vmatpush1.bf16.msra.mxu0 0
      %1108 = vmatprep.subr.bf16.mxu0 0
      %1109 = vmatpush1.bf16.msra.mxu0 0
      %1110 = vmatprep.subr.bf16.mxu0 0
      %1111 = vmatpush1.bf16.msra.mxu0 0
      %1112 = vmatprep.subr.bf16.mxu0 0
      %1113 = vmatpush1.bf16.msra.mxu0 0
      %1114 = vmatprep.subr.bf16.mxu0 0
      %1115 = vmatpush1.bf16.msra.mxu0 0
      %1116 = vmatprep.subr.bf16.mxu0 0
      %1117 = vmatpush1.bf16.msra.mxu0 0
      %1118 = vmatprep.mubr.bf16.mxu0 0
      %1119 = vmatmul.mubr.bf16.gmra.mrb[0].mxu0 %v1084
      %v1120 = vpop.f32.mrb[0].mxu0
      %v1121 = vadd.f32 0.0, %v1120
      %v1122 = vpop.f32.mrb[0].mxu0
      %v1123 = vpop.f32.mrb[0].mxu0
      %v1124 = vadd.f32 0.0, %v1123
      %v1125 = vpop.f32.mrb[0].mxu0
      %1126 = vdwg.mxu0
      %v1127 = vadd.f32 %v1078, %v1121
      %v1128 = vadd.f32 %v1079, %v1124
      %1129 = vst [vmem:[%s168 + $0xe] sm:$0xff] %v1127
      %1130 = vst [vmem:[%s168 + $0x16] sm:$0x3f] %v1128
      %v1131 = vsel %vm670, %v1128, 0.0
      %v1132 = vadd.f32 %v1127, %v1131
      %v1133 = vrot.slane %v1132, 4
      %v1134 = vadd.f32 %v1132, %v1133
      %v1135 = vrot.slane %v1134, 2
      %v1136 = vadd.f32 %v1134, %v1135
      %v1137 = vrot.slane %v1136, 1
      %v1138 = vadd.f32 %v1136, %v1137
      %v1139 = vadd.f32 %v679, %v1138
      %v1140 = vmul.f32 %v1127, %v1127
      %v1141 = vmul.f32 %v1128, %v1128
      %v1142 = vsel %vm670, %v1141, 0.0
      %v1143 = vadd.f32 %v1140, %v1142
      %v1144 = vrot.slane %v1143, 4
      %v1145 = vadd.f32 %v1143, %v1144
      %v1146 = vrot.slane %v1145, 2
      %v1147 = vadd.f32 %v1145, %v1146
      %v1148 = vrot.slane %v1147, 1
      %v1149 = vadd.f32 %v1147, %v1148
      %v1150 = vadd.f32 %v690, %v1149
      %v1151 = vld [vmem:[%s507] sm:$0xff]
      %v1152 = vld [vmem:[%s507 + $0x8] sm:$0x3f]
      %v1153 = vpack.c.bf16 %v1152, %v1151
      %v1154 = vld [vmem:[%s507 + $0x1] sm:$0xff]
      %v1155 = vld [vmem:[%s507 + $0x9] sm:$0x3f]
      %v1156 = vpack.c.bf16 %v1155, %v1154
      %v1158 = vsel %vm194, %v1156, 0
      %1160 = vmatprep.subr.bf16.mxu0 0
      %1161 = vmatpush1.bf16.msra.mxu0 %v200
      %1162 = vmatprep.subr.bf16.mxu0 0
      %1163 = vmatpush1.bf16.msra.mxu0 0
      %1164 = vmatprep.subr.bf16.mxu0 0
      %1165 = vmatpush1.bf16.msra.mxu0 0
      %1166 = vmatprep.subr.bf16.mxu0 0
      %1167 = vmatpush1.bf16.msra.mxu0 0
      %1168 = vmatprep.subr.bf16.mxu0 0
      %1169 = vmatpush1.bf16.msra.mxu0 0
      %1170 = vmatprep.subr.bf16.mxu0 0
      %1171 = vmatpush1.bf16.msra.mxu0 0
      %1172 = vmatprep.subr.bf16.mxu0 0
      %1173 = vmatpush1.bf16.msra.mxu0 0
      %1174 = vmatprep.subr.bf16.mxu0 0
      %1175 = vmatpush1.bf16.msra.mxu0 0
      %1176 = vmatprep.subr.bf16.mxu0 0
      %1177 = vmatpush1.bf16.msra.mxu0 0
      %1178 = vmatprep.subr.bf16.mxu0 0
      %1179 = vmatpush1.bf16.msra.mxu0 0
      %1180 = vmatprep.subr.bf16.mxu0 0
      %1181 = vmatpush1.bf16.msra.mxu0 0
      %1182 = vmatprep.subr.bf16.mxu0 0
      %1183 = vmatpush1.bf16.msra.mxu0 0
      %1184 = vmatprep.subr.bf16.mxu0 0
      %1185 = vmatpush1.bf16.msra.mxu0 0
      %1186 = vmatprep.subr.bf16.mxu0 0
      %1187 = vmatpush1.bf16.msra.mxu0 0
      %1188 = vmatprep.subr.bf16.mxu0 0
      %1189 = vmatpush1.bf16.msra.mxu0 0
      %1190 = vmatprep.subr.bf16.mxu0 0
      %1191 = vmatpush1.bf16.msra.mxu0 0
      %1192 = vmatprep.mubr.bf16.mxu0 0
      %1193 = vmatmul.mubr.bf16.gmra.mrb[0].mxu0 %v1158
      %v1194 = vpop.f32.mrb[0].mxu0
      %v1195 = vadd.f32 0.0, %v1194
      %v1196 = vpop.f32.mrb[0].mxu0
      %v1197 = vpop.f32.mrb[0].mxu0
      %v1198 = vadd.f32 0.0, %v1197
      %v1199 = vpop.f32.mrb[0].mxu0
      %1200 = vdwg.mxu0
      %v1202 = vsel %vm194, %v1153, 0
      %1204 = vmatprep.subr.bf16.mxu0 0
      %1205 = vmatpush1.bf16.msra.mxu0 %v247
      %1206 = vmatprep.subr.bf16.mxu0 0
      %1207 = vmatpush1.bf16.msra.mxu0 0
      %1208 = vmatprep.subr.bf16.mxu0 0
      %1209 = vmatpush1.bf16.msra.mxu0 0
      %1210 = vmatprep.subr.bf16.mxu0 0
      %1211 = vmatpush1.bf16.msra.mxu0 0
      %1212 = vmatprep.subr.bf16.mxu0 0
      %1213 = vmatpush1.bf16.msra.mxu0 0
      %1214 = vmatprep.subr.bf16.mxu0 0
      %1215 = vmatpush1.bf16.msra.mxu0 0
      %1216 = vmatprep.subr.bf16.mxu0 0
      %1217 = vmatpush1.bf16.msra.mxu0 0
      %1218 = vmatprep.subr.bf16.mxu0 0
      %1219 = vmatpush1.bf16.msra.mxu0 0
      %1220 = vmatprep.subr.bf16.mxu0 0
      %1221 = vmatpush1.bf16.msra.mxu0 0
      %1222 = vmatprep.subr.bf16.mxu0 0
      %1223 = vmatpush1.bf16.msra.mxu0 0
      %1224 = vmatprep.subr.bf16.mxu0 0
      %1225 = vmatpush1.bf16.msra.mxu0 0
      %1226 = vmatprep.subr.bf16.mxu0 0
      %1227 = vmatpush1.bf16.msra.mxu0 0
      %1228 = vmatprep.subr.bf16.mxu0 0
      %1229 = vmatpush1.bf16.msra.mxu0 0
      %1230 = vmatprep.subr.bf16.mxu0 0
      %1231 = vmatpush1.bf16.msra.mxu0 0
      %1232 = vmatprep.subr.bf16.mxu0 0
      %1233 = vmatpush1.bf16.msra.mxu0 0
      %1234 = vmatprep.subr.bf16.mxu0 0
      %1235 = vmatpush1.bf16.msra.mxu0 0
      %1236 = vmatprep.mubr.bf16.mxu0 0
      %1237 = vmatmul.mubr.bf16.gmra.mrb[0].mxu0 %v1202
      %v1238 = vpop.f32.mrb[0].mxu0
      %v1239 = vadd.f32 %v1195, %v1238
      %v1240 = vpop.f32.mrb[0].mxu0
      %v1241 = vpop.f32.mrb[0].mxu0
      %v1242 = vadd.f32 %v1198, %v1241
      %v1243 = vpop.f32.mrb[0].mxu0
      %1244 = vdwg.mxu0
      %v1245 = vld [vmem:[%s507 + $0x2] sm:$0xff]
      %v1246 = vld [vmem:[%s507 + $0xa] sm:$0x3f]
      %v1247 = vpack.c.bf16 %v1246, %v1245
      %v1249 = vsel %vm194, %v1247, 0
      %1251 = vmatprep.subr.bf16.mxu0 0
      %1252 = vmatpush1.bf16.msra.mxu0 %v297
      %1253 = vmatprep.subr.bf16.mxu0 0
      %1254 = vmatpush1.bf16.msra.mxu0 0
      %1255 = vmatprep.subr.bf16.mxu0 0
      %1256 = vmatpush1.bf16.msra.mxu0 0
      %1257 = vmatprep.subr.bf16.mxu0 0
      %1258 = vmatpush1.bf16.msra.mxu0 0
      %1259 = vmatprep.subr.bf16.mxu0 0
      %1260 = vmatpush1.bf16.msra.mxu0 0
      %1261 = vmatprep.subr.bf16.mxu0 0
      %1262 = vmatpush1.bf16.msra.mxu0 0
      %1263 = vmatprep.subr.bf16.mxu0 0
      %1264 = vmatpush1.bf16.msra.mxu0 0
      %1265 = vmatprep.subr.bf16.mxu0 0
      %1266 = vmatpush1.bf16.msra.mxu0 0
      %1267 = vmatprep.subr.bf16.mxu0 0
      %1268 = vmatpush1.bf16.msra.mxu0 0
      %1269 = vmatprep.subr.bf16.mxu0 0
      %1270 = vmatpush1.bf16.msra.mxu0 0
      %1271 = vmatprep.subr.bf16.mxu0 0
      %1272 = vmatpush1.bf16.msra.mxu0 0
      %1273 = vmatprep.subr.bf16.mxu0 0
      %1274 = vmatpush1.bf16.msra.mxu0 0
      %1275 = vmatprep.subr.bf16.mxu0 0
      %1276 = vmatpush1.bf16.msra.mxu0 0
      %1277 = vmatprep.subr.bf16.mxu0 0
      %1278 = vmatpush1.bf16.msra.mxu0 0
      %1279 = vmatprep.subr.bf16.mxu0 0
      %1280 = vmatpush1.bf16.msra.mxu0 0
      %1281 = vmatprep.subr.bf16.mxu0 0
      %1282 = vmatpush1.bf16.msra.mxu0 0
      %1283 = vmatprep.mubr.bf16.mxu0 0
      %1284 = vmatmul.mubr.bf16.gmra.mrb[0].mxu0 %v1249
      %v1285 = vpop.f32.mrb[0].mxu0
      %v1286 = vadd.f32 0.0, %v1285
      %v1287 = vpop.f32.mrb[0].mxu0
      %v1288 = vpop.f32.mrb[0].mxu0
      %v1289 = vadd.f32 0.0, %v1288
      %v1290 = vpop.f32.mrb[0].mxu0
      %1291 = vdwg.mxu0
      %v1292 = vadd.f32 %v1239, %v1286
      %v1293 = vadd.f32 %v1242, %v1289
      %v1294 = vld [vmem:[%s981] sm:$0xff]
      %v1295 = vld [vmem:[%s981 + $0x8] sm:$0x3f]
      %v1296 = vpack.c.bf16 %v1295, %v1294
      %v1298 = vsel %vm194, %v1296, 0
      %1300 = vmatprep.subr.bf16.mxu0 0
      %1301 = vmatpush1.bf16.msra.mxu0 %v354
      %1302 = vmatprep.subr.bf16.mxu0 0
      %1303 = vmatpush1.bf16.msra.mxu0 0
      %1304 = vmatprep.subr.bf16.mxu0 0
      %1305 = vmatpush1.bf16.msra.mxu0 0
      %1306 = vmatprep.subr.bf16.mxu0 0
      %1307 = vmatpush1.bf16.msra.mxu0 0
      %1308 = vmatprep.subr.bf16.mxu0 0
      %1309 = vmatpush1.bf16.msra.mxu0 0
      %1310 = vmatprep.subr.bf16.mxu0 0
      %1311 = vmatpush1.bf16.msra.mxu0 0
      %1312 = vmatprep.subr.bf16.mxu0 0
      %1313 = vmatpush1.bf16.msra.mxu0 0
      %1314 = vmatprep.subr.bf16.mxu0 0
      %1315 = vmatpush1.bf16.msra.mxu0 0
      %1316 = vmatprep.subr.bf16.mxu0 0
      %1317 = vmatpush1.bf16.msra.mxu0 0
      %1318 = vmatprep.subr.bf16.mxu0 0
      %1319 = vmatpush1.bf16.msra.mxu0 0
      %1320 = vmatprep.subr.bf16.mxu0 0
      %1321 = vmatpush1.bf16.msra.mxu0 0
      %1322 = vmatprep.subr.bf16.mxu0 0
      %1323 = vmatpush1.bf16.msra.mxu0 0
      %1324 = vmatprep.subr.bf16.mxu0 0
      %1325 = vmatpush1.bf16.msra.mxu0 0
      %1326 = vmatprep.subr.bf16.mxu0 0
      %1327 = vmatpush1.bf16.msra.mxu0 0
      %1328 = vmatprep.subr.bf16.mxu0 0
      %1329 = vmatpush1.bf16.msra.mxu0 0
      %1330 = vmatprep.subr.bf16.mxu0 0
      %1331 = vmatpush1.bf16.msra.mxu0 0
      %1332 = vmatprep.mubr.bf16.mxu0 0
      %1333 = vmatmul.mubr.bf16.gmra.mrb[0].mxu0 %v1298
      %v1334 = vpop.f32.mrb[0].mxu0
      %v1335 = vadd.f32 0.0, %v1334
      %v1336 = vpop.f32.mrb[0].mxu0
      %v1337 = vpop.f32.mrb[0].mxu0
      %v1338 = vadd.f32 0.0, %v1337
      %v1339 = vpop.f32.mrb[0].mxu0
      %1340 = vdwg.mxu0
      %v1341 = vadd.f32 %v1292, %v1335
      %v1342 = vadd.f32 %v1293, %v1338
      %v1343 = vld [vmem:[%s981 + $0x1] sm:$0xff]
      %v1344 = vld [vmem:[%s981 + $0x9] sm:$0x3f]
      %v1345 = vpack.c.bf16 %v1344, %v1343
      %v1347 = vsel %vm194, %v1345, 0
      %1349 = vmatprep.subr.bf16.mxu0 0
      %1350 = vmatpush1.bf16.msra.mxu0 %v406
      %1351 = vmatprep.subr.bf16.mxu0 0
      %1352 = vmatpush1.bf16.msra.mxu0 0
      %1353 = vmatprep.subr.bf16.mxu0 0
      %1354 = vmatpush1.bf16.msra.mxu0 0
      %1355 = vmatprep.subr.bf16.mxu0 0
      %1356 = vmatpush1.bf16.msra.mxu0 0
      %1357 = vmatprep.subr.bf16.mxu0 0
      %1358 = vmatpush1.bf16.msra.mxu0 0
      %1359 = vmatprep.subr.bf16.mxu0 0
      %1360 = vmatpush1.bf16.msra.mxu0 0
      %1361 = vmatprep.subr.bf16.mxu0 0
      %1362 = vmatpush1.bf16.msra.mxu0 0
      %1363 = vmatprep.subr.bf16.mxu0 0
      %1364 = vmatpush1.bf16.msra.mxu0 0
      %1365 = vmatprep.subr.bf16.mxu0 0
      %1366 = vmatpush1.bf16.msra.mxu0 0
      %1367 = vmatprep.subr.bf16.mxu0 0
      %1368 = vmatpush1.bf16.msra.mxu0 0
      %1369 = vmatprep.subr.bf16.mxu0 0
      %1370 = vmatpush1.bf16.msra.mxu0 0
      %1371 = vmatprep.subr.bf16.mxu0 0
      %1372 = vmatpush1.bf16.msra.mxu0 0
      %1373 = vmatprep.subr.bf16.mxu0 0
      %1374 = vmatpush1.bf16.msra.mxu0 0
      %1375 = vmatprep.subr.bf16.mxu0 0
      %1376 = vmatpush1.bf16.msra.mxu0 0
      %1377 = vmatprep.subr.bf16.mxu0 0
      %1378 = vmatpush1.bf16.msra.mxu0 0
      %1379 = vmatprep.subr.bf16.mxu0 0
      %1380 = vmatpush1.bf16.msra.mxu0 0
      %1381 = vmatprep.mubr.bf16.mxu0 0
      %1382 = vmatmul.mubr.bf16.gmra.mrb[0].mxu0 %v1347
      %v1383 = vpop.f32.mrb[0].mxu0
      %v1384 = vadd.f32 0.0, %v1383
      %v1385 = vpop.f32.mrb[0].mxu0
      %v1386 = vpop.f32.mrb[0].mxu0
      %v1387 = vadd.f32 0.0, %v1386
      %v1388 = vpop.f32.mrb[0].mxu0
      %1389 = vdwg.mxu0
      %v1390 = vadd.f32 %v1341, %v1384
      %v1391 = vadd.f32 %v1342, %v1387
      %v1392 = vld [vmem:[%s981 + $0x2] sm:$0xff]
      %v1393 = vld [vmem:[%s981 + $0xa] sm:$0x3f]
      %v1394 = vpack.c.bf16 %v1393, %v1392
      %v1396 = vsel %vm194, %v1394, 0
      %1398 = vmatprep.subr.bf16.mxu0 0
      %1399 = vmatpush1.bf16.msra.mxu0 %v462
      %1400 = vmatprep.subr.bf16.mxu0 0
      %1401 = vmatpush1.bf16.msra.mxu0 0
      %1402 = vmatprep.subr.bf16.mxu0 0
      %1403 = vmatpush1.bf16.msra.mxu0 0
      %1404 = vmatprep.subr.bf16.mxu0 0
      %1405 = vmatpush1.bf16.msra.mxu0 0
      %1406 = vmatprep.subr.bf16.mxu0 0
      %1407 = vmatpush1.bf16.msra.mxu0 0
      %1408 = vmatprep.subr.bf16.mxu0 0
      %1409 = vmatpush1.bf16.msra.mxu0 0
      %1410 = vmatprep.subr.bf16.mxu0 0
      %1411 = vmatpush1.bf16.msra.mxu0 0
      %1412 = vmatprep.subr.bf16.mxu0 0
      %1413 = vmatpush1.bf16.msra.mxu0 0
      %1414 = vmatprep.subr.bf16.mxu0 0
      %1415 = vmatpush1.bf16.msra.mxu0 0
      %1416 = vmatprep.subr.bf16.mxu0 0
      %1417 = vmatpush1.bf16.msra.mxu0 0
      %1418 = vmatprep.subr.bf16.mxu0 0
      %1419 = vmatpush1.bf16.msra.mxu0 0
      %1420 = vmatprep.subr.bf16.mxu0 0
      %1421 = vmatpush1.bf16.msra.mxu0 0
      %1422 = vmatprep.subr.bf16.mxu0 0
      %1423 = vmatpush1.bf16.msra.mxu0 0
      %1424 = vmatprep.subr.bf16.mxu0 0
      %1425 = vmatpush1.bf16.msra.mxu0 0
      %1426 = vmatprep.subr.bf16.mxu0 0
      %1427 = vmatpush1.bf16.msra.mxu0 0
      %1428 = vmatprep.subr.bf16.mxu0 0
      %1429 = vmatpush1.bf16.msra.mxu0 0
      %1430 = vmatprep.mubr.bf16.mxu0 0
      %1431 = vmatmul.mubr.bf16.gmra.mrb[0].mxu0 %v1396
      %v1432 = vpop.f32.mrb[0].mxu0
      %v1433 = vadd.f32 0.0, %v1432
      %v1434 = vpop.f32.mrb[0].mxu0
      %v1435 = vpop.f32.mrb[0].mxu0
      %v1436 = vadd.f32 0.0, %v1435
      %v1437 = vpop.f32.mrb[0].mxu0
      %1438 = vdwg.mxu0
      %v1439 = vadd.f32 %v1390, %v1433
      %v1440 = vadd.f32 %v1391, %v1436
      %s1441 = scalar_lea.vmem %s163, 64
      %v1442 = vld [vmem:[%s1441] sm:$0xff]
      %v1443 = vld [vmem:[%s1441 + $0x8] sm:$0x3f]
      %v1444 = vpack.c.bf16 %v1443, %v1442
      %v1446 = vsel %vm194, %v1444, 0
      %1448 = vmatprep.subr.bf16.mxu0 0
      %1449 = vmatpush1.bf16.msra.mxu0 %v515
      %1450 = vmatprep.subr.bf16.mxu0 0
      %1451 = vmatpush1.bf16.msra.mxu0 0
      %1452 = vmatprep.subr.bf16.mxu0 0
      %1453 = vmatpush1.bf16.msra.mxu0 0
      %1454 = vmatprep.subr.bf16.mxu0 0
      %1455 = vmatpush1.bf16.msra.mxu0 0
      %1456 = vmatprep.subr.bf16.mxu0 0
      %1457 = vmatpush1.bf16.msra.mxu0 0
      %1458 = vmatprep.subr.bf16.mxu0 0
      %1459 = vmatpush1.bf16.msra.mxu0 0
      %1460 = vmatprep.subr.bf16.mxu0 0
      %1461 = vmatpush1.bf16.msra.mxu0 0
      %1462 = vmatprep.subr.bf16.mxu0 0
      %1463 = vmatpush1.bf16.msra.mxu0 0
      %1464 = vmatprep.subr.bf16.mxu0 0
      %1465 = vmatpush1.bf16.msra.mxu0 0
      %1466 = vmatprep.subr.bf16.mxu0 0
      %1467 = vmatpush1.bf16.msra.mxu0 0
      %1468 = vmatprep.subr.bf16.mxu0 0
      %1469 = vmatpush1.bf16.msra.mxu0 0
      %1470 = vmatprep.subr.bf16.mxu0 0
      %1471 = vmatpush1.bf16.msra.mxu0 0
      %1472 = vmatprep.subr.bf16.mxu0 0
      %1473 = vmatpush1.bf16.msra.mxu0 0
      %1474 = vmatprep.subr.bf16.mxu0 0
      %1475 = vmatpush1.bf16.msra.mxu0 0
      %1476 = vmatprep.subr.bf16.mxu0 0
      %1477 = vmatpush1.bf16.msra.mxu0 0
      %1478 = vmatprep.subr.bf16.mxu0 0
      %1479 = vmatpush1.bf16.msra.mxu0 0
      %1480 = vmatprep.mubr.bf16.mxu0 0
      %1481 = vmatmul.mubr.bf16.gmra.mrb[0].mxu0 %v1446
      %v1482 = vpop.f32.mrb[0].mxu0
      %v1483 = vadd.f32 0.0, %v1482
      %v1484 = vpop.f32.mrb[0].mxu0
      %v1485 = vpop.f32.mrb[0].mxu0
      %v1486 = vadd.f32 0.0, %v1485
      %v1487 = vpop.f32.mrb[0].mxu0
      %1488 = vdwg.mxu0
      %v1489 = vadd.f32 %v1439, %v1483
      %v1490 = vadd.f32 %v1440, %v1486
      %v1491 = vld [vmem:[%s1441 + $0x1] sm:$0xff]
      %v1492 = vld [vmem:[%s1441 + $0x9] sm:$0x3f]
      %v1493 = vpack.c.bf16 %v1492, %v1491
      %v1495 = vsel %vm194, %v1493, 0
      %1497 = vmatprep.subr.bf16.mxu0 0
      %1498 = vmatpush1.bf16.msra.mxu0 %v571
      %1499 = vmatprep.subr.bf16.mxu0 0
      %1500 = vmatpush1.bf16.msra.mxu0 0
      %1501 = vmatprep.subr.bf16.mxu0 0
      %1502 = vmatpush1.bf16.msra.mxu0 0
      %1503 = vmatprep.subr.bf16.mxu0 0
      %1504 = vmatpush1.bf16.msra.mxu0 0
      %1505 = vmatprep.subr.bf16.mxu0 0
      %1506 = vmatpush1.bf16.msra.mxu0 0
      %1507 = vmatprep.subr.bf16.mxu0 0
      %1508 = vmatpush1.bf16.msra.mxu0 0
      %1509 = vmatprep.subr.bf16.mxu0 0
      %1510 = vmatpush1.bf16.msra.mxu0 0
      %1511 = vmatprep.subr.bf16.mxu0 0
      %1512 = vmatpush1.bf16.msra.mxu0 0
      %1513 = vmatprep.subr.bf16.mxu0 0
      %1514 = vmatpush1.bf16.msra.mxu0 0
      %1515 = vmatprep.subr.bf16.mxu0 0
      %1516 = vmatpush1.bf16.msra.mxu0 0
      %1517 = vmatprep.subr.bf16.mxu0 0
      %1518 = vmatpush1.bf16.msra.mxu0 0
      %1519 = vmatprep.subr.bf16.mxu0 0
      %1520 = vmatpush1.bf16.msra.mxu0 0
      %1521 = vmatprep.subr.bf16.mxu0 0
      %1522 = vmatpush1.bf16.msra.mxu0 0
      %1523 = vmatprep.subr.bf16.mxu0 0
      %1524 = vmatpush1.bf16.msra.mxu0 0
      %1525 = vmatprep.subr.bf16.mxu0 0
      %1526 = vmatpush1.bf16.msra.mxu0 0
      %1527 = vmatprep.subr.bf16.mxu0 0
      %1528 = vmatpush1.bf16.msra.mxu0 0
      %1529 = vmatprep.mubr.bf16.mxu0 0
      %1530 = vmatmul.mubr.bf16.gmra.mrb[0].mxu0 %v1495
      %v1531 = vpop.f32.mrb[0].mxu0
      %v1532 = vadd.f32 0.0, %v1531
      %v1533 = vpop.f32.mrb[0].mxu0
      %v1534 = vpop.f32.mrb[0].mxu0
      %v1535 = vadd.f32 0.0, %v1534
      %v1536 = vpop.f32.mrb[0].mxu0
      %1537 = vdwg.mxu0
      %v1538 = vadd.f32 %v1489, %v1532
      %v1539 = vadd.f32 %v1490, %v1535
      %v1540 = vld [vmem:[%s1441 + $0x2] sm:$0xff]
      %v1541 = vld [vmem:[%s1441 + $0xa] sm:$0x3f]
      %v1542 = vpack.c.bf16 %v1541, %v1540
      %v1544 = vsel %vm194, %v1542, 0
      %1546 = vmatprep.subr.bf16.mxu0 0
      %1547 = vmatpush1.bf16.msra.mxu0 %v623
      %1548 = vmatprep.subr.bf16.mxu0 0
      %1549 = vmatpush1.bf16.msra.mxu0 0
      %1550 = vmatprep.subr.bf16.mxu0 0
      %1551 = vmatpush1.bf16.msra.mxu0 0
      %1552 = vmatprep.subr.bf16.mxu0 0
      %1553 = vmatpush1.bf16.msra.mxu0 0
      %1554 = vmatprep.subr.bf16.mxu0 0
      %1555 = vmatpush1.bf16.msra.mxu0 0
      %1556 = vmatprep.subr.bf16.mxu0 0
      %1557 = vmatpush1.bf16.msra.mxu0 0
      %1558 = vmatprep.subr.bf16.mxu0 0
      %1559 = vmatpush1.bf16.msra.mxu0 0
      %1560 = vmatprep.subr.bf16.mxu0 0
      %1561 = vmatpush1.bf16.msra.mxu0 0
      %1562 = vmatprep.subr.bf16.mxu0 0
      %1563 = vmatpush1.bf16.msra.mxu0 0
      %1564 = vmatprep.subr.bf16.mxu0 0
      %1565 = vmatpush1.bf16.msra.mxu0 0
      %1566 = vmatprep.subr.bf16.mxu0 0
      %1567 = vmatpush1.bf16.msra.mxu0 0
      %1568 = vmatprep.subr.bf16.mxu0 0
      %1569 = vmatpush1.bf16.msra.mxu0 0
      %1570 = vmatprep.subr.bf16.mxu0 0
      %1571 = vmatpush1.bf16.msra.mxu0 0
      %1572 = vmatprep.subr.bf16.mxu0 0
      %1573 = vmatpush1.bf16.msra.mxu0 0
      %1574 = vmatprep.subr.bf16.mxu0 0
      %1575 = vmatpush1.bf16.msra.mxu0 0
      %1576 = vmatprep.subr.bf16.mxu0 0
      %1577 = vmatpush1.bf16.msra.mxu0 0
      %1578 = vmatprep.mubr.bf16.mxu0 0
      %1579 = vmatmul.mubr.bf16.gmra.mrb[0].mxu0 %v1544
      %v1580 = vpop.f32.mrb[0].mxu0
      %v1581 = vadd.f32 0.0, %v1580
      %v1582 = vpop.f32.mrb[0].mxu0
      %v1583 = vpop.f32.mrb[0].mxu0
      %v1584 = vadd.f32 0.0, %v1583
      %v1585 = vpop.f32.mrb[0].mxu0
      %1586 = vdwg.mxu0
      %v1587 = vadd.f32 %v1538, %v1581
      %v1588 = vadd.f32 %v1539, %v1584
      %1589 = vst [vmem:[%s168 + $0x1c] sm:$0xff] %v1587
      %1590 = vst [vmem:[%s168 + $0x24] sm:$0x3f] %v1588
      %v1591 = vsel %vm670, %v1588, 0.0
      %v1592 = vadd.f32 %v1587, %v1591
      %v1593 = vrot.slane %v1592, 4
      %v1594 = vadd.f32 %v1592, %v1593
      %v1595 = vrot.slane %v1594, 2
      %v1596 = vadd.f32 %v1594, %v1595
      %v1597 = vrot.slane %v1596, 1
      %v1598 = vadd.f32 %v1596, %v1597
      %v1599 = vadd.f32 %v1139, %v1598
      %v1600 = vmul.f32 %v1587, %v1587
      %v1601 = vmul.f32 %v1588, %v1588
      %v1602 = vsel %vm670, %v1601, 0.0
      %v1603 = vadd.f32 %v1600, %v1602
      %v1604 = vrot.slane %v1603, 4
      %v1605 = vadd.f32 %v1603, %v1604
      %v1606 = vrot.slane %v1605, 2
      %v1607 = vadd.f32 %v1605, %v1606
      %v1608 = vrot.slane %v1607, 1
      %v1609 = vadd.f32 %v1607, %v1608
      %v1610 = vadd.f32 %v1150, %v1609
      %v1611 = vld [vmem:[%s981] sm:$0xff]
      %v1612 = vld [vmem:[%s981 + $0x8] sm:$0x3f]
      %v1613 = vpack.c.bf16 %v1612, %v1611
      %v1614 = vld [vmem:[%s981 + $0x1] sm:$0xff]
      %v1615 = vld [vmem:[%s981 + $0x9] sm:$0x3f]
      %v1616 = vpack.c.bf16 %v1615, %v1614
      %v1618 = vsel %vm194, %v1616, 0
      %1620 = vmatprep.subr.bf16.mxu0 0
      %1621 = vmatpush1.bf16.msra.mxu0 %v200
      %1622 = vmatprep.subr.bf16.mxu0 0
      %1623 = vmatpush1.bf16.msra.mxu0 0
      %1624 = vmatprep.subr.bf16.mxu0 0
      %1625 = vmatpush1.bf16.msra.mxu0 0
      %1626 = vmatprep.subr.bf16.mxu0 0
      %1627 = vmatpush1.bf16.msra.mxu0 0
      %1628 = vmatprep.subr.bf16.mxu0 0
      %1629 = vmatpush1.bf16.msra.mxu0 0
      %1630 = vmatprep.subr.bf16.mxu0 0
      %1631 = vmatpush1.bf16.msra.mxu0 0
      %1632 = vmatprep.subr.bf16.mxu0 0
      %1633 = vmatpush1.bf16.msra.mxu0 0
      %1634 = vmatprep.subr.bf16.mxu0 0
      %1635 = vmatpush1.bf16.msra.mxu0 0
      %1636 = vmatprep.subr.bf16.mxu0 0
      %1637 = vmatpush1.bf16.msra.mxu0 0
      %1638 = vmatprep.subr.bf16.mxu0 0
      %1639 = vmatpush1.bf16.msra.mxu0 0
      %1640 = vmatprep.subr.bf16.mxu0 0
      %1641 = vmatpush1.bf16.msra.mxu0 0
      %1642 = vmatprep.subr.bf16.mxu0 0
      %1643 = vmatpush1.bf16.msra.mxu0 0
      %1644 = vmatprep.subr.bf16.mxu0 0
      %1645 = vmatpush1.bf16.msra.mxu0 0
      %1646 = vmatprep.subr.bf16.mxu0 0
      %1647 = vmatpush1.bf16.msra.mxu0 0
      %1648 = vmatprep.subr.bf16.mxu0 0
      %1649 = vmatpush1.bf16.msra.mxu0 0
      %1650 = vmatprep.subr.bf16.mxu0 0
      %1651 = vmatpush1.bf16.msra.mxu0 0
      %1652 = vmatprep.mubr.bf16.mxu0 0
      %1653 = vmatmul.mubr.bf16.gmra.mrb[0].mxu0 %v1618
      %v1654 = vpop.f32.mrb[0].mxu0
      %v1655 = vadd.f32 0.0, %v1654
      %v1656 = vpop.f32.mrb[0].mxu0
      %v1657 = vpop.f32.mrb[0].mxu0
      %v1658 = vadd.f32 0.0, %v1657
      %v1659 = vpop.f32.mrb[0].mxu0
      %1660 = vdwg.mxu0
      %v1662 = vsel %vm194, %v1613, 0
      %1664 = vmatprep.subr.bf16.mxu0 0
      %1665 = vmatpush1.bf16.msra.mxu0 %v247
      %1666 = vmatprep.subr.bf16.mxu0 0
      %1667 = vmatpush1.bf16.msra.mxu0 0
      %1668 = vmatprep.subr.bf16.mxu0 0
      %1669 = vmatpush1.bf16.msra.mxu0 0
      %1670 = vmatprep.subr.bf16.mxu0 0
      %1671 = vmatpush1.bf16.msra.mxu0 0
      %1672 = vmatprep.subr.bf16.mxu0 0
      %1673 = vmatpush1.bf16.msra.mxu0 0
      %1674 = vmatprep.subr.bf16.mxu0 0
      %1675 = vmatpush1.bf16.msra.mxu0 0
      %1676 = vmatprep.subr.bf16.mxu0 0
      %1677 = vmatpush1.bf16.msra.mxu0 0
      %1678 = vmatprep.subr.bf16.mxu0 0
      %1679 = vmatpush1.bf16.msra.mxu0 0
      %1680 = vmatprep.subr.bf16.mxu0 0
      %1681 = vmatpush1.bf16.msra.mxu0 0
      %1682 = vmatprep.subr.bf16.mxu0 0
      %1683 = vmatpush1.bf16.msra.mxu0 0
      %1684 = vmatprep.subr.bf16.mxu0 0
      %1685 = vmatpush1.bf16.msra.mxu0 0
      %1686 = vmatprep.subr.bf16.mxu0 0
      %1687 = vmatpush1.bf16.msra.mxu0 0
      %1688 = vmatprep.subr.bf16.mxu0 0
      %1689 = vmatpush1.bf16.msra.mxu0 0
      %1690 = vmatprep.subr.bf16.mxu0 0
      %1691 = vmatpush1.bf16.msra.mxu0 0
      %1692 = vmatprep.subr.bf16.mxu0 0
      %1693 = vmatpush1.bf16.msra.mxu0 0
      %1694 = vmatprep.subr.bf16.mxu0 0
      %1695 = vmatpush1.bf16.msra.mxu0 0
      %1696 = vmatprep.mubr.bf16.mxu0 0
      %1697 = vmatmul.mubr.bf16.gmra.mrb[0].mxu0 %v1662
      %v1698 = vpop.f32.mrb[0].mxu0
      %v1699 = vadd.f32 %v1655, %v1698
      %v1700 = vpop.f32.mrb[0].mxu0
      %v1701 = vpop.f32.mrb[0].mxu0
      %v1702 = vadd.f32 %v1658, %v1701
      %v1703 = vpop.f32.mrb[0].mxu0
      %1704 = vdwg.mxu0
      %v1705 = vld [vmem:[%s981 + $0x2] sm:$0xff]
      %v1706 = vld [vmem:[%s981 + $0xa] sm:$0x3f]
      %v1707 = vpack.c.bf16 %v1706, %v1705
      %v1709 = vsel %vm194, %v1707, 0
      %1711 = vmatprep.subr.bf16.mxu0 0
      %1712 = vmatpush1.bf16.msra.mxu0 %v297
      %1713 = vmatprep.subr.bf16.mxu0 0
      %1714 = vmatpush1.bf16.msra.mxu0 0
      %1715 = vmatprep.subr.bf16.mxu0 0
      %1716 = vmatpush1.bf16.msra.mxu0 0
      %1717 = vmatprep.subr.bf16.mxu0 0
      %1718 = vmatpush1.bf16.msra.mxu0 0
      %1719 = vmatprep.subr.bf16.mxu0 0
      %1720 = vmatpush1.bf16.msra.mxu0 0
      %1721 = vmatprep.subr.bf16.mxu0 0
      %1722 = vmatpush1.bf16.msra.mxu0 0
      %1723 = vmatprep.subr.bf16.mxu0 0
      %1724 = vmatpush1.bf16.msra.mxu0 0
      %1725 = vmatprep.subr.bf16.mxu0 0
      %1726 = vmatpush1.bf16.msra.mxu0 0
      %1727 = vmatprep.subr.bf16.mxu0 0
      %1728 = vmatpush1.bf16.msra.mxu0 0
      %1729 = vmatprep.subr.bf16.mxu0 0
      %1730 = vmatpush1.bf16.msra.mxu0 0
      %1731 = vmatprep.subr.bf16.mxu0 0
      %1732 = vmatpush1.bf16.msra.mxu0 0
      %1733 = vmatprep.subr.bf16.mxu0 0
      %1734 = vmatpush1.bf16.msra.mxu0 0
      %1735 = vmatprep.subr.bf16.mxu0 0
      %1736 = vmatpush1.bf16.msra.mxu0 0
      %1737 = vmatprep.subr.bf16.mxu0 0
      %1738 = vmatpush1.bf16.msra.mxu0 0
      %1739 = vmatprep.subr.bf16.mxu0 0
      %1740 = vmatpush1.bf16.msra.mxu0 0
      %1741 = vmatprep.subr.bf16.mxu0 0
      %1742 = vmatpush1.bf16.msra.mxu0 0
      %1743 = vmatprep.mubr.bf16.mxu0 0
      %1744 = vmatmul.mubr.bf16.gmra.mrb[0].mxu0 %v1709
      %v1745 = vpop.f32.mrb[0].mxu0
      %v1746 = vadd.f32 0.0, %v1745
      %v1747 = vpop.f32.mrb[0].mxu0
      %v1748 = vpop.f32.mrb[0].mxu0
      %v1749 = vadd.f32 0.0, %v1748
      %v1750 = vpop.f32.mrb[0].mxu0
      %1751 = vdwg.mxu0
      %v1752 = vadd.f32 %v1699, %v1746
      %v1753 = vadd.f32 %v1702, %v1749
      %v1754 = vld [vmem:[%s1441] sm:$0xff]
      %v1755 = vld [vmem:[%s1441 + $0x8] sm:$0x3f]
      %v1756 = vpack.c.bf16 %v1755, %v1754
      %v1758 = vsel %vm194, %v1756, 0
      %1760 = vmatprep.subr.bf16.mxu0 0
      %1761 = vmatpush1.bf16.msra.mxu0 %v354
      %1762 = vmatprep.subr.bf16.mxu0 0
      %1763 = vmatpush1.bf16.msra.mxu0 0
      %1764 = vmatprep.subr.bf16.mxu0 0
      %1765 = vmatpush1.bf16.msra.mxu0 0
      %1766 = vmatprep.subr.bf16.mxu0 0
      %1767 = vmatpush1.bf16.msra.mxu0 0
      %1768 = vmatprep.subr.bf16.mxu0 0
      %1769 = vmatpush1.bf16.msra.mxu0 0
      %1770 = vmatprep.subr.bf16.mxu0 0
      %1771 = vmatpush1.bf16.msra.mxu0 0
      %1772 = vmatprep.subr.bf16.mxu0 0
      %1773 = vmatpush1.bf16.msra.mxu0 0
      %1774 = vmatprep.subr.bf16.mxu0 0
      %1775 = vmatpush1.bf16.msra.mxu0 0
      %1776 = vmatprep.subr.bf16.mxu0 0
      %1777 = vmatpush1.bf16.msra.mxu0 0
      %1778 = vmatprep.subr.bf16.mxu0 0
      %1779 = vmatpush1.bf16.msra.mxu0 0
      %1780 = vmatprep.subr.bf16.mxu0 0
      %1781 = vmatpush1.bf16.msra.mxu0 0
      %1782 = vmatprep.subr.bf16.mxu0 0
      %1783 = vmatpush1.bf16.msra.mxu0 0
      %1784 = vmatprep.subr.bf16.mxu0 0
      %1785 = vmatpush1.bf16.msra.mxu0 0
      %1786 = vmatprep.subr.bf16.mxu0 0
      %1787 = vmatpush1.bf16.msra.mxu0 0
      %1788 = vmatprep.subr.bf16.mxu0 0
      %1789 = vmatpush1.bf16.msra.mxu0 0
      %1790 = vmatprep.subr.bf16.mxu0 0
      %1791 = vmatpush1.bf16.msra.mxu0 0
      %1792 = vmatprep.mubr.bf16.mxu0 0
      %1793 = vmatmul.mubr.bf16.gmra.mrb[0].mxu0 %v1758
      %v1794 = vpop.f32.mrb[0].mxu0
      %v1795 = vadd.f32 0.0, %v1794
      %v1796 = vpop.f32.mrb[0].mxu0
      %v1797 = vpop.f32.mrb[0].mxu0
      %v1798 = vadd.f32 0.0, %v1797
      %v1799 = vpop.f32.mrb[0].mxu0
      %1800 = vdwg.mxu0
      %v1801 = vadd.f32 %v1752, %v1795
      %v1802 = vadd.f32 %v1753, %v1798
      %v1803 = vld [vmem:[%s1441 + $0x1] sm:$0xff]
      %v1804 = vld [vmem:[%s1441 + $0x9] sm:$0x3f]
      %v1805 = vpack.c.bf16 %v1804, %v1803
      %v1807 = vsel %vm194, %v1805, 0
      %1809 = vmatprep.subr.bf16.mxu0 0
      %1810 = vmatpush1.bf16.msra.mxu0 %v406
      %1811 = vmatprep.subr.bf16.mxu0 0
      %1812 = vmatpush1.bf16.msra.mxu0 0
      %1813 = vmatprep.subr.bf16.mxu0 0
      %1814 = vmatpush1.bf16.msra.mxu0 0
      %1815 = vmatprep.subr.bf16.mxu0 0
      %1816 = vmatpush1.bf16.msra.mxu0 0
      %1817 = vmatprep.subr.bf16.mxu0 0
      %1818 = vmatpush1.bf16.msra.mxu0 0
      %1819 = vmatprep.subr.bf16.mxu0 0
      %1820 = vmatpush1.bf16.msra.mxu0 0
      %1821 = vmatprep.subr.bf16.mxu0 0
      %1822 = vmatpush1.bf16.msra.mxu0 0
      %1823 = vmatprep.subr.bf16.mxu0 0
      %1824 = vmatpush1.bf16.msra.mxu0 0
      %1825 = vmatprep.subr.bf16.mxu0 0
      %1826 = vmatpush1.bf16.msra.mxu0 0
      %1827 = vmatprep.subr.bf16.mxu0 0
      %1828 = vmatpush1.bf16.msra.mxu0 0
      %1829 = vmatprep.subr.bf16.mxu0 0
      %1830 = vmatpush1.bf16.msra.mxu0 0
      %1831 = vmatprep.subr.bf16.mxu0 0
      %1832 = vmatpush1.bf16.msra.mxu0 0
      %1833 = vmatprep.subr.bf16.mxu0 0
      %1834 = vmatpush1.bf16.msra.mxu0 0
      %1835 = vmatprep.subr.bf16.mxu0 0
      %1836 = vmatpush1.bf16.msra.mxu0 0
      %1837 = vmatprep.subr.bf16.mxu0 0
      %1838 = vmatpush1.bf16.msra.mxu0 0
      %1839 = vmatprep.subr.bf16.mxu0 0
      %1840 = vmatpush1.bf16.msra.mxu0 0
      %1841 = vmatprep.mubr.bf16.mxu0 0
      %1842 = vmatmul.mubr.bf16.gmra.mrb[0].mxu0 %v1807
      %v1843 = vpop.f32.mrb[0].mxu0
      %v1844 = vadd.f32 0.0, %v1843
      %v1845 = vpop.f32.mrb[0].mxu0
      %v1846 = vpop.f32.mrb[0].mxu0
      %v1847 = vadd.f32 0.0, %v1846
      %v1848 = vpop.f32.mrb[0].mxu0
      %1849 = vdwg.mxu0
      %v1850 = vadd.f32 %v1801, %v1844
      %v1851 = vadd.f32 %v1802, %v1847
      %v1852 = vld [vmem:[%s1441 + $0x2] sm:$0xff]
      %v1853 = vld [vmem:[%s1441 + $0xa] sm:$0x3f]
      %v1854 = vpack.c.bf16 %v1853, %v1852
      %v1856 = vsel %vm194, %v1854, 0
      %1858 = vmatprep.subr.bf16.mxu0 0
      %1859 = vmatpush1.bf16.msra.mxu0 %v462
      %1860 = vmatprep.subr.bf16.mxu0 0
      %1861 = vmatpush1.bf16.msra.mxu0 0
      %1862 = vmatprep.subr.bf16.mxu0 0
      %1863 = vmatpush1.bf16.msra.mxu0 0
      %1864 = vmatprep.subr.bf16.mxu0 0
      %1865 = vmatpush1.bf16.msra.mxu0 0
      %1866 = vmatprep.subr.bf16.mxu0 0
      %1867 = vmatpush1.bf16.msra.mxu0 0
      %1868 = vmatprep.subr.bf16.mxu0 0
      %1869 = vmatpush1.bf16.msra.mxu0 0
      %1870 = vmatprep.subr.bf16.mxu0 0
      %1871 = vmatpush1.bf16.msra.mxu0 0
      %1872 = vmatprep.subr.bf16.mxu0 0
      %1873 = vmatpush1.bf16.msra.mxu0 0
      %1874 = vmatprep.subr.bf16.mxu0 0
      %1875 = vmatpush1.bf16.msra.mxu0 0
      %1876 = vmatprep.subr.bf16.mxu0 0
      %1877 = vmatpush1.bf16.msra.mxu0 0
      %1878 = vmatprep.subr.bf16.mxu0 0
      %1879 = vmatpush1.bf16.msra.mxu0 0
      %1880 = vmatprep.subr.bf16.mxu0 0
      %1881 = vmatpush1.bf16.msra.mxu0 0
      %1882 = vmatprep.subr.bf16.mxu0 0
      %1883 = vmatpush1.bf16.msra.mxu0 0
      %1884 = vmatprep.subr.bf16.mxu0 0
      %1885 = vmatpush1.bf16.msra.mxu0 0
      %1886 = vmatprep.subr.bf16.mxu0 0
      %1887 = vmatpush1.bf16.msra.mxu0 0
      %1888 = vmatprep.subr.bf16.mxu0 0
      %1889 = vmatpush1.bf16.msra.mxu0 0
      %1890 = vmatprep.mubr.bf16.mxu0 0
      %1891 = vmatmul.mubr.bf16.gmra.mrb[0].mxu0 %v1856
      %v1892 = vpop.f32.mrb[0].mxu0
      %v1893 = vadd.f32 0.0, %v1892
      %v1894 = vpop.f32.mrb[0].mxu0
      %v1895 = vpop.f32.mrb[0].mxu0
      %v1896 = vadd.f32 0.0, %v1895
      %v1897 = vpop.f32.mrb[0].mxu0
      %1898 = vdwg.mxu0
      %v1899 = vadd.f32 %v1850, %v1893
      %v1900 = vadd.f32 %v1851, %v1896
      %s1901 = scalar_lea.vmem %s163, 80
      %v1902 = vld [vmem:[%s1901] sm:$0xff]
      %v1903 = vld [vmem:[%s1901 + $0x8] sm:$0x3f]
      %v1904 = vpack.c.bf16 %v1903, %v1902
      %v1906 = vsel %vm194, %v1904, 0
      %1908 = vmatprep.subr.bf16.mxu0 0
      %1909 = vmatpush1.bf16.msra.mxu0 %v515
      %1910 = vmatprep.subr.bf16.mxu0 0
      %1911 = vmatpush1.bf16.msra.mxu0 0
      %1912 = vmatprep.subr.bf16.mxu0 0
      %1913 = vmatpush1.bf16.msra.mxu0 0
      %1914 = vmatprep.subr.bf16.mxu0 0
      %1915 = vmatpush1.bf16.msra.mxu0 0
      %1916 = vmatprep.subr.bf16.mxu0 0
      %1917 = vmatpush1.bf16.msra.mxu0 0
      %1918 = vmatprep.subr.bf16.mxu0 0
      %1919 = vmatpush1.bf16.msra.mxu0 0
      %1920 = vmatprep.subr.bf16.mxu0 0
      %1921 = vmatpush1.bf16.msra.mxu0 0
      %1922 = vmatprep.subr.bf16.mxu0 0
      %1923 = vmatpush1.bf16.msra.mxu0 0
      %1924 = vmatprep.subr.bf16.mxu0 0
      %1925 = vmatpush1.bf16.msra.mxu0 0
      %1926 = vmatprep.subr.bf16.mxu0 0
      %1927 = vmatpush1.bf16.msra.mxu0 0
      %1928 = vmatprep.subr.bf16.mxu0 0
      %1929 = vmatpush1.bf16.msra.mxu0 0
      %1930 = vmatprep.subr.bf16.mxu0 0
      %1931 = vmatpush1.bf16.msra.mxu0 0
      %1932 = vmatprep.subr.bf16.mxu0 0
      %1933 = vmatpush1.bf16.msra.mxu0 0
      %1934 = vmatprep.subr.bf16.mxu0 0
      %1935 = vmatpush1.bf16.msra.mxu0 0
      %1936 = vmatprep.subr.bf16.mxu0 0
      %1937 = vmatpush1.bf16.msra.mxu0 0
      %1938 = vmatprep.subr.bf16.mxu0 0
      %1939 = vmatpush1.bf16.msra.mxu0 0
      %1940 = vmatprep.mubr.bf16.mxu0 0
      %1941 = vmatmul.mubr.bf16.gmra.mrb[0].mxu0 %v1906
      %v1942 = vpop.f32.mrb[0].mxu0
      %v1943 = vadd.f32 0.0, %v1942
      %v1944 = vpop.f32.mrb[0].mxu0
      %v1945 = vpop.f32.mrb[0].mxu0
      %v1946 = vadd.f32 0.0, %v1945
      %v1947 = vpop.f32.mrb[0].mxu0
      %1948 = vdwg.mxu0
      %v1949 = vadd.f32 %v1899, %v1943
      %v1950 = vadd.f32 %v1900, %v1946
      %v1951 = vld [vmem:[%s1901 + $0x1] sm:$0xff]
      %v1952 = vld [vmem:[%s1901 + $0x9] sm:$0x3f]
      %v1953 = vpack.c.bf16 %v1952, %v1951
      %v1955 = vsel %vm194, %v1953, 0
      %1957 = vmatprep.subr.bf16.mxu0 0
      %1958 = vmatpush1.bf16.msra.mxu0 %v571
      %1959 = vmatprep.subr.bf16.mxu0 0
      %1960 = vmatpush1.bf16.msra.mxu0 0
      %1961 = vmatprep.subr.bf16.mxu0 0
      %1962 = vmatpush1.bf16.msra.mxu0 0
      %1963 = vmatprep.subr.bf16.mxu0 0
      %1964 = vmatpush1.bf16.msra.mxu0 0
      %1965 = vmatprep.subr.bf16.mxu0 0
      %1966 = vmatpush1.bf16.msra.mxu0 0
      %1967 = vmatprep.subr.bf16.mxu0 0
      %1968 = vmatpush1.bf16.msra.mxu0 0
      %1969 = vmatprep.subr.bf16.mxu0 0
      %1970 = vmatpush1.bf16.msra.mxu0 0
      %1971 = vmatprep.subr.bf16.mxu0 0
      %1972 = vmatpush1.bf16.msra.mxu0 0
      %1973 = vmatprep.subr.bf16.mxu0 0
      %1974 = vmatpush1.bf16.msra.mxu0 0
      %1975 = vmatprep.subr.bf16.mxu0 0
      %1976 = vmatpush1.bf16.msra.mxu0 0
      %1977 = vmatprep.subr.bf16.mxu0 0
      %1978 = vmatpush1.bf16.msra.mxu0 0
      %1979 = vmatprep.subr.bf16.mxu0 0
      %1980 = vmatpush1.bf16.msra.mxu0 0
      %1981 = vmatprep.subr.bf16.mxu0 0
      %1982 = vmatpush1.bf16.msra.mxu0 0
      %1983 = vmatprep.subr.bf16.mxu0 0
      %1984 = vmatpush1.bf16.msra.mxu0 0
      %1985 = vmatprep.subr.bf16.mxu0 0
      %1986 = vmatpush1.bf16.msra.mxu0 0
      %1987 = vmatprep.subr.bf16.mxu0 0
      %1988 = vmatpush1.bf16.msra.mxu0 0
      %1989 = vmatprep.mubr.bf16.mxu0 0
      %1990 = vmatmul.mubr.bf16.gmra.mrb[0].mxu0 %v1955
      %v1991 = vpop.f32.mrb[0].mxu0
      %v1992 = vadd.f32 0.0, %v1991
      %v1993 = vpop.f32.mrb[0].mxu0
      %v1994 = vpop.f32.mrb[0].mxu0
      %v1995 = vadd.f32 0.0, %v1994
      %v1996 = vpop.f32.mrb[0].mxu0
      %1997 = vdwg.mxu0
      %v1998 = vadd.f32 %v1949, %v1992
      %v1999 = vadd.f32 %v1950, %v1995
      %v2000 = vld [vmem:[%s1901 + $0x2] sm:$0xff]
      %v2001 = vld [vmem:[%s1901 + $0xa] sm:$0x3f]
      %v2002 = vpack.c.bf16 %v2001, %v2000
      %v2004 = vsel %vm194, %v2002, 0
      %2006 = vmatprep.subr.bf16.mxu0 0
      %2007 = vmatpush1.bf16.msra.mxu0 %v623
      %2008 = vmatprep.subr.bf16.mxu0 0
      %2009 = vmatpush1.bf16.msra.mxu0 0
      %2010 = vmatprep.subr.bf16.mxu0 0
      %2011 = vmatpush1.bf16.msra.mxu0 0
      %2012 = vmatprep.subr.bf16.mxu0 0
      %2013 = vmatpush1.bf16.msra.mxu0 0
      %2014 = vmatprep.subr.bf16.mxu0 0
      %2015 = vmatpush1.bf16.msra.mxu0 0
      %2016 = vmatprep.subr.bf16.mxu0 0
      %2017 = vmatpush1.bf16.msra.mxu0 0
      %2018 = vmatprep.subr.bf16.mxu0 0
      %2019 = vmatpush1.bf16.msra.mxu0 0
      %2020 = vmatprep.subr.bf16.mxu0 0
      %2021 = vmatpush1.bf16.msra.mxu0 0
      %2022 = vmatprep.subr.bf16.mxu0 0
      %2023 = vmatpush1.bf16.msra.mxu0 0
      %2024 = vmatprep.subr.bf16.mxu0 0
      %2025 = vmatpush1.bf16.msra.mxu0 0
      %2026 = vmatprep.subr.bf16.mxu0 0
      %2027 = vmatpush1.bf16.msra.mxu0 0
      %2028 = vmatprep.subr.bf16.mxu0 0
      %2029 = vmatpush1.bf16.msra.mxu0 0
      %2030 = vmatprep.subr.bf16.mxu0 0
      %2031 = vmatpush1.bf16.msra.mxu0 0
      %2032 = vmatprep.subr.bf16.mxu0 0
      %2033 = vmatpush1.bf16.msra.mxu0 0
      %2034 = vmatprep.subr.bf16.mxu0 0
      %2035 = vmatpush1.bf16.msra.mxu0 0
      %2036 = vmatprep.subr.bf16.mxu0 0
      %2037 = vmatpush1.bf16.msra.mxu0 0
      %2038 = vmatprep.mubr.bf16.mxu0 0
      %2039 = vmatmul.mubr.bf16.gmra.mrb[0].mxu0 %v2004
      %v2040 = vpop.f32.mrb[0].mxu0
      %v2041 = vadd.f32 0.0, %v2040
      %v2042 = vpop.f32.mrb[0].mxu0
      %v2043 = vpop.f32.mrb[0].mxu0
      %v2044 = vadd.f32 0.0, %v2043
      %v2045 = vpop.f32.mrb[0].mxu0
      %2046 = vdwg.mxu0
      %v2047 = vadd.f32 %v1998, %v2041
      %v2048 = vadd.f32 %v1999, %v2044
      %2049 = vst [vmem:[%s168 + $0x2a] sm:$0xff] %v2047
      %2050 = vst [vmem:[%s168 + $0x32] sm:$0x3f] %v2048
      %v2051 = vsel %vm670, %v2048, 0.0
      %v2052 = vadd.f32 %v2047, %v2051
      %v2053 = vrot.slane %v2052, 4
      %v2054 = vadd.f32 %v2052, %v2053
      %v2055 = vrot.slane %v2054, 2
      %v2056 = vadd.f32 %v2054, %v2055
      %v2057 = vrot.slane %v2056, 1
      %v2058 = vadd.f32 %v2056, %v2057
      %v2059 = vadd.f32 %v1599, %v2058
      %v2060 = vmul.f32 %v2047, %v2047
      %v2061 = vmul.f32 %v2048, %v2048
      %v2062 = vsel %vm670, %v2061, 0.0
      %v2063 = vadd.f32 %v2060, %v2062
      %v2064 = vrot.slane %v2063, 4
      %v2065 = vadd.f32 %v2063, %v2064
      %v2066 = vrot.slane %v2065, 2
      %v2067 = vadd.f32 %v2065, %v2066
      %v2068 = vrot.slane %v2067, 1
      %v2069 = vadd.f32 %v2067, %v2068
      %v2070 = vadd.f32 %v1610, %v2069
      %v2071 = vld [vmem:[%s1441] sm:$0xff]
      %v2072 = vld [vmem:[%s1441 + $0x8] sm:$0x3f]
      %v2073 = vpack.c.bf16 %v2072, %v2071
      %v2074 = vld [vmem:[%s1441 + $0x1] sm:$0xff]
      %v2075 = vld [vmem:[%s1441 + $0x9] sm:$0x3f]
      %v2076 = vpack.c.bf16 %v2075, %v2074
      %v2078 = vsel %vm194, %v2076, 0
      %2080 = vmatprep.subr.bf16.mxu0 0
      %2081 = vmatpush1.bf16.msra.mxu0 %v200
      %2082 = vmatprep.subr.bf16.mxu0 0
      %2083 = vmatpush1.bf16.msra.mxu0 0
      %2084 = vmatprep.subr.bf16.mxu0 0
      %2085 = vmatpush1.bf16.msra.mxu0 0
      %2086 = vmatprep.subr.bf16.mxu0 0
      %2087 = vmatpush1.bf16.msra.mxu0 0
      %2088 = vmatprep.subr.bf16.mxu0 0
      %2089 = vmatpush1.bf16.msra.mxu0 0
      %2090 = vmatprep.subr.bf16.mxu0 0
      %2091 = vmatpush1.bf16.msra.mxu0 0
      %2092 = vmatprep.subr.bf16.mxu0 0
      %2093 = vmatpush1.bf16.msra.mxu0 0
      %2094 = vmatprep.subr.bf16.mxu0 0
      %2095 = vmatpush1.bf16.msra.mxu0 0
      %2096 = vmatprep.subr.bf16.mxu0 0
      %2097 = vmatpush1.bf16.msra.mxu0 0
      %2098 = vmatprep.subr.bf16.mxu0 0
      %2099 = vmatpush1.bf16.msra.mxu0 0
      %2100 = vmatprep.subr.bf16.mxu0 0
      %2101 = vmatpush1.bf16.msra.mxu0 0
      %2102 = vmatprep.subr.bf16.mxu0 0
      %2103 = vmatpush1.bf16.msra.mxu0 0
      %2104 = vmatprep.subr.bf16.mxu0 0
      %2105 = vmatpush1.bf16.msra.mxu0 0
      %2106 = vmatprep.subr.bf16.mxu0 0
      %2107 = vmatpush1.bf16.msra.mxu0 0
      %2108 = vmatprep.subr.bf16.mxu0 0
      %2109 = vmatpush1.bf16.msra.mxu0 0
      %2110 = vmatprep.subr.bf16.mxu0 0
      %2111 = vmatpush1.bf16.msra.mxu0 0
      %2112 = vmatprep.mubr.bf16.mxu0 0
      %2113 = vmatmul.mubr.bf16.gmra.mrb[0].mxu0 %v2078
      %v2114 = vpop.f32.mrb[0].mxu0
      %v2115 = vadd.f32 0.0, %v2114
      %v2116 = vpop.f32.mrb[0].mxu0
      %v2117 = vpop.f32.mrb[0].mxu0
      %v2118 = vadd.f32 0.0, %v2117
      %v2119 = vpop.f32.mrb[0].mxu0
      %2120 = vdwg.mxu0
      %v2122 = vsel %vm194, %v2073, 0
      %2124 = vmatprep.subr.bf16.mxu0 0
      %2125 = vmatpush1.bf16.msra.mxu0 %v247
      %2126 = vmatprep.subr.bf16.mxu0 0
      %2127 = vmatpush1.bf16.msra.mxu0 0
      %2128 = vmatprep.subr.bf16.mxu0 0
      %2129 = vmatpush1.bf16.msra.mxu0 0
      %2130 = vmatprep.subr.bf16.mxu0 0
      %2131 = vmatpush1.bf16.msra.mxu0 0
      %2132 = vmatprep.subr.bf16.mxu0 0
      %2133 = vmatpush1.bf16.msra.mxu0 0
      %2134 = vmatprep.subr.bf16.mxu0 0
      %2135 = vmatpush1.bf16.msra.mxu0 0
      %2136 = vmatprep.subr.bf16.mxu0 0
      %2137 = vmatpush1.bf16.msra.mxu0 0
      %2138 = vmatprep.subr.bf16.mxu0 0
      %2139 = vmatpush1.bf16.msra.mxu0 0
      %2140 = vmatprep.subr.bf16.mxu0 0
      %2141 = vmatpush1.bf16.msra.mxu0 0
      %2142 = vmatprep.subr.bf16.mxu0 0
      %2143 = vmatpush1.bf16.msra.mxu0 0
      %2144 = vmatprep.subr.bf16.mxu0 0
      %2145 = vmatpush1.bf16.msra.mxu0 0
      %2146 = vmatprep.subr.bf16.mxu0 0
      %2147 = vmatpush1.bf16.msra.mxu0 0
      %2148 = vmatprep.subr.bf16.mxu0 0
      %2149 = vmatpush1.bf16.msra.mxu0 0
      %2150 = vmatprep.subr.bf16.mxu0 0
      %2151 = vmatpush1.bf16.msra.mxu0 0
      %2152 = vmatprep.subr.bf16.mxu0 0
      %2153 = vmatpush1.bf16.msra.mxu0 0
      %2154 = vmatprep.subr.bf16.mxu0 0
      %2155 = vmatpush1.bf16.msra.mxu0 0
      %2156 = vmatprep.mubr.bf16.mxu0 0
      %2157 = vmatmul.mubr.bf16.gmra.mrb[0].mxu0 %v2122
      %v2158 = vpop.f32.mrb[0].mxu0
      %v2159 = vadd.f32 %v2115, %v2158
      %v2160 = vpop.f32.mrb[0].mxu0
      %v2161 = vpop.f32.mrb[0].mxu0
      %v2162 = vadd.f32 %v2118, %v2161
      %v2163 = vpop.f32.mrb[0].mxu0
      %2164 = vdwg.mxu0
      %v2165 = vld [vmem:[%s1441 + $0x2] sm:$0xff]
      %v2166 = vld [vmem:[%s1441 + $0xa] sm:$0x3f]
      %v2167 = vpack.c.bf16 %v2166, %v2165
      %v2169 = vsel %vm194, %v2167, 0
      %2171 = vmatprep.subr.bf16.mxu0 0
      %2172 = vmatpush1.bf16.msra.mxu0 %v297
      %2173 = vmatprep.subr.bf16.mxu0 0
      %2174 = vmatpush1.bf16.msra.mxu0 0
      %2175 = vmatprep.subr.bf16.mxu0 0
      %2176 = vmatpush1.bf16.msra.mxu0 0
      %2177 = vmatprep.subr.bf16.mxu0 0
      %2178 = vmatpush1.bf16.msra.mxu0 0
      %2179 = vmatprep.subr.bf16.mxu0 0
      %2180 = vmatpush1.bf16.msra.mxu0 0
      %2181 = vmatprep.subr.bf16.mxu0 0
      %2182 = vmatpush1.bf16.msra.mxu0 0
      %2183 = vmatprep.subr.bf16.mxu0 0
      %2184 = vmatpush1.bf16.msra.mxu0 0
      %2185 = vmatprep.subr.bf16.mxu0 0
      %2186 = vmatpush1.bf16.msra.mxu0 0
      %2187 = vmatprep.subr.bf16.mxu0 0
      %2188 = vmatpush1.bf16.msra.mxu0 0
      %2189 = vmatprep.subr.bf16.mxu0 0
      %2190 = vmatpush1.bf16.msra.mxu0 0
      %2191 = vmatprep.subr.bf16.mxu0 0
      %2192 = vmatpush1.bf16.msra.mxu0 0
      %2193 = vmatprep.subr.bf16.mxu0 0
      %2194 = vmatpush1.bf16.msra.mxu0 0
      %2195 = vmatprep.subr.bf16.mxu0 0
      %2196 = vmatpush1.bf16.msra.mxu0 0
      %2197 = vmatprep.subr.bf16.mxu0 0
      %2198 = vmatpush1.bf16.msra.mxu0 0
      %2199 = vmatprep.subr.bf16.mxu0 0
      %2200 = vmatpush1.bf16.msra.mxu0 0
      %2201 = vmatprep.subr.bf16.mxu0 0
      %2202 = vmatpush1.bf16.msra.mxu0 0
      %2203 = vmatprep.mubr.bf16.mxu0 0
      %2204 = vmatmul.mubr.bf16.gmra.mrb[0].mxu0 %v2169
      %v2205 = vpop.f32.mrb[0].mxu0
      %v2206 = vadd.f32 0.0, %v2205
      %v2207 = vpop.f32.mrb[0].mxu0
      %v2208 = vpop.f32.mrb[0].mxu0
      %v2209 = vadd.f32 0.0, %v2208
      %v2210 = vpop.f32.mrb[0].mxu0
      %2211 = vdwg.mxu0
      %v2212 = vadd.f32 %v2159, %v2206
      %v2213 = vadd.f32 %v2162, %v2209
      %v2214 = vld [vmem:[%s1901] sm:$0xff]
      %v2215 = vld [vmem:[%s1901 + $0x8] sm:$0x3f]
      %v2216 = vpack.c.bf16 %v2215, %v2214
      %v2218 = vsel %vm194, %v2216, 0
      %2220 = vmatprep.subr.bf16.mxu0 0
      %2221 = vmatpush1.bf16.msra.mxu0 %v354
      %2222 = vmatprep.subr.bf16.mxu0 0
      %2223 = vmatpush1.bf16.msra.mxu0 0
      %2224 = vmatprep.subr.bf16.mxu0 0
      %2225 = vmatpush1.bf16.msra.mxu0 0
      %2226 = vmatprep.subr.bf16.mxu0 0
      %2227 = vmatpush1.bf16.msra.mxu0 0
      %2228 = vmatprep.subr.bf16.mxu0 0
      %2229 = vmatpush1.bf16.msra.mxu0 0
      %2230 = vmatprep.subr.bf16.mxu0 0
      %2231 = vmatpush1.bf16.msra.mxu0 0
      %2232 = vmatprep.subr.bf16.mxu0 0
      %2233 = vmatpush1.bf16.msra.mxu0 0
      %2234 = vmatprep.subr.bf16.mxu0 0
      %2235 = vmatpush1.bf16.msra.mxu0 0
      %2236 = vmatprep.subr.bf16.mxu0 0
      %2237 = vmatpush1.bf16.msra.mxu0 0
      %2238 = vmatprep.subr.bf16.mxu0 0
      %2239 = vmatpush1.bf16.msra.mxu0 0
      %2240 = vmatprep.subr.bf16.mxu0 0
      %2241 = vmatpush1.bf16.msra.mxu0 0
      %2242 = vmatprep.subr.bf16.mxu0 0
      %2243 = vmatpush1.bf16.msra.mxu0 0
      %2244 = vmatprep.subr.bf16.mxu0 0
      %2245 = vmatpush1.bf16.msra.mxu0 0
      %2246 = vmatprep.subr.bf16.mxu0 0
      %2247 = vmatpush1.bf16.msra.mxu0 0
      %2248 = vmatprep.subr.bf16.mxu0 0
      %2249 = vmatpush1.bf16.msra.mxu0 0
      %2250 = vmatprep.subr.bf16.mxu0 0
      %2251 = vmatpush1.bf16.msra.mxu0 0
      %2252 = vmatprep.mubr.bf16.mxu0 0
      %2253 = vmatmul.mubr.bf16.gmra.mrb[0].mxu0 %v2218
      %v2254 = vpop.f32.mrb[0].mxu0
      %v2255 = vadd.f32 0.0, %v2254
      %v2256 = vpop.f32.mrb[0].mxu0
      %v2257 = vpop.f32.mrb[0].mxu0
      %v2258 = vadd.f32 0.0, %v2257
      %v2259 = vpop.f32.mrb[0].mxu0
      %2260 = vdwg.mxu0
      %v2261 = vadd.f32 %v2212, %v2255
      %v2262 = vadd.f32 %v2213, %v2258
      %v2263 = vld [vmem:[%s1901 + $0x1] sm:$0xff]
      %v2264 = vld [vmem:[%s1901 + $0x9] sm:$0x3f]
      %v2265 = vpack.c.bf16 %v2264, %v2263
      %v2267 = vsel %vm194, %v2265, 0
      %2269 = vmatprep.subr.bf16.mxu0 0
      %2270 = vmatpush1.bf16.msra.mxu0 %v406
      %2271 = vmatprep.subr.bf16.mxu0 0
      %2272 = vmatpush1.bf16.msra.mxu0 0
      %2273 = vmatprep.subr.bf16.mxu0 0
      %2274 = vmatpush1.bf16.msra.mxu0 0
      %2275 = vmatprep.subr.bf16.mxu0 0
      %2276 = vmatpush1.bf16.msra.mxu0 0
      %2277 = vmatprep.subr.bf16.mxu0 0
      %2278 = vmatpush1.bf16.msra.mxu0 0
      %2279 = vmatprep.subr.bf16.mxu0 0
      %2280 = vmatpush1.bf16.msra.mxu0 0
      %2281 = vmatprep.subr.bf16.mxu0 0
      %2282 = vmatpush1.bf16.msra.mxu0 0
      %2283 = vmatprep.subr.bf16.mxu0 0
      %2284 = vmatpush1.bf16.msra.mxu0 0
      %2285 = vmatprep.subr.bf16.mxu0 0
      %2286 = vmatpush1.bf16.msra.mxu0 0
      %2287 = vmatprep.subr.bf16.mxu0 0
      %2288 = vmatpush1.bf16.msra.mxu0 0
      %2289 = vmatprep.subr.bf16.mxu0 0
      %2290 = vmatpush1.bf16.msra.mxu0 0
      %2291 = vmatprep.subr.bf16.mxu0 0
      %2292 = vmatpush1.bf16.msra.mxu0 0
      %2293 = vmatprep.subr.bf16.mxu0 0
      %2294 = vmatpush1.bf16.msra.mxu0 0
      %2295 = vmatprep.subr.bf16.mxu0 0
      %2296 = vmatpush1.bf16.msra.mxu0 0
      %2297 = vmatprep.subr.bf16.mxu0 0
      %2298 = vmatpush1.bf16.msra.mxu0 0
      %2299 = vmatprep.subr.bf16.mxu0 0
      %2300 = vmatpush1.bf16.msra.mxu0 0
      %2301 = vmatprep.mubr.bf16.mxu0 0
      %2302 = vmatmul.mubr.bf16.gmra.mrb[0].mxu0 %v2267
      %v2303 = vpop.f32.mrb[0].mxu0
      %v2304 = vadd.f32 0.0, %v2303
      %v2305 = vpop.f32.mrb[0].mxu0
      %v2306 = vpop.f32.mrb[0].mxu0
      %v2307 = vadd.f32 0.0, %v2306
      %v2308 = vpop.f32.mrb[0].mxu0
      %2309 = vdwg.mxu0
      %v2310 = vadd.f32 %v2261, %v2304
      %v2311 = vadd.f32 %v2262, %v2307
      %v2312 = vld [vmem:[%s1901 + $0x2] sm:$0xff]
      %v2313 = vld [vmem:[%s1901 + $0xa] sm:$0x3f]
      %v2314 = vpack.c.bf16 %v2313, %v2312
      %v2316 = vsel %vm194, %v2314, 0
      %2318 = vmatprep.subr.bf16.mxu0 0
      %2319 = vmatpush1.bf16.msra.mxu0 %v462
      %2320 = vmatprep.subr.bf16.mxu0 0
      %2321 = vmatpush1.bf16.msra.mxu0 0
      %2322 = vmatprep.subr.bf16.mxu0 0
      %2323 = vmatpush1.bf16.msra.mxu0 0
      %2324 = vmatprep.subr.bf16.mxu0 0
      %2325 = vmatpush1.bf16.msra.mxu0 0
      %2326 = vmatprep.subr.bf16.mxu0 0
      %2327 = vmatpush1.bf16.msra.mxu0 0
      %2328 = vmatprep.subr.bf16.mxu0 0
      %2329 = vmatpush1.bf16.msra.mxu0 0
      %2330 = vmatprep.subr.bf16.mxu0 0
      %2331 = vmatpush1.bf16.msra.mxu0 0
      %2332 = vmatprep.subr.bf16.mxu0 0
      %2333 = vmatpush1.bf16.msra.mxu0 0
      %2334 = vmatprep.subr.bf16.mxu0 0
      %2335 = vmatpush1.bf16.msra.mxu0 0
      %2336 = vmatprep.subr.bf16.mxu0 0
      %2337 = vmatpush1.bf16.msra.mxu0 0
      %2338 = vmatprep.subr.bf16.mxu0 0
      %2339 = vmatpush1.bf16.msra.mxu0 0
      %2340 = vmatprep.subr.bf16.mxu0 0
      %2341 = vmatpush1.bf16.msra.mxu0 0
      %2342 = vmatprep.subr.bf16.mxu0 0
      %2343 = vmatpush1.bf16.msra.mxu0 0
      %2344 = vmatprep.subr.bf16.mxu0 0
      %2345 = vmatpush1.bf16.msra.mxu0 0
      %2346 = vmatprep.subr.bf16.mxu0 0
      %2347 = vmatpush1.bf16.msra.mxu0 0
      %2348 = vmatprep.subr.bf16.mxu0 0
      %2349 = vmatpush1.bf16.msra.mxu0 0
      %2350 = vmatprep.mubr.bf16.mxu0 0
      %2351 = vmatmul.mubr.bf16.gmra.mrb[0].mxu0 %v2316
      %v2352 = vpop.f32.mrb[0].mxu0
      %v2353 = vadd.f32 0.0, %v2352
      %v2354 = vpop.f32.mrb[0].mxu0
      %v2355 = vpop.f32.mrb[0].mxu0
      %v2356 = vadd.f32 0.0, %v2355
      %v2357 = vpop.f32.mrb[0].mxu0
      %2358 = vdwg.mxu0
      %v2359 = vadd.f32 %v2310, %v2353
      %v2360 = vadd.f32 %v2311, %v2356
      %s2361 = scalar_lea.vmem %s163, 96
      %v2362 = vld [vmem:[%s2361] sm:$0xff]
      %v2363 = vld [vmem:[%s2361 + $0x8] sm:$0x3f]
      %v2364 = vpack.c.bf16 %v2363, %v2362
      %v2366 = vsel %vm194, %v2364, 0
      %2368 = vmatprep.subr.bf16.mxu0 0
      %2369 = vmatpush1.bf16.msra.mxu0 %v515
      %2370 = vmatprep.subr.bf16.mxu0 0
      %2371 = vmatpush1.bf16.msra.mxu0 0
      %2372 = vmatprep.subr.bf16.mxu0 0
      %2373 = vmatpush1.bf16.msra.mxu0 0
      %2374 = vmatprep.subr.bf16.mxu0 0
      %2375 = vmatpush1.bf16.msra.mxu0 0
      %2376 = vmatprep.subr.bf16.mxu0 0
      %2377 = vmatpush1.bf16.msra.mxu0 0
      %2378 = vmatprep.subr.bf16.mxu0 0
      %2379 = vmatpush1.bf16.msra.mxu0 0
      %2380 = vmatprep.subr.bf16.mxu0 0
      %2381 = vmatpush1.bf16.msra.mxu0 0
      %2382 = vmatprep.subr.bf16.mxu0 0
      %2383 = vmatpush1.bf16.msra.mxu0 0
      %2384 = vmatprep.subr.bf16.mxu0 0
      %2385 = vmatpush1.bf16.msra.mxu0 0
      %2386 = vmatprep.subr.bf16.mxu0 0
      %2387 = vmatpush1.bf16.msra.mxu0 0
      %2388 = vmatprep.subr.bf16.mxu0 0
      %2389 = vmatpush1.bf16.msra.mxu0 0
      %2390 = vmatprep.subr.bf16.mxu0 0
      %2391 = vmatpush1.bf16.msra.mxu0 0
      %2392 = vmatprep.subr.bf16.mxu0 0
      %2393 = vmatpush1.bf16.msra.mxu0 0
      %2394 = vmatprep.subr.bf16.mxu0 0
      %2395 = vmatpush1.bf16.msra.mxu0 0
      %2396 = vmatprep.subr.bf16.mxu0 0
      %2397 = vmatpush1.bf16.msra.mxu0 0
      %2398 = vmatprep.subr.bf16.mxu0 0
      %2399 = vmatpush1.bf16.msra.mxu0 0
      %2400 = vmatprep.mubr.bf16.mxu0 0
      %2401 = vmatmul.mubr.bf16.gmra.mrb[0].mxu0 %v2366
      %v2402 = vpop.f32.mrb[0].mxu0
      %v2403 = vadd.f32 0.0, %v2402
      %v2404 = vpop.f32.mrb[0].mxu0
      %v2405 = vpop.f32.mrb[0].mxu0
      %v2406 = vadd.f32 0.0, %v2405
      %v2407 = vpop.f32.mrb[0].mxu0
      %2408 = vdwg.mxu0
      %v2409 = vadd.f32 %v2359, %v2403
      %v2410 = vadd.f32 %v2360, %v2406
      %v2411 = vld [vmem:[%s2361 + $0x1] sm:$0xff]
      %v2412 = vld [vmem:[%s2361 + $0x9] sm:$0x3f]
      %v2413 = vpack.c.bf16 %v2412, %v2411
      %v2415 = vsel %vm194, %v2413, 0
      %2417 = vmatprep.subr.bf16.mxu0 0
      %2418 = vmatpush1.bf16.msra.mxu0 %v571
      %2419 = vmatprep.subr.bf16.mxu0 0
      %2420 = vmatpush1.bf16.msra.mxu0 0
      %2421 = vmatprep.subr.bf16.mxu0 0
      %2422 = vmatpush1.bf16.msra.mxu0 0
      %2423 = vmatprep.subr.bf16.mxu0 0
      %2424 = vmatpush1.bf16.msra.mxu0 0
      %2425 = vmatprep.subr.bf16.mxu0 0
      %2426 = vmatpush1.bf16.msra.mxu0 0
      %2427 = vmatprep.subr.bf16.mxu0 0
      %2428 = vmatpush1.bf16.msra.mxu0 0
      %2429 = vmatprep.subr.bf16.mxu0 0
      %2430 = vmatpush1.bf16.msra.mxu0 0
      %2431 = vmatprep.subr.bf16.mxu0 0
      %2432 = vmatpush1.bf16.msra.mxu0 0
      %2433 = vmatprep.subr.bf16.mxu0 0
      %2434 = vmatpush1.bf16.msra.mxu0 0
      %2435 = vmatprep.subr.bf16.mxu0 0
      %2436 = vmatpush1.bf16.msra.mxu0 0
      %2437 = vmatprep.subr.bf16.mxu0 0
      %2438 = vmatpush1.bf16.msra.mxu0 0
      %2439 = vmatprep.subr.bf16.mxu0 0
      %2440 = vmatpush1.bf16.msra.mxu0 0
      %2441 = vmatprep.subr.bf16.mxu0 0
      %2442 = vmatpush1.bf16.msra.mxu0 0
      %2443 = vmatprep.subr.bf16.mxu0 0
      %2444 = vmatpush1.bf16.msra.mxu0 0
      %2445 = vmatprep.subr.bf16.mxu0 0
      %2446 = vmatpush1.bf16.msra.mxu0 0
      %2447 = vmatprep.subr.bf16.mxu0 0
      %2448 = vmatpush1.bf16.msra.mxu0 0
      %2449 = vmatprep.mubr.bf16.mxu0 0
      %2450 = vmatmul.mubr.bf16.gmra.mrb[0].mxu0 %v2415
      %v2451 = vpop.f32.mrb[0].mxu0
      %v2452 = vadd.f32 0.0, %v2451
      %v2453 = vpop.f32.mrb[0].mxu0
      %v2454 = vpop.f32.mrb[0].mxu0
      %v2455 = vadd.f32 0.0, %v2454
      %v2456 = vpop.f32.mrb[0].mxu0
      %2457 = vdwg.mxu0
      %v2458 = vadd.f32 %v2409, %v2452
      %v2459 = vadd.f32 %v2410, %v2455
      %v2460 = vld [vmem:[%s2361 + $0x2] sm:$0xff]
      %v2461 = vld [vmem:[%s2361 + $0xa] sm:$0x3f]
      %v2462 = vpack.c.bf16 %v2461, %v2460
      %v2464 = vsel %vm194, %v2462, 0
      %2466 = vmatprep.subr.bf16.mxu0 0
      %2467 = vmatpush1.bf16.msra.mxu0 %v623
      %2468 = vmatprep.subr.bf16.mxu0 0
      %2469 = vmatpush1.bf16.msra.mxu0 0
      %2470 = vmatprep.subr.bf16.mxu0 0
      %2471 = vmatpush1.bf16.msra.mxu0 0
      %2472 = vmatprep.subr.bf16.mxu0 0
      %2473 = vmatpush1.bf16.msra.mxu0 0
      %2474 = vmatprep.subr.bf16.mxu0 0
      %2475 = vmatpush1.bf16.msra.mxu0 0
      %2476 = vmatprep.subr.bf16.mxu0 0
      %2477 = vmatpush1.bf16.msra.mxu0 0
      %2478 = vmatprep.subr.bf16.mxu0 0
      %2479 = vmatpush1.bf16.msra.mxu0 0
      %2480 = vmatprep.subr.bf16.mxu0 0
      %2481 = vmatpush1.bf16.msra.mxu0 0
      %2482 = vmatprep.subr.bf16.mxu0 0
      %2483 = vmatpush1.bf16.msra.mxu0 0
      %2484 = vmatprep.subr.bf16.mxu0 0
      %2485 = vmatpush1.bf16.msra.mxu0 0
      %2486 = vmatprep.subr.bf16.mxu0 0
      %2487 = vmatpush1.bf16.msra.mxu0 0
      %2488 = vmatprep.subr.bf16.mxu0 0
      %2489 = vmatpush1.bf16.msra.mxu0 0
      %2490 = vmatprep.subr.bf16.mxu0 0
      %2491 = vmatpush1.bf16.msra.mxu0 0
      %2492 = vmatprep.subr.bf16.mxu0 0
      %2493 = vmatpush1.bf16.msra.mxu0 0
      %2494 = vmatprep.subr.bf16.mxu0 0
      %2495 = vmatpush1.bf16.msra.mxu0 0
      %2496 = vmatprep.subr.bf16.mxu0 0
      %2497 = vmatpush1.bf16.msra.mxu0 0
      %2498 = vmatprep.mubr.bf16.mxu0 0
      %2499 = vmatmul.mubr.bf16.gmra.mrb[0].mxu0 %v2464
      %v2500 = vpop.f32.mrb[0].mxu0
      %v2501 = vadd.f32 0.0, %v2500
      %v2502 = vpop.f32.mrb[0].mxu0
      %v2503 = vpop.f32.mrb[0].mxu0
      %v2504 = vadd.f32 0.0, %v2503
      %v2505 = vpop.f32.mrb[0].mxu0
      %2506 = vdwg.mxu0
      %v2507 = vadd.f32 %v2458, %v2501
      %v2508 = vadd.f32 %v2459, %v2504
      %2509 = vst [vmem:[%s168 + $0x38] sm:$0xff] %v2507
      %2510 = vst [vmem:[%s168 + $0x40] sm:$0x3f] %v2508
      %v2511 = vsel %vm670, %v2508, 0.0
      %v2512 = vadd.f32 %v2507, %v2511
      %v2513 = vrot.slane %v2512, 4
      %v2514 = vadd.f32 %v2512, %v2513
      %v2515 = vrot.slane %v2514, 2
      %v2516 = vadd.f32 %v2514, %v2515
      %v2517 = vrot.slane %v2516, 1
      %v2518 = vadd.f32 %v2516, %v2517
      %v2519 = vadd.f32 %v2059, %v2518
      %v2520 = vmul.f32 %v2507, %v2507
      %v2521 = vmul.f32 %v2508, %v2508
      %v2522 = vsel %vm670, %v2521, 0.0
      %v2523 = vadd.f32 %v2520, %v2522
      %v2524 = vrot.slane %v2523, 4
      %v2525 = vadd.f32 %v2523, %v2524
      %v2526 = vrot.slane %v2525, 2
      %v2527 = vadd.f32 %v2525, %v2526
      %v2528 = vrot.slane %v2527, 1
      %v2529 = vadd.f32 %v2527, %v2528
      %v2530 = vadd.f32 %v2070, %v2529
      %v2531 = vld [vmem:[%s1901] sm:$0xff]
      %v2532 = vld [vmem:[%s1901 + $0x8] sm:$0x3f]
      %v2533 = vpack.c.bf16 %v2532, %v2531
      %v2534 = vld [vmem:[%s1901 + $0x1] sm:$0xff]
      %v2535 = vld [vmem:[%s1901 + $0x9] sm:$0x3f]
      %v2536 = vpack.c.bf16 %v2535, %v2534
      %v2538 = vsel %vm194, %v2536, 0
      %2540 = vmatprep.subr.bf16.mxu0 0
      %2541 = vmatpush1.bf16.msra.mxu0 %v200
      %2542 = vmatprep.subr.bf16.mxu0 0
      %2543 = vmatpush1.bf16.msra.mxu0 0
      %2544 = vmatprep.subr.bf16.mxu0 0
      %2545 = vmatpush1.bf16.msra.mxu0 0
      %2546 = vmatprep.subr.bf16.mxu0 0
      %2547 = vmatpush1.bf16.msra.mxu0 0
      %2548 = vmatprep.subr.bf16.mxu0 0
      %2549 = vmatpush1.bf16.msra.mxu0 0
      %2550 = vmatprep.subr.bf16.mxu0 0
      %2551 = vmatpush1.bf16.msra.mxu0 0
      %2552 = vmatprep.subr.bf16.mxu0 0
      %2553 = vmatpush1.bf16.msra.mxu0 0
      %2554 = vmatprep.subr.bf16.mxu0 0
      %2555 = vmatpush1.bf16.msra.mxu0 0
      %2556 = vmatprep.subr.bf16.mxu0 0
      %2557 = vmatpush1.bf16.msra.mxu0 0
      %2558 = vmatprep.subr.bf16.mxu0 0
      %2559 = vmatpush1.bf16.msra.mxu0 0
      %2560 = vmatprep.subr.bf16.mxu0 0
      %2561 = vmatpush1.bf16.msra.mxu0 0
      %2562 = vmatprep.subr.bf16.mxu0 0
      %2563 = vmatpush1.bf16.msra.mxu0 0
      %2564 = vmatprep.subr.bf16.mxu0 0
      %2565 = vmatpush1.bf16.msra.mxu0 0
      %2566 = vmatprep.subr.bf16.mxu0 0
      %2567 = vmatpush1.bf16.msra.mxu0 0
      %2568 = vmatprep.subr.bf16.mxu0 0
      %2569 = vmatpush1.bf16.msra.mxu0 0
      %2570 = vmatprep.subr.bf16.mxu0 0
      %2571 = vmatpush1.bf16.msra.mxu0 0
      %2572 = vmatprep.mubr.bf16.mxu0 0
      %2573 = vmatmul.mubr.bf16.gmra.mrb[0].mxu0 %v2538
      %v2574 = vpop.f32.mrb[0].mxu0
      %v2575 = vadd.f32 0.0, %v2574
      %v2576 = vpop.f32.mrb[0].mxu0
      %v2577 = vpop.f32.mrb[0].mxu0
      %v2578 = vadd.f32 0.0, %v2577
      %v2579 = vpop.f32.mrb[0].mxu0
      %2580 = vdwg.mxu0
      %v2582 = vsel %vm194, %v2533, 0
      %2584 = vmatprep.subr.bf16.mxu0 0
      %2585 = vmatpush1.bf16.msra.mxu0 %v247
      %2586 = vmatprep.subr.bf16.mxu0 0
      %2587 = vmatpush1.bf16.msra.mxu0 0
      %2588 = vmatprep.subr.bf16.mxu0 0
      %2589 = vmatpush1.bf16.msra.mxu0 0
      %2590 = vmatprep.subr.bf16.mxu0 0
      %2591 = vmatpush1.bf16.msra.mxu0 0
      %2592 = vmatprep.subr.bf16.mxu0 0
      %2593 = vmatpush1.bf16.msra.mxu0 0
      %2594 = vmatprep.subr.bf16.mxu0 0
      %2595 = vmatpush1.bf16.msra.mxu0 0
      %2596 = vmatprep.subr.bf16.mxu0 0
      %2597 = vmatpush1.bf16.msra.mxu0 0
      %2598 = vmatprep.subr.bf16.mxu0 0
      %2599 = vmatpush1.bf16.msra.mxu0 0
      %2600 = vmatprep.subr.bf16.mxu0 0
      %2601 = vmatpush1.bf16.msra.mxu0 0
      %2602 = vmatprep.subr.bf16.mxu0 0
      %2603 = vmatpush1.bf16.msra.mxu0 0
      %2604 = vmatprep.subr.bf16.mxu0 0
      %2605 = vmatpush1.bf16.msra.mxu0 0
      %2606 = vmatprep.subr.bf16.mxu0 0
      %2607 = vmatpush1.bf16.msra.mxu0 0
      %2608 = vmatprep.subr.bf16.mxu0 0
      %2609 = vmatpush1.bf16.msra.mxu0 0
      %2610 = vmatprep.subr.bf16.mxu0 0
      %2611 = vmatpush1.bf16.msra.mxu0 0
      %2612 = vmatprep.subr.bf16.mxu0 0
      %2613 = vmatpush1.bf16.msra.mxu0 0
      %2614 = vmatprep.subr.bf16.mxu0 0
      %2615 = vmatpush1.bf16.msra.mxu0 0
      %2616 = vmatprep.mubr.bf16.mxu0 0
      %2617 = vmatmul.mubr.bf16.gmra.mrb[0].mxu0 %v2582
      %v2618 = vpop.f32.mrb[0].mxu0
      %v2619 = vadd.f32 %v2575, %v2618
      %v2620 = vpop.f32.mrb[0].mxu0
      %v2621 = vpop.f32.mrb[0].mxu0
      %v2622 = vadd.f32 %v2578, %v2621
      %v2623 = vpop.f32.mrb[0].mxu0
      %2624 = vdwg.mxu0
      %v2625 = vld [vmem:[%s1901 + $0x2] sm:$0xff]
      %v2626 = vld [vmem:[%s1901 + $0xa] sm:$0x3f]
      %v2627 = vpack.c.bf16 %v2626, %v2625
      %v2629 = vsel %vm194, %v2627, 0
      %2631 = vmatprep.subr.bf16.mxu0 0
      %2632 = vmatpush1.bf16.msra.mxu0 %v297
      %2633 = vmatprep.subr.bf16.mxu0 0
      %2634 = vmatpush1.bf16.msra.mxu0 0
      %2635 = vmatprep.subr.bf16.mxu0 0
      %2636 = vmatpush1.bf16.msra.mxu0 0
      %2637 = vmatprep.subr.bf16.mxu0 0
      %2638 = vmatpush1.bf16.msra.mxu0 0
      %2639 = vmatprep.subr.bf16.mxu0 0
      %2640 = vmatpush1.bf16.msra.mxu0 0
      %2641 = vmatprep.subr.bf16.mxu0 0
      %2642 = vmatpush1.bf16.msra.mxu0 0
      %2643 = vmatprep.subr.bf16.mxu0 0
      %2644 = vmatpush1.bf16.msra.mxu0 0
      %2645 = vmatprep.subr.bf16.mxu0 0
      %2646 = vmatpush1.bf16.msra.mxu0 0
      %2647 = vmatprep.subr.bf16.mxu0 0
      %2648 = vmatpush1.bf16.msra.mxu0 0
      %2649 = vmatprep.subr.bf16.mxu0 0
      %2650 = vmatpush1.bf16.msra.mxu0 0
      %2651 = vmatprep.subr.bf16.mxu0 0
      %2652 = vmatpush1.bf16.msra.mxu0 0
      %2653 = vmatprep.subr.bf16.mxu0 0
      %2654 = vmatpush1.bf16.msra.mxu0 0
      %2655 = vmatprep.subr.bf16.mxu0 0
      %2656 = vmatpush1.bf16.msra.mxu0 0
      %2657 = vmatprep.subr.bf16.mxu0 0
      %2658 = vmatpush1.bf16.msra.mxu0 0
      %2659 = vmatprep.subr.bf16.mxu0 0
      %2660 = vmatpush1.bf16.msra.mxu0 0
      %2661 = vmatprep.subr.bf16.mxu0 0
      %2662 = vmatpush1.bf16.msra.mxu0 0
      %2663 = vmatprep.mubr.bf16.mxu0 0
      %2664 = vmatmul.mubr.bf16.gmra.mrb[0].mxu0 %v2629
      %v2665 = vpop.f32.mrb[0].mxu0
      %v2666 = vadd.f32 0.0, %v2665
      %v2667 = vpop.f32.mrb[0].mxu0
      %v2668 = vpop.f32.mrb[0].mxu0
      %v2669 = vadd.f32 0.0, %v2668
      %v2670 = vpop.f32.mrb[0].mxu0
      %2671 = vdwg.mxu0
      %v2672 = vadd.f32 %v2619, %v2666
      %v2673 = vadd.f32 %v2622, %v2669
      %v2674 = vld [vmem:[%s2361] sm:$0xff]
      %v2675 = vld [vmem:[%s2361 + $0x8] sm:$0x3f]
      %v2676 = vpack.c.bf16 %v2675, %v2674
      %v2678 = vsel %vm194, %v2676, 0
      %2680 = vmatprep.subr.bf16.mxu0 0
      %2681 = vmatpush1.bf16.msra.mxu0 %v354
      %2682 = vmatprep.subr.bf16.mxu0 0
      %2683 = vmatpush1.bf16.msra.mxu0 0
      %2684 = vmatprep.subr.bf16.mxu0 0
      %2685 = vmatpush1.bf16.msra.mxu0 0
      %2686 = vmatprep.subr.bf16.mxu0 0
      %2687 = vmatpush1.bf16.msra.mxu0 0
      %2688 = vmatprep.subr.bf16.mxu0 0
      %2689 = vmatpush1.bf16.msra.mxu0 0
      %2690 = vmatprep.subr.bf16.mxu0 0
      %2691 = vmatpush1.bf16.msra.mxu0 0
      %2692 = vmatprep.subr.bf16.mxu0 0
      %2693 = vmatpush1.bf16.msra.mxu0 0
      %2694 = vmatprep.subr.bf16.mxu0 0
      %2695 = vmatpush1.bf16.msra.mxu0 0
      %2696 = vmatprep.subr.bf16.mxu0 0
      %2697 = vmatpush1.bf16.msra.mxu0 0
      %2698 = vmatprep.subr.bf16.mxu0 0
      %2699 = vmatpush1.bf16.msra.mxu0 0
      %2700 = vmatprep.subr.bf16.mxu0 0
      %2701 = vmatpush1.bf16.msra.mxu0 0
      %2702 = vmatprep.subr.bf16.mxu0 0
      %2703 = vmatpush1.bf16.msra.mxu0 0
      %2704 = vmatprep.subr.bf16.mxu0 0
      %2705 = vmatpush1.bf16.msra.mxu0 0
      %2706 = vmatprep.subr.bf16.mxu0 0
      %2707 = vmatpush1.bf16.msra.mxu0 0
      %2708 = vmatprep.subr.bf16.mxu0 0
      %2709 = vmatpush1.bf16.msra.mxu0 0
      %2710 = vmatprep.subr.bf16.mxu0 0
      %2711 = vmatpush1.bf16.msra.mxu0 0
      %2712 = vmatprep.mubr.bf16.mxu0 0
      %2713 = vmatmul.mubr.bf16.gmra.mrb[0].mxu0 %v2678
      %v2714 = vpop.f32.mrb[0].mxu0
      %v2715 = vadd.f32 0.0, %v2714
      %v2716 = vpop.f32.mrb[0].mxu0
      %v2717 = vpop.f32.mrb[0].mxu0
      %v2718 = vadd.f32 0.0, %v2717
      %v2719 = vpop.f32.mrb[0].mxu0
      %2720 = vdwg.mxu0
      %v2721 = vadd.f32 %v2672, %v2715
      %v2722 = vadd.f32 %v2673, %v2718
      %v2723 = vld [vmem:[%s2361 + $0x1] sm:$0xff]
      %v2724 = vld [vmem:[%s2361 + $0x9] sm:$0x3f]
      %v2725 = vpack.c.bf16 %v2724, %v2723
      %v2727 = vsel %vm194, %v2725, 0
      %2729 = vmatprep.subr.bf16.mxu0 0
      %2730 = vmatpush1.bf16.msra.mxu0 %v406
      %2731 = vmatprep.subr.bf16.mxu0 0
      %2732 = vmatpush1.bf16.msra.mxu0 0
      %2733 = vmatprep.subr.bf16.mxu0 0
      %2734 = vmatpush1.bf16.msra.mxu0 0
      %2735 = vmatprep.subr.bf16.mxu0 0
      %2736 = vmatpush1.bf16.msra.mxu0 0
      %2737 = vmatprep.subr.bf16.mxu0 0
      %2738 = vmatpush1.bf16.msra.mxu0 0
      %2739 = vmatprep.subr.bf16.mxu0 0
      %2740 = vmatpush1.bf16.msra.mxu0 0
      %2741 = vmatprep.subr.bf16.mxu0 0
      %2742 = vmatpush1.bf16.msra.mxu0 0
      %2743 = vmatprep.subr.bf16.mxu0 0
      %2744 = vmatpush1.bf16.msra.mxu0 0
      %2745 = vmatprep.subr.bf16.mxu0 0
      %2746 = vmatpush1.bf16.msra.mxu0 0
      %2747 = vmatprep.subr.bf16.mxu0 0
      %2748 = vmatpush1.bf16.msra.mxu0 0
      %2749 = vmatprep.subr.bf16.mxu0 0
      %2750 = vmatpush1.bf16.msra.mxu0 0
      %2751 = vmatprep.subr.bf16.mxu0 0
      %2752 = vmatpush1.bf16.msra.mxu0 0
      %2753 = vmatprep.subr.bf16.mxu0 0
      %2754 = vmatpush1.bf16.msra.mxu0 0
      %2755 = vmatprep.subr.bf16.mxu0 0
      %2756 = vmatpush1.bf16.msra.mxu0 0
      %2757 = vmatprep.subr.bf16.mxu0 0
      %2758 = vmatpush1.bf16.msra.mxu0 0
      %2759 = vmatprep.subr.bf16.mxu0 0
      %2760 = vmatpush1.bf16.msra.mxu0 0
      %2761 = vmatprep.mubr.bf16.mxu0 0
      %2762 = vmatmul.mubr.bf16.gmra.mrb[0].mxu0 %v2727
      %v2763 = vpop.f32.mrb[0].mxu0
      %v2764 = vadd.f32 0.0, %v2763
      %v2765 = vpop.f32.mrb[0].mxu0
      %v2766 = vpop.f32.mrb[0].mxu0
      %v2767 = vadd.f32 0.0, %v2766
      %v2768 = vpop.f32.mrb[0].mxu0
      %2769 = vdwg.mxu0
      %v2770 = vadd.f32 %v2721, %v2764
      %v2771 = vadd.f32 %v2722, %v2767
      %v2772 = vld [vmem:[%s2361 + $0x2] sm:$0xff]
      %v2773 = vld [vmem:[%s2361 + $0xa] sm:$0x3f]
      %v2774 = vpack.c.bf16 %v2773, %v2772
      %v2776 = vsel %vm194, %v2774, 0
      %2778 = vmatprep.subr.bf16.mxu0 0
      %2779 = vmatpush1.bf16.msra.mxu0 %v462
      %2780 = vmatprep.subr.bf16.mxu0 0
      %2781 = vmatpush1.bf16.msra.mxu0 0
      %2782 = vmatprep.subr.bf16.mxu0 0
      %2783 = vmatpush1.bf16.msra.mxu0 0
      %2784 = vmatprep.subr.bf16.mxu0 0
      %2785 = vmatpush1.bf16.msra.mxu0 0
      %2786 = vmatprep.subr.bf16.mxu0 0
      %2787 = vmatpush1.bf16.msra.mxu0 0
      %2788 = vmatprep.subr.bf16.mxu0 0
      %2789 = vmatpush1.bf16.msra.mxu0 0
      %2790 = vmatprep.subr.bf16.mxu0 0
      %2791 = vmatpush1.bf16.msra.mxu0 0
      %2792 = vmatprep.subr.bf16.mxu0 0
      %2793 = vmatpush1.bf16.msra.mxu0 0
      %2794 = vmatprep.subr.bf16.mxu0 0
      %2795 = vmatpush1.bf16.msra.mxu0 0
      %2796 = vmatprep.subr.bf16.mxu0 0
      %2797 = vmatpush1.bf16.msra.mxu0 0
      %2798 = vmatprep.subr.bf16.mxu0 0
      %2799 = vmatpush1.bf16.msra.mxu0 0
      %2800 = vmatprep.subr.bf16.mxu0 0
      %2801 = vmatpush1.bf16.msra.mxu0 0
      %2802 = vmatprep.subr.bf16.mxu0 0
      %2803 = vmatpush1.bf16.msra.mxu0 0
      %2804 = vmatprep.subr.bf16.mxu0 0
      %2805 = vmatpush1.bf16.msra.mxu0 0
      %2806 = vmatprep.subr.bf16.mxu0 0
      %2807 = vmatpush1.bf16.msra.mxu0 0
      %2808 = vmatprep.subr.bf16.mxu0 0
      %2809 = vmatpush1.bf16.msra.mxu0 0
      %2810 = vmatprep.mubr.bf16.mxu0 0
      %2811 = vmatmul.mubr.bf16.gmra.mrb[0].mxu0 %v2776
      %v2812 = vpop.f32.mrb[0].mxu0
      %v2813 = vadd.f32 0.0, %v2812
      %v2814 = vpop.f32.mrb[0].mxu0
      %v2815 = vpop.f32.mrb[0].mxu0
      %v2816 = vadd.f32 0.0, %v2815
      %v2817 = vpop.f32.mrb[0].mxu0
      %2818 = vdwg.mxu0
      %v2819 = vadd.f32 %v2770, %v2813
      %v2820 = vadd.f32 %v2771, %v2816
      %s2821 = scalar_lea.vmem %s163, 112
      %v2822 = vld [vmem:[%s2821] sm:$0xff]
      %v2823 = vld [vmem:[%s2821 + $0x8] sm:$0x3f]
      %v2824 = vpack.c.bf16 %v2823, %v2822
      %v2826 = vsel %vm194, %v2824, 0
      %2828 = vmatprep.subr.bf16.mxu0 0
      %2829 = vmatpush1.bf16.msra.mxu0 %v515
      %2830 = vmatprep.subr.bf16.mxu0 0
      %2831 = vmatpush1.bf16.msra.mxu0 0
      %2832 = vmatprep.subr.bf16.mxu0 0
      %2833 = vmatpush1.bf16.msra.mxu0 0
      %2834 = vmatprep.subr.bf16.mxu0 0
      %2835 = vmatpush1.bf16.msra.mxu0 0
      %2836 = vmatprep.subr.bf16.mxu0 0
      %2837 = vmatpush1.bf16.msra.mxu0 0
      %2838 = vmatprep.subr.bf16.mxu0 0
      %2839 = vmatpush1.bf16.msra.mxu0 0
      %2840 = vmatprep.subr.bf16.mxu0 0
      %2841 = vmatpush1.bf16.msra.mxu0 0
      %2842 = vmatprep.subr.bf16.mxu0 0
      %2843 = vmatpush1.bf16.msra.mxu0 0
      %2844 = vmatprep.subr.bf16.mxu0 0
      %2845 = vmatpush1.bf16.msra.mxu0 0
      %2846 = vmatprep.subr.bf16.mxu0 0
      %2847 = vmatpush1.bf16.msra.mxu0 0
      %2848 = vmatprep.subr.bf16.mxu0 0
      %2849 = vmatpush1.bf16.msra.mxu0 0
      %2850 = vmatprep.subr.bf16.mxu0 0
      %2851 = vmatpush1.bf16.msra.mxu0 0
      %2852 = vmatprep.subr.bf16.mxu0 0
      %2853 = vmatpush1.bf16.msra.mxu0 0
      %2854 = vmatprep.subr.bf16.mxu0 0
      %2855 = vmatpush1.bf16.msra.mxu0 0
      %2856 = vmatprep.subr.bf16.mxu0 0
      %2857 = vmatpush1.bf16.msra.mxu0 0
      %2858 = vmatprep.subr.bf16.mxu0 0
      %2859 = vmatpush1.bf16.msra.mxu0 0
      %2860 = vmatprep.mubr.bf16.mxu0 0
      %2861 = vmatmul.mubr.bf16.gmra.mrb[0].mxu0 %v2826
      %v2862 = vpop.f32.mrb[0].mxu0
      %v2863 = vadd.f32 0.0, %v2862
      %v2864 = vpop.f32.mrb[0].mxu0
      %v2865 = vpop.f32.mrb[0].mxu0
      %v2866 = vadd.f32 0.0, %v2865
      %v2867 = vpop.f32.mrb[0].mxu0
      %2868 = vdwg.mxu0
      %v2869 = vadd.f32 %v2819, %v2863
      %v2870 = vadd.f32 %v2820, %v2866
      %v2871 = vld [vmem:[%s2821 + $0x1] sm:$0xff]
      %v2872 = vld [vmem:[%s2821 + $0x9] sm:$0x3f]
      %v2873 = vpack.c.bf16 %v2872, %v2871
      %v2875 = vsel %vm194, %v2873, 0
      %2877 = vmatprep.subr.bf16.mxu0 0
      %2878 = vmatpush1.bf16.msra.mxu0 %v571
      %2879 = vmatprep.subr.bf16.mxu0 0
      %2880 = vmatpush1.bf16.msra.mxu0 0
      %2881 = vmatprep.subr.bf16.mxu0 0
      %2882 = vmatpush1.bf16.msra.mxu0 0
      %2883 = vmatprep.subr.bf16.mxu0 0
      %2884 = vmatpush1.bf16.msra.mxu0 0
      %2885 = vmatprep.subr.bf16.mxu0 0
      %2886 = vmatpush1.bf16.msra.mxu0 0
      %2887 = vmatprep.subr.bf16.mxu0 0
      %2888 = vmatpush1.bf16.msra.mxu0 0
      %2889 = vmatprep.subr.bf16.mxu0 0
      %2890 = vmatpush1.bf16.msra.mxu0 0
      %2891 = vmatprep.subr.bf16.mxu0 0
      %2892 = vmatpush1.bf16.msra.mxu0 0
      %2893 = vmatprep.subr.bf16.mxu0 0
      %2894 = vmatpush1.bf16.msra.mxu0 0
      %2895 = vmatprep.subr.bf16.mxu0 0
      %2896 = vmatpush1.bf16.msra.mxu0 0
      %2897 = vmatprep.subr.bf16.mxu0 0
      %2898 = vmatpush1.bf16.msra.mxu0 0
      %2899 = vmatprep.subr.bf16.mxu0 0
      %2900 = vmatpush1.bf16.msra.mxu0 0
      %2901 = vmatprep.subr.bf16.mxu0 0
      %2902 = vmatpush1.bf16.msra.mxu0 0
      %2903 = vmatprep.subr.bf16.mxu0 0
      %2904 = vmatpush1.bf16.msra.mxu0 0
      %2905 = vmatprep.subr.bf16.mxu0 0
      %2906 = vmatpush1.bf16.msra.mxu0 0
      %2907 = vmatprep.subr.bf16.mxu0 0
      %2908 = vmatpush1.bf16.msra.mxu0 0
      %2909 = vmatprep.mubr.bf16.mxu0 0
      %2910 = vmatmul.mubr.bf16.gmra.mrb[0].mxu0 %v2875
      %v2911 = vpop.f32.mrb[0].mxu0
      %v2912 = vadd.f32 0.0, %v2911
      %v2913 = vpop.f32.mrb[0].mxu0
      %v2914 = vpop.f32.mrb[0].mxu0
      %v2915 = vadd.f32 0.0, %v2914
      %v2916 = vpop.f32.mrb[0].mxu0
      %2917 = vdwg.mxu0
      %v2918 = vadd.f32 %v2869, %v2912
      %v2919 = vadd.f32 %v2870, %v2915
      %v2920 = vld [vmem:[%s2821 + $0x2] sm:$0xff]
      %v2921 = vld [vmem:[%s2821 + $0xa] sm:$0x3f]
      %v2922 = vpack.c.bf16 %v2921, %v2920
      %v2924 = vsel %vm194, %v2922, 0
      %2926 = vmatprep.subr.bf16.mxu0 0
      %2927 = vmatpush1.bf16.msra.mxu0 %v623
      %2928 = vmatprep.subr.bf16.mxu0 0
      %2929 = vmatpush1.bf16.msra.mxu0 0
      %2930 = vmatprep.subr.bf16.mxu0 0
      %2931 = vmatpush1.bf16.msra.mxu0 0
      %2932 = vmatprep.subr.bf16.mxu0 0
      %2933 = vmatpush1.bf16.msra.mxu0 0
      %2934 = vmatprep.subr.bf16.mxu0 0
      %2935 = vmatpush1.bf16.msra.mxu0 0
      %2936 = vmatprep.subr.bf16.mxu0 0
      %2937 = vmatpush1.bf16.msra.mxu0 0
      %2938 = vmatprep.subr.bf16.mxu0 0
      %2939 = vmatpush1.bf16.msra.mxu0 0
      %2940 = vmatprep.subr.bf16.mxu0 0
      %2941 = vmatpush1.bf16.msra.mxu0 0
      %2942 = vmatprep.subr.bf16.mxu0 0
      %2943 = vmatpush1.bf16.msra.mxu0 0
      %2944 = vmatprep.subr.bf16.mxu0 0
      %2945 = vmatpush1.bf16.msra.mxu0 0
      %2946 = vmatprep.subr.bf16.mxu0 0
      %2947 = vmatpush1.bf16.msra.mxu0 0
      %2948 = vmatprep.subr.bf16.mxu0 0
      %2949 = vmatpush1.bf16.msra.mxu0 0
      %2950 = vmatprep.subr.bf16.mxu0 0
      %2951 = vmatpush1.bf16.msra.mxu0 0
      %2952 = vmatprep.subr.bf16.mxu0 0
      %2953 = vmatpush1.bf16.msra.mxu0 0
      %2954 = vmatprep.subr.bf16.mxu0 0
      %2955 = vmatpush1.bf16.msra.mxu0 0
      %2956 = vmatprep.subr.bf16.mxu0 0
      %2957 = vmatpush1.bf16.msra.mxu0 0
      %2958 = vmatprep.mubr.bf16.mxu0 0
      %2959 = vmatmul.mubr.bf16.gmra.mrb[0].mxu0 %v2924
      %v2960 = vpop.f32.mrb[0].mxu0
      %v2961 = vadd.f32 0.0, %v2960
      %v2962 = vpop.f32.mrb[0].mxu0
      %v2963 = vpop.f32.mrb[0].mxu0
      %v2964 = vadd.f32 0.0, %v2963
      %v2965 = vpop.f32.mrb[0].mxu0
      %2966 = vdwg.mxu0
      %v2967 = vadd.f32 %v2918, %v2961
      %v2968 = vadd.f32 %v2919, %v2964
      %2969 = vst [vmem:[%s168 + $0x46] sm:$0xff] %v2967
      %2970 = vst [vmem:[%s168 + $0x4e] sm:$0x3f] %v2968
      %v2971 = vsel %vm670, %v2968, 0.0
      %v2972 = vadd.f32 %v2967, %v2971
      %v2973 = vrot.slane %v2972, 4
      %v2974 = vadd.f32 %v2972, %v2973
      %v2975 = vrot.slane %v2974, 2
      %v2976 = vadd.f32 %v2974, %v2975
      %v2977 = vrot.slane %v2976, 1
      %v2978 = vadd.f32 %v2976, %v2977
      %v2979 = vadd.f32 %v2519, %v2978
      %v2980 = vmul.f32 %v2967, %v2967
      %v2981 = vmul.f32 %v2968, %v2968
      %v2982 = vsel %vm670, %v2981, 0.0
      %v2983 = vadd.f32 %v2980, %v2982
      %v2984 = vrot.slane %v2983, 4
      %v2985 = vadd.f32 %v2983, %v2984
      %v2986 = vrot.slane %v2985, 2
      %v2987 = vadd.f32 %v2985, %v2986
      %v2988 = vrot.slane %v2987, 1
      %v2989 = vadd.f32 %v2987, %v2988
      %v2990 = vadd.f32 %v2530, %v2989
      %v2991 = vld [vmem:[%s2361] sm:$0xff]
      %v2992 = vld [vmem:[%s2361 + $0x8] sm:$0x3f]
      %v2993 = vpack.c.bf16 %v2992, %v2991
      %v2994 = vld [vmem:[%s2361 + $0x1] sm:$0xff]
      %v2995 = vld [vmem:[%s2361 + $0x9] sm:$0x3f]
      %v2996 = vpack.c.bf16 %v2995, %v2994
      %v2998 = vsel %vm194, %v2996, 0
      %3000 = vmatprep.subr.bf16.mxu0 0
      %3001 = vmatpush1.bf16.msra.mxu0 %v200
      %3002 = vmatprep.subr.bf16.mxu0 0
      %3003 = vmatpush1.bf16.msra.mxu0 0
      %3004 = vmatprep.subr.bf16.mxu0 0
      %3005 = vmatpush1.bf16.msra.mxu0 0
      %3006 = vmatprep.subr.bf16.mxu0 0
      %3007 = vmatpush1.bf16.msra.mxu0 0
      %3008 = vmatprep.subr.bf16.mxu0 0
      %3009 = vmatpush1.bf16.msra.mxu0 0
      %3010 = vmatprep.subr.bf16.mxu0 0
      %3011 = vmatpush1.bf16.msra.mxu0 0
      %3012 = vmatprep.subr.bf16.mxu0 0
      %3013 = vmatpush1.bf16.msra.mxu0 0
      %3014 = vmatprep.subr.bf16.mxu0 0
      %3015 = vmatpush1.bf16.msra.mxu0 0
      %3016 = vmatprep.subr.bf16.mxu0 0
      %3017 = vmatpush1.bf16.msra.mxu0 0
      %3018 = vmatprep.subr.bf16.mxu0 0
      %3019 = vmatpush1.bf16.msra.mxu0 0
      %3020 = vmatprep.subr.bf16.mxu0 0
      %3021 = vmatpush1.bf16.msra.mxu0 0
      %3022 = vmatprep.subr.bf16.mxu0 0
      %3023 = vmatpush1.bf16.msra.mxu0 0
      %3024 = vmatprep.subr.bf16.mxu0 0
      %3025 = vmatpush1.bf16.msra.mxu0 0
      %3026 = vmatprep.subr.bf16.mxu0 0
      %3027 = vmatpush1.bf16.msra.mxu0 0
      %3028 = vmatprep.subr.bf16.mxu0 0
      %3029 = vmatpush1.bf16.msra.mxu0 0
      %3030 = vmatprep.subr.bf16.mxu0 0
      %3031 = vmatpush1.bf16.msra.mxu0 0
      %3032 = vmatprep.mubr.bf16.mxu0 0
      %3033 = vmatmul.mubr.bf16.gmra.mrb[0].mxu0 %v2998
      %v3034 = vpop.f32.mrb[0].mxu0
      %v3035 = vadd.f32 0.0, %v3034
      %v3036 = vpop.f32.mrb[0].mxu0
      %v3037 = vpop.f32.mrb[0].mxu0
      %v3038 = vadd.f32 0.0, %v3037
      %v3039 = vpop.f32.mrb[0].mxu0
      %3040 = vdwg.mxu0
      %v3042 = vsel %vm194, %v2993, 0
      %3044 = vmatprep.subr.bf16.mxu0 0
      %3045 = vmatpush1.bf16.msra.mxu0 %v247
      %3046 = vmatprep.subr.bf16.mxu0 0
      %3047 = vmatpush1.bf16.msra.mxu0 0
      %3048 = vmatprep.subr.bf16.mxu0 0
      %3049 = vmatpush1.bf16.msra.mxu0 0
      %3050 = vmatprep.subr.bf16.mxu0 0
      %3051 = vmatpush1.bf16.msra.mxu0 0
      %3052 = vmatprep.subr.bf16.mxu0 0
      %3053 = vmatpush1.bf16.msra.mxu0 0
      %3054 = vmatprep.subr.bf16.mxu0 0
      %3055 = vmatpush1.bf16.msra.mxu0 0
      %3056 = vmatprep.subr.bf16.mxu0 0
      %3057 = vmatpush1.bf16.msra.mxu0 0
      %3058 = vmatprep.subr.bf16.mxu0 0
      %3059 = vmatpush1.bf16.msra.mxu0 0
      %3060 = vmatprep.subr.bf16.mxu0 0
      %3061 = vmatpush1.bf16.msra.mxu0 0
      %3062 = vmatprep.subr.bf16.mxu0 0
      %3063 = vmatpush1.bf16.msra.mxu0 0
      %3064 = vmatprep.subr.bf16.mxu0 0
      %3065 = vmatpush1.bf16.msra.mxu0 0
      %3066 = vmatprep.subr.bf16.mxu0 0
      %3067 = vmatpush1.bf16.msra.mxu0 0
      %3068 = vmatprep.subr.bf16.mxu0 0
      %3069 = vmatpush1.bf16.msra.mxu0 0
      %3070 = vmatprep.subr.bf16.mxu0 0
      %3071 = vmatpush1.bf16.msra.mxu0 0
      %3072 = vmatprep.subr.bf16.mxu0 0
      %3073 = vmatpush1.bf16.msra.mxu0 0
      %3074 = vmatprep.subr.bf16.mxu0 0
      %3075 = vmatpush1.bf16.msra.mxu0 0
      %3076 = vmatprep.mubr.bf16.mxu0 0
      %3077 = vmatmul.mubr.bf16.gmra.mrb[0].mxu0 %v3042
      %v3078 = vpop.f32.mrb[0].mxu0
      %v3079 = vadd.f32 %v3035, %v3078
      %v3080 = vpop.f32.mrb[0].mxu0
      %v3081 = vpop.f32.mrb[0].mxu0
      %v3082 = vadd.f32 %v3038, %v3081
      %v3083 = vpop.f32.mrb[0].mxu0
      %3084 = vdwg.mxu0
      %v3085 = vld [vmem:[%s2361 + $0x2] sm:$0xff]
      %v3086 = vld [vmem:[%s2361 + $0xa] sm:$0x3f]
      %v3087 = vpack.c.bf16 %v3086, %v3085
      %v3089 = vsel %vm194, %v3087, 0
      %3091 = vmatprep.subr.bf16.mxu0 0
      %3092 = vmatpush1.bf16.msra.mxu0 %v297
      %3093 = vmatprep.subr.bf16.mxu0 0
      %3094 = vmatpush1.bf16.msra.mxu0 0
      %3095 = vmatprep.subr.bf16.mxu0 0
      %3096 = vmatpush1.bf16.msra.mxu0 0
      %3097 = vmatprep.subr.bf16.mxu0 0
      %3098 = vmatpush1.bf16.msra.mxu0 0
      %3099 = vmatprep.subr.bf16.mxu0 0
      %3100 = vmatpush1.bf16.msra.mxu0 0
      %3101 = vmatprep.subr.bf16.mxu0 0
      %3102 = vmatpush1.bf16.msra.mxu0 0
      %3103 = vmatprep.subr.bf16.mxu0 0
      %3104 = vmatpush1.bf16.msra.mxu0 0
      %3105 = vmatprep.subr.bf16.mxu0 0
      %3106 = vmatpush1.bf16.msra.mxu0 0
      %3107 = vmatprep.subr.bf16.mxu0 0
      %3108 = vmatpush1.bf16.msra.mxu0 0
      %3109 = vmatprep.subr.bf16.mxu0 0
      %3110 = vmatpush1.bf16.msra.mxu0 0
      %3111 = vmatprep.subr.bf16.mxu0 0
      %3112 = vmatpush1.bf16.msra.mxu0 0
      %3113 = vmatprep.subr.bf16.mxu0 0
      %3114 = vmatpush1.bf16.msra.mxu0 0
      %3115 = vmatprep.subr.bf16.mxu0 0
      %3116 = vmatpush1.bf16.msra.mxu0 0
      %3117 = vmatprep.subr.bf16.mxu0 0
      %3118 = vmatpush1.bf16.msra.mxu0 0
      %3119 = vmatprep.subr.bf16.mxu0 0
      %3120 = vmatpush1.bf16.msra.mxu0 0
      %3121 = vmatprep.subr.bf16.mxu0 0
      %3122 = vmatpush1.bf16.msra.mxu0 0
      %3123 = vmatprep.mubr.bf16.mxu0 0
      %3124 = vmatmul.mubr.bf16.gmra.mrb[0].mxu0 %v3089
      %v3125 = vpop.f32.mrb[0].mxu0
      %v3126 = vadd.f32 0.0, %v3125
      %v3127 = vpop.f32.mrb[0].mxu0
      %v3128 = vpop.f32.mrb[0].mxu0
      %v3129 = vadd.f32 0.0, %v3128
      %v3130 = vpop.f32.mrb[0].mxu0
      %3131 = vdwg.mxu0
      %v3132 = vadd.f32 %v3079, %v3126
      %v3133 = vadd.f32 %v3082, %v3129
      %v3134 = vld [vmem:[%s2821] sm:$0xff]
      %v3135 = vld [vmem:[%s2821 + $0x8] sm:$0x3f]
      %v3136 = vpack.c.bf16 %v3135, %v3134
      %v3138 = vsel %vm194, %v3136, 0
      %3140 = vmatprep.subr.bf16.mxu0 0
      %3141 = vmatpush1.bf16.msra.mxu0 %v354
      %3142 = vmatprep.subr.bf16.mxu0 0
      %3143 = vmatpush1.bf16.msra.mxu0 0
      %3144 = vmatprep.subr.bf16.mxu0 0
      %3145 = vmatpush1.bf16.msra.mxu0 0
      %3146 = vmatprep.subr.bf16.mxu0 0
      %3147 = vmatpush1.bf16.msra.mxu0 0
      %3148 = vmatprep.subr.bf16.mxu0 0
      %3149 = vmatpush1.bf16.msra.mxu0 0
      %3150 = vmatprep.subr.bf16.mxu0 0
      %3151 = vmatpush1.bf16.msra.mxu0 0
      %3152 = vmatprep.subr.bf16.mxu0 0
      %3153 = vmatpush1.bf16.msra.mxu0 0
      %3154 = vmatprep.subr.bf16.mxu0 0
      %3155 = vmatpush1.bf16.msra.mxu0 0
      %3156 = vmatprep.subr.bf16.mxu0 0
      %3157 = vmatpush1.bf16.msra.mxu0 0
      %3158 = vmatprep.subr.bf16.mxu0 0
      %3159 = vmatpush1.bf16.msra.mxu0 0
      %3160 = vmatprep.subr.bf16.mxu0 0
      %3161 = vmatpush1.bf16.msra.mxu0 0
      %3162 = vmatprep.subr.bf16.mxu0 0
      %3163 = vmatpush1.bf16.msra.mxu0 0
      %3164 = vmatprep.subr.bf16.mxu0 0
      %3165 = vmatpush1.bf16.msra.mxu0 0
      %3166 = vmatprep.subr.bf16.mxu0 0
      %3167 = vmatpush1.bf16.msra.mxu0 0
      %3168 = vmatprep.subr.bf16.mxu0 0
      %3169 = vmatpush1.bf16.msra.mxu0 0
      %3170 = vmatprep.subr.bf16.mxu0 0
      %3171 = vmatpush1.bf16.msra.mxu0 0
      %3172 = vmatprep.mubr.bf16.mxu0 0
      %3173 = vmatmul.mubr.bf16.gmra.mrb[0].mxu0 %v3138
      %v3174 = vpop.f32.mrb[0].mxu0
      %v3175 = vadd.f32 0.0, %v3174
      %v3176 = vpop.f32.mrb[0].mxu0
      %v3177 = vpop.f32.mrb[0].mxu0
      %v3178 = vadd.f32 0.0, %v3177
      %v3179 = vpop.f32.mrb[0].mxu0
      %3180 = vdwg.mxu0
      %v3181 = vadd.f32 %v3132, %v3175
      %v3182 = vadd.f32 %v3133, %v3178
      %v3183 = vld [vmem:[%s2821 + $0x1] sm:$0xff]
      %v3184 = vld [vmem:[%s2821 + $0x9] sm:$0x3f]
      %v3185 = vpack.c.bf16 %v3184, %v3183
      %v3187 = vsel %vm194, %v3185, 0
      %3189 = vmatprep.subr.bf16.mxu0 0
      %3190 = vmatpush1.bf16.msra.mxu0 %v406
      %3191 = vmatprep.subr.bf16.mxu0 0
      %3192 = vmatpush1.bf16.msra.mxu0 0
      %3193 = vmatprep.subr.bf16.mxu0 0
      %3194 = vmatpush1.bf16.msra.mxu0 0
      %3195 = vmatprep.subr.bf16.mxu0 0
      %3196 = vmatpush1.bf16.msra.mxu0 0
      %3197 = vmatprep.subr.bf16.mxu0 0
      %3198 = vmatpush1.bf16.msra.mxu0 0
      %3199 = vmatprep.subr.bf16.mxu0 0
      %3200 = vmatpush1.bf16.msra.mxu0 0
      %3201 = vmatprep.subr.bf16.mxu0 0
      %3202 = vmatpush1.bf16.msra.mxu0 0
      %3203 = vmatprep.subr.bf16.mxu0 0
      %3204 = vmatpush1.bf16.msra.mxu0 0
      %3205 = vmatprep.subr.bf16.mxu0 0
      %3206 = vmatpush1.bf16.msra.mxu0 0
      %3207 = vmatprep.subr.bf16.mxu0 0
      %3208 = vmatpush1.bf16.msra.mxu0 0
      %3209 = vmatprep.subr.bf16.mxu0 0
      %3210 = vmatpush1.bf16.msra.mxu0 0
      %3211 = vmatprep.subr.bf16.mxu0 0
      %3212 = vmatpush1.bf16.msra.mxu0 0
      %3213 = vmatprep.subr.bf16.mxu0 0
      %3214 = vmatpush1.bf16.msra.mxu0 0
      %3215 = vmatprep.subr.bf16.mxu0 0
      %3216 = vmatpush1.bf16.msra.mxu0 0
      %3217 = vmatprep.subr.bf16.mxu0 0
      %3218 = vmatpush1.bf16.msra.mxu0 0
      %3219 = vmatprep.subr.bf16.mxu0 0
      %3220 = vmatpush1.bf16.msra.mxu0 0
      %3221 = vmatprep.mubr.bf16.mxu0 0
      %3222 = vmatmul.mubr.bf16.gmra.mrb[0].mxu0 %v3187
      %v3223 = vpop.f32.mrb[0].mxu0
      %v3224 = vadd.f32 0.0, %v3223
      %v3225 = vpop.f32.mrb[0].mxu0
      %v3226 = vpop.f32.mrb[0].mxu0
      %v3227 = vadd.f32 0.0, %v3226
      %v3228 = vpop.f32.mrb[0].mxu0
      %3229 = vdwg.mxu0
      %v3230 = vadd.f32 %v3181, %v3224
      %v3231 = vadd.f32 %v3182, %v3227
      %v3232 = vld [vmem:[%s2821 + $0x2] sm:$0xff]
      %v3233 = vld [vmem:[%s2821 + $0xa] sm:$0x3f]
      %v3234 = vpack.c.bf16 %v3233, %v3232
      %v3236 = vsel %vm194, %v3234, 0
      %3238 = vmatprep.subr.bf16.mxu0 0
      %3239 = vmatpush1.bf16.msra.mxu0 %v462
      %3240 = vmatprep.subr.bf16.mxu0 0
      %3241 = vmatpush1.bf16.msra.mxu0 0
      %3242 = vmatprep.subr.bf16.mxu0 0
      %3243 = vmatpush1.bf16.msra.mxu0 0
      %3244 = vmatprep.subr.bf16.mxu0 0
      %3245 = vmatpush1.bf16.msra.mxu0 0
      %3246 = vmatprep.subr.bf16.mxu0 0
      %3247 = vmatpush1.bf16.msra.mxu0 0
      %3248 = vmatprep.subr.bf16.mxu0 0
      %3249 = vmatpush1.bf16.msra.mxu0 0
      %3250 = vmatprep.subr.bf16.mxu0 0
      %3251 = vmatpush1.bf16.msra.mxu0 0
      %3252 = vmatprep.subr.bf16.mxu0 0
      %3253 = vmatpush1.bf16.msra.mxu0 0
      %3254 = vmatprep.subr.bf16.mxu0 0
      %3255 = vmatpush1.bf16.msra.mxu0 0
      %3256 = vmatprep.subr.bf16.mxu0 0
      %3257 = vmatpush1.bf16.msra.mxu0 0
      %3258 = vmatprep.subr.bf16.mxu0 0
      %3259 = vmatpush1.bf16.msra.mxu0 0
      %3260 = vmatprep.subr.bf16.mxu0 0
      %3261 = vmatpush1.bf16.msra.mxu0 0
      %3262 = vmatprep.subr.bf16.mxu0 0
      %3263 = vmatpush1.bf16.msra.mxu0 0
      %3264 = vmatprep.subr.bf16.mxu0 0
      %3265 = vmatpush1.bf16.msra.mxu0 0
      %3266 = vmatprep.subr.bf16.mxu0 0
      %3267 = vmatpush1.bf16.msra.mxu0 0
      %3268 = vmatprep.subr.bf16.mxu0 0
      %3269 = vmatpush1.bf16.msra.mxu0 0
      %3270 = vmatprep.mubr.bf16.mxu0 0
      %3271 = vmatmul.mubr.bf16.gmra.mrb[0].mxu0 %v3236
      %v3272 = vpop.f32.mrb[0].mxu0
      %v3273 = vadd.f32 0.0, %v3272
      %v3274 = vpop.f32.mrb[0].mxu0
      %v3275 = vpop.f32.mrb[0].mxu0
      %v3276 = vadd.f32 0.0, %v3275
      %v3277 = vpop.f32.mrb[0].mxu0
      %3278 = vdwg.mxu0
      %v3279 = vadd.f32 %v3230, %v3273
      %v3280 = vadd.f32 %v3231, %v3276
      %s3281 = scalar_lea.vmem %s163, 128
      %v3282 = vld [vmem:[%s3281] sm:$0xff]
      %v3283 = vld [vmem:[%s3281 + $0x8] sm:$0x3f]
      %v3284 = vpack.c.bf16 %v3283, %v3282
      %v3286 = vsel %vm194, %v3284, 0
      %3288 = vmatprep.subr.bf16.mxu0 0
      %3289 = vmatpush1.bf16.msra.mxu0 %v515
      %3290 = vmatprep.subr.bf16.mxu0 0
      %3291 = vmatpush1.bf16.msra.mxu0 0
      %3292 = vmatprep.subr.bf16.mxu0 0
      %3293 = vmatpush1.bf16.msra.mxu0 0
      %3294 = vmatprep.subr.bf16.mxu0 0
      %3295 = vmatpush1.bf16.msra.mxu0 0
      %3296 = vmatprep.subr.bf16.mxu0 0
      %3297 = vmatpush1.bf16.msra.mxu0 0
      %3298 = vmatprep.subr.bf16.mxu0 0
      %3299 = vmatpush1.bf16.msra.mxu0 0
      %3300 = vmatprep.subr.bf16.mxu0 0
      %3301 = vmatpush1.bf16.msra.mxu0 0
      %3302 = vmatprep.subr.bf16.mxu0 0
      %3303 = vmatpush1.bf16.msra.mxu0 0
      %3304 = vmatprep.subr.bf16.mxu0 0
      %3305 = vmatpush1.bf16.msra.mxu0 0
      %3306 = vmatprep.subr.bf16.mxu0 0
      %3307 = vmatpush1.bf16.msra.mxu0 0
      %3308 = vmatprep.subr.bf16.mxu0 0
      %3309 = vmatpush1.bf16.msra.mxu0 0
      %3310 = vmatprep.subr.bf16.mxu0 0
      %3311 = vmatpush1.bf16.msra.mxu0 0
      %3312 = vmatprep.subr.bf16.mxu0 0
      %3313 = vmatpush1.bf16.msra.mxu0 0
      %3314 = vmatprep.subr.bf16.mxu0 0
      %3315 = vmatpush1.bf16.msra.mxu0 0
      %3316 = vmatprep.subr.bf16.mxu0 0
      %3317 = vmatpush1.bf16.msra.mxu0 0
      %3318 = vmatprep.subr.bf16.mxu0 0
      %3319 = vmatpush1.bf16.msra.mxu0 0
      %3320 = vmatprep.mubr.bf16.mxu0 0
      %3321 = vmatmul.mubr.bf16.gmra.mrb[0].mxu0 %v3286
      %v3322 = vpop.f32.mrb[0].mxu0
      %v3323 = vadd.f32 0.0, %v3322
      %v3324 = vpop.f32.mrb[0].mxu0
      %v3325 = vpop.f32.mrb[0].mxu0
      %v3326 = vadd.f32 0.0, %v3325
      %v3327 = vpop.f32.mrb[0].mxu0
      %3328 = vdwg.mxu0
      %v3329 = vadd.f32 %v3279, %v3323
      %v3330 = vadd.f32 %v3280, %v3326
      %v3331 = vld [vmem:[%s3281 + $0x1] sm:$0xff]
      %v3332 = vld [vmem:[%s3281 + $0x9] sm:$0x3f]
      %v3333 = vpack.c.bf16 %v3332, %v3331
      %v3335 = vsel %vm194, %v3333, 0
      %3337 = vmatprep.subr.bf16.mxu0 0
      %3338 = vmatpush1.bf16.msra.mxu0 %v571
      %3339 = vmatprep.subr.bf16.mxu0 0
      %3340 = vmatpush1.bf16.msra.mxu0 0
      %3341 = vmatprep.subr.bf16.mxu0 0
      %3342 = vmatpush1.bf16.msra.mxu0 0
      %3343 = vmatprep.subr.bf16.mxu0 0
      %3344 = vmatpush1.bf16.msra.mxu0 0
      %3345 = vmatprep.subr.bf16.mxu0 0
      %3346 = vmatpush1.bf16.msra.mxu0 0
      %3347 = vmatprep.subr.bf16.mxu0 0
      %3348 = vmatpush1.bf16.msra.mxu0 0
      %3349 = vmatprep.subr.bf16.mxu0 0
      %3350 = vmatpush1.bf16.msra.mxu0 0
      %3351 = vmatprep.subr.bf16.mxu0 0
      %3352 = vmatpush1.bf16.msra.mxu0 0
      %3353 = vmatprep.subr.bf16.mxu0 0
      %3354 = vmatpush1.bf16.msra.mxu0 0
      %3355 = vmatprep.subr.bf16.mxu0 0
      %3356 = vmatpush1.bf16.msra.mxu0 0
      %3357 = vmatprep.subr.bf16.mxu0 0
      %3358 = vmatpush1.bf16.msra.mxu0 0
      %3359 = vmatprep.subr.bf16.mxu0 0
      %3360 = vmatpush1.bf16.msra.mxu0 0
      %3361 = vmatprep.subr.bf16.mxu0 0
      %3362 = vmatpush1.bf16.msra.mxu0 0
      %3363 = vmatprep.subr.bf16.mxu0 0
      %3364 = vmatpush1.bf16.msra.mxu0 0
      %3365 = vmatprep.subr.bf16.mxu0 0
      %3366 = vmatpush1.bf16.msra.mxu0 0
      %3367 = vmatprep.subr.bf16.mxu0 0
      %3368 = vmatpush1.bf16.msra.mxu0 0
      %3369 = vmatprep.mubr.bf16.mxu0 0
      %3370 = vmatmul.mubr.bf16.gmra.mrb[0].mxu0 %v3335
      %v3371 = vpop.f32.mrb[0].mxu0
      %v3372 = vadd.f32 0.0, %v3371
      %v3373 = vpop.f32.mrb[0].mxu0
      %v3374 = vpop.f32.mrb[0].mxu0
      %v3375 = vadd.f32 0.0, %v3374
      %v3376 = vpop.f32.mrb[0].mxu0
      %3377 = vdwg.mxu0
      %v3378 = vadd.f32 %v3329, %v3372
      %v3379 = vadd.f32 %v3330, %v3375
      %v3380 = vld [vmem:[%s3281 + $0x2] sm:$0xff]
      %v3381 = vld [vmem:[%s3281 + $0xa] sm:$0x3f]
      %v3382 = vpack.c.bf16 %v3381, %v3380
      %v3384 = vsel %vm194, %v3382, 0
      %3386 = vmatprep.subr.bf16.mxu0 0
      %3387 = vmatpush1.bf16.msra.mxu0 %v623
      %3388 = vmatprep.subr.bf16.mxu0 0
      %3389 = vmatpush1.bf16.msra.mxu0 0
      %3390 = vmatprep.subr.bf16.mxu0 0
      %3391 = vmatpush1.bf16.msra.mxu0 0
      %3392 = vmatprep.subr.bf16.mxu0 0
      %3393 = vmatpush1.bf16.msra.mxu0 0
      %3394 = vmatprep.subr.bf16.mxu0 0
      %3395 = vmatpush1.bf16.msra.mxu0 0
      %3396 = vmatprep.subr.bf16.mxu0 0
      %3397 = vmatpush1.bf16.msra.mxu0 0
      %3398 = vmatprep.subr.bf16.mxu0 0
      %3399 = vmatpush1.bf16.msra.mxu0 0
      %3400 = vmatprep.subr.bf16.mxu0 0
      %3401 = vmatpush1.bf16.msra.mxu0 0
      %3402 = vmatprep.subr.bf16.mxu0 0
      %3403 = vmatpush1.bf16.msra.mxu0 0
      %3404 = vmatprep.subr.bf16.mxu0 0
      %3405 = vmatpush1.bf16.msra.mxu0 0
      %3406 = vmatprep.subr.bf16.mxu0 0
      %3407 = vmatpush1.bf16.msra.mxu0 0
      %3408 = vmatprep.subr.bf16.mxu0 0
      %3409 = vmatpush1.bf16.msra.mxu0 0
      %3410 = vmatprep.subr.bf16.mxu0 0
      %3411 = vmatpush1.bf16.msra.mxu0 0
      %3412 = vmatprep.subr.bf16.mxu0 0
      %3413 = vmatpush1.bf16.msra.mxu0 0
      %3414 = vmatprep.subr.bf16.mxu0 0
      %3415 = vmatpush1.bf16.msra.mxu0 0
      %3416 = vmatprep.subr.bf16.mxu0 0
      %3417 = vmatpush1.bf16.msra.mxu0 0
      %3418 = vmatprep.mubr.bf16.mxu0 0
      %3419 = vmatmul.mubr.bf16.gmra.mrb[0].mxu0 %v3384
      %v3420 = vpop.f32.mrb[0].mxu0
      %v3421 = vadd.f32 0.0, %v3420
      %v3422 = vpop.f32.mrb[0].mxu0
      %v3423 = vpop.f32.mrb[0].mxu0
      %v3424 = vadd.f32 0.0, %v3423
      %v3425 = vpop.f32.mrb[0].mxu0
      %3426 = vdwg.mxu0
      %v3427 = vadd.f32 %v3378, %v3421
      %v3428 = vadd.f32 %v3379, %v3424
      %3429 = vst [vmem:[%s168 + $0x54] sm:$0xff] %v3427
      %3430 = vst [vmem:[%s168 + $0x5c] sm:$0x3f] %v3428
      %v3431 = vsel %vm670, %v3428, 0.0
      %v3432 = vadd.f32 %v3427, %v3431
      %v3433 = vrot.slane %v3432, 4
      %v3434 = vadd.f32 %v3432, %v3433
      %v3435 = vrot.slane %v3434, 2
      %v3436 = vadd.f32 %v3434, %v3435
      %v3437 = vrot.slane %v3436, 1
      %v3438 = vadd.f32 %v3436, %v3437
      %v3439 = vadd.f32 %v2979, %v3438
      %v3440 = vmul.f32 %v3427, %v3427
      %v3441 = vmul.f32 %v3428, %v3428
      %v3442 = vsel %vm670, %v3441, 0.0
      %v3443 = vadd.f32 %v3440, %v3442
      %v3444 = vrot.slane %v3443, 4
      %v3445 = vadd.f32 %v3443, %v3444
      %v3446 = vrot.slane %v3445, 2
      %v3447 = vadd.f32 %v3445, %v3446
      %v3448 = vrot.slane %v3447, 1
      %v3449 = vadd.f32 %v3447, %v3448
      %v3450 = vadd.f32 %v2990, %v3449
      %v3451 = vld [vmem:[%s2821] sm:$0xff]
      %v3452 = vld [vmem:[%s2821 + $0x8] sm:$0x3f]
      %v3453 = vpack.c.bf16 %v3452, %v3451
      %v3454 = vld [vmem:[%s2821 + $0x1] sm:$0xff]
      %v3455 = vld [vmem:[%s2821 + $0x9] sm:$0x3f]
      %v3456 = vpack.c.bf16 %v3455, %v3454
      %v3458 = vsel %vm194, %v3456, 0
      %3460 = vmatprep.subr.bf16.mxu0 0
      %3461 = vmatpush1.bf16.msra.mxu0 %v200
      %3462 = vmatprep.subr.bf16.mxu0 0
      %3463 = vmatpush1.bf16.msra.mxu0 0
      %3464 = vmatprep.subr.bf16.mxu0 0
      %3465 = vmatpush1.bf16.msra.mxu0 0
      %3466 = vmatprep.subr.bf16.mxu0 0
      %3467 = vmatpush1.bf16.msra.mxu0 0
      %3468 = vmatprep.subr.bf16.mxu0 0
      %3469 = vmatpush1.bf16.msra.mxu0 0
      %3470 = vmatprep.subr.bf16.mxu0 0
      %3471 = vmatpush1.bf16.msra.mxu0 0
      %3472 = vmatprep.subr.bf16.mxu0 0
      %3473 = vmatpush1.bf16.msra.mxu0 0
      %3474 = vmatprep.subr.bf16.mxu0 0
      %3475 = vmatpush1.bf16.msra.mxu0 0
      %3476 = vmatprep.subr.bf16.mxu0 0
      %3477 = vmatpush1.bf16.msra.mxu0 0
      %3478 = vmatprep.subr.bf16.mxu0 0
      %3479 = vmatpush1.bf16.msra.mxu0 0
      %3480 = vmatprep.subr.bf16.mxu0 0
      %3481 = vmatpush1.bf16.msra.mxu0 0
      %3482 = vmatprep.subr.bf16.mxu0 0
      %3483 = vmatpush1.bf16.msra.mxu0 0
      %3484 = vmatprep.subr.bf16.mxu0 0
      %3485 = vmatpush1.bf16.msra.mxu0 0
      %3486 = vmatprep.subr.bf16.mxu0 0
      %3487 = vmatpush1.bf16.msra.mxu0 0
      %3488 = vmatprep.subr.bf16.mxu0 0
      %3489 = vmatpush1.bf16.msra.mxu0 0
      %3490 = vmatprep.subr.bf16.mxu0 0
      %3491 = vmatpush1.bf16.msra.mxu0 0
      %3492 = vmatprep.mubr.bf16.mxu0 0
      %3493 = vmatmul.mubr.bf16.gmra.mrb[0].mxu0 %v3458
      %v3494 = vpop.f32.mrb[0].mxu0
      %v3495 = vadd.f32 0.0, %v3494
      %v3496 = vpop.f32.mrb[0].mxu0
      %v3497 = vpop.f32.mrb[0].mxu0
      %v3498 = vadd.f32 0.0, %v3497
      %v3499 = vpop.f32.mrb[0].mxu0
      %3500 = vdwg.mxu0
      %v3502 = vsel %vm194, %v3453, 0
      %3504 = vmatprep.subr.bf16.mxu0 0
      %3505 = vmatpush1.bf16.msra.mxu0 %v247
      %3506 = vmatprep.subr.bf16.mxu0 0
      %3507 = vmatpush1.bf16.msra.mxu0 0
      %3508 = vmatprep.subr.bf16.mxu0 0
      %3509 = vmatpush1.bf16.msra.mxu0 0
      %3510 = vmatprep.subr.bf16.mxu0 0
      %3511 = vmatpush1.bf16.msra.mxu0 0
      %3512 = vmatprep.subr.bf16.mxu0 0
      %3513 = vmatpush1.bf16.msra.mxu0 0
      %3514 = vmatprep.subr.bf16.mxu0 0
      %3515 = vmatpush1.bf16.msra.mxu0 0
      %3516 = vmatprep.subr.bf16.mxu0 0
      %3517 = vmatpush1.bf16.msra.mxu0 0
      %3518 = vmatprep.subr.bf16.mxu0 0
      %3519 = vmatpush1.bf16.msra.mxu0 0
      %3520 = vmatprep.subr.bf16.mxu0 0
      %3521 = vmatpush1.bf16.msra.mxu0 0
      %3522 = vmatprep.subr.bf16.mxu0 0
      %3523 = vmatpush1.bf16.msra.mxu0 0
      %3524 = vmatprep.subr.bf16.mxu0 0
      %3525 = vmatpush1.bf16.msra.mxu0 0
      %3526 = vmatprep.subr.bf16.mxu0 0
      %3527 = vmatpush1.bf16.msra.mxu0 0
      %3528 = vmatprep.subr.bf16.mxu0 0
      %3529 = vmatpush1.bf16.msra.mxu0 0
      %3530 = vmatprep.subr.bf16.mxu0 0
      %3531 = vmatpush1.bf16.msra.mxu0 0
      %3532 = vmatprep.subr.bf16.mxu0 0
      %3533 = vmatpush1.bf16.msra.mxu0 0
      %3534 = vmatprep.subr.bf16.mxu0 0
      %3535 = vmatpush1.bf16.msra.mxu0 0
      %3536 = vmatprep.mubr.bf16.mxu0 0
      %3537 = vmatmul.mubr.bf16.gmra.mrb[0].mxu0 %v3502
      %v3538 = vpop.f32.mrb[0].mxu0
      %v3539 = vadd.f32 %v3495, %v3538
      %v3540 = vpop.f32.mrb[0].mxu0
      %v3541 = vpop.f32.mrb[0].mxu0
      %v3542 = vadd.f32 %v3498, %v3541
      %v3543 = vpop.f32.mrb[0].mxu0
      %3544 = vdwg.mxu0
      %v3545 = vld [vmem:[%s2821 + $0x2] sm:$0xff]
      %v3546 = vld [vmem:[%s2821 + $0xa] sm:$0x3f]
      %v3547 = vpack.c.bf16 %v3546, %v3545
      %v3549 = vsel %vm194, %v3547, 0
      %3551 = vmatprep.subr.bf16.mxu0 0
      %3552 = vmatpush1.bf16.msra.mxu0 %v297
      %3553 = vmatprep.subr.bf16.mxu0 0
      %3554 = vmatpush1.bf16.msra.mxu0 0
      %3555 = vmatprep.subr.bf16.mxu0 0
      %3556 = vmatpush1.bf16.msra.mxu0 0
      %3557 = vmatprep.subr.bf16.mxu0 0
      %3558 = vmatpush1.bf16.msra.mxu0 0
      %3559 = vmatprep.subr.bf16.mxu0 0
      %3560 = vmatpush1.bf16.msra.mxu0 0
      %3561 = vmatprep.subr.bf16.mxu0 0
      %3562 = vmatpush1.bf16.msra.mxu0 0
      %3563 = vmatprep.subr.bf16.mxu0 0
      %3564 = vmatpush1.bf16.msra.mxu0 0
      %3565 = vmatprep.subr.bf16.mxu0 0
      %3566 = vmatpush1.bf16.msra.mxu0 0
      %3567 = vmatprep.subr.bf16.mxu0 0
      %3568 = vmatpush1.bf16.msra.mxu0 0
      %3569 = vmatprep.subr.bf16.mxu0 0
      %3570 = vmatpush1.bf16.msra.mxu0 0
      %3571 = vmatprep.subr.bf16.mxu0 0
      %3572 = vmatpush1.bf16.msra.mxu0 0
      %3573 = vmatprep.subr.bf16.mxu0 0
      %3574 = vmatpush1.bf16.msra.mxu0 0
      %3575 = vmatprep.subr.bf16.mxu0 0
      %3576 = vmatpush1.bf16.msra.mxu0 0
      %3577 = vmatprep.subr.bf16.mxu0 0
      %3578 = vmatpush1.bf16.msra.mxu0 0
      %3579 = vmatprep.subr.bf16.mxu0 0
      %3580 = vmatpush1.bf16.msra.mxu0 0
      %3581 = vmatprep.subr.bf16.mxu0 0
      %3582 = vmatpush1.bf16.msra.mxu0 0
      %3583 = vmatprep.mubr.bf16.mxu0 0
      %3584 = vmatmul.mubr.bf16.gmra.mrb[0].mxu0 %v3549
      %v3585 = vpop.f32.mrb[0].mxu0
      %v3586 = vadd.f32 0.0, %v3585
      %v3587 = vpop.f32.mrb[0].mxu0
      %v3588 = vpop.f32.mrb[0].mxu0
      %v3589 = vadd.f32 0.0, %v3588
      %v3590 = vpop.f32.mrb[0].mxu0
      %3591 = vdwg.mxu0
      %v3592 = vadd.f32 %v3539, %v3586
      %v3593 = vadd.f32 %v3542, %v3589
      %v3594 = vld [vmem:[%s3281] sm:$0xff]
      %v3595 = vld [vmem:[%s3281 + $0x8] sm:$0x3f]
      %v3596 = vpack.c.bf16 %v3595, %v3594
      %v3598 = vsel %vm194, %v3596, 0
      %3600 = vmatprep.subr.bf16.mxu0 0
      %3601 = vmatpush1.bf16.msra.mxu0 %v354
      %3602 = vmatprep.subr.bf16.mxu0 0
      %3603 = vmatpush1.bf16.msra.mxu0 0
      %3604 = vmatprep.subr.bf16.mxu0 0
      %3605 = vmatpush1.bf16.msra.mxu0 0
      %3606 = vmatprep.subr.bf16.mxu0 0
      %3607 = vmatpush1.bf16.msra.mxu0 0
      %3608 = vmatprep.subr.bf16.mxu0 0
      %3609 = vmatpush1.bf16.msra.mxu0 0
      %3610 = vmatprep.subr.bf16.mxu0 0
      %3611 = vmatpush1.bf16.msra.mxu0 0
      %3612 = vmatprep.subr.bf16.mxu0 0
      %3613 = vmatpush1.bf16.msra.mxu0 0
      %3614 = vmatprep.subr.bf16.mxu0 0
      %3615 = vmatpush1.bf16.msra.mxu0 0
      %3616 = vmatprep.subr.bf16.mxu0 0
      %3617 = vmatpush1.bf16.msra.mxu0 0
      %3618 = vmatprep.subr.bf16.mxu0 0
      %3619 = vmatpush1.bf16.msra.mxu0 0
      %3620 = vmatprep.subr.bf16.mxu0 0
      %3621 = vmatpush1.bf16.msra.mxu0 0
      %3622 = vmatprep.subr.bf16.mxu0 0
      %3623 = vmatpush1.bf16.msra.mxu0 0
      %3624 = vmatprep.subr.bf16.mxu0 0
      %3625 = vmatpush1.bf16.msra.mxu0 0
      %3626 = vmatprep.subr.bf16.mxu0 0
      %3627 = vmatpush1.bf16.msra.mxu0 0
      %3628 = vmatprep.subr.bf16.mxu0 0
      %3629 = vmatpush1.bf16.msra.mxu0 0
      %3630 = vmatprep.subr.bf16.mxu0 0
      %3631 = vmatpush1.bf16.msra.mxu0 0
      %3632 = vmatprep.mubr.bf16.mxu0 0
      %3633 = vmatmul.mubr.bf16.gmra.mrb[0].mxu0 %v3598
      %v3634 = vpop.f32.mrb[0].mxu0
      %v3635 = vadd.f32 0.0, %v3634
      %v3636 = vpop.f32.mrb[0].mxu0
      %v3637 = vpop.f32.mrb[0].mxu0
      %v3638 = vadd.f32 0.0, %v3637
      %v3639 = vpop.f32.mrb[0].mxu0
      %3640 = vdwg.mxu0
      %v3641 = vadd.f32 %v3592, %v3635
      %v3642 = vadd.f32 %v3593, %v3638
      %v3643 = vld [vmem:[%s3281 + $0x1] sm:$0xff]
      %v3644 = vld [vmem:[%s3281 + $0x9] sm:$0x3f]
      %v3645 = vpack.c.bf16 %v3644, %v3643
      %v3647 = vsel %vm194, %v3645, 0
      %3649 = vmatprep.subr.bf16.mxu0 0
      %3650 = vmatpush1.bf16.msra.mxu0 %v406
      %3651 = vmatprep.subr.bf16.mxu0 0
      %3652 = vmatpush1.bf16.msra.mxu0 0
      %3653 = vmatprep.subr.bf16.mxu0 0
      %3654 = vmatpush1.bf16.msra.mxu0 0
      %3655 = vmatprep.subr.bf16.mxu0 0
      %3656 = vmatpush1.bf16.msra.mxu0 0
      %3657 = vmatprep.subr.bf16.mxu0 0
      %3658 = vmatpush1.bf16.msra.mxu0 0
      %3659 = vmatprep.subr.bf16.mxu0 0
      %3660 = vmatpush1.bf16.msra.mxu0 0
      %3661 = vmatprep.subr.bf16.mxu0 0
      %3662 = vmatpush1.bf16.msra.mxu0 0
      %3663 = vmatprep.subr.bf16.mxu0 0
      %3664 = vmatpush1.bf16.msra.mxu0 0
      %3665 = vmatprep.subr.bf16.mxu0 0
      %3666 = vmatpush1.bf16.msra.mxu0 0
      %3667 = vmatprep.subr.bf16.mxu0 0
      %3668 = vmatpush1.bf16.msra.mxu0 0
      %3669 = vmatprep.subr.bf16.mxu0 0
      %3670 = vmatpush1.bf16.msra.mxu0 0
      %3671 = vmatprep.subr.bf16.mxu0 0
      %3672 = vmatpush1.bf16.msra.mxu0 0
      %3673 = vmatprep.subr.bf16.mxu0 0
      %3674 = vmatpush1.bf16.msra.mxu0 0
      %3675 = vmatprep.subr.bf16.mxu0 0
      %3676 = vmatpush1.bf16.msra.mxu0 0
      %3677 = vmatprep.subr.bf16.mxu0 0
      %3678 = vmatpush1.bf16.msra.mxu0 0
      %3679 = vmatprep.subr.bf16.mxu0 0
      %3680 = vmatpush1.bf16.msra.mxu0 0
      %3681 = vmatprep.mubr.bf16.mxu0 0
      %3682 = vmatmul.mubr.bf16.gmra.mrb[0].mxu0 %v3647
      %v3683 = vpop.f32.mrb[0].mxu0
      %v3684 = vadd.f32 0.0, %v3683
      %v3685 = vpop.f32.mrb[0].mxu0
      %v3686 = vpop.f32.mrb[0].mxu0
      %v3687 = vadd.f32 0.0, %v3686
      %v3688 = vpop.f32.mrb[0].mxu0
      %3689 = vdwg.mxu0
      %v3690 = vadd.f32 %v3641, %v3684
      %v3691 = vadd.f32 %v3642, %v3687
      %v3692 = vld [vmem:[%s3281 + $0x2] sm:$0xff]
      %v3693 = vld [vmem:[%s3281 + $0xa] sm:$0x3f]
      %v3694 = vpack.c.bf16 %v3693, %v3692
      %v3696 = vsel %vm194, %v3694, 0
      %3698 = vmatprep.subr.bf16.mxu0 0
      %3699 = vmatpush1.bf16.msra.mxu0 %v462
      %3700 = vmatprep.subr.bf16.mxu0 0
      %3701 = vmatpush1.bf16.msra.mxu0 0
      %3702 = vmatprep.subr.bf16.mxu0 0
      %3703 = vmatpush1.bf16.msra.mxu0 0
      %3704 = vmatprep.subr.bf16.mxu0 0
      %3705 = vmatpush1.bf16.msra.mxu0 0
      %3706 = vmatprep.subr.bf16.mxu0 0
      %3707 = vmatpush1.bf16.msra.mxu0 0
      %3708 = vmatprep.subr.bf16.mxu0 0
      %3709 = vmatpush1.bf16.msra.mxu0 0
      %3710 = vmatprep.subr.bf16.mxu0 0
      %3711 = vmatpush1.bf16.msra.mxu0 0
      %3712 = vmatprep.subr.bf16.mxu0 0
      %3713 = vmatpush1.bf16.msra.mxu0 0
      %3714 = vmatprep.subr.bf16.mxu0 0
      %3715 = vmatpush1.bf16.msra.mxu0 0
      %3716 = vmatprep.subr.bf16.mxu0 0
      %3717 = vmatpush1.bf16.msra.mxu0 0
      %3718 = vmatprep.subr.bf16.mxu0 0
      %3719 = vmatpush1.bf16.msra.mxu0 0
      %3720 = vmatprep.subr.bf16.mxu0 0
      %3721 = vmatpush1.bf16.msra.mxu0 0
      %3722 = vmatprep.subr.bf16.mxu0 0
      %3723 = vmatpush1.bf16.msra.mxu0 0
      %3724 = vmatprep.subr.bf16.mxu0 0
      %3725 = vmatpush1.bf16.msra.mxu0 0
      %3726 = vmatprep.subr.bf16.mxu0 0
      %3727 = vmatpush1.bf16.msra.mxu0 0
      %3728 = vmatprep.subr.bf16.mxu0 0
      %3729 = vmatpush1.bf16.msra.mxu0 0
      %3730 = vmatprep.mubr.bf16.mxu0 0
      %3731 = vmatmul.mubr.bf16.gmra.mrb[0].mxu0 %v3696
      %v3732 = vpop.f32.mrb[0].mxu0
      %v3733 = vadd.f32 0.0, %v3732
      %v3734 = vpop.f32.mrb[0].mxu0
      %v3735 = vpop.f32.mrb[0].mxu0
      %v3736 = vadd.f32 0.0, %v3735
      %v3737 = vpop.f32.mrb[0].mxu0
      %3738 = vdwg.mxu0
      %v3739 = vadd.f32 %v3690, %v3733
      %v3740 = vadd.f32 %v3691, %v3736
      %s3741 = scalar_lea.vmem %s163, 144
      %v3742 = vld [vmem:[%s3741] sm:$0xff]
      %v3743 = vld [vmem:[%s3741 + $0x8] sm:$0x3f]
      %v3744 = vpack.c.bf16 %v3743, %v3742
      %v3746 = vsel %vm194, %v3744, 0
      %3748 = vmatprep.subr.bf16.mxu0 0
      %3749 = vmatpush1.bf16.msra.mxu0 %v515
      %3750 = vmatprep.subr.bf16.mxu0 0
      %3751 = vmatpush1.bf16.msra.mxu0 0
      %3752 = vmatprep.subr.bf16.mxu0 0
      %3753 = vmatpush1.bf16.msra.mxu0 0
      %3754 = vmatprep.subr.bf16.mxu0 0
      %3755 = vmatpush1.bf16.msra.mxu0 0
      %3756 = vmatprep.subr.bf16.mxu0 0
      %3757 = vmatpush1.bf16.msra.mxu0 0
      %3758 = vmatprep.subr.bf16.mxu0 0
      %3759 = vmatpush1.bf16.msra.mxu0 0
      %3760 = vmatprep.subr.bf16.mxu0 0
      %3761 = vmatpush1.bf16.msra.mxu0 0
      %3762 = vmatprep.subr.bf16.mxu0 0
      %3763 = vmatpush1.bf16.msra.mxu0 0
      %3764 = vmatprep.subr.bf16.mxu0 0
      %3765 = vmatpush1.bf16.msra.mxu0 0
      %3766 = vmatprep.subr.bf16.mxu0 0
      %3767 = vmatpush1.bf16.msra.mxu0 0
      %3768 = vmatprep.subr.bf16.mxu0 0
      %3769 = vmatpush1.bf16.msra.mxu0 0
      %3770 = vmatprep.subr.bf16.mxu0 0
      %3771 = vmatpush1.bf16.msra.mxu0 0
      %3772 = vmatprep.subr.bf16.mxu0 0
      %3773 = vmatpush1.bf16.msra.mxu0 0
      %3774 = vmatprep.subr.bf16.mxu0 0
      %3775 = vmatpush1.bf16.msra.mxu0 0
      %3776 = vmatprep.subr.bf16.mxu0 0
      %3777 = vmatpush1.bf16.msra.mxu0 0
      %3778 = vmatprep.subr.bf16.mxu0 0
      %3779 = vmatpush1.bf16.msra.mxu0 0
      %3780 = vmatprep.mubr.bf16.mxu0 0
      %3781 = vmatmul.mubr.bf16.gmra.mrb[0].mxu0 %v3746
      %v3782 = vpop.f32.mrb[0].mxu0
      %v3783 = vadd.f32 0.0, %v3782
      %v3784 = vpop.f32.mrb[0].mxu0
      %v3785 = vpop.f32.mrb[0].mxu0
      %v3786 = vadd.f32 0.0, %v3785
      %v3787 = vpop.f32.mrb[0].mxu0
      %3788 = vdwg.mxu0
      %v3789 = vadd.f32 %v3739, %v3783
      %v3790 = vadd.f32 %v3740, %v3786
      %v3791 = vld [vmem:[%s3741 + $0x1] sm:$0xff]
      %v3792 = vld [vmem:[%s3741 + $0x9] sm:$0x3f]
      %v3793 = vpack.c.bf16 %v3792, %v3791
      %v3795 = vsel %vm194, %v3793, 0
      %3797 = vmatprep.subr.bf16.mxu0 0
      %3798 = vmatpush1.bf16.msra.mxu0 %v571
      %3799 = vmatprep.subr.bf16.mxu0 0
      %3800 = vmatpush1.bf16.msra.mxu0 0
      %3801 = vmatprep.subr.bf16.mxu0 0
      %3802 = vmatpush1.bf16.msra.mxu0 0
      %3803 = vmatprep.subr.bf16.mxu0 0
      %3804 = vmatpush1.bf16.msra.mxu0 0
      %3805 = vmatprep.subr.bf16.mxu0 0
      %3806 = vmatpush1.bf16.msra.mxu0 0
      %3807 = vmatprep.subr.bf16.mxu0 0
      %3808 = vmatpush1.bf16.msra.mxu0 0
      %3809 = vmatprep.subr.bf16.mxu0 0
      %3810 = vmatpush1.bf16.msra.mxu0 0
      %3811 = vmatprep.subr.bf16.mxu0 0
      %3812 = vmatpush1.bf16.msra.mxu0 0
      %3813 = vmatprep.subr.bf16.mxu0 0
      %3814 = vmatpush1.bf16.msra.mxu0 0
      %3815 = vmatprep.subr.bf16.mxu0 0
      %3816 = vmatpush1.bf16.msra.mxu0 0
      %3817 = vmatprep.subr.bf16.mxu0 0
      %3818 = vmatpush1.bf16.msra.mxu0 0
      %3819 = vmatprep.subr.bf16.mxu0 0
      %3820 = vmatpush1.bf16.msra.mxu0 0
      %3821 = vmatprep.subr.bf16.mxu0 0
      %3822 = vmatpush1.bf16.msra.mxu0 0
      %3823 = vmatprep.subr.bf16.mxu0 0
      %3824 = vmatpush1.bf16.msra.mxu0 0
      %3825 = vmatprep.subr.bf16.mxu0 0
      %3826 = vmatpush1.bf16.msra.mxu0 0
      %3827 = vmatprep.subr.bf16.mxu0 0
      %3828 = vmatpush1.bf16.msra.mxu0 0
      %3829 = vmatprep.mubr.bf16.mxu0 0
      %3830 = vmatmul.mubr.bf16.gmra.mrb[0].mxu0 %v3795
      %v3831 = vpop.f32.mrb[0].mxu0
      %v3832 = vadd.f32 0.0, %v3831
      %v3833 = vpop.f32.mrb[0].mxu0
      %v3834 = vpop.f32.mrb[0].mxu0
      %v3835 = vadd.f32 0.0, %v3834
      %v3836 = vpop.f32.mrb[0].mxu0
      %3837 = vdwg.mxu0
      %v3838 = vadd.f32 %v3789, %v3832
      %v3839 = vadd.f32 %v3790, %v3835
      %v3840 = vld [vmem:[%s3741 + $0x2] sm:$0xff]
      %v3841 = vld [vmem:[%s3741 + $0xa] sm:$0x3f]
      %v3842 = vpack.c.bf16 %v3841, %v3840
      %v3844 = vsel %vm194, %v3842, 0
      %3846 = vmatprep.subr.bf16.mxu0 0
      %3847 = vmatpush1.bf16.msra.mxu0 %v623
      %3848 = vmatprep.subr.bf16.mxu0 0
      %3849 = vmatpush1.bf16.msra.mxu0 0
      %3850 = vmatprep.subr.bf16.mxu0 0
      %3851 = vmatpush1.bf16.msra.mxu0 0
      %3852 = vmatprep.subr.bf16.mxu0 0
      %3853 = vmatpush1.bf16.msra.mxu0 0
      %3854 = vmatprep.subr.bf16.mxu0 0
      %3855 = vmatpush1.bf16.msra.mxu0 0
      %3856 = vmatprep.subr.bf16.mxu0 0
      %3857 = vmatpush1.bf16.msra.mxu0 0
      %3858 = vmatprep.subr.bf16.mxu0 0
      %3859 = vmatpush1.bf16.msra.mxu0 0
      %3860 = vmatprep.subr.bf16.mxu0 0
      %3861 = vmatpush1.bf16.msra.mxu0 0
      %3862 = vmatprep.subr.bf16.mxu0 0
      %3863 = vmatpush1.bf16.msra.mxu0 0
      %3864 = vmatprep.subr.bf16.mxu0 0
      %3865 = vmatpush1.bf16.msra.mxu0 0
      %3866 = vmatprep.subr.bf16.mxu0 0
      %3867 = vmatpush1.bf16.msra.mxu0 0
      %3868 = vmatprep.subr.bf16.mxu0 0
      %3869 = vmatpush1.bf16.msra.mxu0 0
      %3870 = vmatprep.subr.bf16.mxu0 0
      %3871 = vmatpush1.bf16.msra.mxu0 0
      %3872 = vmatprep.subr.bf16.mxu0 0
      %3873 = vmatpush1.bf16.msra.mxu0 0
      %3874 = vmatprep.subr.bf16.mxu0 0
      %3875 = vmatpush1.bf16.msra.mxu0 0
      %3876 = vmatprep.subr.bf16.mxu0 0
      %3877 = vmatpush1.bf16.msra.mxu0 0
      %3878 = vmatprep.mubr.bf16.mxu0 0
      %3879 = vmatmul.mubr.bf16.gmra.mrb[0].mxu0 %v3844
      %v3880 = vpop.f32.mrb[0].mxu0
      %v3881 = vadd.f32 0.0, %v3880
      %v3882 = vpop.f32.mrb[0].mxu0
      %v3883 = vpop.f32.mrb[0].mxu0
      %v3884 = vadd.f32 0.0, %v3883
      %v3885 = vpop.f32.mrb[0].mxu0
      %3886 = vdwg.mxu0
      %v3887 = vadd.f32 %v3838, %v3881
      %v3888 = vadd.f32 %v3839, %v3884
      %3889 = vst [vmem:[%s168 + $0x62] sm:$0xff] %v3887
      %3890 = vst [vmem:[%s168 + $0x6a] sm:$0x3f] %v3888
      %v3891 = vsel %vm670, %v3888, 0.0
      %v3892 = vadd.f32 %v3887, %v3891
      %v3893 = vrot.slane %v3892, 4
      %v3894 = vadd.f32 %v3892, %v3893
      %v3895 = vrot.slane %v3894, 2
      %v3896 = vadd.f32 %v3894, %v3895
      %v3897 = vrot.slane %v3896, 1
      %v3898 = vadd.f32 %v3896, %v3897
      %v3899 = vadd.f32 %v3439, %v3898
      %v3900 = vmul.f32 %v3887, %v3887
      %v3901 = vmul.f32 %v3888, %v3888
      %v3902 = vsel %vm670, %v3901, 0.0
      %v3903 = vadd.f32 %v3900, %v3902
      %v3904 = vrot.slane %v3903, 4
      %v3905 = vadd.f32 %v3903, %v3904
      %v3906 = vrot.slane %v3905, 2
      %v3907 = vadd.f32 %v3905, %v3906
      %v3908 = vrot.slane %v3907, 1
      %v3909 = vadd.f32 %v3907, %v3908
      %v3910 = vadd.f32 %v3450, %v3909
      %v3911 = vld [vmem:[%s3281] sm:$0xff]
      %v3912 = vld [vmem:[%s3281 + $0x8] sm:$0x3f]
      %v3913 = vpack.c.bf16 %v3912, %v3911
      %v3914 = vld [vmem:[%s3281 + $0x1] sm:$0xff]
      %v3915 = vld [vmem:[%s3281 + $0x9] sm:$0x3f]
      %v3916 = vpack.c.bf16 %v3915, %v3914
      %v3918 = vsel %vm194, %v3916, 0
      %3920 = vmatprep.subr.bf16.mxu0 0
      %3921 = vmatpush1.bf16.msra.mxu0 %v200
      %3922 = vmatprep.subr.bf16.mxu0 0
      %3923 = vmatpush1.bf16.msra.mxu0 0
      %3924 = vmatprep.subr.bf16.mxu0 0
      %3925 = vmatpush1.bf16.msra.mxu0 0
      %3926 = vmatprep.subr.bf16.mxu0 0
      %3927 = vmatpush1.bf16.msra.mxu0 0
      %3928 = vmatprep.subr.bf16.mxu0 0
      %3929 = vmatpush1.bf16.msra.mxu0 0
      %3930 = vmatprep.subr.bf16.mxu0 0
      %3931 = vmatpush1.bf16.msra.mxu0 0
      %3932 = vmatprep.subr.bf16.mxu0 0
      %3933 = vmatpush1.bf16.msra.mxu0 0
      %3934 = vmatprep.subr.bf16.mxu0 0
      %3935 = vmatpush1.bf16.msra.mxu0 0
      %3936 = vmatprep.subr.bf16.mxu0 0
      %3937 = vmatpush1.bf16.msra.mxu0 0
      %3938 = vmatprep.subr.bf16.mxu0 0
      %3939 = vmatpush1.bf16.msra.mxu0 0
      %3940 = vmatprep.subr.bf16.mxu0 0
      %3941 = vmatpush1.bf16.msra.mxu0 0
      %3942 = vmatprep.subr.bf16.mxu0 0
      %3943 = vmatpush1.bf16.msra.mxu0 0
      %3944 = vmatprep.subr.bf16.mxu0 0
      %3945 = vmatpush1.bf16.msra.mxu0 0
      %3946 = vmatprep.subr.bf16.mxu0 0
      %3947 = vmatpush1.bf16.msra.mxu0 0
      %3948 = vmatprep.subr.bf16.mxu0 0
      %3949 = vmatpush1.bf16.msra.mxu0 0
      %3950 = vmatprep.subr.bf16.mxu0 0
      %3951 = vmatpush1.bf16.msra.mxu0 0
      %3952 = vmatprep.mubr.bf16.mxu0 0
      %3953 = vmatmul.mubr.bf16.gmra.mrb[0].mxu0 %v3918
      %v3954 = vpop.f32.mrb[0].mxu0
      %v3955 = vadd.f32 0.0, %v3954
      %v3956 = vpop.f32.mrb[0].mxu0
      %v3957 = vpop.f32.mrb[0].mxu0
      %v3958 = vadd.f32 0.0, %v3957
      %v3959 = vpop.f32.mrb[0].mxu0
      %3960 = vdwg.mxu0
      %v3962 = vsel %vm194, %v3913, 0
      %3964 = vmatprep.subr.bf16.mxu0 0
      %3965 = vmatpush1.bf16.msra.mxu0 %v247
      %3966 = vmatprep.subr.bf16.mxu0 0
      %3967 = vmatpush1.bf16.msra.mxu0 0
      %3968 = vmatprep.subr.bf16.mxu0 0
      %3969 = vmatpush1.bf16.msra.mxu0 0
      %3970 = vmatprep.subr.bf16.mxu0 0
      %3971 = vmatpush1.bf16.msra.mxu0 0
      %3972 = vmatprep.subr.bf16.mxu0 0
      %3973 = vmatpush1.bf16.msra.mxu0 0
      %3974 = vmatprep.subr.bf16.mxu0 0
      %3975 = vmatpush1.bf16.msra.mxu0 0
      %3976 = vmatprep.subr.bf16.mxu0 0
      %3977 = vmatpush1.bf16.msra.mxu0 0
      %3978 = vmatprep.subr.bf16.mxu0 0
      %3979 = vmatpush1.bf16.msra.mxu0 0
      %3980 = vmatprep.subr.bf16.mxu0 0
      %3981 = vmatpush1.bf16.msra.mxu0 0
      %3982 = vmatprep.subr.bf16.mxu0 0
      %3983 = vmatpush1.bf16.msra.mxu0 0
      %3984 = vmatprep.subr.bf16.mxu0 0
      %3985 = vmatpush1.bf16.msra.mxu0 0
      %3986 = vmatprep.subr.bf16.mxu0 0
      %3987 = vmatpush1.bf16.msra.mxu0 0
      %3988 = vmatprep.subr.bf16.mxu0 0
      %3989 = vmatpush1.bf16.msra.mxu0 0
      %3990 = vmatprep.subr.bf16.mxu0 0
      %3991 = vmatpush1.bf16.msra.mxu0 0
      %3992 = vmatprep.subr.bf16.mxu0 0
      %3993 = vmatpush1.bf16.msra.mxu0 0
      %3994 = vmatprep.subr.bf16.mxu0 0
      %3995 = vmatpush1.bf16.msra.mxu0 0
      %3996 = vmatprep.mubr.bf16.mxu0 0
      %3997 = vmatmul.mubr.bf16.gmra.mrb[0].mxu0 %v3962
      %v3998 = vpop.f32.mrb[0].mxu0
      %v3999 = vadd.f32 %v3955, %v3998
      %v4000 = vpop.f32.mrb[0].mxu0
      %v4001 = vpop.f32.mrb[0].mxu0
      %v4002 = vadd.f32 %v3958, %v4001
      %v4003 = vpop.f32.mrb[0].mxu0
      %4004 = vdwg.mxu0
      %v4005 = vld [vmem:[%s3281 + $0x2] sm:$0xff]
      %v4006 = vld [vmem:[%s3281 + $0xa] sm:$0x3f]
      %v4007 = vpack.c.bf16 %v4006, %v4005
      %v4009 = vsel %vm194, %v4007, 0
      %4011 = vmatprep.subr.bf16.mxu0 0
      %4012 = vmatpush1.bf16.msra.mxu0 %v297
      %4013 = vmatprep.subr.bf16.mxu0 0
      %4014 = vmatpush1.bf16.msra.mxu0 0
      %4015 = vmatprep.subr.bf16.mxu0 0
      %4016 = vmatpush1.bf16.msra.mxu0 0
      %4017 = vmatprep.subr.bf16.mxu0 0
      %4018 = vmatpush1.bf16.msra.mxu0 0
      %4019 = vmatprep.subr.bf16.mxu0 0
      %4020 = vmatpush1.bf16.msra.mxu0 0
      %4021 = vmatprep.subr.bf16.mxu0 0
      %4022 = vmatpush1.bf16.msra.mxu0 0
      %4023 = vmatprep.subr.bf16.mxu0 0
      %4024 = vmatpush1.bf16.msra.mxu0 0
      %4025 = vmatprep.subr.bf16.mxu0 0
      %4026 = vmatpush1.bf16.msra.mxu0 0
      %4027 = vmatprep.subr.bf16.mxu0 0
      %4028 = vmatpush1.bf16.msra.mxu0 0
      %4029 = vmatprep.subr.bf16.mxu0 0
      %4030 = vmatpush1.bf16.msra.mxu0 0
      %4031 = vmatprep.subr.bf16.mxu0 0
      %4032 = vmatpush1.bf16.msra.mxu0 0
      %4033 = vmatprep.subr.bf16.mxu0 0
      %4034 = vmatpush1.bf16.msra.mxu0 0
      %4035 = vmatprep.subr.bf16.mxu0 0
      %4036 = vmatpush1.bf16.msra.mxu0 0
      %4037 = vmatprep.subr.bf16.mxu0 0
      %4038 = vmatpush1.bf16.msra.mxu0 0
      %4039 = vmatprep.subr.bf16.mxu0 0
      %4040 = vmatpush1.bf16.msra.mxu0 0
      %4041 = vmatprep.subr.bf16.mxu0 0
      %4042 = vmatpush1.bf16.msra.mxu0 0
      %4043 = vmatprep.mubr.bf16.mxu0 0
      %4044 = vmatmul.mubr.bf16.gmra.mrb[0].mxu0 %v4009
      %v4045 = vpop.f32.mrb[0].mxu0
      %v4046 = vadd.f32 0.0, %v4045
      %v4047 = vpop.f32.mrb[0].mxu0
      %v4048 = vpop.f32.mrb[0].mxu0
      %v4049 = vadd.f32 0.0, %v4048
      %v4050 = vpop.f32.mrb[0].mxu0
      %4051 = vdwg.mxu0
      %v4052 = vadd.f32 %v3999, %v4046
      %v4053 = vadd.f32 %v4002, %v4049
      %v4054 = vld [vmem:[%s3741] sm:$0xff]
      %v4055 = vld [vmem:[%s3741 + $0x8] sm:$0x3f]
      %v4056 = vpack.c.bf16 %v4055, %v4054
      %v4058 = vsel %vm194, %v4056, 0
      %4060 = vmatprep.subr.bf16.mxu0 0
      %4061 = vmatpush1.bf16.msra.mxu0 %v354
      %4062 = vmatprep.subr.bf16.mxu0 0
      %4063 = vmatpush1.bf16.msra.mxu0 0
      %4064 = vmatprep.subr.bf16.mxu0 0
      %4065 = vmatpush1.bf16.msra.mxu0 0
      %4066 = vmatprep.subr.bf16.mxu0 0
      %4067 = vmatpush1.bf16.msra.mxu0 0
      %4068 = vmatprep.subr.bf16.mxu0 0
      %4069 = vmatpush1.bf16.msra.mxu0 0
      %4070 = vmatprep.subr.bf16.mxu0 0
      %4071 = vmatpush1.bf16.msra.mxu0 0
      %4072 = vmatprep.subr.bf16.mxu0 0
      %4073 = vmatpush1.bf16.msra.mxu0 0
      %4074 = vmatprep.subr.bf16.mxu0 0
      %4075 = vmatpush1.bf16.msra.mxu0 0
      %4076 = vmatprep.subr.bf16.mxu0 0
      %4077 = vmatpush1.bf16.msra.mxu0 0
      %4078 = vmatprep.subr.bf16.mxu0 0
      %4079 = vmatpush1.bf16.msra.mxu0 0
      %4080 = vmatprep.subr.bf16.mxu0 0
      %4081 = vmatpush1.bf16.msra.mxu0 0
      %4082 = vmatprep.subr.bf16.mxu0 0
      %4083 = vmatpush1.bf16.msra.mxu0 0
      %4084 = vmatprep.subr.bf16.mxu0 0
      %4085 = vmatpush1.bf16.msra.mxu0 0
      %4086 = vmatprep.subr.bf16.mxu0 0
      %4087 = vmatpush1.bf16.msra.mxu0 0
      %4088 = vmatprep.subr.bf16.mxu0 0
      %4089 = vmatpush1.bf16.msra.mxu0 0
      %4090 = vmatprep.subr.bf16.mxu0 0
      %4091 = vmatpush1.bf16.msra.mxu0 0
      %4092 = vmatprep.mubr.bf16.mxu0 0
      %4093 = vmatmul.mubr.bf16.gmra.mrb[0].mxu0 %v4058
      %v4094 = vpop.f32.mrb[0].mxu0
      %v4095 = vadd.f32 0.0, %v4094
      %v4096 = vpop.f32.mrb[0].mxu0
      %v4097 = vpop.f32.mrb[0].mxu0
      %v4098 = vadd.f32 0.0, %v4097
      %v4099 = vpop.f32.mrb[0].mxu0
      %4100 = vdwg.mxu0
      %v4101 = vadd.f32 %v4052, %v4095
      %v4102 = vadd.f32 %v4053, %v4098
      %v4103 = vld [vmem:[%s3741 + $0x1] sm:$0xff]
      %v4104 = vld [vmem:[%s3741 + $0x9] sm:$0x3f]
      %v4105 = vpack.c.bf16 %v4104, %v4103
      %v4107 = vsel %vm194, %v4105, 0
      %4109 = vmatprep.subr.bf16.mxu0 0
      %4110 = vmatpush1.bf16.msra.mxu0 %v406
      %4111 = vmatprep.subr.bf16.mxu0 0
      %4112 = vmatpush1.bf16.msra.mxu0 0
      %4113 = vmatprep.subr.bf16.mxu0 0
      %4114 = vmatpush1.bf16.msra.mxu0 0
      %4115 = vmatprep.subr.bf16.mxu0 0
      %4116 = vmatpush1.bf16.msra.mxu0 0
      %4117 = vmatprep.subr.bf16.mxu0 0
      %4118 = vmatpush1.bf16.msra.mxu0 0
      %4119 = vmatprep.subr.bf16.mxu0 0
      %4120 = vmatpush1.bf16.msra.mxu0 0
      %4121 = vmatprep.subr.bf16.mxu0 0
      %4122 = vmatpush1.bf16.msra.mxu0 0
      %4123 = vmatprep.subr.bf16.mxu0 0
      %4124 = vmatpush1.bf16.msra.mxu0 0
      %4125 = vmatprep.subr.bf16.mxu0 0
      %4126 = vmatpush1.bf16.msra.mxu0 0
      %4127 = vmatprep.subr.bf16.mxu0 0
      %4128 = vmatpush1.bf16.msra.mxu0 0
      %4129 = vmatprep.subr.bf16.mxu0 0
      %4130 = vmatpush1.bf16.msra.mxu0 0
      %4131 = vmatprep.subr.bf16.mxu0 0
      %4132 = vmatpush1.bf16.msra.mxu0 0
      %4133 = vmatprep.subr.bf16.mxu0 0
      %4134 = vmatpush1.bf16.msra.mxu0 0
      %4135 = vmatprep.subr.bf16.mxu0 0
      %4136 = vmatpush1.bf16.msra.mxu0 0
      %4137 = vmatprep.subr.bf16.mxu0 0
      %4138 = vmatpush1.bf16.msra.mxu0 0
      %4139 = vmatprep.subr.bf16.mxu0 0
      %4140 = vmatpush1.bf16.msra.mxu0 0
      %4141 = vmatprep.mubr.bf16.mxu0 0
      %4142 = vmatmul.mubr.bf16.gmra.mrb[0].mxu0 %v4107
      %v4143 = vpop.f32.mrb[0].mxu0
      %v4144 = vadd.f32 0.0, %v4143
      %v4145 = vpop.f32.mrb[0].mxu0
      %v4146 = vpop.f32.mrb[0].mxu0
      %v4147 = vadd.f32 0.0, %v4146
      %v4148 = vpop.f32.mrb[0].mxu0
      %4149 = vdwg.mxu0
      %v4150 = vadd.f32 %v4101, %v4144
      %v4151 = vadd.f32 %v4102, %v4147
      %v4152 = vld [vmem:[%s3741 + $0x2] sm:$0xff]
      %v4153 = vld [vmem:[%s3741 + $0xa] sm:$0x3f]
      %v4154 = vpack.c.bf16 %v4153, %v4152
      %v4156 = vsel %vm194, %v4154, 0
      %4158 = vmatprep.subr.bf16.mxu0 0
      %4159 = vmatpush1.bf16.msra.mxu0 %v462
      %4160 = vmatprep.subr.bf16.mxu0 0
      %4161 = vmatpush1.bf16.msra.mxu0 0
      %4162 = vmatprep.subr.bf16.mxu0 0
      %4163 = vmatpush1.bf16.msra.mxu0 0
      %4164 = vmatprep.subr.bf16.mxu0 0
      %4165 = vmatpush1.bf16.msra.mxu0 0
      %4166 = vmatprep.subr.bf16.mxu0 0
      %4167 = vmatpush1.bf16.msra.mxu0 0
      %4168 = vmatprep.subr.bf16.mxu0 0
      %4169 = vmatpush1.bf16.msra.mxu0 0
      %4170 = vmatprep.subr.bf16.mxu0 0
      %4171 = vmatpush1.bf16.msra.mxu0 0
      %4172 = vmatprep.subr.bf16.mxu0 0
      %4173 = vmatpush1.bf16.msra.mxu0 0
      %4174 = vmatprep.subr.bf16.mxu0 0
      %4175 = vmatpush1.bf16.msra.mxu0 0
      %4176 = vmatprep.subr.bf16.mxu0 0
      %4177 = vmatpush1.bf16.msra.mxu0 0
      %4178 = vmatprep.subr.bf16.mxu0 0
      %4179 = vmatpush1.bf16.msra.mxu0 0
      %4180 = vmatprep.subr.bf16.mxu0 0
      %4181 = vmatpush1.bf16.msra.mxu0 0
      %4182 = vmatprep.subr.bf16.mxu0 0
      %4183 = vmatpush1.bf16.msra.mxu0 0
      %4184 = vmatprep.subr.bf16.mxu0 0
      %4185 = vmatpush1.bf16.msra.mxu0 0
      %4186 = vmatprep.subr.bf16.mxu0 0
      %4187 = vmatpush1.bf16.msra.mxu0 0
      %4188 = vmatprep.subr.bf16.mxu0 0
      %4189 = vmatpush1.bf16.msra.mxu0 0
      %4190 = vmatprep.mubr.bf16.mxu0 0
      %4191 = vmatmul.mubr.bf16.gmra.mrb[0].mxu0 %v4156
      %v4192 = vpop.f32.mrb[0].mxu0
      %v4193 = vadd.f32 0.0, %v4192
      %v4194 = vpop.f32.mrb[0].mxu0
      %v4195 = vpop.f32.mrb[0].mxu0
      %v4196 = vadd.f32 0.0, %v4195
      %v4197 = vpop.f32.mrb[0].mxu0
      %4198 = vdwg.mxu0
      %v4199 = vadd.f32 %v4150, %v4193
      %v4200 = vadd.f32 %v4151, %v4196
      %s4201 = scalar_lea.vmem %s163, 160
      %v4202 = vld [vmem:[%s4201] sm:$0xff]
      %v4203 = vld [vmem:[%s4201 + $0x8] sm:$0x3f]
      %v4204 = vpack.c.bf16 %v4203, %v4202
      %v4206 = vsel %vm194, %v4204, 0
      %4208 = vmatprep.subr.bf16.mxu0 0
      %4209 = vmatpush1.bf16.msra.mxu0 %v515
      %4210 = vmatprep.subr.bf16.mxu0 0
      %4211 = vmatpush1.bf16.msra.mxu0 0
      %4212 = vmatprep.subr.bf16.mxu0 0
      %4213 = vmatpush1.bf16.msra.mxu0 0
      %4214 = vmatprep.subr.bf16.mxu0 0
      %4215 = vmatpush1.bf16.msra.mxu0 0
      %4216 = vmatprep.subr.bf16.mxu0 0
      %4217 = vmatpush1.bf16.msra.mxu0 0
      %4218 = vmatprep.subr.bf16.mxu0 0
      %4219 = vmatpush1.bf16.msra.mxu0 0
      %4220 = vmatprep.subr.bf16.mxu0 0
      %4221 = vmatpush1.bf16.msra.mxu0 0
      %4222 = vmatprep.subr.bf16.mxu0 0
      %4223 = vmatpush1.bf16.msra.mxu0 0
      %4224 = vmatprep.subr.bf16.mxu0 0
      %4225 = vmatpush1.bf16.msra.mxu0 0
      %4226 = vmatprep.subr.bf16.mxu0 0
      %4227 = vmatpush1.bf16.msra.mxu0 0
      %4228 = vmatprep.subr.bf16.mxu0 0
      %4229 = vmatpush1.bf16.msra.mxu0 0
      %4230 = vmatprep.subr.bf16.mxu0 0
      %4231 = vmatpush1.bf16.msra.mxu0 0
      %4232 = vmatprep.subr.bf16.mxu0 0
      %4233 = vmatpush1.bf16.msra.mxu0 0
      %4234 = vmatprep.subr.bf16.mxu0 0
      %4235 = vmatpush1.bf16.msra.mxu0 0
      %4236 = vmatprep.subr.bf16.mxu0 0
      %4237 = vmatpush1.bf16.msra.mxu0 0
      %4238 = vmatprep.subr.bf16.mxu0 0
      %4239 = vmatpush1.bf16.msra.mxu0 0
      %4240 = vmatprep.mubr.bf16.mxu0 0
      %4241 = vmatmul.mubr.bf16.gmra.mrb[0].mxu0 %v4206
      %v4242 = vpop.f32.mrb[0].mxu0
      %v4243 = vadd.f32 0.0, %v4242
      %v4244 = vpop.f32.mrb[0].mxu0
      %v4245 = vpop.f32.mrb[0].mxu0
      %v4246 = vadd.f32 0.0, %v4245
      %v4247 = vpop.f32.mrb[0].mxu0
      %4248 = vdwg.mxu0
      %v4249 = vadd.f32 %v4199, %v4243
      %v4250 = vadd.f32 %v4200, %v4246
      %v4251 = vld [vmem:[%s4201 + $0x1] sm:$0xff]
      %v4252 = vld [vmem:[%s4201 + $0x9] sm:$0x3f]
      %v4253 = vpack.c.bf16 %v4252, %v4251
      %v4255 = vsel %vm194, %v4253, 0
      %4257 = vmatprep.subr.bf16.mxu0 0
      %4258 = vmatpush1.bf16.msra.mxu0 %v571
      %4259 = vmatprep.subr.bf16.mxu0 0
      %4260 = vmatpush1.bf16.msra.mxu0 0
      %4261 = vmatprep.subr.bf16.mxu0 0
      %4262 = vmatpush1.bf16.msra.mxu0 0
      %4263 = vmatprep.subr.bf16.mxu0 0
      %4264 = vmatpush1.bf16.msra.mxu0 0
      %4265 = vmatprep.subr.bf16.mxu0 0
      %4266 = vmatpush1.bf16.msra.mxu0 0
      %4267 = vmatprep.subr.bf16.mxu0 0
      %4268 = vmatpush1.bf16.msra.mxu0 0
      %4269 = vmatprep.subr.bf16.mxu0 0
      %4270 = vmatpush1.bf16.msra.mxu0 0
      %4271 = vmatprep.subr.bf16.mxu0 0
      %4272 = vmatpush1.bf16.msra.mxu0 0
      %4273 = vmatprep.subr.bf16.mxu0 0
      %4274 = vmatpush1.bf16.msra.mxu0 0
      %4275 = vmatprep.subr.bf16.mxu0 0
      %4276 = vmatpush1.bf16.msra.mxu0 0
      %4277 = vmatprep.subr.bf16.mxu0 0
      %4278 = vmatpush1.bf16.msra.mxu0 0
      %4279 = vmatprep.subr.bf16.mxu0 0
      %4280 = vmatpush1.bf16.msra.mxu0 0
      %4281 = vmatprep.subr.bf16.mxu0 0
      %4282 = vmatpush1.bf16.msra.mxu0 0
      %4283 = vmatprep.subr.bf16.mxu0 0
      %4284 = vmatpush1.bf16.msra.mxu0 0
      %4285 = vmatprep.subr.bf16.mxu0 0
      %4286 = vmatpush1.bf16.msra.mxu0 0
      %4287 = vmatprep.subr.bf16.mxu0 0
      %4288 = vmatpush1.bf16.msra.mxu0 0
      %4289 = vmatprep.mubr.bf16.mxu0 0
      %4290 = vmatmul.mubr.bf16.gmra.mrb[0].mxu0 %v4255
      %v4291 = vpop.f32.mrb[0].mxu0
      %v4292 = vadd.f32 0.0, %v4291
      %v4293 = vpop.f32.mrb[0].mxu0
      %v4294 = vpop.f32.mrb[0].mxu0
      %v4295 = vadd.f32 0.0, %v4294
      %v4296 = vpop.f32.mrb[0].mxu0
      %4297 = vdwg.mxu0
      %v4298 = vadd.f32 %v4249, %v4292
      %v4299 = vadd.f32 %v4250, %v4295
      %v4300 = vld [vmem:[%s4201 + $0x2] sm:$0xff]
      %v4301 = vld [vmem:[%s4201 + $0xa] sm:$0x3f]
      %v4302 = vpack.c.bf16 %v4301, %v4300
      %v4304 = vsel %vm194, %v4302, 0
      %4306 = vmatprep.subr.bf16.mxu0 0
      %4307 = vmatpush1.bf16.msra.mxu0 %v623
      %4308 = vmatprep.subr.bf16.mxu0 0
      %4309 = vmatpush1.bf16.msra.mxu0 0
      %4310 = vmatprep.subr.bf16.mxu0 0
      %4311 = vmatpush1.bf16.msra.mxu0 0
      %4312 = vmatprep.subr.bf16.mxu0 0
      %4313 = vmatpush1.bf16.msra.mxu0 0
      %4314 = vmatprep.subr.bf16.mxu0 0
      %4315 = vmatpush1.bf16.msra.mxu0 0
      %4316 = vmatprep.subr.bf16.mxu0 0
      %4317 = vmatpush1.bf16.msra.mxu0 0
      %4318 = vmatprep.subr.bf16.mxu0 0
      %4319 = vmatpush1.bf16.msra.mxu0 0
      %4320 = vmatprep.subr.bf16.mxu0 0
      %4321 = vmatpush1.bf16.msra.mxu0 0
      %4322 = vmatprep.subr.bf16.mxu0 0
      %4323 = vmatpush1.bf16.msra.mxu0 0
      %4324 = vmatprep.subr.bf16.mxu0 0
      %4325 = vmatpush1.bf16.msra.mxu0 0
      %4326 = vmatprep.subr.bf16.mxu0 0
      %4327 = vmatpush1.bf16.msra.mxu0 0
      %4328 = vmatprep.subr.bf16.mxu0 0
      %4329 = vmatpush1.bf16.msra.mxu0 0
      %4330 = vmatprep.subr.bf16.mxu0 0
      %4331 = vmatpush1.bf16.msra.mxu0 0
      %4332 = vmatprep.subr.bf16.mxu0 0
      %4333 = vmatpush1.bf16.msra.mxu0 0
      %4334 = vmatprep.subr.bf16.mxu0 0
      %4335 = vmatpush1.bf16.msra.mxu0 0
      %4336 = vmatprep.subr.bf16.mxu0 0
      %4337 = vmatpush1.bf16.msra.mxu0 0
      %4338 = vmatprep.mubr.bf16.mxu0 0
      %4339 = vmatmul.mubr.bf16.gmra.mrb[0].mxu0 %v4304
      %v4340 = vpop.f32.mrb[0].mxu0
      %v4341 = vadd.f32 0.0, %v4340
      %v4342 = vpop.f32.mrb[0].mxu0
      %v4343 = vpop.f32.mrb[0].mxu0
      %v4344 = vadd.f32 0.0, %v4343
      %v4345 = vpop.f32.mrb[0].mxu0
      %4346 = vdwg.mxu0
      %v4347 = vadd.f32 %v4298, %v4341
      %v4348 = vadd.f32 %v4299, %v4344
      %4349 = vst [vmem:[%s168 + $0x70] sm:$0xff] %v4347
      %4350 = vst [vmem:[%s168 + $0x78] sm:$0x3f] %v4348
      %v4351 = vsel %vm670, %v4348, 0.0
      %v4352 = vadd.f32 %v4347, %v4351
      %v4353 = vrot.slane %v4352, 4
      %v4354 = vadd.f32 %v4352, %v4353
      %v4355 = vrot.slane %v4354, 2
      %v4356 = vadd.f32 %v4354, %v4355
      %v4357 = vrot.slane %v4356, 1
      %v4358 = vadd.f32 %v4356, %v4357
      %v4359 = vadd.f32 %v3899, %v4358
      %v4360 = vmul.f32 %v4347, %v4347
      %v4361 = vmul.f32 %v4348, %v4348
      %v4362 = vsel %vm670, %v4361, 0.0
      %v4363 = vadd.f32 %v4360, %v4362
      %v4364 = vrot.slane %v4363, 4
      %v4365 = vadd.f32 %v4363, %v4364
      %v4366 = vrot.slane %v4365, 2
      %v4367 = vadd.f32 %v4365, %v4366
      %v4368 = vrot.slane %v4367, 1
      %v4369 = vadd.f32 %v4367, %v4368
      %v4370 = vadd.f32 %v3910, %v4369
      %v4371 = vld [vmem:[%s3741] sm:$0xff]
      %v4372 = vld [vmem:[%s3741 + $0x8] sm:$0x3f]
      %v4373 = vpack.c.bf16 %v4372, %v4371
      %v4374 = vld [vmem:[%s3741 + $0x1] sm:$0xff]
      %v4375 = vld [vmem:[%s3741 + $0x9] sm:$0x3f]
      %v4376 = vpack.c.bf16 %v4375, %v4374
      %v4378 = vsel %vm194, %v4376, 0
      %4380 = vmatprep.subr.bf16.mxu0 0
      %4381 = vmatpush1.bf16.msra.mxu0 %v200
      %4382 = vmatprep.subr.bf16.mxu0 0
      %4383 = vmatpush1.bf16.msra.mxu0 0
      %4384 = vmatprep.subr.bf16.mxu0 0
      %4385 = vmatpush1.bf16.msra.mxu0 0
      %4386 = vmatprep.subr.bf16.mxu0 0
      %4387 = vmatpush1.bf16.msra.mxu0 0
      %4388 = vmatprep.subr.bf16.mxu0 0
      %4389 = vmatpush1.bf16.msra.mxu0 0
      %4390 = vmatprep.subr.bf16.mxu0 0
      %4391 = vmatpush1.bf16.msra.mxu0 0
      %4392 = vmatprep.subr.bf16.mxu0 0
      %4393 = vmatpush1.bf16.msra.mxu0 0
      %4394 = vmatprep.subr.bf16.mxu0 0
      %4395 = vmatpush1.bf16.msra.mxu0 0
      %4396 = vmatprep.subr.bf16.mxu0 0
      %4397 = vmatpush1.bf16.msra.mxu0 0
      %4398 = vmatprep.subr.bf16.mxu0 0
      %4399 = vmatpush1.bf16.msra.mxu0 0
      %4400 = vmatprep.subr.bf16.mxu0 0
      %4401 = vmatpush1.bf16.msra.mxu0 0
      %4402 = vmatprep.subr.bf16.mxu0 0
      %4403 = vmatpush1.bf16.msra.mxu0 0
      %4404 = vmatprep.subr.bf16.mxu0 0
      %4405 = vmatpush1.bf16.msra.mxu0 0
      %4406 = vmatprep.subr.bf16.mxu0 0
      %4407 = vmatpush1.bf16.msra.mxu0 0
      %4408 = vmatprep.subr.bf16.mxu0 0
      %4409 = vmatpush1.bf16.msra.mxu0 0
      %4410 = vmatprep.subr.bf16.mxu0 0
      %4411 = vmatpush1.bf16.msra.mxu0 0
      %4412 = vmatprep.mubr.bf16.mxu0 0
      %4413 = vmatmul.mubr.bf16.gmra.mrb[0].mxu0 %v4378
      %v4414 = vpop.f32.mrb[0].mxu0
      %v4415 = vadd.f32 0.0, %v4414
      %v4416 = vpop.f32.mrb[0].mxu0
      %v4417 = vpop.f32.mrb[0].mxu0
      %v4418 = vadd.f32 0.0, %v4417
      %v4419 = vpop.f32.mrb[0].mxu0
      %4420 = vdwg.mxu0
      %v4422 = vsel %vm194, %v4373, 0
      %4424 = vmatprep.subr.bf16.mxu0 0
      %4425 = vmatpush1.bf16.msra.mxu0 %v247
      %4426 = vmatprep.subr.bf16.mxu0 0
      %4427 = vmatpush1.bf16.msra.mxu0 0
      %4428 = vmatprep.subr.bf16.mxu0 0
      %4429 = vmatpush1.bf16.msra.mxu0 0
      %4430 = vmatprep.subr.bf16.mxu0 0
      %4431 = vmatpush1.bf16.msra.mxu0 0
      %4432 = vmatprep.subr.bf16.mxu0 0
      %4433 = vmatpush1.bf16.msra.mxu0 0
      %4434 = vmatprep.subr.bf16.mxu0 0
      %4435 = vmatpush1.bf16.msra.mxu0 0
      %4436 = vmatprep.subr.bf16.mxu0 0
      %4437 = vmatpush1.bf16.msra.mxu0 0
      %4438 = vmatprep.subr.bf16.mxu0 0
      %4439 = vmatpush1.bf16.msra.mxu0 0
      %4440 = vmatprep.subr.bf16.mxu0 0
      %4441 = vmatpush1.bf16.msra.mxu0 0
      %4442 = vmatprep.subr.bf16.mxu0 0
      %4443 = vmatpush1.bf16.msra.mxu0 0
      %4444 = vmatprep.subr.bf16.mxu0 0
      %4445 = vmatpush1.bf16.msra.mxu0 0
      %4446 = vmatprep.subr.bf16.mxu0 0
      %4447 = vmatpush1.bf16.msra.mxu0 0
      %4448 = vmatprep.subr.bf16.mxu0 0
      %4449 = vmatpush1.bf16.msra.mxu0 0
      %4450 = vmatprep.subr.bf16.mxu0 0
      %4451 = vmatpush1.bf16.msra.mxu0 0
      %4452 = vmatprep.subr.bf16.mxu0 0
      %4453 = vmatpush1.bf16.msra.mxu0 0
      %4454 = vmatprep.subr.bf16.mxu0 0
      %4455 = vmatpush1.bf16.msra.mxu0 0
      %4456 = vmatprep.mubr.bf16.mxu0 0
      %4457 = vmatmul.mubr.bf16.gmra.mrb[0].mxu0 %v4422
      %v4458 = vpop.f32.mrb[0].mxu0
      %v4459 = vadd.f32 %v4415, %v4458
      %v4460 = vpop.f32.mrb[0].mxu0
      %v4461 = vpop.f32.mrb[0].mxu0
      %v4462 = vadd.f32 %v4418, %v4461
      %v4463 = vpop.f32.mrb[0].mxu0
      %4464 = vdwg.mxu0
      %v4465 = vld [vmem:[%s3741 + $0x2] sm:$0xff]
      %v4466 = vld [vmem:[%s3741 + $0xa] sm:$0x3f]
      %v4467 = vpack.c.bf16 %v4466, %v4465
      %v4469 = vsel %vm194, %v4467, 0
      %4471 = vmatprep.subr.bf16.mxu0 0
      %4472 = vmatpush1.bf16.msra.mxu0 %v297
      %4473 = vmatprep.subr.bf16.mxu0 0
      %4474 = vmatpush1.bf16.msra.mxu0 0
      %4475 = vmatprep.subr.bf16.mxu0 0
      %4476 = vmatpush1.bf16.msra.mxu0 0
      %4477 = vmatprep.subr.bf16.mxu0 0
      %4478 = vmatpush1.bf16.msra.mxu0 0
      %4479 = vmatprep.subr.bf16.mxu0 0
      %4480 = vmatpush1.bf16.msra.mxu0 0
      %4481 = vmatprep.subr.bf16.mxu0 0
      %4482 = vmatpush1.bf16.msra.mxu0 0
      %4483 = vmatprep.subr.bf16.mxu0 0
      %4484 = vmatpush1.bf16.msra.mxu0 0
      %4485 = vmatprep.subr.bf16.mxu0 0
      %4486 = vmatpush1.bf16.msra.mxu0 0
      %4487 = vmatprep.subr.bf16.mxu0 0
      %4488 = vmatpush1.bf16.msra.mxu0 0
      %4489 = vmatprep.subr.bf16.mxu0 0
      %4490 = vmatpush1.bf16.msra.mxu0 0
      %4491 = vmatprep.subr.bf16.mxu0 0
      %4492 = vmatpush1.bf16.msra.mxu0 0
      %4493 = vmatprep.subr.bf16.mxu0 0
      %4494 = vmatpush1.bf16.msra.mxu0 0
      %4495 = vmatprep.subr.bf16.mxu0 0
      %4496 = vmatpush1.bf16.msra.mxu0 0
      %4497 = vmatprep.subr.bf16.mxu0 0
      %4498 = vmatpush1.bf16.msra.mxu0 0
      %4499 = vmatprep.subr.bf16.mxu0 0
      %4500 = vmatpush1.bf16.msra.mxu0 0
      %4501 = vmatprep.subr.bf16.mxu0 0
      %4502 = vmatpush1.bf16.msra.mxu0 0
      %4503 = vmatprep.mubr.bf16.mxu0 0
      %4504 = vmatmul.mubr.bf16.gmra.mrb[0].mxu0 %v4469
      %v4505 = vpop.f32.mrb[0].mxu0
      %v4506 = vadd.f32 0.0, %v4505
      %v4507 = vpop.f32.mrb[0].mxu0
      %v4508 = vpop.f32.mrb[0].mxu0
      %v4509 = vadd.f32 0.0, %v4508
      %v4510 = vpop.f32.mrb[0].mxu0
      %4511 = vdwg.mxu0
      %v4512 = vadd.f32 %v4459, %v4506
      %v4513 = vadd.f32 %v4462, %v4509
      %v4514 = vld [vmem:[%s4201] sm:$0xff]
      %v4515 = vld [vmem:[%s4201 + $0x8] sm:$0x3f]
      %v4516 = vpack.c.bf16 %v4515, %v4514
      %v4518 = vsel %vm194, %v4516, 0
      %4520 = vmatprep.subr.bf16.mxu0 0
      %4521 = vmatpush1.bf16.msra.mxu0 %v354
      %4522 = vmatprep.subr.bf16.mxu0 0
      %4523 = vmatpush1.bf16.msra.mxu0 0
      %4524 = vmatprep.subr.bf16.mxu0 0
      %4525 = vmatpush1.bf16.msra.mxu0 0
      %4526 = vmatprep.subr.bf16.mxu0 0
      %4527 = vmatpush1.bf16.msra.mxu0 0
      %4528 = vmatprep.subr.bf16.mxu0 0
      %4529 = vmatpush1.bf16.msra.mxu0 0
      %4530 = vmatprep.subr.bf16.mxu0 0
      %4531 = vmatpush1.bf16.msra.mxu0 0
      %4532 = vmatprep.subr.bf16.mxu0 0
      %4533 = vmatpush1.bf16.msra.mxu0 0
      %4534 = vmatprep.subr.bf16.mxu0 0
      %4535 = vmatpush1.bf16.msra.mxu0 0
      %4536 = vmatprep.subr.bf16.mxu0 0
      %4537 = vmatpush1.bf16.msra.mxu0 0
      %4538 = vmatprep.subr.bf16.mxu0 0
      %4539 = vmatpush1.bf16.msra.mxu0 0
      %4540 = vmatprep.subr.bf16.mxu0 0
      %4541 = vmatpush1.bf16.msra.mxu0 0
      %4542 = vmatprep.subr.bf16.mxu0 0
      %4543 = vmatpush1.bf16.msra.mxu0 0
      %4544 = vmatprep.subr.bf16.mxu0 0
      %4545 = vmatpush1.bf16.msra.mxu0 0
      %4546 = vmatprep.subr.bf16.mxu0 0
      %4547 = vmatpush1.bf16.msra.mxu0 0
      %4548 = vmatprep.subr.bf16.mxu0 0
      %4549 = vmatpush1.bf16.msra.mxu0 0
      %4550 = vmatprep.subr.bf16.mxu0 0
      %4551 = vmatpush1.bf16.msra.mxu0 0
      %4552 = vmatprep.mubr.bf16.mxu0 0
      %4553 = vmatmul.mubr.bf16.gmra.mrb[0].mxu0 %v4518
      %v4554 = vpop.f32.mrb[0].mxu0
      %v4555 = vadd.f32 0.0, %v4554
      %v4556 = vpop.f32.mrb[0].mxu0
      %v4557 = vpop.f32.mrb[0].mxu0
      %v4558 = vadd.f32 0.0, %v4557
      %v4559 = vpop.f32.mrb[0].mxu0
      %4560 = vdwg.mxu0
      %v4561 = vadd.f32 %v4512, %v4555
      %v4562 = vadd.f32 %v4513, %v4558
      %v4563 = vld [vmem:[%s4201 + $0x1] sm:$0xff]
      %v4564 = vld [vmem:[%s4201 + $0x9] sm:$0x3f]
      %v4565 = vpack.c.bf16 %v4564, %v4563
      %v4567 = vsel %vm194, %v4565, 0
      %4569 = vmatprep.subr.bf16.mxu0 0
      %4570 = vmatpush1.bf16.msra.mxu0 %v406
      %4571 = vmatprep.subr.bf16.mxu0 0
      %4572 = vmatpush1.bf16.msra.mxu0 0
      %4573 = vmatprep.subr.bf16.mxu0 0
      %4574 = vmatpush1.bf16.msra.mxu0 0
      %4575 = vmatprep.subr.bf16.mxu0 0
      %4576 = vmatpush1.bf16.msra.mxu0 0
      %4577 = vmatprep.subr.bf16.mxu0 0
      %4578 = vmatpush1.bf16.msra.mxu0 0
      %4579 = vmatprep.subr.bf16.mxu0 0
      %4580 = vmatpush1.bf16.msra.mxu0 0
      %4581 = vmatprep.subr.bf16.mxu0 0
      %4582 = vmatpush1.bf16.msra.mxu0 0
      %4583 = vmatprep.subr.bf16.mxu0 0
      %4584 = vmatpush1.bf16.msra.mxu0 0
      %4585 = vmatprep.subr.bf16.mxu0 0
      %4586 = vmatpush1.bf16.msra.mxu0 0
      %4587 = vmatprep.subr.bf16.mxu0 0
      %4588 = vmatpush1.bf16.msra.mxu0 0
      %4589 = vmatprep.subr.bf16.mxu0 0
      %4590 = vmatpush1.bf16.msra.mxu0 0
      %4591 = vmatprep.subr.bf16.mxu0 0
      %4592 = vmatpush1.bf16.msra.mxu0 0
      %4593 = vmatprep.subr.bf16.mxu0 0
      %4594 = vmatpush1.bf16.msra.mxu0 0
      %4595 = vmatprep.subr.bf16.mxu0 0
      %4596 = vmatpush1.bf16.msra.mxu0 0
      %4597 = vmatprep.subr.bf16.mxu0 0
      %4598 = vmatpush1.bf16.msra.mxu0 0
      %4599 = vmatprep.subr.bf16.mxu0 0
      %4600 = vmatpush1.bf16.msra.mxu0 0
      %4601 = vmatprep.mubr.bf16.mxu0 0
      %4602 = vmatmul.mubr.bf16.gmra.mrb[0].mxu0 %v4567
      %v4603 = vpop.f32.mrb[0].mxu0
      %v4604 = vadd.f32 0.0, %v4603
      %v4605 = vpop.f32.mrb[0].mxu0
      %v4606 = vpop.f32.mrb[0].mxu0
      %v4607 = vadd.f32 0.0, %v4606
      %v4608 = vpop.f32.mrb[0].mxu0
      %4609 = vdwg.mxu0
      %v4610 = vadd.f32 %v4561, %v4604
      %v4611 = vadd.f32 %v4562, %v4607
      %v4612 = vld [vmem:[%s4201 + $0x2] sm:$0xff]
      %v4613 = vld [vmem:[%s4201 + $0xa] sm:$0x3f]
      %v4614 = vpack.c.bf16 %v4613, %v4612
      %v4616 = vsel %vm194, %v4614, 0
      %4618 = vmatprep.subr.bf16.mxu0 0
      %4619 = vmatpush1.bf16.msra.mxu0 %v462
      %4620 = vmatprep.subr.bf16.mxu0 0
      %4621 = vmatpush1.bf16.msra.mxu0 0
      %4622 = vmatprep.subr.bf16.mxu0 0
      %4623 = vmatpush1.bf16.msra.mxu0 0
      %4624 = vmatprep.subr.bf16.mxu0 0
      %4625 = vmatpush1.bf16.msra.mxu0 0
      %4626 = vmatprep.subr.bf16.mxu0 0
      %4627 = vmatpush1.bf16.msra.mxu0 0
      %4628 = vmatprep.subr.bf16.mxu0 0
      %4629 = vmatpush1.bf16.msra.mxu0 0
      %4630 = vmatprep.subr.bf16.mxu0 0
      %4631 = vmatpush1.bf16.msra.mxu0 0
      %4632 = vmatprep.subr.bf16.mxu0 0
      %4633 = vmatpush1.bf16.msra.mxu0 0
      %4634 = vmatprep.subr.bf16.mxu0 0
      %4635 = vmatpush1.bf16.msra.mxu0 0
      %4636 = vmatprep.subr.bf16.mxu0 0
      %4637 = vmatpush1.bf16.msra.mxu0 0
      %4638 = vmatprep.subr.bf16.mxu0 0
      %4639 = vmatpush1.bf16.msra.mxu0 0
      %4640 = vmatprep.subr.bf16.mxu0 0
      %4641 = vmatpush1.bf16.msra.mxu0 0
      %4642 = vmatprep.subr.bf16.mxu0 0
      %4643 = vmatpush1.bf16.msra.mxu0 0
      %4644 = vmatprep.subr.bf16.mxu0 0
      %4645 = vmatpush1.bf16.msra.mxu0 0
      %4646 = vmatprep.subr.bf16.mxu0 0
      %4647 = vmatpush1.bf16.msra.mxu0 0
      %4648 = vmatprep.subr.bf16.mxu0 0
      %4649 = vmatpush1.bf16.msra.mxu0 0
      %4650 = vmatprep.mubr.bf16.mxu0 0
      %4651 = vmatmul.mubr.bf16.gmra.mrb[0].mxu0 %v4616
      %v4652 = vpop.f32.mrb[0].mxu0
      %v4653 = vadd.f32 0.0, %v4652
      %v4654 = vpop.f32.mrb[0].mxu0
      %v4655 = vpop.f32.mrb[0].mxu0
      %v4656 = vadd.f32 0.0, %v4655
      %v4657 = vpop.f32.mrb[0].mxu0
      %4658 = vdwg.mxu0
      %v4659 = vadd.f32 %v4610, %v4653
      %v4660 = vadd.f32 %v4611, %v4656
      %s4661 = scalar_lea.vmem %s163, 176
      %v4662 = vld [vmem:[%s4661] sm:$0xff]
      %v4663 = vld [vmem:[%s4661 + $0x8] sm:$0x3f]
      %v4664 = vpack.c.bf16 %v4663, %v4662
      %v4666 = vsel %vm194, %v4664, 0
      %4668 = vmatprep.subr.bf16.mxu0 0
      %4669 = vmatpush1.bf16.msra.mxu0 %v515
      %4670 = vmatprep.subr.bf16.mxu0 0
      %4671 = vmatpush1.bf16.msra.mxu0 0
      %4672 = vmatprep.subr.bf16.mxu0 0
      %4673 = vmatpush1.bf16.msra.mxu0 0
      %4674 = vmatprep.subr.bf16.mxu0 0
      %4675 = vmatpush1.bf16.msra.mxu0 0
      %4676 = vmatprep.subr.bf16.mxu0 0
      %4677 = vmatpush1.bf16.msra.mxu0 0
      %4678 = vmatprep.subr.bf16.mxu0 0
      %4679 = vmatpush1.bf16.msra.mxu0 0
      %4680 = vmatprep.subr.bf16.mxu0 0
      %4681 = vmatpush1.bf16.msra.mxu0 0
      %4682 = vmatprep.subr.bf16.mxu0 0
      %4683 = vmatpush1.bf16.msra.mxu0 0
      %4684 = vmatprep.subr.bf16.mxu0 0
      %4685 = vmatpush1.bf16.msra.mxu0 0
      %4686 = vmatprep.subr.bf16.mxu0 0
      %4687 = vmatpush1.bf16.msra.mxu0 0
      %4688 = vmatprep.subr.bf16.mxu0 0
      %4689 = vmatpush1.bf16.msra.mxu0 0
      %4690 = vmatprep.subr.bf16.mxu0 0
      %4691 = vmatpush1.bf16.msra.mxu0 0
      %4692 = vmatprep.subr.bf16.mxu0 0
      %4693 = vmatpush1.bf16.msra.mxu0 0
      %4694 = vmatprep.subr.bf16.mxu0 0
      %4695 = vmatpush1.bf16.msra.mxu0 0
      %4696 = vmatprep.subr.bf16.mxu0 0
      %4697 = vmatpush1.bf16.msra.mxu0 0
      %4698 = vmatprep.subr.bf16.mxu0 0
      %4699 = vmatpush1.bf16.msra.mxu0 0
      %4700 = vmatprep.mubr.bf16.mxu0 0
      %4701 = vmatmul.mubr.bf16.gmra.mrb[0].mxu0 %v4666
      %v4702 = vpop.f32.mrb[0].mxu0
      %v4703 = vadd.f32 0.0, %v4702
      %v4704 = vpop.f32.mrb[0].mxu0
      %v4705 = vpop.f32.mrb[0].mxu0
      %v4706 = vadd.f32 0.0, %v4705
      %v4707 = vpop.f32.mrb[0].mxu0
      %4708 = vdwg.mxu0
      %v4709 = vadd.f32 %v4659, %v4703
      %v4710 = vadd.f32 %v4660, %v4706
      %v4711 = vld [vmem:[%s4661 + $0x1] sm:$0xff]
      %v4712 = vld [vmem:[%s4661 + $0x9] sm:$0x3f]
      %v4713 = vpack.c.bf16 %v4712, %v4711
      %v4715 = vsel %vm194, %v4713, 0
      %4717 = vmatprep.subr.bf16.mxu0 0
      %4718 = vmatpush1.bf16.msra.mxu0 %v571
      %4719 = vmatprep.subr.bf16.mxu0 0
      %4720 = vmatpush1.bf16.msra.mxu0 0
      %4721 = vmatprep.subr.bf16.mxu0 0
      %4722 = vmatpush1.bf16.msra.mxu0 0
      %4723 = vmatprep.subr.bf16.mxu0 0
      %4724 = vmatpush1.bf16.msra.mxu0 0
      %4725 = vmatprep.subr.bf16.mxu0 0
      %4726 = vmatpush1.bf16.msra.mxu0 0
      %4727 = vmatprep.subr.bf16.mxu0 0
      %4728 = vmatpush1.bf16.msra.mxu0 0
      %4729 = vmatprep.subr.bf16.mxu0 0
      %4730 = vmatpush1.bf16.msra.mxu0 0
      %4731 = vmatprep.subr.bf16.mxu0 0
      %4732 = vmatpush1.bf16.msra.mxu0 0
      %4733 = vmatprep.subr.bf16.mxu0 0
      %4734 = vmatpush1.bf16.msra.mxu0 0
      %4735 = vmatprep.subr.bf16.mxu0 0
      %4736 = vmatpush1.bf16.msra.mxu0 0
      %4737 = vmatprep.subr.bf16.mxu0 0
      %4738 = vmatpush1.bf16.msra.mxu0 0
      %4739 = vmatprep.subr.bf16.mxu0 0
      %4740 = vmatpush1.bf16.msra.mxu0 0
      %4741 = vmatprep.subr.bf16.mxu0 0
      %4742 = vmatpush1.bf16.msra.mxu0 0
      %4743 = vmatprep.subr.bf16.mxu0 0
      %4744 = vmatpush1.bf16.msra.mxu0 0
      %4745 = vmatprep.subr.bf16.mxu0 0
      %4746 = vmatpush1.bf16.msra.mxu0 0
      %4747 = vmatprep.subr.bf16.mxu0 0
      %4748 = vmatpush1.bf16.msra.mxu0 0
      %4749 = vmatprep.mubr.bf16.mxu0 0
      %4750 = vmatmul.mubr.bf16.gmra.mrb[0].mxu0 %v4715
      %v4751 = vpop.f32.mrb[0].mxu0
      %v4752 = vadd.f32 0.0, %v4751
      %v4753 = vpop.f32.mrb[0].mxu0
      %v4754 = vpop.f32.mrb[0].mxu0
      %v4755 = vadd.f32 0.0, %v4754
      %v4756 = vpop.f32.mrb[0].mxu0
      %4757 = vdwg.mxu0
      %v4758 = vadd.f32 %v4709, %v4752
      %v4759 = vadd.f32 %v4710, %v4755
      %v4760 = vld [vmem:[%s4661 + $0x2] sm:$0xff]
      %v4761 = vld [vmem:[%s4661 + $0xa] sm:$0x3f]
      %v4762 = vpack.c.bf16 %v4761, %v4760
      %v4764 = vsel %vm194, %v4762, 0
      %4766 = vmatprep.subr.bf16.mxu0 0
      %4767 = vmatpush1.bf16.msra.mxu0 %v623
      %4768 = vmatprep.subr.bf16.mxu0 0
      %4769 = vmatpush1.bf16.msra.mxu0 0
      %4770 = vmatprep.subr.bf16.mxu0 0
      %4771 = vmatpush1.bf16.msra.mxu0 0
      %4772 = vmatprep.subr.bf16.mxu0 0
      %4773 = vmatpush1.bf16.msra.mxu0 0
      %4774 = vmatprep.subr.bf16.mxu0 0
      %4775 = vmatpush1.bf16.msra.mxu0 0
      %4776 = vmatprep.subr.bf16.mxu0 0
      %4777 = vmatpush1.bf16.msra.mxu0 0
      %4778 = vmatprep.subr.bf16.mxu0 0
      %4779 = vmatpush1.bf16.msra.mxu0 0
      %4780 = vmatprep.subr.bf16.mxu0 0
      %4781 = vmatpush1.bf16.msra.mxu0 0
      %4782 = vmatprep.subr.bf16.mxu0 0
      %4783 = vmatpush1.bf16.msra.mxu0 0
      %4784 = vmatprep.subr.bf16.mxu0 0
      %4785 = vmatpush1.bf16.msra.mxu0 0
      %4786 = vmatprep.subr.bf16.mxu0 0
      %4787 = vmatpush1.bf16.msra.mxu0 0
      %4788 = vmatprep.subr.bf16.mxu0 0
      %4789 = vmatpush1.bf16.msra.mxu0 0
      %4790 = vmatprep.subr.bf16.mxu0 0
      %4791 = vmatpush1.bf16.msra.mxu0 0
      %4792 = vmatprep.subr.bf16.mxu0 0
      %4793 = vmatpush1.bf16.msra.mxu0 0
      %4794 = vmatprep.subr.bf16.mxu0 0
      %4795 = vmatpush1.bf16.msra.mxu0 0
      %4796 = vmatprep.subr.bf16.mxu0 0
      %4797 = vmatpush1.bf16.msra.mxu0 0
      %4798 = vmatprep.mubr.bf16.mxu0 0
      %4799 = vmatmul.mubr.bf16.gmra.mrb[0].mxu0 %v4764
      %v4800 = vpop.f32.mrb[0].mxu0
      %v4801 = vadd.f32 0.0, %v4800
      %v4802 = vpop.f32.mrb[0].mxu0
      %v4803 = vpop.f32.mrb[0].mxu0
      %v4804 = vadd.f32 0.0, %v4803
      %v4805 = vpop.f32.mrb[0].mxu0
      %4806 = vdwg.mxu0
      %v4807 = vadd.f32 %v4758, %v4801
      %v4808 = vadd.f32 %v4759, %v4804
      %4809 = vst [vmem:[%s168 + $0x7e] sm:$0xff] %v4807
      %4810 = vst [vmem:[%s168 + $0x86] sm:$0x3f] %v4808
      %v4811 = vsel %vm670, %v4808, 0.0
      %v4812 = vadd.f32 %v4807, %v4811
      %v4813 = vrot.slane %v4812, 4
      %v4814 = vadd.f32 %v4812, %v4813
      %v4815 = vrot.slane %v4814, 2
      %v4816 = vadd.f32 %v4814, %v4815
      %v4817 = vrot.slane %v4816, 1
      %v4818 = vadd.f32 %v4816, %v4817
      %v4819 = vadd.f32 %v4359, %v4818
      %v4820 = vmul.f32 %v4807, %v4807
      %v4821 = vmul.f32 %v4808, %v4808
      %v4822 = vsel %vm670, %v4821, 0.0
      %v4823 = vadd.f32 %v4820, %v4822
      %v4824 = vrot.slane %v4823, 4
      %v4825 = vadd.f32 %v4823, %v4824
      %v4826 = vrot.slane %v4825, 2
      %v4827 = vadd.f32 %v4825, %v4826
      %v4828 = vrot.slane %v4827, 1
      %v4829 = vadd.f32 %v4827, %v4828
      %v4830 = vadd.f32 %v4370, %v4829
      %v4831 = vld [vmem:[%s4201] sm:$0xff]
      %v4832 = vld [vmem:[%s4201 + $0x8] sm:$0x3f]
      %v4833 = vpack.c.bf16 %v4832, %v4831
      %v4834 = vld [vmem:[%s4201 + $0x1] sm:$0xff]
      %v4835 = vld [vmem:[%s4201 + $0x9] sm:$0x3f]
      %v4836 = vpack.c.bf16 %v4835, %v4834
      %v4838 = vsel %vm194, %v4836, 0
      %4840 = vmatprep.subr.bf16.mxu0 0
      %4841 = vmatpush1.bf16.msra.mxu0 %v200
      %4842 = vmatprep.subr.bf16.mxu0 0
      %4843 = vmatpush1.bf16.msra.mxu0 0
      %4844 = vmatprep.subr.bf16.mxu0 0
      %4845 = vmatpush1.bf16.msra.mxu0 0
      %4846 = vmatprep.subr.bf16.mxu0 0
      %4847 = vmatpush1.bf16.msra.mxu0 0
      %4848 = vmatprep.subr.bf16.mxu0 0
      %4849 = vmatpush1.bf16.msra.mxu0 0
      %4850 = vmatprep.subr.bf16.mxu0 0
      %4851 = vmatpush1.bf16.msra.mxu0 0
      %4852 = vmatprep.subr.bf16.mxu0 0
      %4853 = vmatpush1.bf16.msra.mxu0 0
      %4854 = vmatprep.subr.bf16.mxu0 0
      %4855 = vmatpush1.bf16.msra.mxu0 0
      %4856 = vmatprep.subr.bf16.mxu0 0
      %4857 = vmatpush1.bf16.msra.mxu0 0
      %4858 = vmatprep.subr.bf16.mxu0 0
      %4859 = vmatpush1.bf16.msra.mxu0 0
      %4860 = vmatprep.subr.bf16.mxu0 0
      %4861 = vmatpush1.bf16.msra.mxu0 0
      %4862 = vmatprep.subr.bf16.mxu0 0
      %4863 = vmatpush1.bf16.msra.mxu0 0
      %4864 = vmatprep.subr.bf16.mxu0 0
      %4865 = vmatpush1.bf16.msra.mxu0 0
      %4866 = vmatprep.subr.bf16.mxu0 0
      %4867 = vmatpush1.bf16.msra.mxu0 0
      %4868 = vmatprep.subr.bf16.mxu0 0
      %4869 = vmatpush1.bf16.msra.mxu0 0
      %4870 = vmatprep.subr.bf16.mxu0 0
      %4871 = vmatpush1.bf16.msra.mxu0 0
      %4872 = vmatprep.mubr.bf16.mxu0 0
      %4873 = vmatmul.mubr.bf16.gmra.mrb[0].mxu0 %v4838
      %v4874 = vpop.f32.mrb[0].mxu0
      %v4875 = vadd.f32 0.0, %v4874
      %v4876 = vpop.f32.mrb[0].mxu0
      %v4877 = vpop.f32.mrb[0].mxu0
      %v4878 = vadd.f32 0.0, %v4877
      %v4879 = vpop.f32.mrb[0].mxu0
      %4880 = vdwg.mxu0
      %v4882 = vsel %vm194, %v4833, 0
      %4884 = vmatprep.subr.bf16.mxu0 0
      %4885 = vmatpush1.bf16.msra.mxu0 %v247
      %4886 = vmatprep.subr.bf16.mxu0 0
      %4887 = vmatpush1.bf16.msra.mxu0 0
      %4888 = vmatprep.subr.bf16.mxu0 0
      %4889 = vmatpush1.bf16.msra.mxu0 0
      %4890 = vmatprep.subr.bf16.mxu0 0
      %4891 = vmatpush1.bf16.msra.mxu0 0
      %4892 = vmatprep.subr.bf16.mxu0 0
      %4893 = vmatpush1.bf16.msra.mxu0 0
      %4894 = vmatprep.subr.bf16.mxu0 0
      %4895 = vmatpush1.bf16.msra.mxu0 0
      %4896 = vmatprep.subr.bf16.mxu0 0
      %4897 = vmatpush1.bf16.msra.mxu0 0
      %4898 = vmatprep.subr.bf16.mxu0 0
      %4899 = vmatpush1.bf16.msra.mxu0 0
      %4900 = vmatprep.subr.bf16.mxu0 0
      %4901 = vmatpush1.bf16.msra.mxu0 0
      %4902 = vmatprep.subr.bf16.mxu0 0
      %4903 = vmatpush1.bf16.msra.mxu0 0
      %4904 = vmatprep.subr.bf16.mxu0 0
      %4905 = vmatpush1.bf16.msra.mxu0 0
      %4906 = vmatprep.subr.bf16.mxu0 0
      %4907 = vmatpush1.bf16.msra.mxu0 0
      %4908 = vmatprep.subr.bf16.mxu0 0
      %4909 = vmatpush1.bf16.msra.mxu0 0
      %4910 = vmatprep.subr.bf16.mxu0 0
      %4911 = vmatpush1.bf16.msra.mxu0 0
      %4912 = vmatprep.subr.bf16.mxu0 0
      %4913 = vmatpush1.bf16.msra.mxu0 0
      %4914 = vmatprep.subr.bf16.mxu0 0
      %4915 = vmatpush1.bf16.msra.mxu0 0
      %4916 = vmatprep.mubr.bf16.mxu0 0
      %4917 = vmatmul.mubr.bf16.gmra.mrb[0].mxu0 %v4882
      %v4918 = vpop.f32.mrb[0].mxu0
      %v4919 = vadd.f32 %v4875, %v4918
      %v4920 = vpop.f32.mrb[0].mxu0
      %v4921 = vpop.f32.mrb[0].mxu0
      %v4922 = vadd.f32 %v4878, %v4921
      %v4923 = vpop.f32.mrb[0].mxu0
      %4924 = vdwg.mxu0
      %v4925 = vld [vmem:[%s4201 + $0x2] sm:$0xff]
      %v4926 = vld [vmem:[%s4201 + $0xa] sm:$0x3f]
      %v4927 = vpack.c.bf16 %v4926, %v4925
      %v4929 = vsel %vm194, %v4927, 0
      %4931 = vmatprep.subr.bf16.mxu0 0
      %4932 = vmatpush1.bf16.msra.mxu0 %v297
      %4933 = vmatprep.subr.bf16.mxu0 0
      %4934 = vmatpush1.bf16.msra.mxu0 0
      %4935 = vmatprep.subr.bf16.mxu0 0
      %4936 = vmatpush1.bf16.msra.mxu0 0
      %4937 = vmatprep.subr.bf16.mxu0 0
      %4938 = vmatpush1.bf16.msra.mxu0 0
      %4939 = vmatprep.subr.bf16.mxu0 0
      %4940 = vmatpush1.bf16.msra.mxu0 0
      %4941 = vmatprep.subr.bf16.mxu0 0
      %4942 = vmatpush1.bf16.msra.mxu0 0
      %4943 = vmatprep.subr.bf16.mxu0 0
      %4944 = vmatpush1.bf16.msra.mxu0 0
      %4945 = vmatprep.subr.bf16.mxu0 0
      %4946 = vmatpush1.bf16.msra.mxu0 0
      %4947 = vmatprep.subr.bf16.mxu0 0
      %4948 = vmatpush1.bf16.msra.mxu0 0
      %4949 = vmatprep.subr.bf16.mxu0 0
      %4950 = vmatpush1.bf16.msra.mxu0 0
      %4951 = vmatprep.subr.bf16.mxu0 0
      %4952 = vmatpush1.bf16.msra.mxu0 0
      %4953 = vmatprep.subr.bf16.mxu0 0
      %4954 = vmatpush1.bf16.msra.mxu0 0
      %4955 = vmatprep.subr.bf16.mxu0 0
      %4956 = vmatpush1.bf16.msra.mxu0 0
      %4957 = vmatprep.subr.bf16.mxu0 0
      %4958 = vmatpush1.bf16.msra.mxu0 0
      %4959 = vmatprep.subr.bf16.mxu0 0
      %4960 = vmatpush1.bf16.msra.mxu0 0
      %4961 = vmatprep.subr.bf16.mxu0 0
      %4962 = vmatpush1.bf16.msra.mxu0 0
      %4963 = vmatprep.mubr.bf16.mxu0 0
      %4964 = vmatmul.mubr.bf16.gmra.mrb[0].mxu0 %v4929
      %v4965 = vpop.f32.mrb[0].mxu0
      %v4966 = vadd.f32 0.0, %v4965
      %v4967 = vpop.f32.mrb[0].mxu0
      %v4968 = vpop.f32.mrb[0].mxu0
      %v4969 = vadd.f32 0.0, %v4968
      %v4970 = vpop.f32.mrb[0].mxu0
      %4971 = vdwg.mxu0
      %v4972 = vadd.f32 %v4919, %v4966
      %v4973 = vadd.f32 %v4922, %v4969
      %v4974 = vld [vmem:[%s4661] sm:$0xff]
      %v4975 = vld [vmem:[%s4661 + $0x8] sm:$0x3f]
      %v4976 = vpack.c.bf16 %v4975, %v4974
      %v4978 = vsel %vm194, %v4976, 0
      %4980 = vmatprep.subr.bf16.mxu0 0
      %4981 = vmatpush1.bf16.msra.mxu0 %v354
      %4982 = vmatprep.subr.bf16.mxu0 0
      %4983 = vmatpush1.bf16.msra.mxu0 0
      %4984 = vmatprep.subr.bf16.mxu0 0
      %4985 = vmatpush1.bf16.msra.mxu0 0
      %4986 = vmatprep.subr.bf16.mxu0 0
      %4987 = vmatpush1.bf16.msra.mxu0 0
      %4988 = vmatprep.subr.bf16.mxu0 0
      %4989 = vmatpush1.bf16.msra.mxu0 0
      %4990 = vmatprep.subr.bf16.mxu0 0
      %4991 = vmatpush1.bf16.msra.mxu0 0
      %4992 = vmatprep.subr.bf16.mxu0 0
      %4993 = vmatpush1.bf16.msra.mxu0 0
      %4994 = vmatprep.subr.bf16.mxu0 0
      %4995 = vmatpush1.bf16.msra.mxu0 0
      %4996 = vmatprep.subr.bf16.mxu0 0
      %4997 = vmatpush1.bf16.msra.mxu0 0
      %4998 = vmatprep.subr.bf16.mxu0 0
      %4999 = vmatpush1.bf16.msra.mxu0 0
      %5000 = vmatprep.subr.bf16.mxu0 0
      %5001 = vmatpush1.bf16.msra.mxu0 0
      %5002 = vmatprep.subr.bf16.mxu0 0
      %5003 = vmatpush1.bf16.msra.mxu0 0
      %5004 = vmatprep.subr.bf16.mxu0 0
      %5005 = vmatpush1.bf16.msra.mxu0 0
      %5006 = vmatprep.subr.bf16.mxu0 0
      %5007 = vmatpush1.bf16.msra.mxu0 0
      %5008 = vmatprep.subr.bf16.mxu0 0
      %5009 = vmatpush1.bf16.msra.mxu0 0
      %5010 = vmatprep.subr.bf16.mxu0 0
      %5011 = vmatpush1.bf16.msra.mxu0 0
      %5012 = vmatprep.mubr.bf16.mxu0 0
      %5013 = vmatmul.mubr.bf16.gmra.mrb[0].mxu0 %v4978
      %v5014 = vpop.f32.mrb[0].mxu0
      %v5015 = vadd.f32 0.0, %v5014
      %v5016 = vpop.f32.mrb[0].mxu0
      %v5017 = vpop.f32.mrb[0].mxu0
      %v5018 = vadd.f32 0.0, %v5017
      %v5019 = vpop.f32.mrb[0].mxu0
      %5020 = vdwg.mxu0
      %v5021 = vadd.f32 %v4972, %v5015
      %v5022 = vadd.f32 %v4973, %v5018
      %v5023 = vld [vmem:[%s4661 + $0x1] sm:$0xff]
      %v5024 = vld [vmem:[%s4661 + $0x9] sm:$0x3f]
      %v5025 = vpack.c.bf16 %v5024, %v5023
      %v5027 = vsel %vm194, %v5025, 0
      %5029 = vmatprep.subr.bf16.mxu0 0
      %5030 = vmatpush1.bf16.msra.mxu0 %v406
      %5031 = vmatprep.subr.bf16.mxu0 0
      %5032 = vmatpush1.bf16.msra.mxu0 0
      %5033 = vmatprep.subr.bf16.mxu0 0
      %5034 = vmatpush1.bf16.msra.mxu0 0
      %5035 = vmatprep.subr.bf16.mxu0 0
      %5036 = vmatpush1.bf16.msra.mxu0 0
      %5037 = vmatprep.subr.bf16.mxu0 0
      %5038 = vmatpush1.bf16.msra.mxu0 0
      %5039 = vmatprep.subr.bf16.mxu0 0
      %5040 = vmatpush1.bf16.msra.mxu0 0
      %5041 = vmatprep.subr.bf16.mxu0 0
      %5042 = vmatpush1.bf16.msra.mxu0 0
      %5043 = vmatprep.subr.bf16.mxu0 0
      %5044 = vmatpush1.bf16.msra.mxu0 0
      %5045 = vmatprep.subr.bf16.mxu0 0
      %5046 = vmatpush1.bf16.msra.mxu0 0
      %5047 = vmatprep.subr.bf16.mxu0 0
      %5048 = vmatpush1.bf16.msra.mxu0 0
      %5049 = vmatprep.subr.bf16.mxu0 0
      %5050 = vmatpush1.bf16.msra.mxu0 0
      %5051 = vmatprep.subr.bf16.mxu0 0
      %5052 = vmatpush1.bf16.msra.mxu0 0
      %5053 = vmatprep.subr.bf16.mxu0 0
      %5054 = vmatpush1.bf16.msra.mxu0 0
      %5055 = vmatprep.subr.bf16.mxu0 0
      %5056 = vmatpush1.bf16.msra.mxu0 0
      %5057 = vmatprep.subr.bf16.mxu0 0
      %5058 = vmatpush1.bf16.msra.mxu0 0
      %5059 = vmatprep.subr.bf16.mxu0 0
      %5060 = vmatpush1.bf16.msra.mxu0 0
      %5061 = vmatprep.mubr.bf16.mxu0 0
      %5062 = vmatmul.mubr.bf16.gmra.mrb[0].mxu0 %v5027
      %v5063 = vpop.f32.mrb[0].mxu0
      %v5064 = vadd.f32 0.0, %v5063
      %v5065 = vpop.f32.mrb[0].mxu0
      %v5066 = vpop.f32.mrb[0].mxu0
      %v5067 = vadd.f32 0.0, %v5066
      %v5068 = vpop.f32.mrb[0].mxu0
      %5069 = vdwg.mxu0
      %v5070 = vadd.f32 %v5021, %v5064
      %v5071 = vadd.f32 %v5022, %v5067
      %v5072 = vld [vmem:[%s4661 + $0x2] sm:$0xff]
      %v5073 = vld [vmem:[%s4661 + $0xa] sm:$0x3f]
      %v5074 = vpack.c.bf16 %v5073, %v5072
      %v5076 = vsel %vm194, %v5074, 0
      %5078 = vmatprep.subr.bf16.mxu0 0
      %5079 = vmatpush1.bf16.msra.mxu0 %v462
      %5080 = vmatprep.subr.bf16.mxu0 0
      %5081 = vmatpush1.bf16.msra.mxu0 0
      %5082 = vmatprep.subr.bf16.mxu0 0
      %5083 = vmatpush1.bf16.msra.mxu0 0
      %5084 = vmatprep.subr.bf16.mxu0 0
      %5085 = vmatpush1.bf16.msra.mxu0 0
      %5086 = vmatprep.subr.bf16.mxu0 0
      %5087 = vmatpush1.bf16.msra.mxu0 0
      %5088 = vmatprep.subr.bf16.mxu0 0
      %5089 = vmatpush1.bf16.msra.mxu0 0
      %5090 = vmatprep.subr.bf16.mxu0 0
      %5091 = vmatpush1.bf16.msra.mxu0 0
      %5092 = vmatprep.subr.bf16.mxu0 0
      %5093 = vmatpush1.bf16.msra.mxu0 0
      %5094 = vmatprep.subr.bf16.mxu0 0
      %5095 = vmatpush1.bf16.msra.mxu0 0
      %5096 = vmatprep.subr.bf16.mxu0 0
      %5097 = vmatpush1.bf16.msra.mxu0 0
      %5098 = vmatprep.subr.bf16.mxu0 0
      %5099 = vmatpush1.bf16.msra.mxu0 0
      %5100 = vmatprep.subr.bf16.mxu0 0
      %5101 = vmatpush1.bf16.msra.mxu0 0
      %5102 = vmatprep.subr.bf16.mxu0 0
      %5103 = vmatpush1.bf16.msra.mxu0 0
      %5104 = vmatprep.subr.bf16.mxu0 0
      %5105 = vmatpush1.bf16.msra.mxu0 0
      %5106 = vmatprep.subr.bf16.mxu0 0
      %5107 = vmatpush1.bf16.msra.mxu0 0
      %5108 = vmatprep.subr.bf16.mxu0 0
      %5109 = vmatpush1.bf16.msra.mxu0 0
      %5110 = vmatprep.mubr.bf16.mxu0 0
      %5111 = vmatmul.mubr.bf16.gmra.mrb[0].mxu0 %v5076
      %v5112 = vpop.f32.mrb[0].mxu0
      %v5113 = vadd.f32 0.0, %v5112
      %v5114 = vpop.f32.mrb[0].mxu0
      %v5115 = vpop.f32.mrb[0].mxu0
      %v5116 = vadd.f32 0.0, %v5115
      %v5117 = vpop.f32.mrb[0].mxu0
      %5118 = vdwg.mxu0
      %v5119 = vadd.f32 %v5070, %v5113
      %v5120 = vadd.f32 %v5071, %v5116
      %s5121 = scalar_lea.vmem %s163, 192
      %v5122 = vld [vmem:[%s5121] sm:$0xff]
      %v5123 = vld [vmem:[%s5121 + $0x8] sm:$0x3f]
      %v5124 = vpack.c.bf16 %v5123, %v5122
      %v5126 = vsel %vm194, %v5124, 0
      %5128 = vmatprep.subr.bf16.mxu0 0
      %5129 = vmatpush1.bf16.msra.mxu0 %v515
      %5130 = vmatprep.subr.bf16.mxu0 0
      %5131 = vmatpush1.bf16.msra.mxu0 0
      %5132 = vmatprep.subr.bf16.mxu0 0
      %5133 = vmatpush1.bf16.msra.mxu0 0
      %5134 = vmatprep.subr.bf16.mxu0 0
      %5135 = vmatpush1.bf16.msra.mxu0 0
      %5136 = vmatprep.subr.bf16.mxu0 0
      %5137 = vmatpush1.bf16.msra.mxu0 0
      %5138 = vmatprep.subr.bf16.mxu0 0
      %5139 = vmatpush1.bf16.msra.mxu0 0
      %5140 = vmatprep.subr.bf16.mxu0 0
      %5141 = vmatpush1.bf16.msra.mxu0 0
      %5142 = vmatprep.subr.bf16.mxu0 0
      %5143 = vmatpush1.bf16.msra.mxu0 0
      %5144 = vmatprep.subr.bf16.mxu0 0
      %5145 = vmatpush1.bf16.msra.mxu0 0
      %5146 = vmatprep.subr.bf16.mxu0 0
      %5147 = vmatpush1.bf16.msra.mxu0 0
      %5148 = vmatprep.subr.bf16.mxu0 0
      %5149 = vmatpush1.bf16.msra.mxu0 0
      %5150 = vmatprep.subr.bf16.mxu0 0
      %5151 = vmatpush1.bf16.msra.mxu0 0
      %5152 = vmatprep.subr.bf16.mxu0 0
      %5153 = vmatpush1.bf16.msra.mxu0 0
      %5154 = vmatprep.subr.bf16.mxu0 0
      %5155 = vmatpush1.bf16.msra.mxu0 0
      %5156 = vmatprep.subr.bf16.mxu0 0
      %5157 = vmatpush1.bf16.msra.mxu0 0
      %5158 = vmatprep.subr.bf16.mxu0 0
      %5159 = vmatpush1.bf16.msra.mxu0 0
      %5160 = vmatprep.mubr.bf16.mxu0 0
      %5161 = vmatmul.mubr.bf16.gmra.mrb[0].mxu0 %v5126
      %v5162 = vpop.f32.mrb[0].mxu0
      %v5163 = vadd.f32 0.0, %v5162
      %v5164 = vpop.f32.mrb[0].mxu0
      %v5165 = vpop.f32.mrb[0].mxu0
      %v5166 = vadd.f32 0.0, %v5165
      %v5167 = vpop.f32.mrb[0].mxu0
      %5168 = vdwg.mxu0
      %v5169 = vadd.f32 %v5119, %v5163
      %v5170 = vadd.f32 %v5120, %v5166
      %v5171 = vld [vmem:[%s5121 + $0x1] sm:$0xff]
      %v5172 = vld [vmem:[%s5121 + $0x9] sm:$0x3f]
      %v5173 = vpack.c.bf16 %v5172, %v5171
      %v5175 = vsel %vm194, %v5173, 0
      %5177 = vmatprep.subr.bf16.mxu0 0
      %5178 = vmatpush1.bf16.msra.mxu0 %v571
      %5179 = vmatprep.subr.bf16.mxu0 0
      %5180 = vmatpush1.bf16.msra.mxu0 0
      %5181 = vmatprep.subr.bf16.mxu0 0
      %5182 = vmatpush1.bf16.msra.mxu0 0
      %5183 = vmatprep.subr.bf16.mxu0 0
      %5184 = vmatpush1.bf16.msra.mxu0 0
      %5185 = vmatprep.subr.bf16.mxu0 0
      %5186 = vmatpush1.bf16.msra.mxu0 0
      %5187 = vmatprep.subr.bf16.mxu0 0
      %5188 = vmatpush1.bf16.msra.mxu0 0
      %5189 = vmatprep.subr.bf16.mxu0 0
      %5190 = vmatpush1.bf16.msra.mxu0 0
      %5191 = vmatprep.subr.bf16.mxu0 0
      %5192 = vmatpush1.bf16.msra.mxu0 0
      %5193 = vmatprep.subr.bf16.mxu0 0
      %5194 = vmatpush1.bf16.msra.mxu0 0
      %5195 = vmatprep.subr.bf16.mxu0 0
      %5196 = vmatpush1.bf16.msra.mxu0 0
      %5197 = vmatprep.subr.bf16.mxu0 0
      %5198 = vmatpush1.bf16.msra.mxu0 0
      %5199 = vmatprep.subr.bf16.mxu0 0
      %5200 = vmatpush1.bf16.msra.mxu0 0
      %5201 = vmatprep.subr.bf16.mxu0 0
      %5202 = vmatpush1.bf16.msra.mxu0 0
      %5203 = vmatprep.subr.bf16.mxu0 0
      %5204 = vmatpush1.bf16.msra.mxu0 0
      %5205 = vmatprep.subr.bf16.mxu0 0
      %5206 = vmatpush1.bf16.msra.mxu0 0
      %5207 = vmatprep.subr.bf16.mxu0 0
      %5208 = vmatpush1.bf16.msra.mxu0 0
      %5209 = vmatprep.mubr.bf16.mxu0 0
      %5210 = vmatmul.mubr.bf16.gmra.mrb[0].mxu0 %v5175
      %v5211 = vpop.f32.mrb[0].mxu0
      %v5212 = vadd.f32 0.0, %v5211
      %v5213 = vpop.f32.mrb[0].mxu0
      %v5214 = vpop.f32.mrb[0].mxu0
      %v5215 = vadd.f32 0.0, %v5214
      %v5216 = vpop.f32.mrb[0].mxu0
      %5217 = vdwg.mxu0
      %v5218 = vadd.f32 %v5169, %v5212
      %v5219 = vadd.f32 %v5170, %v5215
      %v5220 = vld [vmem:[%s5121 + $0x2] sm:$0xff]
      %v5221 = vld [vmem:[%s5121 + $0xa] sm:$0x3f]
      %v5222 = vpack.c.bf16 %v5221, %v5220
      %v5224 = vsel %vm194, %v5222, 0
      %5226 = vmatprep.subr.bf16.mxu0 0
      %5227 = vmatpush1.bf16.msra.mxu0 %v623
      %5228 = vmatprep.subr.bf16.mxu0 0
      %5229 = vmatpush1.bf16.msra.mxu0 0
      %5230 = vmatprep.subr.bf16.mxu0 0
      %5231 = vmatpush1.bf16.msra.mxu0 0
      %5232 = vmatprep.subr.bf16.mxu0 0
      %5233 = vmatpush1.bf16.msra.mxu0 0
      %5234 = vmatprep.subr.bf16.mxu0 0
      %5235 = vmatpush1.bf16.msra.mxu0 0
      %5236 = vmatprep.subr.bf16.mxu0 0
      %5237 = vmatpush1.bf16.msra.mxu0 0
      %5238 = vmatprep.subr.bf16.mxu0 0
      %5239 = vmatpush1.bf16.msra.mxu0 0
      %5240 = vmatprep.subr.bf16.mxu0 0
      %5241 = vmatpush1.bf16.msra.mxu0 0
      %5242 = vmatprep.subr.bf16.mxu0 0
      %5243 = vmatpush1.bf16.msra.mxu0 0
      %5244 = vmatprep.subr.bf16.mxu0 0
      %5245 = vmatpush1.bf16.msra.mxu0 0
      %5246 = vmatprep.subr.bf16.mxu0 0
      %5247 = vmatpush1.bf16.msra.mxu0 0
      %5248 = vmatprep.subr.bf16.mxu0 0
      %5249 = vmatpush1.bf16.msra.mxu0 0
      %5250 = vmatprep.subr.bf16.mxu0 0
      %5251 = vmatpush1.bf16.msra.mxu0 0
      %5252 = vmatprep.subr.bf16.mxu0 0
      %5253 = vmatpush1.bf16.msra.mxu0 0
      %5254 = vmatprep.subr.bf16.mxu0 0
      %5255 = vmatpush1.bf16.msra.mxu0 0
      %5256 = vmatprep.subr.bf16.mxu0 0
      %5257 = vmatpush1.bf16.msra.mxu0 0
      %5258 = vmatprep.mubr.bf16.mxu0 0
      %5259 = vmatmul.mubr.bf16.gmra.mrb[0].mxu0 %v5224
      %v5260 = vpop.f32.mrb[0].mxu0
      %v5261 = vadd.f32 0.0, %v5260
      %v5262 = vpop.f32.mrb[0].mxu0
      %v5263 = vpop.f32.mrb[0].mxu0
      %v5264 = vadd.f32 0.0, %v5263
      %v5265 = vpop.f32.mrb[0].mxu0
      %5266 = vdwg.mxu0
      %v5267 = vadd.f32 %v5218, %v5261
      %v5268 = vadd.f32 %v5219, %v5264
      %5269 = vst [vmem:[%s168 + $0x8c] sm:$0xff] %v5267
      %5270 = vst [vmem:[%s168 + $0x94] sm:$0x3f] %v5268
      %v5271 = vsel %vm670, %v5268, 0.0
      %v5272 = vadd.f32 %v5267, %v5271
      %v5273 = vrot.slane %v5272, 4
      %v5274 = vadd.f32 %v5272, %v5273
      %v5275 = vrot.slane %v5274, 2
      %v5276 = vadd.f32 %v5274, %v5275
      %v5277 = vrot.slane %v5276, 1
      %v5278 = vadd.f32 %v5276, %v5277
      %v5279 = vadd.f32 %v4819, %v5278
      %v5280 = vmul.f32 %v5267, %v5267
      %v5281 = vmul.f32 %v5268, %v5268
      %v5282 = vsel %vm670, %v5281, 0.0
      %v5283 = vadd.f32 %v5280, %v5282
      %v5284 = vrot.slane %v5283, 4
      %v5285 = vadd.f32 %v5283, %v5284
      %v5286 = vrot.slane %v5285, 2
      %v5287 = vadd.f32 %v5285, %v5286
      %v5288 = vrot.slane %v5287, 1
      %v5289 = vadd.f32 %v5287, %v5288
      %v5290 = vadd.f32 %v4830, %v5289
      %v5291 = vld [vmem:[%s4661] sm:$0xff]
      %v5292 = vld [vmem:[%s4661 + $0x8] sm:$0x3f]
      %v5293 = vpack.c.bf16 %v5292, %v5291
      %v5294 = vld [vmem:[%s4661 + $0x1] sm:$0xff]
      %v5295 = vld [vmem:[%s4661 + $0x9] sm:$0x3f]
      %v5296 = vpack.c.bf16 %v5295, %v5294
      %v5298 = vsel %vm194, %v5296, 0
      %5300 = vmatprep.subr.bf16.mxu0 0
      %5301 = vmatpush1.bf16.msra.mxu0 %v200
      %5302 = vmatprep.subr.bf16.mxu0 0
      %5303 = vmatpush1.bf16.msra.mxu0 0
      %5304 = vmatprep.subr.bf16.mxu0 0
      %5305 = vmatpush1.bf16.msra.mxu0 0
      %5306 = vmatprep.subr.bf16.mxu0 0
      %5307 = vmatpush1.bf16.msra.mxu0 0
      %5308 = vmatprep.subr.bf16.mxu0 0
      %5309 = vmatpush1.bf16.msra.mxu0 0
      %5310 = vmatprep.subr.bf16.mxu0 0
      %5311 = vmatpush1.bf16.msra.mxu0 0
      %5312 = vmatprep.subr.bf16.mxu0 0
      %5313 = vmatpush1.bf16.msra.mxu0 0
      %5314 = vmatprep.subr.bf16.mxu0 0
      %5315 = vmatpush1.bf16.msra.mxu0 0
      %5316 = vmatprep.subr.bf16.mxu0 0
      %5317 = vmatpush1.bf16.msra.mxu0 0
      %5318 = vmatprep.subr.bf16.mxu0 0
      %5319 = vmatpush1.bf16.msra.mxu0 0
      %5320 = vmatprep.subr.bf16.mxu0 0
      %5321 = vmatpush1.bf16.msra.mxu0 0
      %5322 = vmatprep.subr.bf16.mxu0 0
      %5323 = vmatpush1.bf16.msra.mxu0 0
      %5324 = vmatprep.subr.bf16.mxu0 0
      %5325 = vmatpush1.bf16.msra.mxu0 0
      %5326 = vmatprep.subr.bf16.mxu0 0
      %5327 = vmatpush1.bf16.msra.mxu0 0
      %5328 = vmatprep.subr.bf16.mxu0 0
      %5329 = vmatpush1.bf16.msra.mxu0 0
      %5330 = vmatprep.subr.bf16.mxu0 0
      %5331 = vmatpush1.bf16.msra.mxu0 0
      %5332 = vmatprep.mubr.bf16.mxu0 0
      %5333 = vmatmul.mubr.bf16.gmra.mrb[0].mxu0 %v5298
      %v5334 = vpop.f32.mrb[0].mxu0
      %v5335 = vadd.f32 0.0, %v5334
      %v5336 = vpop.f32.mrb[0].mxu0
      %v5337 = vpop.f32.mrb[0].mxu0
      %v5338 = vadd.f32 0.0, %v5337
      %v5339 = vpop.f32.mrb[0].mxu0
      %5340 = vdwg.mxu0
      %v5342 = vsel %vm194, %v5293, 0
      %5344 = vmatprep.subr.bf16.mxu0 0
      %5345 = vmatpush1.bf16.msra.mxu0 %v247
      %5346 = vmatprep.subr.bf16.mxu0 0
      %5347 = vmatpush1.bf16.msra.mxu0 0
      %5348 = vmatprep.subr.bf16.mxu0 0
      %5349 = vmatpush1.bf16.msra.mxu0 0
      %5350 = vmatprep.subr.bf16.mxu0 0
      %5351 = vmatpush1.bf16.msra.mxu0 0
      %5352 = vmatprep.subr.bf16.mxu0 0
      %5353 = vmatpush1.bf16.msra.mxu0 0
      %5354 = vmatprep.subr.bf16.mxu0 0
      %5355 = vmatpush1.bf16.msra.mxu0 0
      %5356 = vmatprep.subr.bf16.mxu0 0
      %5357 = vmatpush1.bf16.msra.mxu0 0
      %5358 = vmatprep.subr.bf16.mxu0 0
      %5359 = vmatpush1.bf16.msra.mxu0 0
      %5360 = vmatprep.subr.bf16.mxu0 0
      %5361 = vmatpush1.bf16.msra.mxu0 0
      %5362 = vmatprep.subr.bf16.mxu0 0
      %5363 = vmatpush1.bf16.msra.mxu0 0
      %5364 = vmatprep.subr.bf16.mxu0 0
      %5365 = vmatpush1.bf16.msra.mxu0 0
      %5366 = vmatprep.subr.bf16.mxu0 0
      %5367 = vmatpush1.bf16.msra.mxu0 0
      %5368 = vmatprep.subr.bf16.mxu0 0
      %5369 = vmatpush1.bf16.msra.mxu0 0
      %5370 = vmatprep.subr.bf16.mxu0 0
      %5371 = vmatpush1.bf16.msra.mxu0 0
      %5372 = vmatprep.subr.bf16.mxu0 0
      %5373 = vmatpush1.bf16.msra.mxu0 0
      %5374 = vmatprep.subr.bf16.mxu0 0
      %5375 = vmatpush1.bf16.msra.mxu0 0
      %5376 = vmatprep.mubr.bf16.mxu0 0
      %5377 = vmatmul.mubr.bf16.gmra.mrb[0].mxu0 %v5342
      %v5378 = vpop.f32.mrb[0].mxu0
      %v5379 = vadd.f32 %v5335, %v5378
      %v5380 = vpop.f32.mrb[0].mxu0
      %v5381 = vpop.f32.mrb[0].mxu0
      %v5382 = vadd.f32 %v5338, %v5381
      %v5383 = vpop.f32.mrb[0].mxu0
      %5384 = vdwg.mxu0
      %v5385 = vld [vmem:[%s4661 + $0x2] sm:$0xff]
      %v5386 = vld [vmem:[%s4661 + $0xa] sm:$0x3f]
      %v5387 = vpack.c.bf16 %v5386, %v5385
      %v5389 = vsel %vm194, %v5387, 0
      %5391 = vmatprep.subr.bf16.mxu0 0
      %5392 = vmatpush1.bf16.msra.mxu0 %v297
      %5393 = vmatprep.subr.bf16.mxu0 0
      %5394 = vmatpush1.bf16.msra.mxu0 0
      %5395 = vmatprep.subr.bf16.mxu0 0
      %5396 = vmatpush1.bf16.msra.mxu0 0
      %5397 = vmatprep.subr.bf16.mxu0 0
      %5398 = vmatpush1.bf16.msra.mxu0 0
      %5399 = vmatprep.subr.bf16.mxu0 0
      %5400 = vmatpush1.bf16.msra.mxu0 0
      %5401 = vmatprep.subr.bf16.mxu0 0
      %5402 = vmatpush1.bf16.msra.mxu0 0
      %5403 = vmatprep.subr.bf16.mxu0 0
      %5404 = vmatpush1.bf16.msra.mxu0 0
      %5405 = vmatprep.subr.bf16.mxu0 0
      %5406 = vmatpush1.bf16.msra.mxu0 0
      %5407 = vmatprep.subr.bf16.mxu0 0
      %5408 = vmatpush1.bf16.msra.mxu0 0
      %5409 = vmatprep.subr.bf16.mxu0 0
      %5410 = vmatpush1.bf16.msra.mxu0 0
      %5411 = vmatprep.subr.bf16.mxu0 0
      %5412 = vmatpush1.bf16.msra.mxu0 0
      %5413 = vmatprep.subr.bf16.mxu0 0
      %5414 = vmatpush1.bf16.msra.mxu0 0
      %5415 = vmatprep.subr.bf16.mxu0 0
      %5416 = vmatpush1.bf16.msra.mxu0 0
      %5417 = vmatprep.subr.bf16.mxu0 0
      %5418 = vmatpush1.bf16.msra.mxu0 0
      %5419 = vmatprep.subr.bf16.mxu0 0
      %5420 = vmatpush1.bf16.msra.mxu0 0
      %5421 = vmatprep.subr.bf16.mxu0 0
      %5422 = vmatpush1.bf16.msra.mxu0 0
      %5423 = vmatprep.mubr.bf16.mxu0 0
      %5424 = vmatmul.mubr.bf16.gmra.mrb[0].mxu0 %v5389
      %v5425 = vpop.f32.mrb[0].mxu0
      %v5426 = vadd.f32 0.0, %v5425
      %v5427 = vpop.f32.mrb[0].mxu0
      %v5428 = vpop.f32.mrb[0].mxu0
      %v5429 = vadd.f32 0.0, %v5428
      %v5430 = vpop.f32.mrb[0].mxu0
      %5431 = vdwg.mxu0
      %v5432 = vadd.f32 %v5379, %v5426
      %v5433 = vadd.f32 %v5382, %v5429
      %v5434 = vld [vmem:[%s5121] sm:$0xff]
      %v5435 = vld [vmem:[%s5121 + $0x8] sm:$0x3f]
      %v5436 = vpack.c.bf16 %v5435, %v5434
      %v5438 = vsel %vm194, %v5436, 0
      %5440 = vmatprep.subr.bf16.mxu0 0
      %5441 = vmatpush1.bf16.msra.mxu0 %v354
      %5442 = vmatprep.subr.bf16.mxu0 0
      %5443 = vmatpush1.bf16.msra.mxu0 0
      %5444 = vmatprep.subr.bf16.mxu0 0
      %5445 = vmatpush1.bf16.msra.mxu0 0
      %5446 = vmatprep.subr.bf16.mxu0 0
      %5447 = vmatpush1.bf16.msra.mxu0 0
      %5448 = vmatprep.subr.bf16.mxu0 0
      %5449 = vmatpush1.bf16.msra.mxu0 0
      %5450 = vmatprep.subr.bf16.mxu0 0
      %5451 = vmatpush1.bf16.msra.mxu0 0
      %5452 = vmatprep.subr.bf16.mxu0 0
      %5453 = vmatpush1.bf16.msra.mxu0 0
      %5454 = vmatprep.subr.bf16.mxu0 0
      %5455 = vmatpush1.bf16.msra.mxu0 0
      %5456 = vmatprep.subr.bf16.mxu0 0
      %5457 = vmatpush1.bf16.msra.mxu0 0
      %5458 = vmatprep.subr.bf16.mxu0 0
      %5459 = vmatpush1.bf16.msra.mxu0 0
      %5460 = vmatprep.subr.bf16.mxu0 0
      %5461 = vmatpush1.bf16.msra.mxu0 0
      %5462 = vmatprep.subr.bf16.mxu0 0
      %5463 = vmatpush1.bf16.msra.mxu0 0
      %5464 = vmatprep.subr.bf16.mxu0 0
      %5465 = vmatpush1.bf16.msra.mxu0 0
      %5466 = vmatprep.subr.bf16.mxu0 0
      %5467 = vmatpush1.bf16.msra.mxu0 0
      %5468 = vmatprep.subr.bf16.mxu0 0
      %5469 = vmatpush1.bf16.msra.mxu0 0
      %5470 = vmatprep.subr.bf16.mxu0 0
      %5471 = vmatpush1.bf16.msra.mxu0 0
      %5472 = vmatprep.mubr.bf16.mxu0 0
      %5473 = vmatmul.mubr.bf16.gmra.mrb[0].mxu0 %v5438
      %v5474 = vpop.f32.mrb[0].mxu0
      %v5475 = vadd.f32 0.0, %v5474
      %v5476 = vpop.f32.mrb[0].mxu0
      %v5477 = vpop.f32.mrb[0].mxu0
      %v5478 = vadd.f32 0.0, %v5477
      %v5479 = vpop.f32.mrb[0].mxu0
      %5480 = vdwg.mxu0
      %v5481 = vadd.f32 %v5432, %v5475
      %v5482 = vadd.f32 %v5433, %v5478
      %v5483 = vld [vmem:[%s5121 + $0x1] sm:$0xff]
      %v5484 = vld [vmem:[%s5121 + $0x9] sm:$0x3f]
      %v5485 = vpack.c.bf16 %v5484, %v5483
      %v5487 = vsel %vm194, %v5485, 0
      %5489 = vmatprep.subr.bf16.mxu0 0
      %5490 = vmatpush1.bf16.msra.mxu0 %v406
      %5491 = vmatprep.subr.bf16.mxu0 0
      %5492 = vmatpush1.bf16.msra.mxu0 0
      %5493 = vmatprep.subr.bf16.mxu0 0
      %5494 = vmatpush1.bf16.msra.mxu0 0
      %5495 = vmatprep.subr.bf16.mxu0 0
      %5496 = vmatpush1.bf16.msra.mxu0 0
      %5497 = vmatprep.subr.bf16.mxu0 0
      %5498 = vmatpush1.bf16.msra.mxu0 0
      %5499 = vmatprep.subr.bf16.mxu0 0
      %5500 = vmatpush1.bf16.msra.mxu0 0
      %5501 = vmatprep.subr.bf16.mxu0 0
      %5502 = vmatpush1.bf16.msra.mxu0 0
      %5503 = vmatprep.subr.bf16.mxu0 0
      %5504 = vmatpush1.bf16.msra.mxu0 0
      %5505 = vmatprep.subr.bf16.mxu0 0
      %5506 = vmatpush1.bf16.msra.mxu0 0
      %5507 = vmatprep.subr.bf16.mxu0 0
      %5508 = vmatpush1.bf16.msra.mxu0 0
      %5509 = vmatprep.subr.bf16.mxu0 0
      %5510 = vmatpush1.bf16.msra.mxu0 0
      %5511 = vmatprep.subr.bf16.mxu0 0
      %5512 = vmatpush1.bf16.msra.mxu0 0
      %5513 = vmatprep.subr.bf16.mxu0 0
      %5514 = vmatpush1.bf16.msra.mxu0 0
      %5515 = vmatprep.subr.bf16.mxu0 0
      %5516 = vmatpush1.bf16.msra.mxu0 0
      %5517 = vmatprep.subr.bf16.mxu0 0
      %5518 = vmatpush1.bf16.msra.mxu0 0
      %5519 = vmatprep.subr.bf16.mxu0 0
      %5520 = vmatpush1.bf16.msra.mxu0 0
      %5521 = vmatprep.mubr.bf16.mxu0 0
      %5522 = vmatmul.mubr.bf16.gmra.mrb[0].mxu0 %v5487
      %v5523 = vpop.f32.mrb[0].mxu0
      %v5524 = vadd.f32 0.0, %v5523
      %v5525 = vpop.f32.mrb[0].mxu0
      %v5526 = vpop.f32.mrb[0].mxu0
      %v5527 = vadd.f32 0.0, %v5526
      %v5528 = vpop.f32.mrb[0].mxu0
      %5529 = vdwg.mxu0
      %v5530 = vadd.f32 %v5481, %v5524
      %v5531 = vadd.f32 %v5482, %v5527
      %v5532 = vld [vmem:[%s5121 + $0x2] sm:$0xff]
      %v5533 = vld [vmem:[%s5121 + $0xa] sm:$0x3f]
      %v5534 = vpack.c.bf16 %v5533, %v5532
      %v5536 = vsel %vm194, %v5534, 0
      %5538 = vmatprep.subr.bf16.mxu0 0
      %5539 = vmatpush1.bf16.msra.mxu0 %v462
      %5540 = vmatprep.subr.bf16.mxu0 0
      %5541 = vmatpush1.bf16.msra.mxu0 0
      %5542 = vmatprep.subr.bf16.mxu0 0
      %5543 = vmatpush1.bf16.msra.mxu0 0
      %5544 = vmatprep.subr.bf16.mxu0 0
      %5545 = vmatpush1.bf16.msra.mxu0 0
      %5546 = vmatprep.subr.bf16.mxu0 0
      %5547 = vmatpush1.bf16.msra.mxu0 0
      %5548 = vmatprep.subr.bf16.mxu0 0
      %5549 = vmatpush1.bf16.msra.mxu0 0
      %5550 = vmatprep.subr.bf16.mxu0 0
      %5551 = vmatpush1.bf16.msra.mxu0 0
      %5552 = vmatprep.subr.bf16.mxu0 0
      %5553 = vmatpush1.bf16.msra.mxu0 0
      %5554 = vmatprep.subr.bf16.mxu0 0
      %5555 = vmatpush1.bf16.msra.mxu0 0
      %5556 = vmatprep.subr.bf16.mxu0 0
      %5557 = vmatpush1.bf16.msra.mxu0 0
      %5558 = vmatprep.subr.bf16.mxu0 0
      %5559 = vmatpush1.bf16.msra.mxu0 0
      %5560 = vmatprep.subr.bf16.mxu0 0
      %5561 = vmatpush1.bf16.msra.mxu0 0
      %5562 = vmatprep.subr.bf16.mxu0 0
      %5563 = vmatpush1.bf16.msra.mxu0 0
      %5564 = vmatprep.subr.bf16.mxu0 0
      %5565 = vmatpush1.bf16.msra.mxu0 0
      %5566 = vmatprep.subr.bf16.mxu0 0
      %5567 = vmatpush1.bf16.msra.mxu0 0
      %5568 = vmatprep.subr.bf16.mxu0 0
      %5569 = vmatpush1.bf16.msra.mxu0 0
      %5570 = vmatprep.mubr.bf16.mxu0 0
      %5571 = vmatmul.mubr.bf16.gmra.mrb[0].mxu0 %v5536
      %v5572 = vpop.f32.mrb[0].mxu0
      %v5573 = vadd.f32 0.0, %v5572
      %v5574 = vpop.f32.mrb[0].mxu0
      %v5575 = vpop.f32.mrb[0].mxu0
      %v5576 = vadd.f32 0.0, %v5575
      %v5577 = vpop.f32.mrb[0].mxu0
      %5578 = vdwg.mxu0
      %v5579 = vadd.f32 %v5530, %v5573
      %v5580 = vadd.f32 %v5531, %v5576
      %s5581 = scalar_lea.vmem %s163, 208
      %v5582 = vld [vmem:[%s5581] sm:$0xff]
      %v5583 = vld [vmem:[%s5581 + $0x8] sm:$0x3f]
      %v5584 = vpack.c.bf16 %v5583, %v5582
      %v5586 = vsel %vm194, %v5584, 0
      %5588 = vmatprep.subr.bf16.mxu0 0
      %5589 = vmatpush1.bf16.msra.mxu0 %v515
      %5590 = vmatprep.subr.bf16.mxu0 0
      %5591 = vmatpush1.bf16.msra.mxu0 0
      %5592 = vmatprep.subr.bf16.mxu0 0
      %5593 = vmatpush1.bf16.msra.mxu0 0
      %5594 = vmatprep.subr.bf16.mxu0 0
      %5595 = vmatpush1.bf16.msra.mxu0 0
      %5596 = vmatprep.subr.bf16.mxu0 0
      %5597 = vmatpush1.bf16.msra.mxu0 0
      %5598 = vmatprep.subr.bf16.mxu0 0
      %5599 = vmatpush1.bf16.msra.mxu0 0
      %5600 = vmatprep.subr.bf16.mxu0 0
      %5601 = vmatpush1.bf16.msra.mxu0 0
      %5602 = vmatprep.subr.bf16.mxu0 0
      %5603 = vmatpush1.bf16.msra.mxu0 0
      %5604 = vmatprep.subr.bf16.mxu0 0
      %5605 = vmatpush1.bf16.msra.mxu0 0
      %5606 = vmatprep.subr.bf16.mxu0 0
      %5607 = vmatpush1.bf16.msra.mxu0 0
      %5608 = vmatprep.subr.bf16.mxu0 0
      %5609 = vmatpush1.bf16.msra.mxu0 0
      %5610 = vmatprep.subr.bf16.mxu0 0
      %5611 = vmatpush1.bf16.msra.mxu0 0
      %5612 = vmatprep.subr.bf16.mxu0 0
      %5613 = vmatpush1.bf16.msra.mxu0 0
      %5614 = vmatprep.subr.bf16.mxu0 0
      %5615 = vmatpush1.bf16.msra.mxu0 0
      %5616 = vmatprep.subr.bf16.mxu0 0
      %5617 = vmatpush1.bf16.msra.mxu0 0
      %5618 = vmatprep.subr.bf16.mxu0 0
      %5619 = vmatpush1.bf16.msra.mxu0 0
      %5620 = vmatprep.mubr.bf16.mxu0 0
      %5621 = vmatmul.mubr.bf16.gmra.mrb[0].mxu0 %v5586
      %v5622 = vpop.f32.mrb[0].mxu0
      %v5623 = vadd.f32 0.0, %v5622
      %v5624 = vpop.f32.mrb[0].mxu0
      %v5625 = vpop.f32.mrb[0].mxu0
      %v5626 = vadd.f32 0.0, %v5625
      %v5627 = vpop.f32.mrb[0].mxu0
      %5628 = vdwg.mxu0
      %v5629 = vadd.f32 %v5579, %v5623
      %v5630 = vadd.f32 %v5580, %v5626
      %v5631 = vld [vmem:[%s5581 + $0x1] sm:$0xff]
      %v5632 = vld [vmem:[%s5581 + $0x9] sm:$0x3f]
      %v5633 = vpack.c.bf16 %v5632, %v5631
      %v5635 = vsel %vm194, %v5633, 0
      %5637 = vmatprep.subr.bf16.mxu0 0
      %5638 = vmatpush1.bf16.msra.mxu0 %v571
      %5639 = vmatprep.subr.bf16.mxu0 0
      %5640 = vmatpush1.bf16.msra.mxu0 0
      %5641 = vmatprep.subr.bf16.mxu0 0
      %5642 = vmatpush1.bf16.msra.mxu0 0
      %5643 = vmatprep.subr.bf16.mxu0 0
      %5644 = vmatpush1.bf16.msra.mxu0 0
      %5645 = vmatprep.subr.bf16.mxu0 0
      %5646 = vmatpush1.bf16.msra.mxu0 0
      %5647 = vmatprep.subr.bf16.mxu0 0
      %5648 = vmatpush1.bf16.msra.mxu0 0
      %5649 = vmatprep.subr.bf16.mxu0 0
      %5650 = vmatpush1.bf16.msra.mxu0 0
      %5651 = vmatprep.subr.bf16.mxu0 0
      %5652 = vmatpush1.bf16.msra.mxu0 0
      %5653 = vmatprep.subr.bf16.mxu0 0
      %5654 = vmatpush1.bf16.msra.mxu0 0
      %5655 = vmatprep.subr.bf16.mxu0 0
      %5656 = vmatpush1.bf16.msra.mxu0 0
      %5657 = vmatprep.subr.bf16.mxu0 0
      %5658 = vmatpush1.bf16.msra.mxu0 0
      %5659 = vmatprep.subr.bf16.mxu0 0
      %5660 = vmatpush1.bf16.msra.mxu0 0
      %5661 = vmatprep.subr.bf16.mxu0 0
      %5662 = vmatpush1.bf16.msra.mxu0 0
      %5663 = vmatprep.subr.bf16.mxu0 0
      %5664 = vmatpush1.bf16.msra.mxu0 0
      %5665 = vmatprep.subr.bf16.mxu0 0
      %5666 = vmatpush1.bf16.msra.mxu0 0
      %5667 = vmatprep.subr.bf16.mxu0 0
      %5668 = vmatpush1.bf16.msra.mxu0 0
      %5669 = vmatprep.mubr.bf16.mxu0 0
      %5670 = vmatmul.mubr.bf16.gmra.mrb[0].mxu0 %v5635
      %v5671 = vpop.f32.mrb[0].mxu0
      %v5672 = vadd.f32 0.0, %v5671
      %v5673 = vpop.f32.mrb[0].mxu0
      %v5674 = vpop.f32.mrb[0].mxu0
      %v5675 = vadd.f32 0.0, %v5674
      %v5676 = vpop.f32.mrb[0].mxu0
      %5677 = vdwg.mxu0
      %v5678 = vadd.f32 %v5629, %v5672
      %v5679 = vadd.f32 %v5630, %v5675
      %v5680 = vld [vmem:[%s5581 + $0x2] sm:$0xff]
      %v5681 = vld [vmem:[%s5581 + $0xa] sm:$0x3f]
      %v5682 = vpack.c.bf16 %v5681, %v5680
      %v5684 = vsel %vm194, %v5682, 0
      %5686 = vmatprep.subr.bf16.mxu0 0
      %5687 = vmatpush1.bf16.msra.mxu0 %v623
      %5688 = vmatprep.subr.bf16.mxu0 0
      %5689 = vmatpush1.bf16.msra.mxu0 0
      %5690 = vmatprep.subr.bf16.mxu0 0
      %5691 = vmatpush1.bf16.msra.mxu0 0
      %5692 = vmatprep.subr.bf16.mxu0 0
      %5693 = vmatpush1.bf16.msra.mxu0 0
      %5694 = vmatprep.subr.bf16.mxu0 0
      %5695 = vmatpush1.bf16.msra.mxu0 0
      %5696 = vmatprep.subr.bf16.mxu0 0
      %5697 = vmatpush1.bf16.msra.mxu0 0
      %5698 = vmatprep.subr.bf16.mxu0 0
      %5699 = vmatpush1.bf16.msra.mxu0 0
      %5700 = vmatprep.subr.bf16.mxu0 0
      %5701 = vmatpush1.bf16.msra.mxu0 0
      %5702 = vmatprep.subr.bf16.mxu0 0
      %5703 = vmatpush1.bf16.msra.mxu0 0
      %5704 = vmatprep.subr.bf16.mxu0 0
      %5705 = vmatpush1.bf16.msra.mxu0 0
      %5706 = vmatprep.subr.bf16.mxu0 0
      %5707 = vmatpush1.bf16.msra.mxu0 0
      %5708 = vmatprep.subr.bf16.mxu0 0
      %5709 = vmatpush1.bf16.msra.mxu0 0
      %5710 = vmatprep.subr.bf16.mxu0 0
      %5711 = vmatpush1.bf16.msra.mxu0 0
      %5712 = vmatprep.subr.bf16.mxu0 0
      %5713 = vmatpush1.bf16.msra.mxu0 0
      %5714 = vmatprep.subr.bf16.mxu0 0
      %5715 = vmatpush1.bf16.msra.mxu0 0
      %5716 = vmatprep.subr.bf16.mxu0 0
      %5717 = vmatpush1.bf16.msra.mxu0 0
      %5718 = vmatprep.mubr.bf16.mxu0 0
      %5719 = vmatmul.mubr.bf16.gmra.mrb[0].mxu0 %v5684
      %v5720 = vpop.f32.mrb[0].mxu0
      %v5721 = vadd.f32 0.0, %v5720
      %v5722 = vpop.f32.mrb[0].mxu0
      %v5723 = vpop.f32.mrb[0].mxu0
      %v5724 = vadd.f32 0.0, %v5723
      %v5725 = vpop.f32.mrb[0].mxu0
      %5726 = vdwg.mxu0
      %v5727 = vadd.f32 %v5678, %v5721
      %v5728 = vadd.f32 %v5679, %v5724
      %5729 = vst [vmem:[%s168 + $0x9a] sm:$0xff] %v5727
      %5730 = vst [vmem:[%s168 + $0xa2] sm:$0x3f] %v5728
      %v5731 = vsel %vm670, %v5728, 0.0
      %v5732 = vadd.f32 %v5727, %v5731
      %v5733 = vrot.slane %v5732, 4
      %v5734 = vadd.f32 %v5732, %v5733
      %v5735 = vrot.slane %v5734, 2
      %v5736 = vadd.f32 %v5734, %v5735
      %v5737 = vrot.slane %v5736, 1
      %v5738 = vadd.f32 %v5736, %v5737
      %v5739 = vadd.f32 %v5279, %v5738
      %v5740 = vmul.f32 %v5727, %v5727
      %v5741 = vmul.f32 %v5728, %v5728
      %v5742 = vsel %vm670, %v5741, 0.0
      %v5743 = vadd.f32 %v5740, %v5742
      %v5744 = vrot.slane %v5743, 4
      %v5745 = vadd.f32 %v5743, %v5744
      %v5746 = vrot.slane %v5745, 2
      %v5747 = vadd.f32 %v5745, %v5746
      %v5748 = vrot.slane %v5747, 1
      %v5749 = vadd.f32 %v5747, %v5748
      %v5750 = vadd.f32 %v5290, %v5749
      %v5751 = vld [vmem:[%s5121] sm:$0xff]
      %v5752 = vld [vmem:[%s5121 + $0x8] sm:$0x3f]
      %v5753 = vpack.c.bf16 %v5752, %v5751
      %v5754 = vld [vmem:[%s5121 + $0x1] sm:$0xff]
      %v5755 = vld [vmem:[%s5121 + $0x9] sm:$0x3f]
      %v5756 = vpack.c.bf16 %v5755, %v5754
      %v5758 = vsel %vm194, %v5756, 0
      %5760 = vmatprep.subr.bf16.mxu0 0
      %5761 = vmatpush1.bf16.msra.mxu0 %v200
      %5762 = vmatprep.subr.bf16.mxu0 0
      %5763 = vmatpush1.bf16.msra.mxu0 0
      %5764 = vmatprep.subr.bf16.mxu0 0
      %5765 = vmatpush1.bf16.msra.mxu0 0
      %5766 = vmatprep.subr.bf16.mxu0 0
      %5767 = vmatpush1.bf16.msra.mxu0 0
      %5768 = vmatprep.subr.bf16.mxu0 0
      %5769 = vmatpush1.bf16.msra.mxu0 0
      %5770 = vmatprep.subr.bf16.mxu0 0
      %5771 = vmatpush1.bf16.msra.mxu0 0
      %5772 = vmatprep.subr.bf16.mxu0 0
      %5773 = vmatpush1.bf16.msra.mxu0 0
      %5774 = vmatprep.subr.bf16.mxu0 0
      %5775 = vmatpush1.bf16.msra.mxu0 0
      %5776 = vmatprep.subr.bf16.mxu0 0
      %5777 = vmatpush1.bf16.msra.mxu0 0
      %5778 = vmatprep.subr.bf16.mxu0 0
      %5779 = vmatpush1.bf16.msra.mxu0 0
      %5780 = vmatprep.subr.bf16.mxu0 0
      %5781 = vmatpush1.bf16.msra.mxu0 0
      %5782 = vmatprep.subr.bf16.mxu0 0
      %5783 = vmatpush1.bf16.msra.mxu0 0
      %5784 = vmatprep.subr.bf16.mxu0 0
      %5785 = vmatpush1.bf16.msra.mxu0 0
      %5786 = vmatprep.subr.bf16.mxu0 0
      %5787 = vmatpush1.bf16.msra.mxu0 0
      %5788 = vmatprep.subr.bf16.mxu0 0
      %5789 = vmatpush1.bf16.msra.mxu0 0
      %5790 = vmatprep.subr.bf16.mxu0 0
      %5791 = vmatpush1.bf16.msra.mxu0 0
      %5792 = vmatprep.mubr.bf16.mxu0 0
      %5793 = vmatmul.mubr.bf16.gmra.mrb[0].mxu0 %v5758
      %v5794 = vpop.f32.mrb[0].mxu0
      %v5795 = vadd.f32 0.0, %v5794
      %v5796 = vpop.f32.mrb[0].mxu0
      %v5797 = vpop.f32.mrb[0].mxu0
      %v5798 = vadd.f32 0.0, %v5797
      %v5799 = vpop.f32.mrb[0].mxu0
      %5800 = vdwg.mxu0
      %v5802 = vsel %vm194, %v5753, 0
      %5804 = vmatprep.subr.bf16.mxu0 0
      %5805 = vmatpush1.bf16.msra.mxu0 %v247
      %5806 = vmatprep.subr.bf16.mxu0 0
      %5807 = vmatpush1.bf16.msra.mxu0 0
      %5808 = vmatprep.subr.bf16.mxu0 0
      %5809 = vmatpush1.bf16.msra.mxu0 0
      %5810 = vmatprep.subr.bf16.mxu0 0
      %5811 = vmatpush1.bf16.msra.mxu0 0
      %5812 = vmatprep.subr.bf16.mxu0 0
      %5813 = vmatpush1.bf16.msra.mxu0 0
      %5814 = vmatprep.subr.bf16.mxu0 0
      %5815 = vmatpush1.bf16.msra.mxu0 0
      %5816 = vmatprep.subr.bf16.mxu0 0
      %5817 = vmatpush1.bf16.msra.mxu0 0
      %5818 = vmatprep.subr.bf16.mxu0 0
      %5819 = vmatpush1.bf16.msra.mxu0 0
      %5820 = vmatprep.subr.bf16.mxu0 0
      %5821 = vmatpush1.bf16.msra.mxu0 0
      %5822 = vmatprep.subr.bf16.mxu0 0
      %5823 = vmatpush1.bf16.msra.mxu0 0
      %5824 = vmatprep.subr.bf16.mxu0 0
      %5825 = vmatpush1.bf16.msra.mxu0 0
      %5826 = vmatprep.subr.bf16.mxu0 0
      %5827 = vmatpush1.bf16.msra.mxu0 0
      %5828 = vmatprep.subr.bf16.mxu0 0
      %5829 = vmatpush1.bf16.msra.mxu0 0
      %5830 = vmatprep.subr.bf16.mxu0 0
      %5831 = vmatpush1.bf16.msra.mxu0 0
      %5832 = vmatprep.subr.bf16.mxu0 0
      %5833 = vmatpush1.bf16.msra.mxu0 0
      %5834 = vmatprep.subr.bf16.mxu0 0
      %5835 = vmatpush1.bf16.msra.mxu0 0
      %5836 = vmatprep.mubr.bf16.mxu0 0
      %5837 = vmatmul.mubr.bf16.gmra.mrb[0].mxu0 %v5802
      %v5838 = vpop.f32.mrb[0].mxu0
      %v5839 = vadd.f32 %v5795, %v5838
      %v5840 = vpop.f32.mrb[0].mxu0
      %v5841 = vpop.f32.mrb[0].mxu0
      %v5842 = vadd.f32 %v5798, %v5841
      %v5843 = vpop.f32.mrb[0].mxu0
      %5844 = vdwg.mxu0
      %v5845 = vld [vmem:[%s5121 + $0x2] sm:$0xff]
      %v5846 = vld [vmem:[%s5121 + $0xa] sm:$0x3f]
      %v5847 = vpack.c.bf16 %v5846, %v5845
      %v5849 = vsel %vm194, %v5847, 0
      %5851 = vmatprep.subr.bf16.mxu0 0
      %5852 = vmatpush1.bf16.msra.mxu0 %v297
      %5853 = vmatprep.subr.bf16.mxu0 0
      %5854 = vmatpush1.bf16.msra.mxu0 0
      %5855 = vmatprep.subr.bf16.mxu0 0
      %5856 = vmatpush1.bf16.msra.mxu0 0
      %5857 = vmatprep.subr.bf16.mxu0 0
      %5858 = vmatpush1.bf16.msra.mxu0 0
      %5859 = vmatprep.subr.bf16.mxu0 0
      %5860 = vmatpush1.bf16.msra.mxu0 0
      %5861 = vmatprep.subr.bf16.mxu0 0
      %5862 = vmatpush1.bf16.msra.mxu0 0
      %5863 = vmatprep.subr.bf16.mxu0 0
      %5864 = vmatpush1.bf16.msra.mxu0 0
      %5865 = vmatprep.subr.bf16.mxu0 0
      %5866 = vmatpush1.bf16.msra.mxu0 0
      %5867 = vmatprep.subr.bf16.mxu0 0
      %5868 = vmatpush1.bf16.msra.mxu0 0
      %5869 = vmatprep.subr.bf16.mxu0 0
      %5870 = vmatpush1.bf16.msra.mxu0 0
      %5871 = vmatprep.subr.bf16.mxu0 0
      %5872 = vmatpush1.bf16.msra.mxu0 0
      %5873 = vmatprep.subr.bf16.mxu0 0
      %5874 = vmatpush1.bf16.msra.mxu0 0
      %5875 = vmatprep.subr.bf16.mxu0 0
      %5876 = vmatpush1.bf16.msra.mxu0 0
      %5877 = vmatprep.subr.bf16.mxu0 0
      %5878 = vmatpush1.bf16.msra.mxu0 0
      %5879 = vmatprep.subr.bf16.mxu0 0
      %5880 = vmatpush1.bf16.msra.mxu0 0
      %5881 = vmatprep.subr.bf16.mxu0 0
      %5882 = vmatpush1.bf16.msra.mxu0 0
      %5883 = vmatprep.mubr.bf16.mxu0 0
      %5884 = vmatmul.mubr.bf16.gmra.mrb[0].mxu0 %v5849
      %v5885 = vpop.f32.mrb[0].mxu0
      %v5886 = vadd.f32 0.0, %v5885
      %v5887 = vpop.f32.mrb[0].mxu0
      %v5888 = vpop.f32.mrb[0].mxu0
      %v5889 = vadd.f32 0.0, %v5888
      %v5890 = vpop.f32.mrb[0].mxu0
      %5891 = vdwg.mxu0
      %v5892 = vadd.f32 %v5839, %v5886
      %v5893 = vadd.f32 %v5842, %v5889
      %v5894 = vld [vmem:[%s5581] sm:$0xff]
      %v5895 = vld [vmem:[%s5581 + $0x8] sm:$0x3f]
      %v5896 = vpack.c.bf16 %v5895, %v5894
      %v5898 = vsel %vm194, %v5896, 0
      %5900 = vmatprep.subr.bf16.mxu0 0
      %5901 = vmatpush1.bf16.msra.mxu0 %v354
      %5902 = vmatprep.subr.bf16.mxu0 0
      %5903 = vmatpush1.bf16.msra.mxu0 0
      %5904 = vmatprep.subr.bf16.mxu0 0
      %5905 = vmatpush1.bf16.msra.mxu0 0
      %5906 = vmatprep.subr.bf16.mxu0 0
      %5907 = vmatpush1.bf16.msra.mxu0 0
      %5908 = vmatprep.subr.bf16.mxu0 0
      %5909 = vmatpush1.bf16.msra.mxu0 0
      %5910 = vmatprep.subr.bf16.mxu0 0
      %5911 = vmatpush1.bf16.msra.mxu0 0
      %5912 = vmatprep.subr.bf16.mxu0 0
      %5913 = vmatpush1.bf16.msra.mxu0 0
      %5914 = vmatprep.subr.bf16.mxu0 0
      %5915 = vmatpush1.bf16.msra.mxu0 0
      %5916 = vmatprep.subr.bf16.mxu0 0
      %5917 = vmatpush1.bf16.msra.mxu0 0
      %5918 = vmatprep.subr.bf16.mxu0 0
      %5919 = vmatpush1.bf16.msra.mxu0 0
      %5920 = vmatprep.subr.bf16.mxu0 0
      %5921 = vmatpush1.bf16.msra.mxu0 0
      %5922 = vmatprep.subr.bf16.mxu0 0
      %5923 = vmatpush1.bf16.msra.mxu0 0
      %5924 = vmatprep.subr.bf16.mxu0 0
      %5925 = vmatpush1.bf16.msra.mxu0 0
      %5926 = vmatprep.subr.bf16.mxu0 0
      %5927 = vmatpush1.bf16.msra.mxu0 0
      %5928 = vmatprep.subr.bf16.mxu0 0
      %5929 = vmatpush1.bf16.msra.mxu0 0
      %5930 = vmatprep.subr.bf16.mxu0 0
      %5931 = vmatpush1.bf16.msra.mxu0 0
      %5932 = vmatprep.mubr.bf16.mxu0 0
      %5933 = vmatmul.mubr.bf16.gmra.mrb[0].mxu0 %v5898
      %v5934 = vpop.f32.mrb[0].mxu0
      %v5935 = vadd.f32 0.0, %v5934
      %v5936 = vpop.f32.mrb[0].mxu0
      %v5937 = vpop.f32.mrb[0].mxu0
      %v5938 = vadd.f32 0.0, %v5937
      %v5939 = vpop.f32.mrb[0].mxu0
      %5940 = vdwg.mxu0
      %v5941 = vadd.f32 %v5892, %v5935
      %v5942 = vadd.f32 %v5893, %v5938
      %v5943 = vld [vmem:[%s5581 + $0x1] sm:$0xff]
      %v5944 = vld [vmem:[%s5581 + $0x9] sm:$0x3f]
      %v5945 = vpack.c.bf16 %v5944, %v5943
      %v5947 = vsel %vm194, %v5945, 0
      %5949 = vmatprep.subr.bf16.mxu0 0
      %5950 = vmatpush1.bf16.msra.mxu0 %v406
      %5951 = vmatprep.subr.bf16.mxu0 0
      %5952 = vmatpush1.bf16.msra.mxu0 0
      %5953 = vmatprep.subr.bf16.mxu0 0
      %5954 = vmatpush1.bf16.msra.mxu0 0
      %5955 = vmatprep.subr.bf16.mxu0 0
      %5956 = vmatpush1.bf16.msra.mxu0 0
      %5957 = vmatprep.subr.bf16.mxu0 0
      %5958 = vmatpush1.bf16.msra.mxu0 0
      %5959 = vmatprep.subr.bf16.mxu0 0
      %5960 = vmatpush1.bf16.msra.mxu0 0
      %5961 = vmatprep.subr.bf16.mxu0 0
      %5962 = vmatpush1.bf16.msra.mxu0 0
      %5963 = vmatprep.subr.bf16.mxu0 0
      %5964 = vmatpush1.bf16.msra.mxu0 0
      %5965 = vmatprep.subr.bf16.mxu0 0
      %5966 = vmatpush1.bf16.msra.mxu0 0
      %5967 = vmatprep.subr.bf16.mxu0 0
      %5968 = vmatpush1.bf16.msra.mxu0 0
      %5969 = vmatprep.subr.bf16.mxu0 0
      %5970 = vmatpush1.bf16.msra.mxu0 0
      %5971 = vmatprep.subr.bf16.mxu0 0
      %5972 = vmatpush1.bf16.msra.mxu0 0
      %5973 = vmatprep.subr.bf16.mxu0 0
      %5974 = vmatpush1.bf16.msra.mxu0 0
      %5975 = vmatprep.subr.bf16.mxu0 0
      %5976 = vmatpush1.bf16.msra.mxu0 0
      %5977 = vmatprep.subr.bf16.mxu0 0
      %5978 = vmatpush1.bf16.msra.mxu0 0
      %5979 = vmatprep.subr.bf16.mxu0 0
      %5980 = vmatpush1.bf16.msra.mxu0 0
      %5981 = vmatprep.mubr.bf16.mxu0 0
      %5982 = vmatmul.mubr.bf16.gmra.mrb[0].mxu0 %v5947
      %v5983 = vpop.f32.mrb[0].mxu0
      %v5984 = vadd.f32 0.0, %v5983
      %v5985 = vpop.f32.mrb[0].mxu0
      %v5986 = vpop.f32.mrb[0].mxu0
      %v5987 = vadd.f32 0.0, %v5986
      %v5988 = vpop.f32.mrb[0].mxu0
      %5989 = vdwg.mxu0
      %v5990 = vadd.f32 %v5941, %v5984
      %v5991 = vadd.f32 %v5942, %v5987
      %v5992 = vld [vmem:[%s5581 + $0x2] sm:$0xff]
      %v5993 = vld [vmem:[%s5581 + $0xa] sm:$0x3f]
      %v5994 = vpack.c.bf16 %v5993, %v5992
      %v5996 = vsel %vm194, %v5994, 0
      %5998 = vmatprep.subr.bf16.mxu0 0
      %5999 = vmatpush1.bf16.msra.mxu0 %v462
      %6000 = vmatprep.subr.bf16.mxu0 0
      %6001 = vmatpush1.bf16.msra.mxu0 0
      %6002 = vmatprep.subr.bf16.mxu0 0
      %6003 = vmatpush1.bf16.msra.mxu0 0
      %6004 = vmatprep.subr.bf16.mxu0 0
      %6005 = vmatpush1.bf16.msra.mxu0 0
      %6006 = vmatprep.subr.bf16.mxu0 0
      %6007 = vmatpush1.bf16.msra.mxu0 0
      %6008 = vmatprep.subr.bf16.mxu0 0
      %6009 = vmatpush1.bf16.msra.mxu0 0
      %6010 = vmatprep.subr.bf16.mxu0 0
      %6011 = vmatpush1.bf16.msra.mxu0 0
      %6012 = vmatprep.subr.bf16.mxu0 0
      %6013 = vmatpush1.bf16.msra.mxu0 0
      %6014 = vmatprep.subr.bf16.mxu0 0
      %6015 = vmatpush1.bf16.msra.mxu0 0
      %6016 = vmatprep.subr.bf16.mxu0 0
      %6017 = vmatpush1.bf16.msra.mxu0 0
      %6018 = vmatprep.subr.bf16.mxu0 0
      %6019 = vmatpush1.bf16.msra.mxu0 0
      %6020 = vmatprep.subr.bf16.mxu0 0
      %6021 = vmatpush1.bf16.msra.mxu0 0
      %6022 = vmatprep.subr.bf16.mxu0 0
      %6023 = vmatpush1.bf16.msra.mxu0 0
      %6024 = vmatprep.subr.bf16.mxu0 0
      %6025 = vmatpush1.bf16.msra.mxu0 0
      %6026 = vmatprep.subr.bf16.mxu0 0
      %6027 = vmatpush1.bf16.msra.mxu0 0
      %6028 = vmatprep.subr.bf16.mxu0 0
      %6029 = vmatpush1.bf16.msra.mxu0 0
      %6030 = vmatprep.mubr.bf16.mxu0 0
      %6031 = vmatmul.mubr.bf16.gmra.mrb[0].mxu0 %v5996
      %v6032 = vpop.f32.mrb[0].mxu0
      %v6033 = vadd.f32 0.0, %v6032
      %v6034 = vpop.f32.mrb[0].mxu0
      %v6035 = vpop.f32.mrb[0].mxu0
      %v6036 = vadd.f32 0.0, %v6035
      %v6037 = vpop.f32.mrb[0].mxu0
      %6038 = vdwg.mxu0
      %v6039 = vadd.f32 %v5990, %v6033
      %v6040 = vadd.f32 %v5991, %v6036
      %s6041 = scalar_lea.vmem %s163, 224
      %v6042 = vld [vmem:[%s6041] sm:$0xff]
      %v6043 = vld [vmem:[%s6041 + $0x8] sm:$0x3f]
      %v6044 = vpack.c.bf16 %v6043, %v6042
      %v6046 = vsel %vm194, %v6044, 0
      %6048 = vmatprep.subr.bf16.mxu0 0
      %6049 = vmatpush1.bf16.msra.mxu0 %v515
      %6050 = vmatprep.subr.bf16.mxu0 0
      %6051 = vmatpush1.bf16.msra.mxu0 0
      %6052 = vmatprep.subr.bf16.mxu0 0
      %6053 = vmatpush1.bf16.msra.mxu0 0
      %6054 = vmatprep.subr.bf16.mxu0 0
      %6055 = vmatpush1.bf16.msra.mxu0 0
      %6056 = vmatprep.subr.bf16.mxu0 0
      %6057 = vmatpush1.bf16.msra.mxu0 0
      %6058 = vmatprep.subr.bf16.mxu0 0
      %6059 = vmatpush1.bf16.msra.mxu0 0
      %6060 = vmatprep.subr.bf16.mxu0 0
      %6061 = vmatpush1.bf16.msra.mxu0 0
      %6062 = vmatprep.subr.bf16.mxu0 0
      %6063 = vmatpush1.bf16.msra.mxu0 0
      %6064 = vmatprep.subr.bf16.mxu0 0
      %6065 = vmatpush1.bf16.msra.mxu0 0
      %6066 = vmatprep.subr.bf16.mxu0 0
      %6067 = vmatpush1.bf16.msra.mxu0 0
      %6068 = vmatprep.subr.bf16.mxu0 0
      %6069 = vmatpush1.bf16.msra.mxu0 0
      %6070 = vmatprep.subr.bf16.mxu0 0
      %6071 = vmatpush1.bf16.msra.mxu0 0
      %6072 = vmatprep.subr.bf16.mxu0 0
      %6073 = vmatpush1.bf16.msra.mxu0 0
      %6074 = vmatprep.subr.bf16.mxu0 0
      %6075 = vmatpush1.bf16.msra.mxu0 0
      %6076 = vmatprep.subr.bf16.mxu0 0
      %6077 = vmatpush1.bf16.msra.mxu0 0
      %6078 = vmatprep.subr.bf16.mxu0 0
      %6079 = vmatpush1.bf16.msra.mxu0 0
      %6080 = vmatprep.mubr.bf16.mxu0 0
      %6081 = vmatmul.mubr.bf16.gmra.mrb[0].mxu0 %v6046
      %v6082 = vpop.f32.mrb[0].mxu0
      %v6083 = vadd.f32 0.0, %v6082
      %v6084 = vpop.f32.mrb[0].mxu0
      %v6085 = vpop.f32.mrb[0].mxu0
      %v6086 = vadd.f32 0.0, %v6085
      %v6087 = vpop.f32.mrb[0].mxu0
      %6088 = vdwg.mxu0
      %v6089 = vadd.f32 %v6039, %v6083
      %v6090 = vadd.f32 %v6040, %v6086
      %v6091 = vld [vmem:[%s6041 + $0x1] sm:$0xff]
      %v6092 = vld [vmem:[%s6041 + $0x9] sm:$0x3f]
      %v6093 = vpack.c.bf16 %v6092, %v6091
      %v6095 = vsel %vm194, %v6093, 0
      %6097 = vmatprep.subr.bf16.mxu0 0
      %6098 = vmatpush1.bf16.msra.mxu0 %v571
      %6099 = vmatprep.subr.bf16.mxu0 0
      %6100 = vmatpush1.bf16.msra.mxu0 0
      %6101 = vmatprep.subr.bf16.mxu0 0
      %6102 = vmatpush1.bf16.msra.mxu0 0
      %6103 = vmatprep.subr.bf16.mxu0 0
      %6104 = vmatpush1.bf16.msra.mxu0 0
      %6105 = vmatprep.subr.bf16.mxu0 0
      %6106 = vmatpush1.bf16.msra.mxu0 0
      %6107 = vmatprep.subr.bf16.mxu0 0
      %6108 = vmatpush1.bf16.msra.mxu0 0
      %6109 = vmatprep.subr.bf16.mxu0 0
      %6110 = vmatpush1.bf16.msra.mxu0 0
      %6111 = vmatprep.subr.bf16.mxu0 0
      %6112 = vmatpush1.bf16.msra.mxu0 0
      %6113 = vmatprep.subr.bf16.mxu0 0
      %6114 = vmatpush1.bf16.msra.mxu0 0
      %6115 = vmatprep.subr.bf16.mxu0 0
      %6116 = vmatpush1.bf16.msra.mxu0 0
      %6117 = vmatprep.subr.bf16.mxu0 0
      %6118 = vmatpush1.bf16.msra.mxu0 0
      %6119 = vmatprep.subr.bf16.mxu0 0
      %6120 = vmatpush1.bf16.msra.mxu0 0
      %6121 = vmatprep.subr.bf16.mxu0 0
      %6122 = vmatpush1.bf16.msra.mxu0 0
      %6123 = vmatprep.subr.bf16.mxu0 0
      %6124 = vmatpush1.bf16.msra.mxu0 0
      %6125 = vmatprep.subr.bf16.mxu0 0
      %6126 = vmatpush1.bf16.msra.mxu0 0
      %6127 = vmatprep.subr.bf16.mxu0 0
      %6128 = vmatpush1.bf16.msra.mxu0 0
      %6129 = vmatprep.mubr.bf16.mxu0 0
      %6130 = vmatmul.mubr.bf16.gmra.mrb[0].mxu0 %v6095
      %v6131 = vpop.f32.mrb[0].mxu0
      %v6132 = vadd.f32 0.0, %v6131
      %v6133 = vpop.f32.mrb[0].mxu0
      %v6134 = vpop.f32.mrb[0].mxu0
      %v6135 = vadd.f32 0.0, %v6134
      %v6136 = vpop.f32.mrb[0].mxu0
      %6137 = vdwg.mxu0
      %v6138 = vadd.f32 %v6089, %v6132
      %v6139 = vadd.f32 %v6090, %v6135
      %v6140 = vld [vmem:[%s6041 + $0x2] sm:$0xff]
      %v6141 = vld [vmem:[%s6041 + $0xa] sm:$0x3f]
      %v6142 = vpack.c.bf16 %v6141, %v6140
      %v6144 = vsel %vm194, %v6142, 0
      %6146 = vmatprep.subr.bf16.mxu0 0
      %6147 = vmatpush1.bf16.msra.mxu0 %v623
      %6148 = vmatprep.subr.bf16.mxu0 0
      %6149 = vmatpush1.bf16.msra.mxu0 0
      %6150 = vmatprep.subr.bf16.mxu0 0
      %6151 = vmatpush1.bf16.msra.mxu0 0
      %6152 = vmatprep.subr.bf16.mxu0 0
      %6153 = vmatpush1.bf16.msra.mxu0 0
      %6154 = vmatprep.subr.bf16.mxu0 0
      %6155 = vmatpush1.bf16.msra.mxu0 0
      %6156 = vmatprep.subr.bf16.mxu0 0
      %6157 = vmatpush1.bf16.msra.mxu0 0
      %6158 = vmatprep.subr.bf16.mxu0 0
      %6159 = vmatpush1.bf16.msra.mxu0 0
      %6160 = vmatprep.subr.bf16.mxu0 0
      %6161 = vmatpush1.bf16.msra.mxu0 0
      %6162 = vmatprep.subr.bf16.mxu0 0
      %6163 = vmatpush1.bf16.msra.mxu0 0
      %6164 = vmatprep.subr.bf16.mxu0 0
      %6165 = vmatpush1.bf16.msra.mxu0 0
      %6166 = vmatprep.subr.bf16.mxu0 0
      %6167 = vmatpush1.bf16.msra.mxu0 0
      %6168 = vmatprep.subr.bf16.mxu0 0
      %6169 = vmatpush1.bf16.msra.mxu0 0
      %6170 = vmatprep.subr.bf16.mxu0 0
      %6171 = vmatpush1.bf16.msra.mxu0 0
      %6172 = vmatprep.subr.bf16.mxu0 0
      %6173 = vmatpush1.bf16.msra.mxu0 0
      %6174 = vmatprep.subr.bf16.mxu0 0
      %6175 = vmatpush1.bf16.msra.mxu0 0
      %6176 = vmatprep.subr.bf16.mxu0 0
      %6177 = vmatpush1.bf16.msra.mxu0 0
      %6178 = vmatprep.mubr.bf16.mxu0 0
      %6179 = vmatmul.mubr.bf16.gmra.mrb[0].mxu0 %v6144
      %v6180 = vpop.f32.mrb[0].mxu0
      %v6181 = vadd.f32 0.0, %v6180
      %v6182 = vpop.f32.mrb[0].mxu0
      %v6183 = vpop.f32.mrb[0].mxu0
      %v6184 = vadd.f32 0.0, %v6183
      %v6185 = vpop.f32.mrb[0].mxu0
      %6186 = vdwg.mxu0
      %v6187 = vadd.f32 %v6138, %v6181
      %v6188 = vadd.f32 %v6139, %v6184
      %6189 = vst [vmem:[%s168 + $0xa8] sm:$0xff] %v6187
      %6190 = vst [vmem:[%s168 + $0xb0] sm:$0x3f] %v6188
      %v6191 = vsel %vm670, %v6188, 0.0
      %v6192 = vadd.f32 %v6187, %v6191
      %v6193 = vrot.slane %v6192, 4
      %v6194 = vadd.f32 %v6192, %v6193
      %v6195 = vrot.slane %v6194, 2
      %v6196 = vadd.f32 %v6194, %v6195
      %v6197 = vrot.slane %v6196, 1
      %v6198 = vadd.f32 %v6196, %v6197
      %v6199 = vadd.f32 %v5739, %v6198
      %v6200 = vmul.f32 %v6187, %v6187
      %v6201 = vmul.f32 %v6188, %v6188
      %v6202 = vsel %vm670, %v6201, 0.0
      %v6203 = vadd.f32 %v6200, %v6202
      %v6204 = vrot.slane %v6203, 4
      %v6205 = vadd.f32 %v6203, %v6204
      %v6206 = vrot.slane %v6205, 2
      %v6207 = vadd.f32 %v6205, %v6206
      %v6208 = vrot.slane %v6207, 1
      %v6209 = vadd.f32 %v6207, %v6208
      %v6210 = vadd.f32 %v5750, %v6209
      %v6211 = vld [vmem:[%s5581] sm:$0xff]
      %v6212 = vld [vmem:[%s5581 + $0x8] sm:$0x3f]
      %v6213 = vpack.c.bf16 %v6212, %v6211
      %v6214 = vld [vmem:[%s5581 + $0x1] sm:$0xff]
      %v6215 = vld [vmem:[%s5581 + $0x9] sm:$0x3f]
      %v6216 = vpack.c.bf16 %v6215, %v6214
      %v6218 = vsel %vm194, %v6216, 0
      %6220 = vmatprep.subr.bf16.mxu0 0
      %6221 = vmatpush1.bf16.msra.mxu0 %v200
      %6222 = vmatprep.subr.bf16.mxu0 0
      %6223 = vmatpush1.bf16.msra.mxu0 0
      %6224 = vmatprep.subr.bf16.mxu0 0
      %6225 = vmatpush1.bf16.msra.mxu0 0
      %6226 = vmatprep.subr.bf16.mxu0 0
      %6227 = vmatpush1.bf16.msra.mxu0 0
      %6228 = vmatprep.subr.bf16.mxu0 0
      %6229 = vmatpush1.bf16.msra.mxu0 0
      %6230 = vmatprep.subr.bf16.mxu0 0
      %6231 = vmatpush1.bf16.msra.mxu0 0
      %6232 = vmatprep.subr.bf16.mxu0 0
      %6233 = vmatpush1.bf16.msra.mxu0 0
      %6234 = vmatprep.subr.bf16.mxu0 0
      %6235 = vmatpush1.bf16.msra.mxu0 0
      %6236 = vmatprep.subr.bf16.mxu0 0
      %6237 = vmatpush1.bf16.msra.mxu0 0
      %6238 = vmatprep.subr.bf16.mxu0 0
      %6239 = vmatpush1.bf16.msra.mxu0 0
      %6240 = vmatprep.subr.bf16.mxu0 0
      %6241 = vmatpush1.bf16.msra.mxu0 0
      %6242 = vmatprep.subr.bf16.mxu0 0
      %6243 = vmatpush1.bf16.msra.mxu0 0
      %6244 = vmatprep.subr.bf16.mxu0 0
      %6245 = vmatpush1.bf16.msra.mxu0 0
      %6246 = vmatprep.subr.bf16.mxu0 0
      %6247 = vmatpush1.bf16.msra.mxu0 0
      %6248 = vmatprep.subr.bf16.mxu0 0
      %6249 = vmatpush1.bf16.msra.mxu0 0
      %6250 = vmatprep.subr.bf16.mxu0 0
      %6251 = vmatpush1.bf16.msra.mxu0 0
      %6252 = vmatprep.mubr.bf16.mxu0 0
      %6253 = vmatmul.mubr.bf16.gmra.mrb[0].mxu0 %v6218
      %v6254 = vpop.f32.mrb[0].mxu0
      %v6255 = vadd.f32 0.0, %v6254
      %v6256 = vpop.f32.mrb[0].mxu0
      %v6257 = vpop.f32.mrb[0].mxu0
      %v6258 = vadd.f32 0.0, %v6257
      %v6259 = vpop.f32.mrb[0].mxu0
      %6260 = vdwg.mxu0
      %v6262 = vsel %vm194, %v6213, 0
      %6264 = vmatprep.subr.bf16.mxu0 0
      %6265 = vmatpush1.bf16.msra.mxu0 %v247
      %6266 = vmatprep.subr.bf16.mxu0 0
      %6267 = vmatpush1.bf16.msra.mxu0 0
      %6268 = vmatprep.subr.bf16.mxu0 0
      %6269 = vmatpush1.bf16.msra.mxu0 0
      %6270 = vmatprep.subr.bf16.mxu0 0
      %6271 = vmatpush1.bf16.msra.mxu0 0
      %6272 = vmatprep.subr.bf16.mxu0 0
      %6273 = vmatpush1.bf16.msra.mxu0 0
      %6274 = vmatprep.subr.bf16.mxu0 0
      %6275 = vmatpush1.bf16.msra.mxu0 0
      %6276 = vmatprep.subr.bf16.mxu0 0
      %6277 = vmatpush1.bf16.msra.mxu0 0
      %6278 = vmatprep.subr.bf16.mxu0 0
      %6279 = vmatpush1.bf16.msra.mxu0 0
      %6280 = vmatprep.subr.bf16.mxu0 0
      %6281 = vmatpush1.bf16.msra.mxu0 0
      %6282 = vmatprep.subr.bf16.mxu0 0
      %6283 = vmatpush1.bf16.msra.mxu0 0
      %6284 = vmatprep.subr.bf16.mxu0 0
      %6285 = vmatpush1.bf16.msra.mxu0 0
      %6286 = vmatprep.subr.bf16.mxu0 0
      %6287 = vmatpush1.bf16.msra.mxu0 0
      %6288 = vmatprep.subr.bf16.mxu0 0
      %6289 = vmatpush1.bf16.msra.mxu0 0
      %6290 = vmatprep.subr.bf16.mxu0 0
      %6291 = vmatpush1.bf16.msra.mxu0 0
      %6292 = vmatprep.subr.bf16.mxu0 0
      %6293 = vmatpush1.bf16.msra.mxu0 0
      %6294 = vmatprep.subr.bf16.mxu0 0
      %6295 = vmatpush1.bf16.msra.mxu0 0
      %6296 = vmatprep.mubr.bf16.mxu0 0
      %6297 = vmatmul.mubr.bf16.gmra.mrb[0].mxu0 %v6262
      %v6298 = vpop.f32.mrb[0].mxu0
      %v6299 = vadd.f32 %v6255, %v6298
      %v6300 = vpop.f32.mrb[0].mxu0
      %v6301 = vpop.f32.mrb[0].mxu0
      %v6302 = vadd.f32 %v6258, %v6301
      %v6303 = vpop.f32.mrb[0].mxu0
      %6304 = vdwg.mxu0
      %v6305 = vld [vmem:[%s5581 + $0x2] sm:$0xff]
      %v6306 = vld [vmem:[%s5581 + $0xa] sm:$0x3f]
      %v6307 = vpack.c.bf16 %v6306, %v6305
      %v6309 = vsel %vm194, %v6307, 0
      %6311 = vmatprep.subr.bf16.mxu0 0
      %6312 = vmatpush1.bf16.msra.mxu0 %v297
      %6313 = vmatprep.subr.bf16.mxu0 0
      %6314 = vmatpush1.bf16.msra.mxu0 0
      %6315 = vmatprep.subr.bf16.mxu0 0
      %6316 = vmatpush1.bf16.msra.mxu0 0
      %6317 = vmatprep.subr.bf16.mxu0 0
      %6318 = vmatpush1.bf16.msra.mxu0 0
      %6319 = vmatprep.subr.bf16.mxu0 0
      %6320 = vmatpush1.bf16.msra.mxu0 0
      %6321 = vmatprep.subr.bf16.mxu0 0
      %6322 = vmatpush1.bf16.msra.mxu0 0
      %6323 = vmatprep.subr.bf16.mxu0 0
      %6324 = vmatpush1.bf16.msra.mxu0 0
      %6325 = vmatprep.subr.bf16.mxu0 0
      %6326 = vmatpush1.bf16.msra.mxu0 0
      %6327 = vmatprep.subr.bf16.mxu0 0
      %6328 = vmatpush1.bf16.msra.mxu0 0
      %6329 = vmatprep.subr.bf16.mxu0 0
      %6330 = vmatpush1.bf16.msra.mxu0 0
      %6331 = vmatprep.subr.bf16.mxu0 0
      %6332 = vmatpush1.bf16.msra.mxu0 0
      %6333 = vmatprep.subr.bf16.mxu0 0
      %6334 = vmatpush1.bf16.msra.mxu0 0
      %6335 = vmatprep.subr.bf16.mxu0 0
      %6336 = vmatpush1.bf16.msra.mxu0 0
      %6337 = vmatprep.subr.bf16.mxu0 0
      %6338 = vmatpush1.bf16.msra.mxu0 0
      %6339 = vmatprep.subr.bf16.mxu0 0
      %6340 = vmatpush1.bf16.msra.mxu0 0
      %6341 = vmatprep.subr.bf16.mxu0 0
      %6342 = vmatpush1.bf16.msra.mxu0 0
      %6343 = vmatprep.mubr.bf16.mxu0 0
      %6344 = vmatmul.mubr.bf16.gmra.mrb[0].mxu0 %v6309
      %v6345 = vpop.f32.mrb[0].mxu0
      %v6346 = vadd.f32 0.0, %v6345
      %v6347 = vpop.f32.mrb[0].mxu0
      %v6348 = vpop.f32.mrb[0].mxu0
      %v6349 = vadd.f32 0.0, %v6348
      %v6350 = vpop.f32.mrb[0].mxu0
      %6351 = vdwg.mxu0
      %v6352 = vadd.f32 %v6299, %v6346
      %v6353 = vadd.f32 %v6302, %v6349
      %v6354 = vld [vmem:[%s6041] sm:$0xff]
      %v6355 = vld [vmem:[%s6041 + $0x8] sm:$0x3f]
      %v6356 = vpack.c.bf16 %v6355, %v6354
      %v6358 = vsel %vm194, %v6356, 0
      %6360 = vmatprep.subr.bf16.mxu0 0
      %6361 = vmatpush1.bf16.msra.mxu0 %v354
      %6362 = vmatprep.subr.bf16.mxu0 0
      %6363 = vmatpush1.bf16.msra.mxu0 0
      %6364 = vmatprep.subr.bf16.mxu0 0
      %6365 = vmatpush1.bf16.msra.mxu0 0
      %6366 = vmatprep.subr.bf16.mxu0 0
      %6367 = vmatpush1.bf16.msra.mxu0 0
      %6368 = vmatprep.subr.bf16.mxu0 0
      %6369 = vmatpush1.bf16.msra.mxu0 0
      %6370 = vmatprep.subr.bf16.mxu0 0
      %6371 = vmatpush1.bf16.msra.mxu0 0
      %6372 = vmatprep.subr.bf16.mxu0 0
      %6373 = vmatpush1.bf16.msra.mxu0 0
      %6374 = vmatprep.subr.bf16.mxu0 0
      %6375 = vmatpush1.bf16.msra.mxu0 0
      %6376 = vmatprep.subr.bf16.mxu0 0
      %6377 = vmatpush1.bf16.msra.mxu0 0
      %6378 = vmatprep.subr.bf16.mxu0 0
      %6379 = vmatpush1.bf16.msra.mxu0 0
      %6380 = vmatprep.subr.bf16.mxu0 0
      %6381 = vmatpush1.bf16.msra.mxu0 0
      %6382 = vmatprep.subr.bf16.mxu0 0
      %6383 = vmatpush1.bf16.msra.mxu0 0
      %6384 = vmatprep.subr.bf16.mxu0 0
      %6385 = vmatpush1.bf16.msra.mxu0 0
      %6386 = vmatprep.subr.bf16.mxu0 0
      %6387 = vmatpush1.bf16.msra.mxu0 0
      %6388 = vmatprep.subr.bf16.mxu0 0
      %6389 = vmatpush1.bf16.msra.mxu0 0
      %6390 = vmatprep.subr.bf16.mxu0 0
      %6391 = vmatpush1.bf16.msra.mxu0 0
      %6392 = vmatprep.mubr.bf16.mxu0 0
      %6393 = vmatmul.mubr.bf16.gmra.mrb[0].mxu0 %v6358
      %v6394 = vpop.f32.mrb[0].mxu0
      %v6395 = vadd.f32 0.0, %v6394
      %v6396 = vpop.f32.mrb[0].mxu0
      %v6397 = vpop.f32.mrb[0].mxu0
      %v6398 = vadd.f32 0.0, %v6397
      %v6399 = vpop.f32.mrb[0].mxu0
      %6400 = vdwg.mxu0
      %v6401 = vadd.f32 %v6352, %v6395
      %v6402 = vadd.f32 %v6353, %v6398
      %v6403 = vld [vmem:[%s6041 + $0x1] sm:$0xff]
      %v6404 = vld [vmem:[%s6041 + $0x9] sm:$0x3f]
      %v6405 = vpack.c.bf16 %v6404, %v6403
      %v6407 = vsel %vm194, %v6405, 0
      %6409 = vmatprep.subr.bf16.mxu0 0
      %6410 = vmatpush1.bf16.msra.mxu0 %v406
      %6411 = vmatprep.subr.bf16.mxu0 0
      %6412 = vmatpush1.bf16.msra.mxu0 0
      %6413 = vmatprep.subr.bf16.mxu0 0
      %6414 = vmatpush1.bf16.msra.mxu0 0
      %6415 = vmatprep.subr.bf16.mxu0 0
      %6416 = vmatpush1.bf16.msra.mxu0 0
      %6417 = vmatprep.subr.bf16.mxu0 0
      %6418 = vmatpush1.bf16.msra.mxu0 0
      %6419 = vmatprep.subr.bf16.mxu0 0
      %6420 = vmatpush1.bf16.msra.mxu0 0
      %6421 = vmatprep.subr.bf16.mxu0 0
      %6422 = vmatpush1.bf16.msra.mxu0 0
      %6423 = vmatprep.subr.bf16.mxu0 0
      %6424 = vmatpush1.bf16.msra.mxu0 0
      %6425 = vmatprep.subr.bf16.mxu0 0
      %6426 = vmatpush1.bf16.msra.mxu0 0
      %6427 = vmatprep.subr.bf16.mxu0 0
      %6428 = vmatpush1.bf16.msra.mxu0 0
      %6429 = vmatprep.subr.bf16.mxu0 0
      %6430 = vmatpush1.bf16.msra.mxu0 0
      %6431 = vmatprep.subr.bf16.mxu0 0
      %6432 = vmatpush1.bf16.msra.mxu0 0
      %6433 = vmatprep.subr.bf16.mxu0 0
      %6434 = vmatpush1.bf16.msra.mxu0 0
      %6435 = vmatprep.subr.bf16.mxu0 0
      %6436 = vmatpush1.bf16.msra.mxu0 0
      %6437 = vmatprep.subr.bf16.mxu0 0
      %6438 = vmatpush1.bf16.msra.mxu0 0
      %6439 = vmatprep.subr.bf16.mxu0 0
      %6440 = vmatpush1.bf16.msra.mxu0 0
      %6441 = vmatprep.mubr.bf16.mxu0 0
      %6442 = vmatmul.mubr.bf16.gmra.mrb[0].mxu0 %v6407
      %v6443 = vpop.f32.mrb[0].mxu0
      %v6444 = vadd.f32 0.0, %v6443
      %v6445 = vpop.f32.mrb[0].mxu0
      %v6446 = vpop.f32.mrb[0].mxu0
      %v6447 = vadd.f32 0.0, %v6446
      %v6448 = vpop.f32.mrb[0].mxu0
      %6449 = vdwg.mxu0
      %v6450 = vadd.f32 %v6401, %v6444
      %v6451 = vadd.f32 %v6402, %v6447
      %v6452 = vld [vmem:[%s6041 + $0x2] sm:$0xff]
      %v6453 = vld [vmem:[%s6041 + $0xa] sm:$0x3f]
      %v6454 = vpack.c.bf16 %v6453, %v6452
      %v6456 = vsel %vm194, %v6454, 0
      %6458 = vmatprep.subr.bf16.mxu0 0
      %6459 = vmatpush1.bf16.msra.mxu0 %v462
      %6460 = vmatprep.subr.bf16.mxu0 0
      %6461 = vmatpush1.bf16.msra.mxu0 0
      %6462 = vmatprep.subr.bf16.mxu0 0
      %6463 = vmatpush1.bf16.msra.mxu0 0
      %6464 = vmatprep.subr.bf16.mxu0 0
      %6465 = vmatpush1.bf16.msra.mxu0 0
      %6466 = vmatprep.subr.bf16.mxu0 0
      %6467 = vmatpush1.bf16.msra.mxu0 0
      %6468 = vmatprep.subr.bf16.mxu0 0
      %6469 = vmatpush1.bf16.msra.mxu0 0
      %6470 = vmatprep.subr.bf16.mxu0 0
      %6471 = vmatpush1.bf16.msra.mxu0 0
      %6472 = vmatprep.subr.bf16.mxu0 0
      %6473 = vmatpush1.bf16.msra.mxu0 0
      %6474 = vmatprep.subr.bf16.mxu0 0
      %6475 = vmatpush1.bf16.msra.mxu0 0
      %6476 = vmatprep.subr.bf16.mxu0 0
      %6477 = vmatpush1.bf16.msra.mxu0 0
      %6478 = vmatprep.subr.bf16.mxu0 0
      %6479 = vmatpush1.bf16.msra.mxu0 0
      %6480 = vmatprep.subr.bf16.mxu0 0
      %6481 = vmatpush1.bf16.msra.mxu0 0
      %6482 = vmatprep.subr.bf16.mxu0 0
      %6483 = vmatpush1.bf16.msra.mxu0 0
      %6484 = vmatprep.subr.bf16.mxu0 0
      %6485 = vmatpush1.bf16.msra.mxu0 0
      %6486 = vmatprep.subr.bf16.mxu0 0
      %6487 = vmatpush1.bf16.msra.mxu0 0
      %6488 = vmatprep.subr.bf16.mxu0 0
      %6489 = vmatpush1.bf16.msra.mxu0 0
      %6490 = vmatprep.mubr.bf16.mxu0 0
      %6491 = vmatmul.mubr.bf16.gmra.mrb[0].mxu0 %v6456
      %v6492 = vpop.f32.mrb[0].mxu0
      %v6493 = vadd.f32 0.0, %v6492
      %v6494 = vpop.f32.mrb[0].mxu0
      %v6495 = vpop.f32.mrb[0].mxu0
      %v6496 = vadd.f32 0.0, %v6495
      %v6497 = vpop.f32.mrb[0].mxu0
      %6498 = vdwg.mxu0
      %v6499 = vadd.f32 %v6450, %v6493
      %v6500 = vadd.f32 %v6451, %v6496
      %s6501 = scalar_lea.vmem %s163, 240
      %v6502 = vld [vmem:[%s6501] sm:$0xff]
      %v6503 = vld [vmem:[%s6501 + $0x8] sm:$0x3f]
      %v6504 = vpack.c.bf16 %v6503, %v6502
      %v6506 = vsel %vm194, %v6504, 0
      %6508 = vmatprep.subr.bf16.mxu0 0
      %6509 = vmatpush1.bf16.msra.mxu0 %v515
      %6510 = vmatprep.subr.bf16.mxu0 0
      %6511 = vmatpush1.bf16.msra.mxu0 0
      %6512 = vmatprep.subr.bf16.mxu0 0
      %6513 = vmatpush1.bf16.msra.mxu0 0
      %6514 = vmatprep.subr.bf16.mxu0 0
      %6515 = vmatpush1.bf16.msra.mxu0 0
      %6516 = vmatprep.subr.bf16.mxu0 0
      %6517 = vmatpush1.bf16.msra.mxu0 0
      %6518 = vmatprep.subr.bf16.mxu0 0
      %6519 = vmatpush1.bf16.msra.mxu0 0
      %6520 = vmatprep.subr.bf16.mxu0 0
      %6521 = vmatpush1.bf16.msra.mxu0 0
      %6522 = vmatprep.subr.bf16.mxu0 0
      %6523 = vmatpush1.bf16.msra.mxu0 0
      %6524 = vmatprep.subr.bf16.mxu0 0
      %6525 = vmatpush1.bf16.msra.mxu0 0
      %6526 = vmatprep.subr.bf16.mxu0 0
      %6527 = vmatpush1.bf16.msra.mxu0 0
      %6528 = vmatprep.subr.bf16.mxu0 0
      %6529 = vmatpush1.bf16.msra.mxu0 0
      %6530 = vmatprep.subr.bf16.mxu0 0
      %6531 = vmatpush1.bf16.msra.mxu0 0
      %6532 = vmatprep.subr.bf16.mxu0 0
      %6533 = vmatpush1.bf16.msra.mxu0 0
      %6534 = vmatprep.subr.bf16.mxu0 0
      %6535 = vmatpush1.bf16.msra.mxu0 0
      %6536 = vmatprep.subr.bf16.mxu0 0
      %6537 = vmatpush1.bf16.msra.mxu0 0
      %6538 = vmatprep.subr.bf16.mxu0 0
      %6539 = vmatpush1.bf16.msra.mxu0 0
      %6540 = vmatprep.mubr.bf16.mxu0 0
      %6541 = vmatmul.mubr.bf16.gmra.mrb[0].mxu0 %v6506
      %v6542 = vpop.f32.mrb[0].mxu0
      %v6543 = vadd.f32 0.0, %v6542
      %v6544 = vpop.f32.mrb[0].mxu0
      %v6545 = vpop.f32.mrb[0].mxu0
      %v6546 = vadd.f32 0.0, %v6545
      %v6547 = vpop.f32.mrb[0].mxu0
      %6548 = vdwg.mxu0
      %v6549 = vadd.f32 %v6499, %v6543
      %v6550 = vadd.f32 %v6500, %v6546
      %v6551 = vld [vmem:[%s6501 + $0x1] sm:$0xff]
      %v6552 = vld [vmem:[%s6501 + $0x9] sm:$0x3f]
      %v6553 = vpack.c.bf16 %v6552, %v6551
      %v6555 = vsel %vm194, %v6553, 0
      %6557 = vmatprep.subr.bf16.mxu0 0
      %6558 = vmatpush1.bf16.msra.mxu0 %v571
      %6559 = vmatprep.subr.bf16.mxu0 0
      %6560 = vmatpush1.bf16.msra.mxu0 0
      %6561 = vmatprep.subr.bf16.mxu0 0
      %6562 = vmatpush1.bf16.msra.mxu0 0
      %6563 = vmatprep.subr.bf16.mxu0 0
      %6564 = vmatpush1.bf16.msra.mxu0 0
      %6565 = vmatprep.subr.bf16.mxu0 0
      %6566 = vmatpush1.bf16.msra.mxu0 0
      %6567 = vmatprep.subr.bf16.mxu0 0
      %6568 = vmatpush1.bf16.msra.mxu0 0
      %6569 = vmatprep.subr.bf16.mxu0 0
      %6570 = vmatpush1.bf16.msra.mxu0 0
      %6571 = vmatprep.subr.bf16.mxu0 0
      %6572 = vmatpush1.bf16.msra.mxu0 0
      %6573 = vmatprep.subr.bf16.mxu0 0
      %6574 = vmatpush1.bf16.msra.mxu0 0
      %6575 = vmatprep.subr.bf16.mxu0 0
      %6576 = vmatpush1.bf16.msra.mxu0 0
      %6577 = vmatprep.subr.bf16.mxu0 0
      %6578 = vmatpush1.bf16.msra.mxu0 0
      %6579 = vmatprep.subr.bf16.mxu0 0
      %6580 = vmatpush1.bf16.msra.mxu0 0
      %6581 = vmatprep.subr.bf16.mxu0 0
      %6582 = vmatpush1.bf16.msra.mxu0 0
      %6583 = vmatprep.subr.bf16.mxu0 0
      %6584 = vmatpush1.bf16.msra.mxu0 0
      %6585 = vmatprep.subr.bf16.mxu0 0
      %6586 = vmatpush1.bf16.msra.mxu0 0
      %6587 = vmatprep.subr.bf16.mxu0 0
      %6588 = vmatpush1.bf16.msra.mxu0 0
      %6589 = vmatprep.mubr.bf16.mxu0 0
      %6590 = vmatmul.mubr.bf16.gmra.mrb[0].mxu0 %v6555
      %v6591 = vpop.f32.mrb[0].mxu0
      %v6592 = vadd.f32 0.0, %v6591
      %v6593 = vpop.f32.mrb[0].mxu0
      %v6594 = vpop.f32.mrb[0].mxu0
      %v6595 = vadd.f32 0.0, %v6594
      %v6596 = vpop.f32.mrb[0].mxu0
      %6597 = vdwg.mxu0
      %v6598 = vadd.f32 %v6549, %v6592
      %v6599 = vadd.f32 %v6550, %v6595
      %v6600 = vld [vmem:[%s6501 + $0x2] sm:$0xff]
      %v6601 = vld [vmem:[%s6501 + $0xa] sm:$0x3f]
      %v6602 = vpack.c.bf16 %v6601, %v6600
      %v6604 = vsel %vm194, %v6602, 0
      %6606 = vmatprep.subr.bf16.mxu0 0
      %6607 = vmatpush1.bf16.msra.mxu0 %v623
      %6608 = vmatprep.subr.bf16.mxu0 0
      %6609 = vmatpush1.bf16.msra.mxu0 0
      %6610 = vmatprep.subr.bf16.mxu0 0
      %6611 = vmatpush1.bf16.msra.mxu0 0
      %6612 = vmatprep.subr.bf16.mxu0 0
      %6613 = vmatpush1.bf16.msra.mxu0 0
      %6614 = vmatprep.subr.bf16.mxu0 0
      %6615 = vmatpush1.bf16.msra.mxu0 0
      %6616 = vmatprep.subr.bf16.mxu0 0
      %6617 = vmatpush1.bf16.msra.mxu0 0
      %6618 = vmatprep.subr.bf16.mxu0 0
      %6619 = vmatpush1.bf16.msra.mxu0 0
      %6620 = vmatprep.subr.bf16.mxu0 0
      %6621 = vmatpush1.bf16.msra.mxu0 0
      %6622 = vmatprep.subr.bf16.mxu0 0
      %6623 = vmatpush1.bf16.msra.mxu0 0
      %6624 = vmatprep.subr.bf16.mxu0 0
      %6625 = vmatpush1.bf16.msra.mxu0 0
      %6626 = vmatprep.subr.bf16.mxu0 0
      %6627 = vmatpush1.bf16.msra.mxu0 0
      %6628 = vmatprep.subr.bf16.mxu0 0
      %6629 = vmatpush1.bf16.msra.mxu0 0
      %6630 = vmatprep.subr.bf16.mxu0 0
      %6631 = vmatpush1.bf16.msra.mxu0 0
      %6632 = vmatprep.subr.bf16.mxu0 0
      %6633 = vmatpush1.bf16.msra.mxu0 0
      %6634 = vmatprep.subr.bf16.mxu0 0
      %6635 = vmatpush1.bf16.msra.mxu0 0
      %6636 = vmatprep.subr.bf16.mxu0 0
      %6637 = vmatpush1.bf16.msra.mxu0 0
      %6638 = vmatprep.mubr.bf16.mxu0 0
      %6639 = vmatmul.mubr.bf16.gmra.mrb[0].mxu0 %v6604
      %v6640 = vpop.f32.mrb[0].mxu0
      %v6641 = vadd.f32 0.0, %v6640
      %v6642 = vpop.f32.mrb[0].mxu0
      %v6643 = vpop.f32.mrb[0].mxu0
      %v6644 = vadd.f32 0.0, %v6643
      %v6645 = vpop.f32.mrb[0].mxu0
      %6646 = vdwg.mxu0
      %v6647 = vadd.f32 %v6598, %v6641
      %v6648 = vadd.f32 %v6599, %v6644
      %6649 = vst [vmem:[%s168 + $0xb6] sm:$0xff] %v6647
      %6650 = vst [vmem:[%s168 + $0xbe] sm:$0x3f] %v6648
      %v6651 = vsel %vm670, %v6648, 0.0
      %v6652 = vadd.f32 %v6647, %v6651
      %v6653 = vrot.slane %v6652, 4
      %v6654 = vadd.f32 %v6652, %v6653
      %v6655 = vrot.slane %v6654, 2
      %v6656 = vadd.f32 %v6654, %v6655
      %v6657 = vrot.slane %v6656, 1
      %v6658 = vadd.f32 %v6656, %v6657
      %v6659 = vadd.f32 %v6199, %v6658
      %v6660 = vmul.f32 %v6647, %v6647
      %v6661 = vmul.f32 %v6648, %v6648
      %v6662 = vsel %vm670, %v6661, 0.0
      %v6663 = vadd.f32 %v6660, %v6662
      %v6664 = vrot.slane %v6663, 4
      %v6665 = vadd.f32 %v6663, %v6664
      %v6666 = vrot.slane %v6665, 2
      %v6667 = vadd.f32 %v6665, %v6666
      %v6668 = vrot.slane %v6667, 1
      %v6669 = vadd.f32 %v6667, %v6668
      %v6670 = vadd.f32 %v6210, %v6669
      %v6671 = vld [vmem:[%s3] sm:$0x3]
      %vm6672 = vcmask 1040384
      %v6673 = vsel %vm6672, %v6659, %v6670
      %v6674 = vadd.f32 %v6671, %v6673
      %6675 = vst [vmem:[%s3] sm:$0x3] %v6674
      %p6676 = scmp.lt.s32.totalorder %s15, 1
      %s6677 = scalar_select %p6676, %s15, 1
      %s6678 = smul.addr %s6677, 25
      %s6679 = smul.addr %s6678, 8
      %s6680 = scalar_lea.vmem %s2, %s6679
      // Predicated region
      $region33: #{conv_block_forward.2} parent=27 // pred_check
        %p6681 = pneg %p80
      $region34: #{conv_block_forward.2} parent=27 // pred_check_branch
        %6683 = sbr.rel (%p6681) target = $region36
      $region35: #{conv_block_forward.2} parent=27 // pred_region
        _
      $region36: #{conv_block_forward.2} parent=27 // pred_fallthru
        _
      // Predicated region
      $region37: #{conv_block_forward.2} parent=27 // pred_check
        %p6684 = pneg %p101
      $region38: #{conv_block_forward.2} parent=27 // pred_check_branch
        %6686 = sbr.rel (%p6684) target = $region40
      $region39: #{conv_block_forward.2} parent=27 // pred_region
        _
      $region40: #{conv_block_forward.2} parent=27 // pred_fallthru
        _
      // Predicated region
      $region41: #{conv_block_forward.2} parent=27 // pred_check
        %p6687 = pneg %p101
      $region42: #{conv_block_forward.2} parent=27 // pred_check_branch
        %6689 = sbr.rel (%p6687) target = $region44
      $region43: #{conv_block_forward.2} parent=27 // pred_region
        _
      $region44: #{conv_block_forward.2} parent=27 // pred_fallthru
        _
    $region28: #{conv_block_forward.2} parent=5 // pred_fallthru
      _
    %p6690 = scmp.le.s32.totalorder 2, %s10
    // Predicated region
    $region45: #{conv_block_forward.2} parent=5 // pred_check
      %p6691 = pneg %p6690
    $region46: #{conv_block_forward.2} parent=5 // pred_check_branch
      %6693 = sbr.rel (%p6691) target = $region48
    $region47: #{conv_block_forward.2} parent=5 // pred_region
      %s6694 = ssub.s32 %s10, 2
      // Predicated region
      $region49: #{conv_block_forward.2} parent=47 // pred_check
        %p6695 = pneg %p86
      $region50: #{conv_block_forward.2} parent=47 // pred_check_branch
        %6697 = sbr.rel (%p6695) target = $region52
      $region51: #{conv_block_forward.2} parent=47 // pred_region
        %p6698 = scmp.lt.s32.totalorder %s16, 1
        %s6699 = scalar_select %p6698, %s16, 1
        %s6700 = smul.addr %s6699, 25
        %s6701 = smul.addr %s6700, 8
        %s6702 = scalar_lea.vmem %s2, %s6701
      $region52: #{conv_block_forward.2} parent=47 // pred_fallthru
        _
    $region48: #{conv_block_forward.2} parent=5 // pred_fallthru
      _
  $region6: #{conv_block_forward.2} parent=0 // loop_footer
    %s14 = sadd.s32 1, %s10
  $region7: #{conv_block_forward.2} parent=0 // loop_footer_branch
    %9 = sbr.rel target = $region3
  $region8: #{conv_block_forward.2} parent=0 // loop_exit
    _

</llo_original>
